<compile_context>
chip_gen: v7x
topology: tpu7x:2x2x1
jax: 0.10.0
libtpu: 0.0.40
codegen_flags: <defaults>
</compile_context>

<pallas_src>
import functools
import math

import jax
import jax.numpy as jnp
from jax.experimental import pallas as pl
from jax.experimental.pallas import tpu as pltpu


def _round_up(x, m):
    return ((x + m - 1) // m) * m


@functools.lru_cache(maxsize=None)
def _big_vmem():
    """True on 128 MiB-VMEM chips (v5e/v6e); False / unknown -> conservative."""
    try:
        info = pltpu.get_tpu_info()
        vmem = getattr(info, "vmem_capacity_bytes", None)
        return bool(vmem is not None and vmem >= 96 * 1024 * 1024)
    except Exception:
        return False


def _default_tile_rows():
    return 1024 if _big_vmem() else 512


# ----------------------------------------------------------------------------
# Pallas kernels
# ----------------------------------------------------------------------------
def _mm_bias_kernel(x_ref, w_ref, b_ref, *rest, relu, residual, has_add):
    """One row-tile of y = x @ w + b (+ add) (+ x) (optionally ReLU)."""
    if has_add:
        a_ref, o_ref = rest
    else:
        (o_ref,) = rest
        a_ref = None
    acc = jnp.dot(x_ref[...], w_ref[...], preferred_element_type=jnp.float32)
    acc = acc + b_ref[...]
    if a_ref is not None:
        acc = acc + a_ref[...].astype(jnp.float32)
    if residual:
        acc = acc + x_ref[...].astype(jnp.float32)
    if relu:
        acc = jnp.maximum(acc, 0.0)
    o_ref[...] = acc.astype(o_ref.dtype)


def pallas_matmul_bias(x, w, b, *, relu=False, add=None, residual=False,
                       out_dtype=jnp.bfloat16, tile_rows=None):
    """y = x @ w + b (+add) (+x) with a Pallas TPU kernel.

    x:(R,K), w:(K,C), b:(C,), add:(R,C) optional. bf16 inputs, f32 accumulate.
    """
    R, K = x.shape
    K2, C = w.shape
    assert K == K2, (K, K2)
    if residual:
        assert K == C, (K, C)
    if tile_rows is None:
        tile_rows = _default_tile_rows()
    x = x.astype(jnp.bfloat16)
    w = w.astype(jnp.bfloat16)
    b2 = b.reshape(1, C).astype(jnp.float32)

    # Row tiling: bf16-native 16-row rounding for small R, a 2-way split for
    # medium R (>=2 parallel blocks keeps both v7x TensorCores busy), and
    # large VMEM-aware tiles otherwise.
    if R <= tile_rows:
        if R >= 256:
            tr = _round_up((R + 1) // 2, 128)
        else:
            tr = _round_up(max(R, 16), 16)
        Rp = _round_up(R, tr)
    else:
        tr = tile_rows
        Rp = _round_up(R, tr)
    if Rp != R:
        x = jnp.pad(x, ((0, Rp - R), (0, 0)))

    # TODO(synk): mark the grid-invariant w/b specs pipeline_mode=pl.Buffered(1)
    # once single-buffered invariant blocks are safe across jax versions.
    inputs = [x, w, b2]
    in_specs = [
        pl.BlockSpec((tr, K), lambda i: (i, 0)),
        pl.BlockSpec((K, C), lambda i: (0, 0)),
        pl.BlockSpec((1, C), lambda i: (0, 0)),
    ]
    has_add = add is not None
    if has_add:
        a = add.astype(jnp.bfloat16)
        if Rp != R:
            a = jnp.pad(a, ((0, Rp - R), (0, 0)))
        inputs.append(a)
        in_specs.append(pl.BlockSpec((tr, C), lambda i: (i, 0)))

    out = pl.pallas_call(
        functools.partial(_mm_bias_kernel, relu=relu, residual=residual,
                          has_add=has_add),
        out_shape=jax.ShapeDtypeStruct((Rp, C), out_dtype),
        grid_spec=pltpu.PrefetchScalarGridSpec(
            num_scalar_prefetch=0,
            grid=(Rp // tr,),
            in_specs=in_specs,
            out_specs=pl.BlockSpec((tr, C), lambda i: (i, 0)),
        ),
        compiler_params=pltpu.CompilerParams(
            dimension_semantics=("parallel",)),
    )(*inputs)
    return out if Rp == R else out[:R]


def _conv3x3_s2_kernel(x_ref, w_ref, b_ref, o_ref, *, ws, rows, relu):
    """3x3 stride-2 conv via space-to-depth 2x2 taps, one image per grid step.

    x_ref:(1, Rp, 4C) flattened s2d input, w_ref:(4, 4C, Cout) per-tap weights,
    b_ref:(1, Cout) f32, o_ref:(1, oh*ws, Cout). Output column ws-1 of each
    row-block is garbage and is stripped by the wrapper.
    """
    x = x_ref[0]                                       # (Rp, 4C) bf16
    acc = None
    t = 0
    for di in (0, 1):
        for dj in (0, 1):
            start = di * ws + dj
            xt = x[start:start + rows, :]              # contiguous row slice
            part = jnp.dot(xt, w_ref[t], preferred_element_type=jnp.float32)
            acc = part if acc is None else acc + part
            t += 1
    acc = acc + b_ref[...]
    if relu:
        acc = jnp.maximum(acc, 0.0)
    o_ref[0] = acc.astype(o_ref.dtype)


def conv3x3_s2(x, w_taps, b, *, relu=True):
    """3x3 conv, stride 2, padding 1 (PyTorch semantics). x NHWC bf16.

    The padded input is space-to-depth'ed once in XLA (same bytes as the
    input, unlike the old 2.25x im2col patches) and the 9 taps are folded
    into 4 in-kernel matmuls over contiguous row slices.
    # TODO(synk): row-band the grid (Element-offset or manual DMA) for large
    # feature maps; whole-image blocks are fine at these resolutions.
    """
    B, H, W, C = x.shape
    oh, ow = H // 2, W // 2
    hs, ws = oh + 1, ow + 1
    cout = w_taps.shape[-1]
    x = x.astype(jnp.bfloat16)

    xp = jnp.pad(x, ((0, 0), (1, 1), (1, 1), (0, 0)))          # (B, H+2, W+2, C)
    xs = xp.reshape(B, hs, 2, ws, 2, C)
    xs = jnp.transpose(xs, (0, 1, 3, 2, 4, 5)).reshape(B, hs * ws, 4 * C)
    rows = oh * ws
    need = ws + 1 + rows                                       # max slice end
    rp = _round_up(max(hs * ws, need), 8)
    if rp != hs * ws:
        xs = jnp.pad(xs, ((0, 0), (0, rp - hs * ws), (0, 0)))

    y = pl.pallas_call(
        functools.partial(_conv3x3_s2_kernel, ws=ws, rows=rows, relu=relu),
        out_shape=jax.ShapeDtypeStruct((B, rows, cout), jnp.bfloat16),
        grid_spec=pltpu.PrefetchScalarGridSpec(
            num_scalar_prefetch=0,
            grid=(B,),
            in_specs=[
                pl.BlockSpec((1, rp, 4 * C), lambda n: (n, 0, 0)),
                pl.BlockSpec((4, 4 * C, cout), lambda n: (0, 0, 0)),
                pl.BlockSpec((1, cout), lambda n: (0, 0)),
            ],
            out_specs=pl.BlockSpec((1, rows, cout), lambda n: (n, 0, 0)),
        ),
        compiler_params=pltpu.CompilerParams(
            dimension_semantics=("parallel",)),
    )(xs, w_taps.astype(jnp.bfloat16), b.reshape(1, cout).astype(jnp.float32))

    # strip the wrap-around column produced by the flattened-row trick
    return y.reshape(B, oh, ws, cout)[:, :, :ow, :]


def _mem_attn_kernel(q_ref, kv_ref, wo_ref, o_ref, m_sc, l_sc, acc_sc,
                     *, dk_pad, m_actual, mask, exact_recip):
    """Flash-style space-time memory read, fused with the output projection.

    q:(1,tn,dk) queries (softmax scale pre-baked), kv:(1,tm,dk+dv) fused K|V,
    wo:(dv,C) read->C projection applied on the last M tile. Online softmax
    over M with f32 m/l/acc scratch; neither P nor the read hit HBM.
    """
    j = pl.program_id(2)
    neg = -1e30

    @pl.when(j == 0)
    def _():
        m_sc[...] = jnp.full(m_sc.shape, neg, jnp.float32)
        l_sc[...] = jnp.zeros(l_sc.shape, jnp.float32)
        acc_sc[...] = jnp.zeros(acc_sc.shape, jnp.float32)

    q = q_ref[0]                                       # (tn, dk) bf16
    kv = kv_ref[0]                                     # (tm, dk+dv) bf16
    k = kv[:, :dk_pad]
    v = kv[:, dk_pad:]
    s = jnp.dot(q, k.T, preferred_element_type=jnp.float32)        # (tn, tm)
    if mask:
        col = j * s.shape[1] + jax.lax.broadcasted_iota(jnp.int32, s.shape, 1)
        s = jnp.where(col < m_actual, s, neg)          # mask padded memory slots

    m_new = jnp.maximum(m_sc[...], jnp.max(s, axis=-1, keepdims=True))
    alpha = jnp.exp(m_sc[...] - m_new)
    p = jnp.exp(s - m_new)
    l_sc[...] = alpha * l_sc[...] + jnp.sum(p, axis=-1, keepdims=True)
    acc_sc[...] = alpha * acc_sc[...] + jnp.dot(
        p.astype(v.dtype), v, preferred_element_type=jnp.float32)
    m_sc[...] = m_new

    @pl.when(j == pl.num_programs(2) - 1)
    def _():
        if exact_recip:
            read = acc_sc[...] / l_sc[...]
        else:
            read = acc_sc[...] * pl.reciprocal(l_sc[...], approx=True)
        o_ref[0] = jnp.dot(read.astype(wo_ref.dtype), wo_ref[...],
                           preferred_element_type=jnp.float32).astype(o_ref.dtype)


def pallas_memory_attention(q, kv, w_or, *, dk_pad, exact_recip=False):
    """q:(B,N,dk), kv:(B,M,dk+dv), w_or:(dv,C) -> projected read:(B,N,C) bf16."""
    B, N, dkp = q.shape
    M = kv.shape[1]
    dvp = kv.shape[2] - dkp
    C = w_or.shape[1]

    tn = min(512, _round_up(max(N, 16), 16))
    Np = _round_up(N, tn)
    tile_cap = 1024 if _big_vmem() else 512
    tile_m = min(tile_cap, _round_up(M, 128))
    Mp = _round_up(M, tile_m)
    if Np != N:
        q = jnp.pad(q, ((0, 0), (0, Np - N), (0, 0)))
    if Mp != M:
        kv = jnp.pad(kv, ((0, 0), (0, Mp - M), (0, 0)))

    out = pl.pallas_call(
        functools.partial(_mem_attn_kernel, dk_pad=dkp, m_actual=M,
                          mask=(Mp != M), exact_recip=exact_recip),
        out_shape=jax.ShapeDtypeStruct((B, Np, C), jnp.bfloat16),
        grid_spec=pltpu.PrefetchScalarGridSpec(
            num_scalar_prefetch=0,
            grid=(B, Np // tn, Mp // tile_m),
            in_specs=[
                pl.BlockSpec((1, tn, dkp), lambda b, i, j: (b, i, 0)),
                pl.BlockSpec((1, tile_m, dkp + dvp), lambda b, i, j: (b, j, 0)),
                pl.BlockSpec((dvp, C), lambda b, i, j: (0, 0)),
            ],
            out_specs=pl.BlockSpec((1, tn, C), lambda b, i, j: (b, i, 0)),
            scratch_shapes=[
                pltpu.VMEM((tn, 1), jnp.float32),
                pltpu.VMEM((tn, 1), jnp.float32),
                pltpu.VMEM((tn, dvp), jnp.float32),
            ],
        ),
        compiler_params=pltpu.CompilerParams(
            dimension_semantics=("parallel", "parallel", "arbitrary")),
    )(q.astype(jnp.bfloat16), kv.astype(jnp.bfloat16), w_or.astype(jnp.bfloat16))
    return out[:, :N, :] if Np != N else out


# ----------------------------------------------------------------------------
# Conv1x1 helper (matmul in Pallas)
# ----------------------------------------------------------------------------
def conv1x1(x, w, b, *, relu=False, add=None, out_dtype=jnp.bfloat16):
    """1x1 conv as a Pallas matmul (optionally fused skip-add + ReLU). x NHWC."""
    B, H, W, C = x.shape
    a = None if add is None else add.reshape(B * H * W, add.shape[-1])
    y = pallas_matmul_bias(x.reshape(B * H * W, C), w, b, relu=relu, add=a,
                           out_dtype=out_dtype)
    return y.reshape(B, H, W, w.shape[1])


# ----------------------------------------------------------------------------
# SPNet sub-modules
# ----------------------------------------------------------------------------
def encoder_forward(params, frames):
    """MobileEncoder (simplified): 3 stride-2 stages -> [32, 96(pad128), 256]."""
    f0 = conv3x3_s2(frames, params["enc0_wt"], params["enc0_b"], relu=True)
    f1 = conv3x3_s2(f0, params["enc1_wt"], params["enc1_b"], relu=True)
    f2 = conv3x3_s2(f1, params["enc2_wt"], params["enc2_b"], relu=True)
    return [f0, f1, f2]


def memory_forward(params, global_ctx, current_ctx):
    """Memory(c): non-local read of (T-1) global frames by the current frame."""
    B, Tm, H, W, C = global_ctx.shape
    N, M = H * W, Tm * H * W
    dk_p = params["mem_q_w"].shape[1]

    g_flat = global_ctx.reshape(B * M, C)
    c_flat = current_ctx.reshape(B * N, C)

    # Q (softmax scale baked into the weight) and fused K|V projections.
    q = pallas_matmul_bias(c_flat, params["mem_q_w"], params["mem_q_b"]
                           ).reshape(B, N, dk_p)
    kv = pallas_matmul_bias(g_flat, params["mem_kv_w"], params["mem_kv_b"]
                            ).reshape(B, M, params["mem_kv_w"].shape[1])

    # Attention + read->C projection fused into one kernel (no read/tmp in HBM).
    proj = pallas_memory_attention(q, kv, params["mem_or_w"], dk_pad=dk_p)

    # st = c + [read | c] @ Wo + b, with read@W_or already done in-kernel.
    st = pallas_matmul_bias(c_flat, params["mem_oc_w"], params["mem_o_b"],
                            add=proj.reshape(B * N, C), residual=True)
    return st.reshape(B, H, W, C)


def decoder_forward(params, feats, out_hw, num_classes):
    """RefineDecoder (simplified FPN-style refine + classifier)."""
    # TODO(synk): original RefineDecoder source unavailable; FPN-style refinement used.
    f0, f1, f2 = feats
    B = f0.shape[0]
    p2 = conv1x1(f2, params["dec_p2_w"], params["dec_p2_b"])
    # TODO(synk): bilinear upsample kept in XLA; fusing it into the conv1x1 add
    # path (gather + interpolate in-kernel) is the remaining decoder HBM saving.
    p2u = jax.image.resize(p2, (B,) + f1.shape[1:3] + (p2.shape[-1],),
                           method="bilinear")
    p1 = conv1x1(f1, params["dec_p1_w"], params["dec_p1_b"],
                 add=p2u, relu=True)                   # fused conv+skip+ReLU
    p1u = jax.image.resize(p1, (B,) + f0.shape[1:3] + (p1.shape[-1],),
                           method="bilinear")
    p0 = conv1x1(f0, params["dec_p0_w"], params["dec_p0_b"],
                 add=p1u, relu=True)
    logits = conv1x1(p0, params["dec_cls_w"], params["dec_cls_b"],
                     out_dtype=jnp.float32)
    logits = logits[..., :num_classes]                 # strip lane padding
    logits = jax.image.resize(
        logits, (B,) + tuple(out_hw) + (num_classes,), method="bilinear")
    return jnp.transpose(logits, (0, 3, 1, 2))         # NCHW like PyTorch


# ----------------------------------------------------------------------------
# SPNet forward
# ----------------------------------------------------------------------------
def spnet_forward(params, x, *, global_n=2, spatial_layer=-1, num_classes=5):
    """x: (B, T, 3, H, W) float32 (PyTorch layout). Returns (B, K, H, W) f32."""
    B, T, Cin, H, W = x.shape
    # Fold the T-frame loop into the batch: one encoder pass over B*T frames.
    frames = jnp.transpose(x.reshape(B * T, Cin, H, W), (0, 2, 3, 1))
    frames = frames.astype(jnp.bfloat16)
    f0, f1, f2 = encoder_forward(params, frames)

    def last_frame(f):
        return f.reshape((B, T) + f.shape[1:])[:, -1]

    feats = [last_frame(f0), last_frame(f1), last_frame(f2)]
    sel = spatial_layer % 3                            # -1 -> 2
    fsel = (f0, f1, f2)[sel]
    seq = fsel.reshape((B, T) + fsel.shape[1:])        # (B, T, h, w, c)
    global_context = seq[:, :-1]
    current_context = seq[:, -1]
    if global_n > 0 and T > 1:
        st_outputs = memory_forward(params, global_context, current_context)
    else:
        st_outputs = current_context
    feats[sel] = st_outputs
    return decoder_forward(params, feats, (H, W), num_classes)


# ----------------------------------------------------------------------------
# Deterministic parameter init (normal(0, 0.01), zero bias).
# Narrow output-channel dims (memory dk, enc1 96, decoder 96, classifier K) are
# zero-padded to 128 lanes so Pallas stores are lane-dense; padded channels
# stay exactly zero end-to-end.
# ----------------------------------------------------------------------------
def _pad_to(a, shape):
    pads = [(0, t - s) for s, t in zip(a.shape, shape)]
    return jnp.pad(a, pads)


def _make_tap_weights(w33, cout_pad):
    """(3,3,Cin,Cout) conv weight -> (4, 4*Cin, Cout_pad) space-to-depth taps.

    Phase order along the 4*Cin axis is (row_phase, col_phase) =
    (0,0),(0,1),(1,0),(1,1); taps that fall outside the 3x3 window are zero.
    """
    cin, cout = w33.shape[2], w33.shape[3]
    zero = jnp.zeros((cin, cout), w33.dtype)
    taps = []
    for di in (0, 1):
        for dj in (0, 1):
            blocks = []
            for pr in (0, 1):
                for pc in (0, 1):
                    dy, dx = 2 * di + pr, 2 * dj + pc
                    blocks.append(w33[dy, dx] if (dy < 3 and dx < 3) else zero)
            taps.append(jnp.concatenate(blocks, axis=0))       # (4*cin, cout)
    wt = jnp.stack(taps, axis=0)                               # (4, 4*cin, cout)
    if cout_pad != cout:
        wt = jnp.pad(wt, ((0, 0), (0, 0), (0, cout_pad - cout)))
    return wt


def init_params(key, num_classes=5, c=256):
    dk, dv = c // 8, c // 2
    dk_p = _round_up(dk, 128)
    dv_p = _round_up(dv, 128)
    dd = 96                                            # decoder width (logical)
    dd_p = _round_up(dd, 128)
    nc_p = _round_up(num_classes, 128)
    qscale = 1.0 / math.sqrt(dk)                       # softmax scale (baked in)

    keys = iter(jax.random.split(key, 16))

    def normal(shape):
        return 0.01 * jax.random.normal(next(keys), shape, jnp.float32)

    params = {}

    # Encoder: (cin_logical, cin_padded, cout_logical, cout_padded).
    # enc1 output padded 96->128 for lane-dense stores; the padded channels are
    # exactly zero (zero weight cols + zero bias + ReLU), so enc2 / dec_p1 see
    # a logically 96-channel feature.
    enc_cfg = [(3, 3, 32, 32), (32, 32, 96, 128), (96, 128, c, c)]
    for idx, (cin, cin_p, cout, cout_p) in enumerate(enc_cfg):
        w33 = normal((3, 3, cin, cout))
        if cin_p != cin:
            w33 = jnp.pad(w33, ((0, 0), (0, 0), (0, cin_p - cin), (0, 0)))
        params[f"enc{idx}_wt"] = _make_tap_weights(w33, cout_p).astype(jnp.bfloat16)
        params[f"enc{idx}_b"] = jnp.zeros((cout_p,), jnp.float32)

    # Memory head.
    wq = _pad_to(normal((c, dk)), (c, dk_p)) * qscale
    params["mem_q_w"] = wq.astype(jnp.bfloat16)
    params["mem_q_b"] = jnp.zeros((dk_p,), jnp.float32)
    wk = _pad_to(normal((c, dk)), (c, dk_p))
    wv = _pad_to(normal((c, dv)), (c, dv_p))
    params["mem_kv_w"] = jnp.concatenate([wk, wv], axis=1).astype(jnp.bfloat16)
    params["mem_kv_b"] = jnp.zeros((dk_p + dv_p,), jnp.float32)
    params["mem_or_w"] = _pad_to(normal((dv, c)), (dv_p, c)).astype(jnp.bfloat16)
    params["mem_oc_w"] = normal((c, c)).astype(jnp.bfloat16)
    params["mem_o_b"] = jnp.zeros((c,), jnp.float32)

    # Decoder.
    params["dec_p2_w"] = _pad_to(normal((c, dd)), (c, dd_p)).astype(jnp.bfloat16)
    params["dec_p1_w"] = _pad_to(normal((dd, dd)), (128, dd_p)).astype(jnp.bfloat16)
    params["dec_p0_w"] = _pad_to(normal((32, dd)), (32, dd_p)).astype(jnp.bfloat16)
    params["dec_cls_w"] = _pad_to(normal((dd, num_classes)),
                                  (dd_p, nc_p)).astype(jnp.bfloat16)
    for nm in ("dec_p2", "dec_p1", "dec_p0"):
        params[nm + "_b"] = jnp.zeros((dd_p,), jnp.float32)
    params["dec_cls_b"] = jnp.zeros((nc_p,), jnp.float32)
    return params


# ----------------------------------------------------------------------------
if __name__ == "__main__":
    num_classes, global_n, spatial_layer = 5, 2, -1
    B, T, H, W = 2, 3, 32, 32

    root = jax.random.PRNGKey(0)
    kx, kp = jax.random.split(root)
    x = jax.random.normal(kx, (B, T, 3, H, W), jnp.float32)
    params = init_params(kp, num_classes=num_classes,
                         c=256 if spatial_layer == -1 else 96)

    fwd = jax.jit(functools.partial(spnet_forward,
                                    global_n=global_n,
                                    spatial_layer=spatial_layer,
                                    num_classes=num_classes))
    out = fwd(params, x)
    jax.block_until_ready(out)
    assert out.shape == (B, num_classes, H, W), out.shape
    assert bool(jnp.all(jnp.isfinite(out)))
    print("KERNEL_OK")
</pallas_src>

<mosaic_0001>
module attributes {stable_mosaic.version = 11 : i64} {
  func.func @_conv3x3_s2_kernel(%arg0: i32, %arg1: memref<1x296x12xbf16, #tpu.memory_space<vmem>>, %arg2: memref<4x12x32xbf16, #tpu.memory_space<vmem>>, %arg3: memref<1x32xf32, #tpu.memory_space<vmem>>, %arg4: memref<1x272x32xbf16, #tpu.memory_space<vmem>>) attributes {dimension_semantics = [#tpu.dimension_semantics<parallel>], iteration_bounds = array<i64: 6>, scalar_prefetch = 0 : i64, scratch_operands = 0 : i64, tpu.core_type = #tpu.core_type<tc>, window_params = [{transform_indices = @transform_0, window_bounds = array<i64: 1, 296, 12>}, {pipeline_mode = #tpu.pipeline_mode<synchronous>, transform_indices = @transform_1, window_bounds = array<i64: 4, 12, 32>}, {pipeline_mode = #tpu.pipeline_mode<synchronous>, transform_indices = @transform_2, window_bounds = array<i64: 1, 32>}, {transform_indices = @transform_3, window_bounds = array<i64: 1, 272, 32>}]} {
    %c0 = arith.constant 0 : index
    %c0_0 = arith.constant 0 : index
    %c0_1 = arith.constant 0 : index
    %0 = vector.load %arg1[%c0, %c0_0, %c0_1] : memref<1x296x12xbf16, #tpu.memory_space<vmem>>, vector<1x296x12xbf16>
    %1 = vector.shape_cast %0 : vector<1x296x12xbf16> to vector<296x12xbf16>
    %2 = vector.extract_strided_slice %1 {offsets = [0, 0], sizes = [272, 12], strides = [1, 1]} : vector<296x12xbf16> to vector<272x12xbf16>
    %c0_2 = arith.constant 0 : index
    %c0_3 = arith.constant 0 : index
    %c0_4 = arith.constant 0 : index
    %3 = vector.load %arg2[%c0_2, %c0_3, %c0_4] : memref<4x12x32xbf16, #tpu.memory_space<vmem>>, vector<1x12x32xbf16>
    %4 = vector.shape_cast %3 : vector<1x12x32xbf16> to vector<12x32xbf16>
    %cst = arith.constant dense<0.000000e+00> : vector<272x32xf32>
    %5 = tpu.matmul %2, %4, %cst {dimension_numbers = #tpu.dot_dimension_numbers<[1], [0], [0], [1], [0, 0, 1, 1], [], []>} : vector<272x12xbf16>, vector<12x32xbf16>, vector<272x32xf32> -> vector<272x32xf32>
    %6 = vector.extract_strided_slice %1 {offsets = [1, 0], sizes = [272, 12], strides = [1, 1]} : vector<296x12xbf16> to vector<272x12xbf16>
    %c1 = arith.constant 1 : index
    %c0_5 = arith.constant 0 : index
    %c0_6 = arith.constant 0 : index
    %7 = vector.load %arg2[%c1, %c0_5, %c0_6] : memref<4x12x32xbf16, #tpu.memory_space<vmem>>, vector<1x12x32xbf16>
    %8 = vector.shape_cast %7 : vector<1x12x32xbf16> to vector<12x32xbf16>
    %cst_7 = arith.constant dense<0.000000e+00> : vector<272x32xf32>
    %9 = tpu.matmul %6, %8, %cst_7 {dimension_numbers = #tpu.dot_dimension_numbers<[1], [0], [0], [1], [0, 0, 1, 1], [], []>} : vector<272x12xbf16>, vector<12x32xbf16>, vector<272x32xf32> -> vector<272x32xf32>
    %10 = arith.addf %5, %9 : vector<272x32xf32>
    %11 = vector.extract_strided_slice %1 {offsets = [17, 0], sizes = [272, 12], strides = [1, 1]} : vector<296x12xbf16> to vector<272x12xbf16>
    %c2 = arith.constant 2 : index
    %c0_8 = arith.constant 0 : index
    %c0_9 = arith.constant 0 : index
    %12 = vector.load %arg2[%c2, %c0_8, %c0_9] : memref<4x12x32xbf16, #tpu.memory_space<vmem>>, vector<1x12x32xbf16>
    %13 = vector.shape_cast %12 : vector<1x12x32xbf16> to vector<12x32xbf16>
    %cst_10 = arith.constant dense<0.000000e+00> : vector<272x32xf32>
    %14 = tpu.matmul %11, %13, %cst_10 {dimension_numbers = #tpu.dot_dimension_numbers<[1], [0], [0], [1], [0, 0, 1, 1], [], []>} : vector<272x12xbf16>, vector<12x32xbf16>, vector<272x32xf32> -> vector<272x32xf32>
    %15 = arith.addf %10, %14 : vector<272x32xf32>
    %16 = vector.extract_strided_slice %1 {offsets = [18, 0], sizes = [272, 12], strides = [1, 1]} : vector<296x12xbf16> to vector<272x12xbf16>
    %c3 = arith.constant 3 : index
    %c0_11 = arith.constant 0 : index
    %c0_12 = arith.constant 0 : index
    %17 = vector.load %arg2[%c3, %c0_11, %c0_12] : memref<4x12x32xbf16, #tpu.memory_space<vmem>>, vector<1x12x32xbf16>
    %18 = vector.shape_cast %17 : vector<1x12x32xbf16> to vector<12x32xbf16>
    %cst_13 = arith.constant dense<0.000000e+00> : vector<272x32xf32>
    %19 = tpu.matmul %16, %18, %cst_13 {dimension_numbers = #tpu.dot_dimension_numbers<[1], [0], [0], [1], [0, 0, 1, 1], [], []>} : vector<272x12xbf16>, vector<12x32xbf16>, vector<272x32xf32> -> vector<272x32xf32>
    %20 = arith.addf %15, %19 : vector<272x32xf32>
    %c0_14 = arith.constant 0 : index
    %c0_15 = arith.constant 0 : index
    %21 = vector.load %arg3[%c0_14, %c0_15] : memref<1x32xf32, #tpu.memory_space<vmem>>, vector<1x32xf32>
    %22 = vector.broadcast %21 : vector<1x32xf32> to vector<272x32xf32>
    %23 = arith.addf %20, %22 : vector<272x32xf32>
    %cst_16 = arith.constant 0.000000e+00 : f32
    %24 = vector.broadcast %cst_16 : f32 to vector<272x32xf32>
    %25 = arith.maximumf %23, %24 : vector<272x32xf32>
    %26 = arith.truncf %25 : vector<272x32xf32> to vector<272x32xbf16>
    %c0_17 = arith.constant 0 : index
    %c0_18 = arith.constant 0 : index
    %c0_19 = arith.constant 0 : index
    %27 = vector.load %arg4[%c0_17, %c0_18, %c0_19] : memref<1x272x32xbf16, #tpu.memory_space<vmem>>, vector<1x272x32xbf16>
    %28 = vector.shape_cast %27 : vector<1x272x32xbf16> to vector<272x32xbf16>
    %29 = vector.shape_cast %26 : vector<272x32xbf16> to vector<1x272x32xbf16>
    tpu.vector_store %arg4[%c0_17, %c0_18, %c0_19], %29 {strides = array<i32>} : memref<1x272x32xbf16, #tpu.memory_space<vmem>>, vector<1x272x32xbf16>,
    return
  }
  func.func @transform_0(%arg0: i32) -> (i32, i32, i32) {
    %c0_i32 = arith.constant 0 : i32
    %c0_i32_0 = arith.constant 0 : i32
    %c0_i32_1 = arith.constant 0 : i32
    return %arg0, %c0_i32, %c0_i32_0 : i32, i32, i32
  }
  func.func @transform_1(%arg0: i32) -> (i32, i32, i32) {
    %c0_i32 = arith.constant 0 : i32
    %c0_i32_0 = arith.constant 0 : i32
    %c0_i32_1 = arith.constant 0 : i32
    %c0_i32_2 = arith.constant 0 : i32
    return %c0_i32, %c0_i32_0, %c0_i32_1 : i32, i32, i32
  }
  func.func @transform_2(%arg0: i32) -> (i32, i32) {
    %c0_i32 = arith.constant 0 : i32
    %c0_i32_0 = arith.constant 0 : i32
    %c0_i32_1 = arith.constant 0 : i32
    return %c0_i32, %c0_i32_0 : i32, i32
  }
  func.func @transform_3(%arg0: i32) -> (i32, i32, i32) {
    %c0_i32 = arith.constant 0 : i32
    %c0_i32_0 = arith.constant 0 : i32
    %c0_i32_1 = arith.constant 0 : i32
    return %arg0, %c0_i32, %c0_i32_0 : i32, i32, i32
  }
}

module attributes {stable_mosaic.version = 11 : i64} {
  func.func @_conv3x3_s2_kernel(%arg0: i32, %arg1: memref<1x88x128xbf16, #tpu.memory_space<vmem>>, %arg2: memref<4x128x128xbf16, #tpu.memory_space<vmem>>, %arg3: memref<1x128xf32, #tpu.memory_space<vmem>>, %arg4: memref<1x72x128xbf16, #tpu.memory_space<vmem>>) attributes {dimension_semantics = [#tpu.dimension_semantics<parallel>], iteration_bounds = array<i64: 6>, scalar_prefetch = 0 : i64, scratch_operands = 0 : i64, tpu.core_type = #tpu.core_type<tc>, window_params = [{transform_indices = @transform_0, window_bounds = array<i64: 1, 88, 128>}, {pipeline_mode = #tpu.pipeline_mode<synchronous>, transform_indices = @transform_1, window_bounds = array<i64: 4, 128, 128>}, {pipeline_mode = #tpu.pipeline_mode<synchronous>, transform_indices = @transform_2, window_bounds = array<i64: 1, 128>}, {transform_indices = @transform_3, window_bounds = array<i64: 1, 72, 128>}]} {
    %c0 = arith.constant 0 : index
    %c0_0 = arith.constant 0 : index
    %c0_1 = arith.constant 0 : index
    %0 = vector.load %arg1[%c0, %c0_0, %c0_1] : memref<1x88x128xbf16, #tpu.memory_space<vmem>>, vector<1x88x128xbf16>
    %1 = vector.shape_cast %0 : vector<1x88x128xbf16> to vector<88x128xbf16>
    %2 = vector.extract_strided_slice %1 {offsets = [0, 0], sizes = [72, 128], strides = [1, 1]} : vector<88x128xbf16> to vector<72x128xbf16>
    %c0_2 = arith.constant 0 : index
    %c0_3 = arith.constant 0 : index
    %c0_4 = arith.constant 0 : index
    %3 = vector.load %arg2[%c0_2, %c0_3, %c0_4] : memref<4x128x128xbf16, #tpu.memory_space<vmem>>, vector<1x128x128xbf16>
    %4 = vector.shape_cast %3 : vector<1x128x128xbf16> to vector<128x128xbf16>
    %cst = arith.constant dense<0.000000e+00> : vector<72x128xf32>
    %5 = tpu.matmul %2, %4, %cst {dimension_numbers = #tpu.dot_dimension_numbers<[1], [0], [0], [1], [0, 0, 1, 1], [], []>} : vector<72x128xbf16>, vector<128x128xbf16>, vector<72x128xf32> -> vector<72x128xf32>
    %6 = vector.extract_strided_slice %1 {offsets = [1, 0], sizes = [72, 128], strides = [1, 1]} : vector<88x128xbf16> to vector<72x128xbf16>
    %c1 = arith.constant 1 : index
    %c0_5 = arith.constant 0 : index
    %c0_6 = arith.constant 0 : index
    %7 = vector.load %arg2[%c1, %c0_5, %c0_6] : memref<4x128x128xbf16, #tpu.memory_space<vmem>>, vector<1x128x128xbf16>
    %8 = vector.shape_cast %7 : vector<1x128x128xbf16> to vector<128x128xbf16>
    %cst_7 = arith.constant dense<0.000000e+00> : vector<72x128xf32>
    %9 = tpu.matmul %6, %8, %cst_7 {dimension_numbers = #tpu.dot_dimension_numbers<[1], [0], [0], [1], [0, 0, 1, 1], [], []>} : vector<72x128xbf16>, vector<128x128xbf16>, vector<72x128xf32> -> vector<72x128xf32>
    %10 = arith.addf %5, %9 : vector<72x128xf32>
    %11 = vector.extract_strided_slice %1 {offsets = [9, 0], sizes = [72, 128], strides = [1, 1]} : vector<88x128xbf16> to vector<72x128xbf16>
    %c2 = arith.constant 2 : index
    %c0_8 = arith.constant 0 : index
    %c0_9 = arith.constant 0 : index
    %12 = vector.load %arg2[%c2, %c0_8, %c0_9] : memref<4x128x128xbf16, #tpu.memory_space<vmem>>, vector<1x128x128xbf16>
    %13 = vector.shape_cast %12 : vector<1x128x128xbf16> to vector<128x128xbf16>
    %cst_10 = arith.constant dense<0.000000e+00> : vector<72x128xf32>
    %14 = tpu.matmul %11, %13, %cst_10 {dimension_numbers = #tpu.dot_dimension_numbers<[1], [0], [0], [1], [0, 0, 1, 1], [], []>} : vector<72x128xbf16>, vector<128x128xbf16>, vector<72x128xf32> -> vector<72x128xf32>
    %15 = arith.addf %10, %14 : vector<72x128xf32>
    %16 = vector.extract_strided_slice %1 {offsets = [10, 0], sizes = [72, 128], strides = [1, 1]} : vector<88x128xbf16> to vector<72x128xbf16>
    %c3 = arith.constant 3 : index
    %c0_11 = arith.constant 0 : index
    %c0_12 = arith.constant 0 : index
    %17 = vector.load %arg2[%c3, %c0_11, %c0_12] : memref<4x128x128xbf16, #tpu.memory_space<vmem>>, vector<1x128x128xbf16>
    %18 = vector.shape_cast %17 : vector<1x128x128xbf16> to vector<128x128xbf16>
    %cst_13 = arith.constant dense<0.000000e+00> : vector<72x128xf32>
    %19 = tpu.matmul %16, %18, %cst_13 {dimension_numbers = #tpu.dot_dimension_numbers<[1], [0], [0], [1], [0, 0, 1, 1], [], []>} : vector<72x128xbf16>, vector<128x128xbf16>, vector<72x128xf32> -> vector<72x128xf32>
    %20 = arith.addf %15, %19 : vector<72x128xf32>
    %c0_14 = arith.constant 0 : index
    %c0_15 = arith.constant 0 : index
    %21 = vector.load %arg3[%c0_14, %c0_15] : memref<1x128xf32, #tpu.memory_space<vmem>>, vector<1x128xf32>
    %22 = vector.broadcast %21 : vector<1x128xf32> to vector<72x128xf32>
    %23 = arith.addf %20, %22 : vector<72x128xf32>
    %cst_16 = arith.constant 0.000000e+00 : f32
    %24 = vector.broadcast %cst_16 : f32 to vector<72x128xf32>
    %25 = arith.maximumf %23, %24 : vector<72x128xf32>
    %26 = arith.truncf %25 : vector<72x128xf32> to vector<72x128xbf16>
    %c0_17 = arith.constant 0 : index
    %c0_18 = arith.constant 0 : index
    %c0_19 = arith.constant 0 : index
    %27 = vector.load %arg4[%c0_17, %c0_18, %c0_19] : memref<1x72x128xbf16, #tpu.memory_space<vmem>>, vector<1x72x128xbf16>
    %28 = vector.shape_cast %27 : vector<1x72x128xbf16> to vector<72x128xbf16>
    %29 = vector.shape_cast %26 : vector<72x128xbf16> to vector<1x72x128xbf16>
    tpu.vector_store %arg4[%c0_17, %c0_18, %c0_19], %29 {strides = array<i32>} : memref<1x72x128xbf16, #tpu.memory_space<vmem>>, vector<1x72x128xbf16>,
    return
  }
  func.func @transform_0(%arg0: i32) -> (i32, i32, i32) {
    %c0_i32 = arith.constant 0 : i32
    %c0_i32_0 = arith.constant 0 : i32
    %c0_i32_1 = arith.constant 0 : i32
    return %arg0, %c0_i32, %c0_i32_0 : i32, i32, i32
  }
  func.func @transform_1(%arg0: i32) -> (i32, i32, i32) {
    %c0_i32 = arith.constant 0 : i32
    %c0_i32_0 = arith.constant 0 : i32
    %c0_i32_1 = arith.constant 0 : i32
    %c0_i32_2 = arith.constant 0 : i32
    return %c0_i32, %c0_i32_0, %c0_i32_1 : i32, i32, i32
  }
  func.func @transform_2(%arg0: i32) -> (i32, i32) {
    %c0_i32 = arith.constant 0 : i32
    %c0_i32_0 = arith.constant 0 : i32
    %c0_i32_1 = arith.constant 0 : i32
    return %c0_i32, %c0_i32_0 : i32, i32
  }
  func.func @transform_3(%arg0: i32) -> (i32, i32, i32) {
    %c0_i32 = arith.constant 0 : i32
    %c0_i32_0 = arith.constant 0 : i32
    %c0_i32_1 = arith.constant 0 : i32
    return %arg0, %c0_i32, %c0_i32_0 : i32, i32, i32
  }
}

module attributes {stable_mosaic.version = 11 : i64} {
  func.func @_conv3x3_s2_kernel(%arg0: i32, %arg1: memref<1x32x512xbf16, #tpu.memory_space<vmem>>, %arg2: memref<4x512x256xbf16, #tpu.memory_space<vmem>>, %arg3: memref<1x256xf32, #tpu.memory_space<vmem>>, %arg4: memref<1x20x256xbf16, #tpu.memory_space<vmem>>) attributes {dimension_semantics = [#tpu.dimension_semantics<parallel>], iteration_bounds = array<i64: 6>, scalar_prefetch = 0 : i64, scratch_operands = 0 : i64, tpu.core_type = #tpu.core_type<tc>, window_params = [{transform_indices = @transform_0, window_bounds = array<i64: 1, 32, 512>}, {pipeline_mode = #tpu.pipeline_mode<synchronous>, transform_indices = @transform_1, window_bounds = array<i64: 4, 512, 256>}, {pipeline_mode = #tpu.pipeline_mode<synchronous>, transform_indices = @transform_2, window_bounds = array<i64: 1, 256>}, {transform_indices = @transform_3, window_bounds = array<i64: 1, 20, 256>}]} {
    %c0 = arith.constant 0 : index
    %c0_0 = arith.constant 0 : index
    %c0_1 = arith.constant 0 : index
    %0 = vector.load %arg1[%c0, %c0_0, %c0_1] : memref<1x32x512xbf16, #tpu.memory_space<vmem>>, vector<1x32x512xbf16>
    %1 = vector.shape_cast %0 : vector<1x32x512xbf16> to vector<32x512xbf16>
    %2 = vector.extract_strided_slice %1 {offsets = [0, 0], sizes = [20, 512], strides = [1, 1]} : vector<32x512xbf16> to vector<20x512xbf16>
    %c0_2 = arith.constant 0 : index
    %c0_3 = arith.constant 0 : index
    %c0_4 = arith.constant 0 : index
    %3 = vector.load %arg2[%c0_2, %c0_3, %c0_4] : memref<4x512x256xbf16, #tpu.memory_space<vmem>>, vector<1x512x256xbf16>
    %4 = vector.shape_cast %3 : vector<1x512x256xbf16> to vector<512x256xbf16>
    %cst = arith.constant dense<0.000000e+00> : vector<20x256xf32>
    %5 = tpu.matmul %2, %4, %cst {dimension_numbers = #tpu.dot_dimension_numbers<[1], [0], [0], [1], [0, 0, 1, 1], [], []>} : vector<20x512xbf16>, vector<512x256xbf16>, vector<20x256xf32> -> vector<20x256xf32>
    %6 = vector.extract_strided_slice %1 {offsets = [1, 0], sizes = [20, 512], strides = [1, 1]} : vector<32x512xbf16> to vector<20x512xbf16>
    %c1 = arith.constant 1 : index
    %c0_5 = arith.constant 0 : index
    %c0_6 = arith.constant 0 : index
    %7 = vector.load %arg2[%c1, %c0_5, %c0_6] : memref<4x512x256xbf16, #tpu.memory_space<vmem>>, vector<1x512x256xbf16>
    %8 = vector.shape_cast %7 : vector<1x512x256xbf16> to vector<512x256xbf16>
    %cst_7 = arith.constant dense<0.000000e+00> : vector<20x256xf32>
    %9 = tpu.matmul %6, %8, %cst_7 {dimension_numbers = #tpu.dot_dimension_numbers<[1], [0], [0], [1], [0, 0, 1, 1], [], []>} : vector<20x512xbf16>, vector<512x256xbf16>, vector<20x256xf32> -> vector<20x256xf32>
    %10 = arith.addf %5, %9 : vector<20x256xf32>
    %11 = vector.extract_strided_slice %1 {offsets = [5, 0], sizes = [20, 512], strides = [1, 1]} : vector<32x512xbf16> to vector<20x512xbf16>
    %c2 = arith.constant 2 : index
    %c0_8 = arith.constant 0 : index
    %c0_9 = arith.constant 0 : index
    %12 = vector.load %arg2[%c2, %c0_8, %c0_9] : memref<4x512x256xbf16, #tpu.memory_space<vmem>>, vector<1x512x256xbf16>
    %13 = vector.shape_cast %12 : vector<1x512x256xbf16> to vector<512x256xbf16>
    %cst_10 = arith.constant dense<0.000000e+00> : vector<20x256xf32>
    %14 = tpu.matmul %11, %13, %cst_10 {dimension_numbers = #tpu.dot_dimension_numbers<[1], [0], [0], [1], [0, 0, 1, 1], [], []>} : vector<20x512xbf16>, vector<512x256xbf16>, vector<20x256xf32> -> vector<20x256xf32>
    %15 = arith.addf %10, %14 : vector<20x256xf32>
    %16 = vector.extract_strided_slice %1 {offsets = [6, 0], sizes = [20, 512], strides = [1, 1]} : vector<32x512xbf16> to vector<20x512xbf16>
    %c3 = arith.constant 3 : index
    %c0_11 = arith.constant 0 : index
    %c0_12 = arith.constant 0 : index
    %17 = vector.load %arg2[%c3, %c0_11, %c0_12] : memref<4x512x256xbf16, #tpu.memory_space<vmem>>, vector<1x512x256xbf16>
    %18 = vector.shape_cast %17 : vector<1x512x256xbf16> to vector<512x256xbf16>
    %cst_13 = arith.constant dense<0.000000e+00> : vector<20x256xf32>
    %19 = tpu.matmul %16, %18, %cst_13 {dimension_numbers = #tpu.dot_dimension_numbers<[1], [0], [0], [1], [0, 0, 1, 1], [], []>} : vector<20x512xbf16>, vector<512x256xbf16>, vector<20x256xf32> -> vector<20x256xf32>
    %20 = arith.addf %15, %19 : vector<20x256xf32>
    %c0_14 = arith.constant 0 : index
    %c0_15 = arith.constant 0 : index
    %21 = vector.load %arg3[%c0_14, %c0_15] : memref<1x256xf32, #tpu.memory_space<vmem>>, vector<1x256xf32>
    %22 = vector.broadcast %21 : vector<1x256xf32> to vector<20x256xf32>
    %23 = arith.addf %20, %22 : vector<20x256xf32>
    %cst_16 = arith.constant 0.000000e+00 : f32
    %24 = vector.broadcast %cst_16 : f32 to vector<20x256xf32>
    %25 = arith.maximumf %23, %24 : vector<20x256xf32>
    %26 = arith.truncf %25 : vector<20x256xf32> to vector<20x256xbf16>
    %c0_17 = arith.constant 0 : index
    %c0_18 = arith.constant 0 : index
    %c0_19 = arith.constant 0 : index
    %27 = vector.load %arg4[%c0_17, %c0_18, %c0_19] : memref<1x20x256xbf16, #tpu.memory_space<vmem>>, vector<1x20x256xbf16>
    %28 = vector.shape_cast %27 : vector<1x20x256xbf16> to vector<20x256xbf16>
    %29 = vector.shape_cast %26 : vector<20x256xbf16> to vector<1x20x256xbf16>
    tpu.vector_store %arg4[%c0_17, %c0_18, %c0_19], %29 {strides = array<i32>} : memref<1x20x256xbf16, #tpu.memory_space<vmem>>, vector<1x20x256xbf16>,
    return
  }
  func.func @transform_0(%arg0: i32) -> (i32, i32, i32) {
    %c0_i32 = arith.constant 0 : i32
    %c0_i32_0 = arith.constant 0 : i32
    %c0_i32_1 = arith.constant 0 : i32
    return %arg0, %c0_i32, %c0_i32_0 : i32, i32, i32
  }
  func.func @transform_1(%arg0: i32) -> (i32, i32, i32) {
    %c0_i32 = arith.constant 0 : i32
    %c0_i32_0 = arith.constant 0 : i32
    %c0_i32_1 = arith.constant 0 : i32
    %c0_i32_2 = arith.constant 0 : i32
    return %c0_i32, %c0_i32_0, %c0_i32_1 : i32, i32, i32
  }
  func.func @transform_2(%arg0: i32) -> (i32, i32) {
    %c0_i32 = arith.constant 0 : i32
    %c0_i32_0 = arith.constant 0 : i32
    %c0_i32_1 = arith.constant 0 : i32
    return %c0_i32, %c0_i32_0 : i32, i32
  }
  func.func @transform_3(%arg0: i32) -> (i32, i32, i32) {
    %c0_i32 = arith.constant 0 : i32
    %c0_i32_0 = arith.constant 0 : i32
    %c0_i32_1 = arith.constant 0 : i32
    return %arg0, %c0_i32, %c0_i32_0 : i32, i32, i32
  }
}

module attributes {stable_mosaic.version = 11 : i64} {
  func.func @_mm_bias_kernel(%arg0: i32, %arg1: memref<32x256xbf16, #tpu.memory_space<vmem>>, %arg2: memref<256x128xbf16, #tpu.memory_space<vmem>>, %arg3: memref<1x128xf32, #tpu.memory_space<vmem>>, %arg4: memref<32x128xbf16, #tpu.memory_space<vmem>>) attributes {dimension_semantics = [#tpu.dimension_semantics<parallel>], iteration_bounds = array<i64: 1>, scalar_prefetch = 0 : i64, scratch_operands = 0 : i64, tpu.core_type = #tpu.core_type<tc>, window_params = [{transform_indices = @transform_0, window_bounds = array<i64: 32, 256>}, {pipeline_mode = #tpu.pipeline_mode<synchronous>, transform_indices = @transform_1, window_bounds = array<i64: 256, 128>}, {pipeline_mode = #tpu.pipeline_mode<synchronous>, transform_indices = @transform_2, window_bounds = array<i64: 1, 128>}, {transform_indices = @transform_3, window_bounds = array<i64: 32, 128>}]} {
    %c0 = arith.constant 0 : index
    %c0_0 = arith.constant 0 : index
    %0 = vector.load %arg1[%c0, %c0_0] : memref<32x256xbf16, #tpu.memory_space<vmem>>, vector<32x256xbf16>
    %c0_1 = arith.constant 0 : index
    %c0_2 = arith.constant 0 : index
    %1 = vector.load %arg2[%c0_1, %c0_2] : memref<256x128xbf16, #tpu.memory_space<vmem>>, vector<256x128xbf16>
    %cst = arith.constant dense<0.000000e+00> : vector<32x128xf32>
    %2 = tpu.matmul %0, %1, %cst {dimension_numbers = #tpu.dot_dimension_numbers<[1], [0], [0], [1], [0, 0, 1, 1], [], []>} : vector<32x256xbf16>, vector<256x128xbf16>, vector<32x128xf32> -> vector<32x128xf32>
    %c0_3 = arith.constant 0 : index
    %c0_4 = arith.constant 0 : index
    %3 = vector.load %arg3[%c0_3, %c0_4] : memref<1x128xf32, #tpu.memory_space<vmem>>, vector<1x128xf32>
    %4 = vector.broadcast %3 : vector<1x128xf32> to vector<32x128xf32>
    %5 = arith.addf %2, %4 : vector<32x128xf32>
    %6 = arith.truncf %5 : vector<32x128xf32> to vector<32x128xbf16>
    %c0_5 = arith.constant 0 : index
    %c0_6 = arith.constant 0 : index
    %7 = vector.load %arg4[%c0_5, %c0_6] : memref<32x128xbf16, #tpu.memory_space<vmem>>, vector<32x128xbf16>
    tpu.vector_store %arg4[%c0_5, %c0_6], %6 {strides = array<i32>} : memref<32x128xbf16, #tpu.memory_space<vmem>>, vector<32x128xbf16>,
    return
  }
  func.func @transform_0(%arg0: i32) -> (i32, i32) {
    %c0_i32 = arith.constant 0 : i32
    %c0_i32_0 = arith.constant 0 : i32
    return %arg0, %c0_i32 : i32, i32
  }
  func.func @transform_1(%arg0: i32) -> (i32, i32) {
    %c0_i32 = arith.constant 0 : i32
    %c0_i32_0 = arith.constant 0 : i32
    %c0_i32_1 = arith.constant 0 : i32
    return %c0_i32, %c0_i32_0 : i32, i32
  }
  func.func @transform_2(%arg0: i32) -> (i32, i32) {
    %c0_i32 = arith.constant 0 : i32
    %c0_i32_0 = arith.constant 0 : i32
    %c0_i32_1 = arith.constant 0 : i32
    return %c0_i32, %c0_i32_0 : i32, i32
  }
  func.func @transform_3(%arg0: i32) -> (i32, i32) {
    %c0_i32 = arith.constant 0 : i32
    %c0_i32_0 = arith.constant 0 : i32
    return %arg0, %c0_i32 : i32, i32
  }
}

module attributes {stable_mosaic.version = 11 : i64} {
  func.func @_mm_bias_kernel(%arg0: i32, %arg1: memref<64x256xbf16, #tpu.memory_space<vmem>>, %arg2: memref<256x256xbf16, #tpu.memory_space<vmem>>, %arg3: memref<1x256xf32, #tpu.memory_space<vmem>>, %arg4: memref<64x256xbf16, #tpu.memory_space<vmem>>) attributes {dimension_semantics = [#tpu.dimension_semantics<parallel>], iteration_bounds = array<i64: 1>, scalar_prefetch = 0 : i64, scratch_operands = 0 : i64, tpu.core_type = #tpu.core_type<tc>, window_params = [{transform_indices = @transform_0, window_bounds = array<i64: 64, 256>}, {pipeline_mode = #tpu.pipeline_mode<synchronous>, transform_indices = @transform_1, window_bounds = array<i64: 256, 256>}, {pipeline_mode = #tpu.pipeline_mode<synchronous>, transform_indices = @transform_2, window_bounds = array<i64: 1, 256>}, {transform_indices = @transform_3, window_bounds = array<i64: 64, 256>}]} {
    %c0 = arith.constant 0 : index
    %c0_0 = arith.constant 0 : index
    %0 = vector.load %arg1[%c0, %c0_0] : memref<64x256xbf16, #tpu.memory_space<vmem>>, vector<64x256xbf16>
    %c0_1 = arith.constant 0 : index
    %c0_2 = arith.constant 0 : index
    %1 = vector.load %arg2[%c0_1, %c0_2] : memref<256x256xbf16, #tpu.memory_space<vmem>>, vector<256x256xbf16>
    %cst = arith.constant dense<0.000000e+00> : vector<64x256xf32>
    %2 = tpu.matmul %0, %1, %cst {dimension_numbers = #tpu.dot_dimension_numbers<[1], [0], [0], [1], [0, 0, 1, 1], [], []>} : vector<64x256xbf16>, vector<256x256xbf16>, vector<64x256xf32> -> vector<64x256xf32>
    %c0_3 = arith.constant 0 : index
    %c0_4 = arith.constant 0 : index
    %3 = vector.load %arg3[%c0_3, %c0_4] : memref<1x256xf32, #tpu.memory_space<vmem>>, vector<1x256xf32>
    %4 = vector.broadcast %3 : vector<1x256xf32> to vector<64x256xf32>
    %5 = arith.addf %2, %4 : vector<64x256xf32>
    %6 = arith.truncf %5 : vector<64x256xf32> to vector<64x256xbf16>
    %c0_5 = arith.constant 0 : index
    %c0_6 = arith.constant 0 : index
    %7 = vector.load %arg4[%c0_5, %c0_6] : memref<64x256xbf16, #tpu.memory_space<vmem>>, vector<64x256xbf16>
    tpu.vector_store %arg4[%c0_5, %c0_6], %6 {strides = array<i32>} : memref<64x256xbf16, #tpu.memory_space<vmem>>, vector<64x256xbf16>,
    return
  }
  func.func @transform_0(%arg0: i32) -> (i32, i32) {
    %c0_i32 = arith.constant 0 : i32
    %c0_i32_0 = arith.constant 0 : i32
    return %arg0, %c0_i32 : i32, i32
  }
  func.func @transform_1(%arg0: i32) -> (i32, i32) {
    %c0_i32 = arith.constant 0 : i32
    %c0_i32_0 = arith.constant 0 : i32
    %c0_i32_1 = arith.constant 0 : i32
    return %c0_i32, %c0_i32_0 : i32, i32
  }
  func.func @transform_2(%arg0: i32) -> (i32, i32) {
    %c0_i32 = arith.constant 0 : i32
    %c0_i32_0 = arith.constant 0 : i32
    %c0_i32_1 = arith.constant 0 : i32
    return %c0_i32, %c0_i32_0 : i32, i32
  }
  func.func @transform_3(%arg0: i32) -> (i32, i32) {
    %c0_i32 = arith.constant 0 : i32
    %c0_i32_0 = arith.constant 0 : i32
    return %arg0, %c0_i32 : i32, i32
  }
}

module attributes {stable_mosaic.version = 11 : i64} {
  func.func @_mem_attn_kernel(%arg0: i32, %arg1: i32, %arg2: i32, %arg3: memref<1x16x128xbf16, #tpu.memory_space<vmem>>, %arg4: memref<1x128x256xbf16, #tpu.memory_space<vmem>>, %arg5: memref<128x256xbf16, #tpu.memory_space<vmem>>, %arg6: memref<1x16x256xbf16, #tpu.memory_space<vmem>>, %arg7: memref<16x1xf32, #tpu.memory_space<vmem>>, %arg8: memref<16x1xf32, #tpu.memory_space<vmem>>, %arg9: memref<16x128xf32, #tpu.memory_space<vmem>>) attributes {dimension_semantics = [#tpu.dimension_semantics<parallel>, #tpu.dimension_semantics<parallel>, #tpu.dimension_semantics<arbitrary>], iteration_bounds = array<i64: 2, 1, 1>, scalar_prefetch = 0 : i64, scratch_operands = 3 : i64, tpu.core_type = #tpu.core_type<tc>, window_params = [{transform_indices = @transform_0, window_bounds = array<i64: 1, 16, 128>}, {transform_indices = @transform_1, window_bounds = array<i64: 1, 128, 256>}, {pipeline_mode = #tpu.pipeline_mode<synchronous>, transform_indices = @transform_2, window_bounds = array<i64: 128, 256>}, {transform_indices = @transform_3, window_bounds = array<i64: 1, 16, 256>}]} {
    %c0_i32 = arith.constant 0 : i32
    %0 = arith.cmpi eq, %arg2, %c0_i32 : i32
    %1 = arith.extui %0 : i1 to i32
    %c0_i32_0 = arith.constant 0 : i32
    %2 = arith.cmpi ne, %1, %c0_i32_0 : i32
    scf.if %2 {
      %cst_26 = arith.constant -1.000000e+30 : f32
      %46 = vector.broadcast %cst_26 : f32 to vector<16x1xf32>
      %c0_27 = arith.constant 0 : index
      %c0_28 = arith.constant 0 : index
      %47 = vector.load %arg7[%c0_27, %c0_28] : memref<16x1xf32, #tpu.memory_space<vmem>>, vector<16x1xf32>
      tpu.vector_store %arg7[%c0_27, %c0_28], %46 {strides = array<i32>} : memref<16x1xf32, #tpu.memory_space<vmem>>, vector<16x1xf32>,
      %cst_29 = arith.constant 0.000000e+00 : f32
      %48 = vector.broadcast %cst_29 : f32 to vector<16x1xf32>
      %c0_30 = arith.constant 0 : index
      %c0_31 = arith.constant 0 : index
      %49 = vector.load %arg8[%c0_30, %c0_31] : memref<16x1xf32, #tpu.memory_space<vmem>>, vector<16x1xf32>
      tpu.vector_store %arg8[%c0_30, %c0_31], %48 {strides = array<i32>} : memref<16x1xf32, #tpu.memory_space<vmem>>, vector<16x1xf32>,
      %cst_32 = arith.constant 0.000000e+00 : f32
      %50 = vector.broadcast %cst_32 : f32 to vector<16x128xf32>
      %c0_33 = arith.constant 0 : index
      %c0_34 = arith.constant 0 : index
      %51 = vector.load %arg9[%c0_33, %c0_34] : memref<16x128xf32, #tpu.memory_space<vmem>>, vector<16x128xf32>
      tpu.vector_store %arg9[%c0_33, %c0_34], %50 {strides = array<i32>} : memref<16x128xf32, #tpu.memory_space<vmem>>, vector<16x128xf32>,
    } else {
    }
    %c0 = arith.constant 0 : index
    %c0_1 = arith.constant 0 : index
    %c0_2 = arith.constant 0 : index
    %3 = vector.load %arg3[%c0, %c0_1, %c0_2] : memref<1x16x128xbf16, #tpu.memory_space<vmem>>, vector<1x16x128xbf16>
    %4 = vector.shape_cast %3 : vector<1x16x128xbf16> to vector<16x128xbf16>
    %c0_3 = arith.constant 0 : index
    %c0_4 = arith.constant 0 : index
    %c0_5 = arith.constant 0 : index
    %5 = vector.load %arg4[%c0_3, %c0_4, %c0_5] : memref<1x128x256xbf16, #tpu.memory_space<vmem>>, vector<1x128x256xbf16>
    %6 = vector.shape_cast %5 : vector<1x128x256xbf16> to vector<128x256xbf16>
    %7 = vector.extract_strided_slice %6 {offsets = [0, 0], sizes = [128, 128], strides = [1, 1]} : vector<128x256xbf16> to vector<128x128xbf16>
    %8 = vector.extract_strided_slice %6 {offsets = [0, 128], sizes = [128, 128], strides = [1, 1]} : vector<128x256xbf16> to vector<128x128xbf16>
    %9 = tpu.transpose %7, [1, 0] : vector<128x128xbf16> -> vector<128x128xbf16>
    %cst = arith.constant dense<0.000000e+00> : vector<16x128xf32>
    %10 = tpu.matmul %4, %9, %cst {dimension_numbers = #tpu.dot_dimension_numbers<[1], [0], [0], [1], [0, 0, 1, 1], [], []>} : vector<16x128xbf16>, vector<128x128xbf16>, vector<16x128xf32> -> vector<16x128xf32>
    %c128_i32 = arith.constant 128 : i32
    %11 = arith.muli %arg2, %c128_i32 : i32
    %12 = tpu.iota {dimensions = array<i32: 1>} : vector<16x128xi32>
    %13 = vector.broadcast %11 : i32 to vector<16x128xi32>
    %14 = arith.addi %13, %12 : vector<16x128xi32>
    %c32_i32 = arith.constant 32 : i32
    %15 = vector.broadcast %c32_i32 : i32 to vector<16x128xi32>
    %16 = arith.cmpi slt, %14, %15 : vector<16x128xi32>
    %cst_6 = arith.constant -1.000000e+30 : f32
    %17 = vector.broadcast %cst_6 : f32 to vector<16x128xf32>
    %18 = arith.select %16, %10, %17 : vector<16x128xi1>, vector<16x128xf32>
    %c0_7 = arith.constant 0 : index
    %c0_8 = arith.constant 0 : index
    %19 = vector.load %arg7[%c0_7, %c0_8] : memref<16x1xf32, #tpu.memory_space<vmem>>, vector<16x1xf32>
    %cst_9 = arith.constant dense<0xFF800000> : vector<16xf32>
    %20 = vector.multi_reduction <maximumf>, %18, %cst_9 [1] : vector<16x128xf32> to vector<16xf32>
    %21 = vector.shape_cast %20 : vector<16xf32> to vector<16x1xf32>
    %22 = arith.maximumf %19, %21 : vector<16x1xf32>
    %c0_10 = arith.constant 0 : index
    %c0_11 = arith.constant 0 : index
    %23 = vector.load %arg7[%c0_10, %c0_11] : memref<16x1xf32, #tpu.memory_space<vmem>>, vector<16x1xf32>
    %24 = arith.subf %23, %22 : vector<16x1xf32>
    %25 = math.exp %24 : vector<16x1xf32>
    %26 = vector.broadcast %22 : vector<16x1xf32> to vector<16x128xf32>
    %27 = arith.subf %18, %26 : vector<16x128xf32>
    %28 = math.exp %27 : vector<16x128xf32>
    %c0_12 = arith.constant 0 : index
    %c0_13 = arith.constant 0 : index
    %29 = vector.load %arg8[%c0_12, %c0_13] : memref<16x1xf32, #tpu.memory_space<vmem>>, vector<16x1xf32>
    %30 = arith.mulf %25, %29 : vector<16x1xf32>
    %cst_14 = arith.constant dense<0.000000e+00> : vector<16xf32>
    %31 = vector.multi_reduction <add>, %28, %cst_14 [1] : vector<16x128xf32> to vector<16xf32>
    %32 = vector.shape_cast %31 : vector<16xf32> to vector<16x1xf32>
    %33 = arith.addf %30, %32 : vector<16x1xf32>
    %c0_15 = arith.constant 0 : index
    %c0_16 = arith.constant 0 : index
    %34 = vector.load %arg8[%c0_15, %c0_16] : memref<16x1xf32, #tpu.memory_space<vmem>>, vector<16x1xf32>
    tpu.vector_store %arg8[%c0_15, %c0_16], %33 {strides = array<i32>} : memref<16x1xf32, #tpu.memory_space<vmem>>, vector<16x1xf32>,
    %c0_17 = arith.constant 0 : index
    %c0_18 = arith.constant 0 : index
    %35 = vector.load %arg9[%c0_17, %c0_18] : memref<16x128xf32, #tpu.memory_space<vmem>>, vector<16x128xf32>
    %36 = vector.broadcast %25 : vector<16x1xf32> to vector<16x128xf32>
    %37 = arith.mulf %36, %35 : vector<16x128xf32>
    %38 = arith.truncf %28 : vector<16x128xf32> to vector<16x128xbf16>
    %cst_19 = arith.constant dense<0.000000e+00> : vector<16x128xf32>
    %39 = tpu.matmul %38, %8, %cst_19 {dimension_numbers = #tpu.dot_dimension_numbers<[1], [0], [0], [1], [0, 0, 1, 1], [], []>} : vector<16x128xbf16>, vector<128x128xbf16>, vector<16x128xf32> -> vector<16x128xf32>
    %40 = arith.addf %37, %39 : vector<16x128xf32>
    %c0_20 = arith.constant 0 : index
    %c0_21 = arith.constant 0 : index
    %41 = vector.load %arg9[%c0_20, %c0_21] : memref<16x128xf32, #tpu.memory_space<vmem>>, vector<16x128xf32>
    tpu.vector_store %arg9[%c0_20, %c0_21], %40 {strides = array<i32>} : memref<16x128xf32, #tpu.memory_space<vmem>>, vector<16x128xf32>,
    %c0_22 = arith.constant 0 : index
    %c0_23 = arith.constant 0 : index
    %42 = vector.load %arg7[%c0_22, %c0_23] : memref<16x1xf32, #tpu.memory_space<vmem>>, vector<16x1xf32>
    tpu.vector_store %arg7[%c0_22, %c0_23], %22 {strides = array<i32>} : memref<16x1xf32, #tpu.memory_space<vmem>>, vector<16x1xf32>,
    %c0_i32_24 = arith.constant 0 : i32
    %43 = arith.cmpi eq, %arg2, %c0_i32_24 : i32
    %44 = arith.extui %43 : i1 to i32
    %c0_i32_25 = arith.constant 0 : i32
    %45 = arith.cmpi ne, %44, %c0_i32_25 : i32
    scf.if %45 {
      %c0_26 = arith.constant 0 : index
      %c0_27 = arith.constant 0 : index
      %46 = vector.load %arg9[%c0_26, %c0_27] : memref<16x128xf32, #tpu.memory_space<vmem>>, vector<16x128xf32>
      %c0_28 = arith.constant 0 : index
      %c0_29 = arith.constant 0 : index
      %47 = vector.load %arg8[%c0_28, %c0_29] : memref<16x1xf32, #tpu.memory_space<vmem>>, vector<16x1xf32>
      %48 = tpu.reciprocal %47 {approx = true} : vector<16x1xf32> -> vector<16x1xf32>
      %49 = vector.broadcast %48 : vector<16x1xf32> to vector<16x128xf32>
      %50 = arith.mulf %46, %49 : vector<16x128xf32>
      %51 = arith.truncf %50 : vector<16x128xf32> to vector<16x128xbf16>
      %c0_30 = arith.constant 0 : index
      %c0_31 = arith.constant 0 : index
      %52 = vector.load %arg5[%c0_30, %c0_31] : memref<128x256xbf16, #tpu.memory_space<vmem>>, vector<128x256xbf16>
      %cst_32 = arith.constant dense<0.000000e+00> : vector<16x256xf32>
      %53 = tpu.matmul %51, %52, %cst_32 {dimension_numbers = #tpu.dot_dimension_numbers<[1], [0], [0], [1], [0, 0, 1, 1], [], []>} : vector<16x128xbf16>, vector<128x256xbf16>, vector<16x256xf32> -> vector<16x256xf32>
      %54 = arith.truncf %53 : vector<16x256xf32> to vector<16x256xbf16>
      %c0_33 = arith.constant 0 : index
      %c0_34 = arith.constant 0 : index
      %c0_35 = arith.constant 0 : index
      %55 = vector.load %arg6[%c0_33, %c0_34, %c0_35] : memref<1x16x256xbf16, #tpu.memory_space<vmem>>, vector<1x16x256xbf16>
      %56 = vector.shape_cast %55 : vector<1x16x256xbf16> to vector<16x256xbf16>
      %57 = vector.shape_cast %54 : vector<16x256xbf16> to vector<1x16x256xbf16>
      tpu.vector_store %arg6[%c0_33, %c0_34, %c0_35], %57 {strides = array<i32>} : memref<1x16x256xbf16, #tpu.memory_space<vmem>>, vector<1x16x256xbf16>,
    } else {
    }
    return
  }
  func.func @transform_0(%arg0: i32, %arg1: i32, %arg2: i32) -> (i32, i32, i32) {
    %c0_i32 = arith.constant 0 : i32
    %c0_i32_0 = arith.constant 0 : i32
    return %arg0, %arg1, %c0_i32 : i32, i32, i32
  }
  func.func @transform_1(%arg0: i32, %arg1: i32, %arg2: i32) -> (i32, i32, i32) {
    %c0_i32 = arith.constant 0 : i32
    %c0_i32_0 = arith.constant 0 : i32
    return %arg0, %arg2, %c0_i32 : i32, i32, i32
  }
  func.func @transform_2(%arg0: i32, %arg1: i32, %arg2: i32) -> (i32, i32) {
    %c0_i32 = arith.constant 0 : i32
    %c0_i32_0 = arith.constant 0 : i32
    %c0_i32_1 = arith.constant 0 : i32
    return %c0_i32, %c0_i32_0 : i32, i32
  }
  func.func @transform_3(%arg0: i32, %arg1: i32, %arg2: i32) -> (i32, i32, i32) {
    %c0_i32 = arith.constant 0 : i32
    %c0_i32_0 = arith.constant 0 : i32
    return %arg0, %arg1, %c0_i32 : i32, i32, i32
  }
}

module attributes {stable_mosaic.version = 11 : i64} {
  func.func @_mm_bias_kernel(%arg0: i32, %arg1: memref<32x256xbf16, #tpu.memory_space<vmem>>, %arg2: memref<256x256xbf16, #tpu.memory_space<vmem>>, %arg3: memref<1x256xf32, #tpu.memory_space<vmem>>, %arg4: memref<32x256xbf16, #tpu.memory_space<vmem>>, %arg5: memref<32x256xbf16, #tpu.memory_space<vmem>>) attributes {dimension_semantics = [#tpu.dimension_semantics<parallel>], iteration_bounds = array<i64: 1>, scalar_prefetch = 0 : i64, scratch_operands = 0 : i64, tpu.core_type = #tpu.core_type<tc>, window_params = [{transform_indices = @transform_0, window_bounds = array<i64: 32, 256>}, {pipeline_mode = #tpu.pipeline_mode<synchronous>, transform_indices = @transform_1, window_bounds = array<i64: 256, 256>}, {pipeline_mode = #tpu.pipeline_mode<synchronous>, transform_indices = @transform_2, window_bounds = array<i64: 1, 256>}, {transform_indices = @transform_3, window_bounds = array<i64: 32, 256>}, {transform_indices = @transform_4, window_bounds = array<i64: 32, 256>}]} {
    %c0 = arith.constant 0 : index
    %c0_0 = arith.constant 0 : index
    %0 = vector.load %arg1[%c0, %c0_0] : memref<32x256xbf16, #tpu.memory_space<vmem>>, vector<32x256xbf16>
    %c0_1 = arith.constant 0 : index
    %c0_2 = arith.constant 0 : index
    %1 = vector.load %arg2[%c0_1, %c0_2] : memref<256x256xbf16, #tpu.memory_space<vmem>>, vector<256x256xbf16>
    %cst = arith.constant dense<0.000000e+00> : vector<32x256xf32>
    %2 = tpu.matmul %0, %1, %cst {dimension_numbers = #tpu.dot_dimension_numbers<[1], [0], [0], [1], [0, 0, 1, 1], [], []>} : vector<32x256xbf16>, vector<256x256xbf16>, vector<32x256xf32> -> vector<32x256xf32>
    %c0_3 = arith.constant 0 : index
    %c0_4 = arith.constant 0 : index
    %3 = vector.load %arg3[%c0_3, %c0_4] : memref<1x256xf32, #tpu.memory_space<vmem>>, vector<1x256xf32>
    %4 = vector.broadcast %3 : vector<1x256xf32> to vector<32x256xf32>
    %5 = arith.addf %2, %4 : vector<32x256xf32>
    %c0_5 = arith.constant 0 : index
    %c0_6 = arith.constant 0 : index
    %6 = vector.load %arg4[%c0_5, %c0_6] : memref<32x256xbf16, #tpu.memory_space<vmem>>, vector<32x256xbf16>
    %7 = arith.extf %6 : vector<32x256xbf16> to vector<32x256xf32>
    %8 = arith.addf %5, %7 : vector<32x256xf32>
    %c0_7 = arith.constant 0 : index
    %c0_8 = arith.constant 0 : index
    %9 = vector.load %arg1[%c0_7, %c0_8] : memref<32x256xbf16, #tpu.memory_space<vmem>>, vector<32x256xbf16>
    %10 = arith.extf %9 : vector<32x256xbf16> to vector<32x256xf32>
    %11 = arith.addf %8, %10 : vector<32x256xf32>
    %12 = arith.truncf %11 : vector<32x256xf32> to vector<32x256xbf16>
    %c0_9 = arith.constant 0 : index
    %c0_10 = arith.constant 0 : index
    %13 = vector.load %arg5[%c0_9, %c0_10] : memref<32x256xbf16, #tpu.memory_space<vmem>>, vector<32x256xbf16>
    tpu.vector_store %arg5[%c0_9, %c0_10], %12 {strides = array<i32>} : memref<32x256xbf16, #tpu.memory_space<vmem>>, vector<32x256xbf16>,
    return
  }
  func.func @transform_0(%arg0: i32) -> (i32, i32) {
    %c0_i32 = arith.constant 0 : i32
    %c0_i32_0 = arith.constant 0 : i32
    return %arg0, %c0_i32 : i32, i32
  }
  func.func @transform_1(%arg0: i32) -> (i32, i32) {
    %c0_i32 = arith.constant 0 : i32
    %c0_i32_0 = arith.constant 0 : i32
    %c0_i32_1 = arith.constant 0 : i32
    return %c0_i32, %c0_i32_0 : i32, i32
  }
  func.func @transform_2(%arg0: i32) -> (i32, i32) {
    %c0_i32 = arith.constant 0 : i32
    %c0_i32_0 = arith.constant 0 : i32
    %c0_i32_1 = arith.constant 0 : i32
    return %c0_i32, %c0_i32_0 : i32, i32
  }
  func.func @transform_3(%arg0: i32) -> (i32, i32) {
    %c0_i32 = arith.constant 0 : i32
    %c0_i32_0 = arith.constant 0 : i32
    return %arg0, %c0_i32 : i32, i32
  }
  func.func @transform_4(%arg0: i32) -> (i32, i32) {
    %c0_i32 = arith.constant 0 : i32
    %c0_i32_0 = arith.constant 0 : i32
    return %arg0, %c0_i32 : i32, i32
  }
}

module attributes {stable_mosaic.version = 11 : i64} {
  func.func @_mm_bias_kernel(%arg0: i32, %arg1: memref<128x128xbf16, #tpu.memory_space<vmem>>, %arg2: memref<128x128xbf16, #tpu.memory_space<vmem>>, %arg3: memref<1x128xf32, #tpu.memory_space<vmem>>, %arg4: memref<128x128xbf16, #tpu.memory_space<vmem>>, %arg5: memref<128x128xbf16, #tpu.memory_space<vmem>>) attributes {dimension_semantics = [#tpu.dimension_semantics<parallel>], iteration_bounds = array<i64: 1>, scalar_prefetch = 0 : i64, scratch_operands = 0 : i64, tpu.core_type = #tpu.core_type<tc>, window_params = [{transform_indices = @transform_0, window_bounds = array<i64: 128, 128>}, {pipeline_mode = #tpu.pipeline_mode<synchronous>, transform_indices = @transform_1, window_bounds = array<i64: 128, 128>}, {pipeline_mode = #tpu.pipeline_mode<synchronous>, transform_indices = @transform_2, window_bounds = array<i64: 1, 128>}, {transform_indices = @transform_3, window_bounds = array<i64: 128, 128>}, {transform_indices = @transform_4, window_bounds = array<i64: 128, 128>}]} {
    %c0 = arith.constant 0 : index
    %c0_0 = arith.constant 0 : index
    %0 = vector.load %arg1[%c0, %c0_0] : memref<128x128xbf16, #tpu.memory_space<vmem>>, vector<128x128xbf16>
    %c0_1 = arith.constant 0 : index
    %c0_2 = arith.constant 0 : index
    %1 = vector.load %arg2[%c0_1, %c0_2] : memref<128x128xbf16, #tpu.memory_space<vmem>>, vector<128x128xbf16>
    %cst = arith.constant dense<0.000000e+00> : vector<128x128xf32>
    %2 = tpu.matmul %0, %1, %cst {dimension_numbers = #tpu.dot_dimension_numbers<[1], [0], [0], [1], [0, 0, 1, 1], [], []>} : vector<128x128xbf16>, vector<128x128xbf16>, vector<128x128xf32> -> vector<128x128xf32>
    %c0_3 = arith.constant 0 : index
    %c0_4 = arith.constant 0 : index
    %3 = vector.load %arg3[%c0_3, %c0_4] : memref<1x128xf32, #tpu.memory_space<vmem>>, vector<1x128xf32>
    %4 = vector.broadcast %3 : vector<1x128xf32> to vector<128x128xf32>
    %5 = arith.addf %2, %4 : vector<128x128xf32>
    %c0_5 = arith.constant 0 : index
    %c0_6 = arith.constant 0 : index
    %6 = vector.load %arg4[%c0_5, %c0_6] : memref<128x128xbf16, #tpu.memory_space<vmem>>, vector<128x128xbf16>
    %7 = arith.extf %6 : vector<128x128xbf16> to vector<128x128xf32>
    %8 = arith.addf %5, %7 : vector<128x128xf32>
    %cst_7 = arith.constant 0.000000e+00 : f32
    %9 = vector.broadcast %cst_7 : f32 to vector<128x128xf32>
    %10 = arith.maximumf %8, %9 : vector<128x128xf32>
    %11 = arith.truncf %10 : vector<128x128xf32> to vector<128x128xbf16>
    %c0_8 = arith.constant 0 : index
    %c0_9 = arith.constant 0 : index
    %12 = vector.load %arg5[%c0_8, %c0_9] : memref<128x128xbf16, #tpu.memory_space<vmem>>, vector<128x128xbf16>
    tpu.vector_store %arg5[%c0_8, %c0_9], %11 {strides = array<i32>} : memref<128x128xbf16, #tpu.memory_space<vmem>>, vector<128x128xbf16>,
    return
  }
  func.func @transform_0(%arg0: i32) -> (i32, i32) {
    %c0_i32 = arith.constant 0 : i32
    %c0_i32_0 = arith.constant 0 : i32
    return %arg0, %c0_i32 : i32, i32
  }
  func.func @transform_1(%arg0: i32) -> (i32, i32) {
    %c0_i32 = arith.constant 0 : i32
    %c0_i32_0 = arith.constant 0 : i32
    %c0_i32_1 = arith.constant 0 : i32
    return %c0_i32, %c0_i32_0 : i32, i32
  }
  func.func @transform_2(%arg0: i32) -> (i32, i32) {
    %c0_i32 = arith.constant 0 : i32
    %c0_i32_0 = arith.constant 0 : i32
    %c0_i32_1 = arith.constant 0 : i32
    return %c0_i32, %c0_i32_0 : i32, i32
  }
  func.func @transform_3(%arg0: i32) -> (i32, i32) {
    %c0_i32 = arith.constant 0 : i32
    %c0_i32_0 = arith.constant 0 : i32
    return %arg0, %c0_i32 : i32, i32
  }
  func.func @transform_4(%arg0: i32) -> (i32, i32) {
    %c0_i32 = arith.constant 0 : i32
    %c0_i32_0 = arith.constant 0 : i32
    return %arg0, %c0_i32 : i32, i32
  }
}

module attributes {stable_mosaic.version = 11 : i64} {
  func.func @_mm_bias_kernel(%arg0: i32, %arg1: memref<256x128xbf16, #tpu.memory_space<vmem>>, %arg2: memref<128x128xbf16, #tpu.memory_space<vmem>>, %arg3: memref<1x128xf32, #tpu.memory_space<vmem>>, %arg4: memref<256x128xf32, #tpu.memory_space<vmem>>) attributes {dimension_semantics = [#tpu.dimension_semantics<parallel>], iteration_bounds = array<i64: 2>, scalar_prefetch = 0 : i64, scratch_operands = 0 : i64, tpu.core_type = #tpu.core_type<tc>, window_params = [{transform_indices = @transform_0, window_bounds = array<i64: 256, 128>}, {pipeline_mode = #tpu.pipeline_mode<synchronous>, transform_indices = @transform_1, window_bounds = array<i64: 128, 128>}, {pipeline_mode = #tpu.pipeline_mode<synchronous>, transform_indices = @transform_2, window_bounds = array<i64: 1, 128>}, {transform_indices = @transform_3, window_bounds = array<i64: 256, 128>}]} {
    %c0 = arith.constant 0 : index
    %c0_0 = arith.constant 0 : index
    %0 = vector.load %arg1[%c0, %c0_0] : memref<256x128xbf16, #tpu.memory_space<vmem>>, vector<256x128xbf16>
    %c0_1 = arith.constant 0 : index
    %c0_2 = arith.constant 0 : index
    %1 = vector.load %arg2[%c0_1, %c0_2] : memref<128x128xbf16, #tpu.memory_space<vmem>>, vector<128x128xbf16>
    %cst = arith.constant dense<0.000000e+00> : vector<256x128xf32>
    %2 = tpu.matmul %0, %1, %cst {dimension_numbers = #tpu.dot_dimension_numbers<[1], [0], [0], [1], [0, 0, 1, 1], [], []>} : vector<256x128xbf16>, vector<128x128xbf16>, vector<256x128xf32> -> vector<256x128xf32>
    %c0_3 = arith.constant 0 : index
    %c0_4 = arith.constant 0 : index
    %3 = vector.load %arg3[%c0_3, %c0_4] : memref<1x128xf32, #tpu.memory_space<vmem>>, vector<1x128xf32>
    %4 = vector.broadcast %3 : vector<1x128xf32> to vector<256x128xf32>
    %5 = arith.addf %2, %4 : vector<256x128xf32>
    %c0_5 = arith.constant 0 : index
    %c0_6 = arith.constant 0 : index
    %6 = vector.load %arg4[%c0_5, %c0_6] : memref<256x128xf32, #tpu.memory_space<vmem>>, vector<256x128xf32>
    tpu.vector_store %arg4[%c0_5, %c0_6], %5 {strides = array<i32>} : memref<256x128xf32, #tpu.memory_space<vmem>>, vector<256x128xf32>,
    return
  }
  func.func @transform_0(%arg0: i32) -> (i32, i32) {
    %c0_i32 = arith.constant 0 : i32
    %c0_i32_0 = arith.constant 0 : i32
    return %arg0, %c0_i32 : i32, i32
  }
  func.func @transform_1(%arg0: i32) -> (i32, i32) {
    %c0_i32 = arith.constant 0 : i32
    %c0_i32_0 = arith.constant 0 : i32
    %c0_i32_1 = arith.constant 0 : i32
    return %c0_i32, %c0_i32_0 : i32, i32
  }
  func.func @transform_2(%arg0: i32) -> (i32, i32) {
    %c0_i32 = arith.constant 0 : i32
    %c0_i32_0 = arith.constant 0 : i32
    %c0_i32_1 = arith.constant 0 : i32
    return %c0_i32, %c0_i32_0 : i32, i32
  }
  func.func @transform_3(%arg0: i32) -> (i32, i32) {
    %c0_i32 = arith.constant 0 : i32
    %c0_i32_0 = arith.constant 0 : i32
    return %arg0, %c0_i32 : i32, i32
  }
}

module attributes {stable_mosaic.version = 11 : i64} {
  func.func @_mm_bias_kernel(%arg0: i32, %arg1: memref<256x32xbf16, #tpu.memory_space<vmem>>, %arg2: memref<32x128xbf16, #tpu.memory_space<vmem>>, %arg3: memref<1x128xf32, #tpu.memory_space<vmem>>, %arg4: memref<256x128xbf16, #tpu.memory_space<vmem>>, %arg5: memref<256x128xbf16, #tpu.memory_space<vmem>>) attributes {dimension_semantics = [#tpu.dimension_semantics<parallel>], iteration_bounds = array<i64: 2>, scalar_prefetch = 0 : i64, scratch_operands = 0 : i64, tpu.core_type = #tpu.core_type<tc>, window_params = [{transform_indices = @transform_0, window_bounds = array<i64: 256, 32>}, {pipeline_mode = #tpu.pipeline_mode<synchronous>, transform_indices = @transform_1, window_bounds = array<i64: 32, 128>}, {pipeline_mode = #tpu.pipeline_mode<synchronous>, transform_indices = @transform_2, window_bounds = array<i64: 1, 128>}, {transform_indices = @transform_3, window_bounds = array<i64: 256, 128>}, {transform_indices = @transform_4, window_bounds = array<i64: 256, 128>}]} {
    %c0 = arith.constant 0 : index
    %c0_0 = arith.constant 0 : index
    %0 = vector.load %arg1[%c0, %c0_0] : memref<256x32xbf16, #tpu.memory_space<vmem>>, vector<256x32xbf16>
    %c0_1 = arith.constant 0 : index
    %c0_2 = arith.constant 0 : index
    %1 = vector.load %arg2[%c0_1, %c0_2] : memref<32x128xbf16, #tpu.memory_space<vmem>>, vector<32x128xbf16>
    %cst = arith.constant dense<0.000000e+00> : vector<256x128xf32>
    %2 = tpu.matmul %0, %1, %cst {dimension_numbers = #tpu.dot_dimension_numbers<[1], [0], [0], [1], [0, 0, 1, 1], [], []>} : vector<256x32xbf16>, vector<32x128xbf16>, vector<256x128xf32> -> vector<256x128xf32>
    %c0_3 = arith.constant 0 : index
    %c0_4 = arith.constant 0 : index
    %3 = vector.load %arg3[%c0_3, %c0_4] : memref<1x128xf32, #tpu.memory_space<vmem>>, vector<1x128xf32>
    %4 = vector.broadcast %3 : vector<1x128xf32> to vector<256x128xf32>
    %5 = arith.addf %2, %4 : vector<256x128xf32>
    %c0_5 = arith.constant 0 : index
    %c0_6 = arith.constant 0 : index
    %6 = vector.load %arg4[%c0_5, %c0_6] : memref<256x128xbf16, #tpu.memory_space<vmem>>, vector<256x128xbf16>
    %7 = arith.extf %6 : vector<256x128xbf16> to vector<256x128xf32>
    %8 = arith.addf %5, %7 : vector<256x128xf32>
    %cst_7 = arith.constant 0.000000e+00 : f32
    %9 = vector.broadcast %cst_7 : f32 to vector<256x128xf32>
    %10 = arith.maximumf %8, %9 : vector<256x128xf32>
    %11 = arith.truncf %10 : vector<256x128xf32> to vector<256x128xbf16>
    %c0_8 = arith.constant 0 : index
    %c0_9 = arith.constant 0 : index
    %12 = vector.load %arg5[%c0_8, %c0_9] : memref<256x128xbf16, #tpu.memory_space<vmem>>, vector<256x128xbf16>
    tpu.vector_store %arg5[%c0_8, %c0_9], %11 {strides = array<i32>} : memref<256x128xbf16, #tpu.memory_space<vmem>>, vector<256x128xbf16>,
    return
  }
  func.func @transform_0(%arg0: i32) -> (i32, i32) {
    %c0_i32 = arith.constant 0 : i32
    %c0_i32_0 = arith.constant 0 : i32
    return %arg0, %c0_i32 : i32, i32
  }
  func.func @transform_1(%arg0: i32) -> (i32, i32) {
    %c0_i32 = arith.constant 0 : i32
    %c0_i32_0 = arith.constant 0 : i32
    %c0_i32_1 = arith.constant 0 : i32
    return %c0_i32, %c0_i32_0 : i32, i32
  }
  func.func @transform_2(%arg0: i32) -> (i32, i32) {
    %c0_i32 = arith.constant 0 : i32
    %c0_i32_0 = arith.constant 0 : i32
    %c0_i32_1 = arith.constant 0 : i32
    return %c0_i32, %c0_i32_0 : i32, i32
  }
  func.func @transform_3(%arg0: i32) -> (i32, i32) {
    %c0_i32 = arith.constant 0 : i32
    %c0_i32_0 = arith.constant 0 : i32
    return %arg0, %c0_i32 : i32, i32
  }
  func.func @transform_4(%arg0: i32) -> (i32, i32) {
    %c0_i32 = arith.constant 0 : i32
    %c0_i32_0 = arith.constant 0 : i32
    return %arg0, %c0_i32 : i32, i32
  }
}

</mosaic_0001>

<llo_original>
// kernel: spnet_forward.11
$region0: #{spnet_forward.11}
  #allocation0 [shape = 'u32[]', space=smem, size = 0x4, offset = 0x4, fixed_abs, tag = 'smem constant byte address 0x4 - core index']
  #allocation1 [shape = 'u32[144,128]{1,0:T(1,128)}', space=vmem, size = 0x12000, scoped, tag = 'internal scratch']
  %s0 = inlined_call_operand.vmem [shape: bf16[6,296,12], index: 0, kind: input, shape index: {}]
  %s1 = inlined_call_operand.vmem [shape: bf16[4,12,32], index: 1, kind: input, shape index: {}]
  %s2 = inlined_call_operand.vmem [shape: f32[1,32], index: 2, kind: input, shape index: {}]
  %s3 = inlined_call_operand.vmem [shape: bf16[6,272,32], index: 3, kind: output, shape index: {}]
  %s4 = sld [smem:[#allocation0]]
  $region45: #{spnet_forward.11} parent=0
    _
  %s6 = ssub.s32 1, %s4
  %s7 = scalar_select 0, %s6, %s4
  loop: start=0, step=1, limit=8
  $region2: #{spnet_forward.11} parent=0 // loop_pre_header
    _
  $region3: #{spnet_forward.11} parent=0 // loop_header
    %s9 = sphi 0, %s13
    %p10 = scmp.ge.s32.totalorder %s9, 8
    %s19 = sphi 0, %s21
    %s22 = sphi 0, %s19
    %s23 = sphi 0, %s22
    %s39 = sphi 0, %s23
    %s43 = sphi 0, %s43
    %s45 = sphi 0, %s43
    %s46 = sphi 0, %s45
    %s60 = sphi 0, %s46
    %s64 = sphi 0, %s64
    %s66 = sphi 0, %s64
    %s67 = sphi 0, %s66
    %s81 = sphi 0, %s67
    %s87 = sphi 0, %s89
    %s90 = sphi 0, %s87
    %s91 = sphi 0, %s90
    %s107 = sphi 0, %s91
  $region4: #{spnet_forward.11} parent=0 // loop_header_branch
    %12 = sbr.rel (%p10) target = $region8
  $region5: #{spnet_forward.11} parent=0 // loop_body
    %s14 = ssub.s32 %s9, 1
    %s15 = ssub.s32 %s9, 2
    %s16 = sadd.s32 %s9, 1
    %s17 = ssub.s32 %s9, %s16
    %p18 = scmp.eq.s32.totalorder %s17, 0
    %s20 = sadd.s32 %s19, 1
    %s21 = scalar_select %p18, %s19, %s20
    %p24 = pneg %p18
    %p25 = scmp.eq.s32.totalorder %s9, 5
    %p26 = por %p24, %p25
    %p27 = scmp.ne.s32.totalorder %s19, %s22
    %p28 = scmp.eq.s32.totalorder %s9, 0
    %p29 = por %p27, %p28
    %p30 = scmp.ne.s32.totalorder %s19, %s22
    %p31 = scmp.eq.s32.totalorder %s14, 5
    %p32 = por %p30, %p31
    %p33 = scmp.ne.s32.totalorder %s22, %s23
    %p34 = scmp.eq.s32.totalorder %s14, 0
    %p35 = por %p33, %p34
    %p36 = scmp.ne.s32.totalorder %s22, %s23
    %p37 = scmp.eq.s32.totalorder %s15, 5
    %p38 = por %p36, %p37
    %p40 = scmp.ne.s32.totalorder %s23, %s39
    %p41 = scmp.eq.s32.totalorder %s15, 0
    %p42 = por %p40, %p41
    %s44 = sadd.s32 %s43, 1
    %p47 = scmp.eq.s32.totalorder %s9, 5
    %p48 = scmp.ne.s32.totalorder %s43, %s45
    %p49 = scmp.eq.s32.totalorder %s9, 0
    %p50 = por %p48, %p49
    %p51 = scmp.ne.s32.totalorder %s43, %s45
    %p52 = scmp.eq.s32.totalorder %s14, 5
    %p53 = por %p51, %p52
    %p54 = scmp.ne.s32.totalorder %s45, %s46
    %p55 = scmp.eq.s32.totalorder %s14, 0
    %p56 = por %p54, %p55
    %p57 = scmp.ne.s32.totalorder %s45, %s46
    %p58 = scmp.eq.s32.totalorder %s15, 5
    %p59 = por %p57, %p58
    %p61 = scmp.ne.s32.totalorder %s46, %s60
    %p62 = scmp.eq.s32.totalorder %s15, 0
    %p63 = por %p61, %p62
    %s65 = sadd.s32 %s64, 1
    %p68 = scmp.eq.s32.totalorder %s9, 5
    %p69 = scmp.ne.s32.totalorder %s64, %s66
    %p70 = scmp.eq.s32.totalorder %s9, 0
    %p71 = por %p69, %p70
    %p72 = scmp.ne.s32.totalorder %s64, %s66
    %p73 = scmp.eq.s32.totalorder %s14, 5
    %p74 = por %p72, %p73
    %p75 = scmp.ne.s32.totalorder %s66, %s67
    %p76 = scmp.eq.s32.totalorder %s14, 0
    %p77 = por %p75, %p76
    %p78 = scmp.ne.s32.totalorder %s66, %s67
    %p79 = scmp.eq.s32.totalorder %s15, 5
    %p80 = por %p78, %p79
    %p82 = scmp.ne.s32.totalorder %s67, %s81
    %p83 = scmp.eq.s32.totalorder %s15, 0
    %p84 = por %p82, %p83
    %s85 = ssub.s32 %s9, %s16
    %p86 = scmp.eq.s32.totalorder %s85, 0
    %s88 = sadd.s32 %s87, 1
    %s89 = scalar_select %p86, %s87, %s88
    %p92 = pneg %p86
    %p93 = scmp.eq.s32.totalorder %s9, 5
    %p94 = por %p92, %p93
    %p95 = scmp.ne.s32.totalorder %s87, %s90
    %p96 = scmp.eq.s32.totalorder %s9, 0
    %p97 = por %p95, %p96
    %p98 = scmp.ne.s32.totalorder %s87, %s90
    %p99 = scmp.eq.s32.totalorder %s14, 5
    %p100 = por %p98, %p99
    %p101 = scmp.ne.s32.totalorder %s90, %s91
    %p102 = scmp.eq.s32.totalorder %s14, 0
    %p103 = por %p101, %p102
    %p104 = scmp.ne.s32.totalorder %s90, %s91
    %p105 = scmp.eq.s32.totalorder %s15, 5
    %p106 = por %p104, %p105
    %p108 = scmp.ne.s32.totalorder %s91, %s107
    %p109 = scmp.eq.s32.totalorder %s15, 0
    %p110 = por %p108, %p109
    %p111 = scmp.le.s32.totalorder 1, %s9
    %p112 = scmp.lt.s32.totalorder %s9, 7
    %p113 = pnand %p111, %p112
    %p114 = pneg %p113
    // Predicated region
    $region9: #{spnet_forward.11} parent=5 // pred_check
      _
    $region10: #{spnet_forward.11} parent=5 // pred_check_branch
      %116 = sbr.rel (%p113) target = $region12
    $region11: #{spnet_forward.11} parent=5 // pred_region
      %s117 = ssub.s32 %s9, 1
      // Predicated region
      $region13: #{spnet_forward.11} parent=11 // pred_check
        %p118 = pneg %p56
      $region14: #{spnet_forward.11} parent=11 // pred_check_branch
        %120 = sbr.rel (%p118) target = $region16
      $region15: #{spnet_forward.11} parent=11 // pred_region
        _
      $region16: #{spnet_forward.11} parent=11 // pred_fallthru
        _
      // Predicated region
      $region17: #{spnet_forward.11} parent=11 // pred_check
        %p121 = pneg %p77
      $region18: #{spnet_forward.11} parent=11 // pred_check_branch
        %123 = sbr.rel (%p121) target = $region20
      $region19: #{spnet_forward.11} parent=11 // pred_region
        _
      $region20: #{spnet_forward.11} parent=11 // pred_fallthru
        _
    $region12: #{spnet_forward.11} parent=5 // pred_fallthru
      _
    %p124 = scmp.lt.s32.totalorder %s9, 6
    // Predicated region
    $region21: #{spnet_forward.11} parent=5 // pred_check
      %p125 = pneg %p124
    $region22: #{spnet_forward.11} parent=5 // pred_check_branch
      %127 = sbr.rel (%p125) target = $region24
    $region23: #{spnet_forward.11} parent=5 // pred_region
      // Predicated region
      $region25: #{spnet_forward.11} parent=23 // pred_check
        %p128 = pneg %p29
      $region26: #{spnet_forward.11} parent=23 // pred_check_branch
        %130 = sbr.rel (%p128) target = $region28
      $region27: #{spnet_forward.11} parent=23 // pred_region
        %p131 = scmp.lt.s32.totalorder %s9, 5
        %s132 = scalar_select %p131, %s9, 5
        %s133 = smul.addr %s132, 37
        %s134 = smul.addr %s133, 4
        %s135 = scalar_lea.vmem %s0, %s134
      $region28: #{spnet_forward.11} parent=23 // pred_fallthru
        _
    $region24: #{spnet_forward.11} parent=5 // pred_fallthru
      _
    %p136 = scmp.le.s32.totalorder 1, %s9
    %p137 = scmp.lt.s32.totalorder %s9, 7
    %p138 = pnand %p136, %p137
    %p139 = pneg %p138
    // Predicated region
    $region29: #{spnet_forward.11} parent=5 // pred_check
      _
    $region30: #{spnet_forward.11} parent=5 // pred_check_branch
      %141 = sbr.rel (%p138) target = $region32
    $region31: #{spnet_forward.11} parent=5 // pred_region
      %s142 = ssub.s32 %s9, 1
      %p143 = scmp.lt.s32.totalorder %s14, 5
      %s144 = scalar_select %p143, %s14, 5
      %s145 = smul.addr %s144, 37
      %s146 = smul.addr %s145, 4
      %s147 = scalar_lea.vmem %s0, %s146
      %p148 = pneg %p35
      %p149 = pneg %p32
      %p150 = pneg %p56
      %p151 = pneg %p53
      %p152 = pneg %p77
      %p153 = pneg %p74
      %p154 = pneg %p103
      %p155 = pneg %p100
      %p156 = scmp.lt.s32.totalorder %s14, 5
      %s157 = scalar_select %p156, %s14, 5
      %s158 = smul.addr %s157, 34
      %s159 = smul.addr %s158, 4
      %s160 = scalar_lea.vmem %s3, %s159
      %p161 = scmp.lt.s32.totalorder %s14, 5
      %s162 = scalar_select %p161, %s14, 5
      %s163 = smul.addr %s162, 37
      %s164 = smul.addr %s163, 4
      %s165 = scalar_lea.vmem %s0, %s164
      %p166 = scmp.lt.s32.totalorder %s14, 5
      %s167 = scalar_select %p166, %s14, 5
      %s168 = smul.addr %s167, 34
      %s169 = smul.addr %s168, 4
      %s170 = scalar_lea.vmem %s3, %s169
      %v172 = vld [vmem:[%s165] sm:$0xf]
      %v173 = vld [vmem:[%s165 + $0x4] sm:$0xf]
      %v174 = vld [vmem:[%s165 + $0x8] sm:$0xf]
      %v175 = vld [vmem:[%s165 + $0xc] sm:$0xf]
      %v176 = vld [vmem:[%s165 + $0x10] sm:$0xf]
      %v177 = vld [vmem:[%s165 + $0x14] sm:$0xf]
      %v178 = vld [vmem:[%s165 + $0x18] sm:$0xf]
      %v179 = vld [vmem:[%s165 + $0x1c] sm:$0xf]
      %v180 = vld [vmem:[%s165 + $0x20] sm:$0xf]
      %v181 = vld [vmem:[%s165 + $0x24] sm:$0xf]
      %v182 = vld [vmem:[%s165 + $0x28] sm:$0xf]
      %v183 = vld [vmem:[%s165 + $0x2c] sm:$0xf]
      %v184 = vld [vmem:[%s165 + $0x30] sm:$0xf]
      %v185 = vld [vmem:[%s165 + $0x34] sm:$0xf]
      %v186 = vld [vmem:[%s165 + $0x38] sm:$0xf]
      %v187 = vld [vmem:[%s165 + $0x3c] sm:$0xf]
      %v188 = vld [vmem:[%s165 + $0x40] sm:$0xf]
      %v189 = vld [vmem:[%s165 + $0x44] sm:$0xf]
      %v190 = vld [vmem:[%s165 + $0x48] sm:$0xf]
      %v191 = vld [vmem:[%s165 + $0x4c] sm:$0xf]
      %v192 = vld [vmem:[%s165 + $0x50] sm:$0xf]
      %v193 = vld [vmem:[%s165 + $0x54] sm:$0xf]
      %v194 = vld [vmem:[%s165 + $0x58] sm:$0xf]
      %v195 = vld [vmem:[%s165 + $0x5c] sm:$0xf]
      %v196 = vld [vmem:[%s165 + $0x60] sm:$0xf]
      %v197 = vld [vmem:[%s165 + $0x64] sm:$0xf]
      %v198 = vld [vmem:[%s165 + $0x68] sm:$0xf]
      %v199 = vld [vmem:[%s165 + $0x6c] sm:$0xf]
      %v200 = vld [vmem:[%s165 + $0x70] sm:$0xf]
      %v201 = vld [vmem:[%s165 + $0x74] sm:$0xf]
      %v202 = vld [vmem:[%s165 + $0x78] sm:$0xf]
      %v203 = vld [vmem:[%s165 + $0x7c] sm:$0xf]
      %v204 = vld [vmem:[%s165 + $0x80] sm:$0xf]
      %v205 = vld [vmem:[%s165 + $0x84] sm:$0xf]
      %v206 = vld [vmem:[%s165 + $0x88] sm:$0xf]
      %v207 = vld [vmem:[%s165 + $0x8c] sm:$0xf]
      %v208 = vld [vmem:[%s165 + $0x90] sm:$0xf]
      %v209 = vld [vmem:[%s1] sm:$0xf]
      %v210 = vld [vmem:[%s1 + $0x4] sm:$0x3]
      %s211 = scalar_lea.vmem %s1, 8
      %v212 = vld [vmem:[%s211] sm:$0xf]
      %v213 = vld [vmem:[%s211 + $0x4] sm:$0x3]
      %v249 = vunpack.c.l.b16 %v172
      %v250 = vunpack.c.l.b16 %v173
      %v251 = vunpack.c.l.b16 %v174
      %v252 = vunpack.c.l.b16 %v175
      %v253 = vunpack.c.l.b16 %v176
      %v254 = vunpack.c.l.b16 %v177
      %v255 = vunpack.c.l.b16 %v178
      %v256 = vunpack.c.l.b16 %v179
      %v257 = vunpack.c.l.b16 %v180
      %v258 = vunpack.c.l.b16 %v181
      %v259 = vunpack.c.l.b16 %v182
      %v260 = vunpack.c.l.b16 %v183
      %v261 = vunpack.c.l.b16 %v184
      %v262 = vunpack.c.l.b16 %v185
      %v263 = vunpack.c.l.b16 %v186
      %v264 = vunpack.c.l.b16 %v187
      %v265 = vunpack.c.l.b16 %v188
      %v266 = vunpack.c.l.b16 %v189
      %v267 = vunpack.c.l.b16 %v190
      %v268 = vunpack.c.l.b16 %v191
      %v269 = vunpack.c.l.b16 %v192
      %v270 = vunpack.c.l.b16 %v193
      %v271 = vunpack.c.l.b16 %v194
      %v272 = vunpack.c.l.b16 %v195
      %v273 = vunpack.c.l.b16 %v196
      %v274 = vunpack.c.l.b16 %v197
      %v275 = vunpack.c.l.b16 %v198
      %v276 = vunpack.c.l.b16 %v199
      %v277 = vunpack.c.l.b16 %v200
      %v278 = vunpack.c.l.b16 %v201
      %v279 = vunpack.c.l.b16 %v202
      %v280 = vunpack.c.l.b16 %v203
      %v281 = vunpack.c.l.b16 %v204
      %v282 = vunpack.c.l.b16 %v205
      %v283 = vunpack.c.l.b16 %v206
      %v284 = vpack.c.b16 %v250, %v249
      %v285 = vpack.c.b16 %v252, %v251
      %v286 = vpack.c.b16 %v254, %v253
      %v287 = vpack.c.b16 %v256, %v255
      %v288 = vpack.c.b16 %v258, %v257
      %v289 = vpack.c.b16 %v260, %v259
      %v290 = vpack.c.b16 %v262, %v261
      %v291 = vpack.c.b16 %v264, %v263
      %v292 = vpack.c.b16 %v266, %v265
      %v293 = vpack.c.b16 %v268, %v267
      %v294 = vpack.c.b16 %v270, %v269
      %v295 = vpack.c.b16 %v272, %v271
      %v296 = vpack.c.b16 %v274, %v273
      %v297 = vpack.c.b16 %v276, %v275
      %v298 = vpack.c.b16 %v278, %v277
      %v299 = vpack.c.b16 %v280, %v279
      %v300 = vpack.c.b16 %v282, %v281
      %v301 = vpack.c.b16 %v283, %v283
      %vm302 = vsmask.f32 7424
      %v304 = vshrl.u32 %v284, 16
      %v306 = vshll.u32 %v284, 16
      %v308 = vrot.slane %v306, 1
      %v309 = vor.u32 %v304, %v308
      %v311 = vshll.u32 %v285, 16
      %v313 = vrot.slane %v311, 1
      %v314 = vsel %vm302, %v309, %v313
      %v315 = vshrl.u32 %v285, 16
      %v317 = vor.u32 %v315, %v313
      %v319 = vshll.u32 %v286, 16
      %v321 = vrot.slane %v319, 1
      %v322 = vsel %vm302, %v317, %v321
      %v323 = vshrl.u32 %v286, 16
      %v325 = vor.u32 %v323, %v321
      %v327 = vshll.u32 %v287, 16
      %v329 = vrot.slane %v327, 1
      %v330 = vsel %vm302, %v325, %v329
      %v331 = vshrl.u32 %v287, 16
      %v333 = vor.u32 %v331, %v329
      %v335 = vshll.u32 %v288, 16
      %v337 = vrot.slane %v335, 1
      %v338 = vsel %vm302, %v333, %v337
      %v339 = vshrl.u32 %v288, 16
      %v341 = vor.u32 %v339, %v337
      %v343 = vshll.u32 %v289, 16
      %v345 = vrot.slane %v343, 1
      %v346 = vsel %vm302, %v341, %v345
      %v347 = vshrl.u32 %v289, 16
      %v349 = vor.u32 %v347, %v345
      %v351 = vshll.u32 %v290, 16
      %v353 = vrot.slane %v351, 1
      %v354 = vsel %vm302, %v349, %v353
      %v355 = vshrl.u32 %v290, 16
      %v357 = vor.u32 %v355, %v353
      %v359 = vshll.u32 %v291, 16
      %v361 = vrot.slane %v359, 1
      %v362 = vsel %vm302, %v357, %v361
      %v363 = vshrl.u32 %v291, 16
      %v365 = vor.u32 %v363, %v361
      %v367 = vshll.u32 %v292, 16
      %v369 = vrot.slane %v367, 1
      %v370 = vsel %vm302, %v365, %v369
      %v371 = vshrl.u32 %v292, 16
      %v373 = vor.u32 %v371, %v369
      %v375 = vshll.u32 %v293, 16
      %v377 = vrot.slane %v375, 1
      %v378 = vsel %vm302, %v373, %v377
      %v379 = vshrl.u32 %v293, 16
      %v381 = vor.u32 %v379, %v377
      %v383 = vshll.u32 %v294, 16
      %v385 = vrot.slane %v383, 1
      %v386 = vsel %vm302, %v381, %v385
      %v387 = vshrl.u32 %v294, 16
      %v389 = vor.u32 %v387, %v385
      %v391 = vshll.u32 %v295, 16
      %v393 = vrot.slane %v391, 1
      %v394 = vsel %vm302, %v389, %v393
      %v395 = vshrl.u32 %v295, 16
      %v397 = vor.u32 %v395, %v393
      %v399 = vshll.u32 %v296, 16
      %v401 = vrot.slane %v399, 1
      %v402 = vsel %vm302, %v397, %v401
      %v403 = vshrl.u32 %v296, 16
      %v405 = vor.u32 %v403, %v401
      %v407 = vshll.u32 %v297, 16
      %v409 = vrot.slane %v407, 1
      %v410 = vsel %vm302, %v405, %v409
      %v411 = vshrl.u32 %v297, 16
      %v413 = vor.u32 %v411, %v409
      %v415 = vshll.u32 %v298, 16
      %v417 = vrot.slane %v415, 1
      %v418 = vsel %vm302, %v413, %v417
      %v419 = vshrl.u32 %v298, 16
      %v421 = vor.u32 %v419, %v417
      %v423 = vshll.u32 %v299, 16
      %v425 = vrot.slane %v423, 1
      %v426 = vsel %vm302, %v421, %v425
      %v427 = vshrl.u32 %v299, 16
      %v429 = vor.u32 %v427, %v425
      %v431 = vshll.u32 %v300, 16
      %v433 = vrot.slane %v431, 1
      %v434 = vsel %vm302, %v429, %v433
      %v435 = vshrl.u32 %v300, 16
      %v437 = vor.u32 %v435, %v433
      %v439 = vshll.u32 %v301, 16
      %v441 = vrot.slane %v439, 1
      %v442 = vsel %vm302, %v437, %v441
      %v445 = vunpack.c.l.b16 %v212
      %v446 = vunpack.c.l.b16 %v213
      %v447 = vpack.c.b16 %v446, %v445
      %vm448 = vcmask 97280
      %v450 = vsel %vm448, %v314, 0
      %v453 = vsel %vm448, %v322, 0
      %v456 = vsel %vm448, %v330, 0
      %v459 = vsel %vm448, %v338, 0
      %v462 = vsel %vm448, %v346, 0
      %v465 = vsel %vm448, %v354, 0
      %v468 = vsel %vm448, %v362, 0
      %v471 = vsel %vm448, %v370, 0
      %v474 = vsel %vm448, %v378, 0
      %v477 = vsel %vm448, %v386, 0
      %v480 = vsel %vm448, %v394, 0
      %v483 = vsel %vm448, %v402, 0
      %v486 = vsel %vm448, %v410, 0
      %v489 = vsel %vm448, %v418, 0
      %v492 = vsel %vm448, %v426, 0
      %v495 = vsel %vm448, %v434, 0
      %v498 = vsel %vm448, %v442, 0
      %vm500 = vcmask 1045504
      %v502 = vsel %vm500, %v447, 0
      %504 = vmatprep.subr.bf16.mxu0 0
      %505 = vmatpush1.bf16.msra.mxu0 %v502
      %506 = vmatprep.subr.bf16.mxu0 0
      %507 = vmatpush1.bf16.msra.mxu0 0
      %508 = vmatprep.subr.bf16.mxu0 0
      %509 = vmatpush1.bf16.msra.mxu0 0
      %510 = vmatprep.subr.bf16.mxu0 0
      %511 = vmatpush1.bf16.msra.mxu0 0
      %512 = vmatprep.subr.bf16.mxu0 0
      %513 = vmatpush1.bf16.msra.mxu0 0
      %514 = vmatprep.subr.bf16.mxu0 0
      %515 = vmatpush1.bf16.msra.mxu0 0
      %516 = vmatprep.subr.bf16.mxu0 0
      %517 = vmatpush1.bf16.msra.mxu0 0
      %518 = vmatprep.subr.bf16.mxu0 0
      %519 = vmatpush1.bf16.msra.mxu0 0
      %520 = vmatprep.subr.bf16.mxu0 0
      %521 = vmatpush1.bf16.msra.mxu0 0
      %522 = vmatprep.subr.bf16.mxu0 0
      %523 = vmatpush1.bf16.msra.mxu0 0
      %524 = vmatprep.subr.bf16.mxu0 0
      %525 = vmatpush1.bf16.msra.mxu0 0
      %526 = vmatprep.subr.bf16.mxu0 0
      %527 = vmatpush1.bf16.msra.mxu0 0
      %528 = vmatprep.subr.bf16.mxu0 0
      %529 = vmatpush1.bf16.msra.mxu0 0
      %530 = vmatprep.subr.bf16.mxu0 0
      %531 = vmatpush1.bf16.msra.mxu0 0
      %532 = vmatprep.subr.bf16.mxu0 0
      %533 = vmatpush1.bf16.msra.mxu0 0
      %534 = vmatprep.subr.bf16.mxu0 0
      %535 = vmatpush1.bf16.msra.mxu0 0
      %536 = vmatprep.mubr.bf16.mxu0 0
      %537 = vmatmul.mubr.bf16.gmra.mrb[0].mxu0 %v450
      %v538 = vpop.f32.mrb[0].mxu0
      %v539 = vadd.f32 0.0, %v538
      %v540 = vpop.f32.mrb[0].mxu0
      %v541 = vpop.f32.mrb[0].mxu0
      %v542 = vadd.f32 0.0, %v541
      %v543 = vpop.f32.mrb[0].mxu0
      %544 = vmatprep.mubr.bf16.mxu0 0
      %545 = vmatmul.mubr.bf16.gmra.mrb[0].mxu0 %v453
      %v546 = vpop.f32.mrb[0].mxu0
      %v547 = vadd.f32 0.0, %v546
      %v548 = vpop.f32.mrb[0].mxu0
      %v549 = vpop.f32.mrb[0].mxu0
      %v550 = vadd.f32 0.0, %v549
      %v551 = vpop.f32.mrb[0].mxu0
      %552 = vmatprep.mubr.bf16.mxu0 0
      %553 = vmatmul.mubr.bf16.gmra.mrb[0].mxu0 %v456
      %v554 = vpop.f32.mrb[0].mxu0
      %v555 = vadd.f32 0.0, %v554
      %v556 = vpop.f32.mrb[0].mxu0
      %v557 = vpop.f32.mrb[0].mxu0
      %v558 = vadd.f32 0.0, %v557
      %v559 = vpop.f32.mrb[0].mxu0
      %560 = vmatprep.mubr.bf16.mxu0 0
      %561 = vmatmul.mubr.bf16.gmra.mrb[0].mxu0 %v459
      %v562 = vpop.f32.mrb[0].mxu0
      %v563 = vadd.f32 0.0, %v562
      %v564 = vpop.f32.mrb[0].mxu0
      %v565 = vpop.f32.mrb[0].mxu0
      %v566 = vadd.f32 0.0, %v565
      %v567 = vpop.f32.mrb[0].mxu0
      %568 = vmatprep.mubr.bf16.mxu0 0
      %569 = vmatmul.mubr.bf16.gmra.mrb[0].mxu0 %v462
      %v570 = vpop.f32.mrb[0].mxu0
      %v571 = vadd.f32 0.0, %v570
      %v572 = vpop.f32.mrb[0].mxu0
      %v573 = vpop.f32.mrb[0].mxu0
      %v574 = vadd.f32 0.0, %v573
      %v575 = vpop.f32.mrb[0].mxu0
      %576 = vmatprep.mubr.bf16.mxu0 0
      %577 = vmatmul.mubr.bf16.gmra.mrb[0].mxu0 %v465
      %v578 = vpop.f32.mrb[0].mxu0
      %v579 = vadd.f32 0.0, %v578
      %v580 = vpop.f32.mrb[0].mxu0
      %v581 = vpop.f32.mrb[0].mxu0
      %v582 = vadd.f32 0.0, %v581
      %v583 = vpop.f32.mrb[0].mxu0
      %584 = vmatprep.mubr.bf16.mxu0 0
      %585 = vmatmul.mubr.bf16.gmra.mrb[0].mxu0 %v468
      %v586 = vpop.f32.mrb[0].mxu0
      %v587 = vadd.f32 0.0, %v586
      %v588 = vpop.f32.mrb[0].mxu0
      %v589 = vpop.f32.mrb[0].mxu0
      %v590 = vadd.f32 0.0, %v589
      %v591 = vpop.f32.mrb[0].mxu0
      %592 = vmatprep.mubr.bf16.mxu0 0
      %593 = vmatmul.mubr.bf16.gmra.mrb[0].mxu0 %v471
      %v594 = vpop.f32.mrb[0].mxu0
      %v595 = vadd.f32 0.0, %v594
      %v596 = vpop.f32.mrb[0].mxu0
      %v597 = vpop.f32.mrb[0].mxu0
      %v598 = vadd.f32 0.0, %v597
      %v599 = vpop.f32.mrb[0].mxu0
      %600 = vmatprep.mubr.bf16.mxu0 0
      %601 = vmatmul.mubr.bf16.gmra.mrb[0].mxu0 %v474
      %v602 = vpop.f32.mrb[0].mxu0
      %v603 = vadd.f32 0.0, %v602
      %v604 = vpop.f32.mrb[0].mxu0
      %v605 = vpop.f32.mrb[0].mxu0
      %v606 = vadd.f32 0.0, %v605
      %v607 = vpop.f32.mrb[0].mxu0
      %608 = vmatprep.mubr.bf16.mxu0 0
      %609 = vmatmul.mubr.bf16.gmra.mrb[0].mxu0 %v477
      %v610 = vpop.f32.mrb[0].mxu0
      %v611 = vadd.f32 0.0, %v610
      %v612 = vpop.f32.mrb[0].mxu0
      %v613 = vpop.f32.mrb[0].mxu0
      %v614 = vadd.f32 0.0, %v613
      %v615 = vpop.f32.mrb[0].mxu0
      %616 = vmatprep.mubr.bf16.mxu0 0
      %617 = vmatmul.mubr.bf16.gmra.mrb[0].mxu0 %v480
      %v618 = vpop.f32.mrb[0].mxu0
      %v619 = vadd.f32 0.0, %v618
      %v620 = vpop.f32.mrb[0].mxu0
      %v621 = vpop.f32.mrb[0].mxu0
      %v622 = vadd.f32 0.0, %v621
      %v623 = vpop.f32.mrb[0].mxu0
      %624 = vmatprep.mubr.bf16.mxu0 0
      %625 = vmatmul.mubr.bf16.gmra.mrb[0].mxu0 %v483
      %v626 = vpop.f32.mrb[0].mxu0
      %v627 = vadd.f32 0.0, %v626
      %v628 = vpop.f32.mrb[0].mxu0
      %v629 = vpop.f32.mrb[0].mxu0
      %v630 = vadd.f32 0.0, %v629
      %v631 = vpop.f32.mrb[0].mxu0
      %632 = vmatprep.mubr.bf16.mxu0 0
      %633 = vmatmul.mubr.bf16.gmra.mrb[0].mxu0 %v486
      %v634 = vpop.f32.mrb[0].mxu0
      %v635 = vadd.f32 0.0, %v634
      %v636 = vpop.f32.mrb[0].mxu0
      %v637 = vpop.f32.mrb[0].mxu0
      %v638 = vadd.f32 0.0, %v637
      %v639 = vpop.f32.mrb[0].mxu0
      %640 = vmatprep.mubr.bf16.mxu0 0
      %641 = vmatmul.mubr.bf16.gmra.mrb[0].mxu0 %v489
      %v642 = vpop.f32.mrb[0].mxu0
      %v643 = vadd.f32 0.0, %v642
      %v644 = vpop.f32.mrb[0].mxu0
      %v645 = vpop.f32.mrb[0].mxu0
      %v646 = vadd.f32 0.0, %v645
      %v647 = vpop.f32.mrb[0].mxu0
      %648 = vmatprep.mubr.bf16.mxu0 0
      %649 = vmatmul.mubr.bf16.gmra.mrb[0].mxu0 %v492
      %v650 = vpop.f32.mrb[0].mxu0
      %v651 = vadd.f32 0.0, %v650
      %v652 = vpop.f32.mrb[0].mxu0
      %v653 = vpop.f32.mrb[0].mxu0
      %v654 = vadd.f32 0.0, %v653
      %v655 = vpop.f32.mrb[0].mxu0
      %656 = vmatprep.mubr.bf16.mxu0 0
      %657 = vmatmul.mubr.bf16.gmra.mrb[0].mxu0 %v495
      %v658 = vpop.f32.mrb[0].mxu0
      %v659 = vadd.f32 0.0, %v658
      %v660 = vpop.f32.mrb[0].mxu0
      %v661 = vpop.f32.mrb[0].mxu0
      %v662 = vadd.f32 0.0, %v661
      %v663 = vpop.f32.mrb[0].mxu0
      %664 = vmatprep.mubr.bf16.mxu0 0
      %665 = vmatmul.mubr.bf16.gmra.mrb[0].mxu0 %v498
      %v666 = vpop.f32.mrb[0].mxu0
      %v667 = vadd.f32 0.0, %v666
      %v668 = vpop.f32.mrb[0].mxu0
      %v669 = vpop.f32.mrb[0].mxu0
      %v670 = vadd.f32 0.0, %v669
      %v671 = vpop.f32.mrb[0].mxu0
      %672 = vdwg.mxu0
      %v675 = vunpack.c.l.b16 %v209
      %v676 = vunpack.c.l.b16 %v210
      %v677 = vpack.c.b16 %v676, %v675
      %v678 = vsel %vm448, %v284, 0
      %v680 = vsel %vm448, %v285, 0
      %v682 = vsel %vm448, %v286, 0
      %v684 = vsel %vm448, %v287, 0
      %v686 = vsel %vm448, %v288, 0
      %v688 = vsel %vm448, %v289, 0
      %v690 = vsel %vm448, %v290, 0
      %v692 = vsel %vm448, %v291, 0
      %v694 = vsel %vm448, %v292, 0
      %v696 = vsel %vm448, %v293, 0
      %v698 = vsel %vm448, %v294, 0
      %v700 = vsel %vm448, %v295, 0
      %v702 = vsel %vm448, %v296, 0
      %v704 = vsel %vm448, %v297, 0
      %v706 = vsel %vm448, %v298, 0
      %v708 = vsel %vm448, %v299, 0
      %v710 = vsel %vm448, %v300, 0
      %v713 = vsel %vm500, %v677, 0
      %715 = vmatprep.subr.bf16.mxu0 0
      %716 = vmatpush1.bf16.msra.mxu0 %v713
      %717 = vmatprep.subr.bf16.mxu0 0
      %718 = vmatpush1.bf16.msra.mxu0 0
      %719 = vmatprep.subr.bf16.mxu0 0
      %720 = vmatpush1.bf16.msra.mxu0 0
      %721 = vmatprep.subr.bf16.mxu0 0
      %722 = vmatpush1.bf16.msra.mxu0 0
      %723 = vmatprep.subr.bf16.mxu0 0
      %724 = vmatpush1.bf16.msra.mxu0 0
      %725 = vmatprep.subr.bf16.mxu0 0
      %726 = vmatpush1.bf16.msra.mxu0 0
      %727 = vmatprep.subr.bf16.mxu0 0
      %728 = vmatpush1.bf16.msra.mxu0 0
      %729 = vmatprep.subr.bf16.mxu0 0
      %730 = vmatpush1.bf16.msra.mxu0 0
      %731 = vmatprep.subr.bf16.mxu0 0
      %732 = vmatpush1.bf16.msra.mxu0 0
      %733 = vmatprep.subr.bf16.mxu0 0
      %734 = vmatpush1.bf16.msra.mxu0 0
      %735 = vmatprep.subr.bf16.mxu0 0
      %736 = vmatpush1.bf16.msra.mxu0 0
      %737 = vmatprep.subr.bf16.mxu0 0
      %738 = vmatpush1.bf16.msra.mxu0 0
      %739 = vmatprep.subr.bf16.mxu0 0
      %740 = vmatpush1.bf16.msra.mxu0 0
      %741 = vmatprep.subr.bf16.mxu0 0
      %742 = vmatpush1.bf16.msra.mxu0 0
      %743 = vmatprep.subr.bf16.mxu0 0
      %744 = vmatpush1.bf16.msra.mxu0 0
      %745 = vmatprep.subr.bf16.mxu0 0
      %746 = vmatpush1.bf16.msra.mxu0 0
      %747 = vmatprep.mubr.bf16.mxu0 0
      %748 = vmatmul.mubr.bf16.gmra.mrb[0].mxu0 %v678
      %v749 = vpop.f32.mrb[0].mxu0
      %v750 = vadd.f32 %v539, %v749
      %v751 = vpop.f32.mrb[0].mxu0
      %v752 = vpop.f32.mrb[0].mxu0
      %v753 = vadd.f32 %v542, %v752
      %v754 = vpop.f32.mrb[0].mxu0
      %755 = vmatprep.mubr.bf16.mxu0 0
      %756 = vmatmul.mubr.bf16.gmra.mrb[0].mxu0 %v680
      %v757 = vpop.f32.mrb[0].mxu0
      %v758 = vadd.f32 %v547, %v757
      %v759 = vpop.f32.mrb[0].mxu0
      %v760 = vpop.f32.mrb[0].mxu0
      %v761 = vadd.f32 %v550, %v760
      %v762 = vpop.f32.mrb[0].mxu0
      %763 = vmatprep.mubr.bf16.mxu0 0
      %764 = vmatmul.mubr.bf16.gmra.mrb[0].mxu0 %v682
      %v765 = vpop.f32.mrb[0].mxu0
      %v766 = vadd.f32 %v555, %v765
      %v767 = vpop.f32.mrb[0].mxu0
      %v768 = vpop.f32.mrb[0].mxu0
      %v769 = vadd.f32 %v558, %v768
      %v770 = vpop.f32.mrb[0].mxu0
      %771 = vmatprep.mubr.bf16.mxu0 0
      %772 = vmatmul.mubr.bf16.gmra.mrb[0].mxu0 %v684
      %v773 = vpop.f32.mrb[0].mxu0
      %v774 = vadd.f32 %v563, %v773
      %v775 = vpop.f32.mrb[0].mxu0
      %v776 = vpop.f32.mrb[0].mxu0
      %v777 = vadd.f32 %v566, %v776
      %v778 = vpop.f32.mrb[0].mxu0
      %779 = vmatprep.mubr.bf16.mxu0 0
      %780 = vmatmul.mubr.bf16.gmra.mrb[0].mxu0 %v686
      %v781 = vpop.f32.mrb[0].mxu0
      %v782 = vadd.f32 %v571, %v781
      %v783 = vpop.f32.mrb[0].mxu0
      %v784 = vpop.f32.mrb[0].mxu0
      %v785 = vadd.f32 %v574, %v784
      %v786 = vpop.f32.mrb[0].mxu0
      %787 = vmatprep.mubr.bf16.mxu0 0
      %788 = vmatmul.mubr.bf16.gmra.mrb[0].mxu0 %v688
      %v789 = vpop.f32.mrb[0].mxu0
      %v790 = vadd.f32 %v579, %v789
      %v791 = vpop.f32.mrb[0].mxu0
      %v792 = vpop.f32.mrb[0].mxu0
      %v793 = vadd.f32 %v582, %v792
      %v794 = vpop.f32.mrb[0].mxu0
      %795 = vmatprep.mubr.bf16.mxu0 0
      %796 = vmatmul.mubr.bf16.gmra.mrb[0].mxu0 %v690
      %v797 = vpop.f32.mrb[0].mxu0
      %v798 = vadd.f32 %v587, %v797
      %v799 = vpop.f32.mrb[0].mxu0
      %v800 = vpop.f32.mrb[0].mxu0
      %v801 = vadd.f32 %v590, %v800
      %v802 = vpop.f32.mrb[0].mxu0
      %803 = vmatprep.mubr.bf16.mxu0 0
      %804 = vmatmul.mubr.bf16.gmra.mrb[0].mxu0 %v692
      %v805 = vpop.f32.mrb[0].mxu0
      %v806 = vadd.f32 %v595, %v805
      %v807 = vpop.f32.mrb[0].mxu0
      %v808 = vpop.f32.mrb[0].mxu0
      %v809 = vadd.f32 %v598, %v808
      %v810 = vpop.f32.mrb[0].mxu0
      %811 = vmatprep.mubr.bf16.mxu0 0
      %812 = vmatmul.mubr.bf16.gmra.mrb[0].mxu0 %v694
      %v813 = vpop.f32.mrb[0].mxu0
      %v814 = vadd.f32 %v603, %v813
      %v815 = vpop.f32.mrb[0].mxu0
      %v816 = vpop.f32.mrb[0].mxu0
      %v817 = vadd.f32 %v606, %v816
      %v818 = vpop.f32.mrb[0].mxu0
      %819 = vmatprep.mubr.bf16.mxu0 0
      %820 = vmatmul.mubr.bf16.gmra.mrb[0].mxu0 %v696
      %v821 = vpop.f32.mrb[0].mxu0
      %v822 = vadd.f32 %v611, %v821
      %v823 = vpop.f32.mrb[0].mxu0
      %v824 = vpop.f32.mrb[0].mxu0
      %v825 = vadd.f32 %v614, %v824
      %v826 = vpop.f32.mrb[0].mxu0
      %827 = vmatprep.mubr.bf16.mxu0 0
      %828 = vmatmul.mubr.bf16.gmra.mrb[0].mxu0 %v698
      %v829 = vpop.f32.mrb[0].mxu0
      %v830 = vadd.f32 %v619, %v829
      %v831 = vpop.f32.mrb[0].mxu0
      %v832 = vpop.f32.mrb[0].mxu0
      %v833 = vadd.f32 %v622, %v832
      %v834 = vpop.f32.mrb[0].mxu0
      %835 = vmatprep.mubr.bf16.mxu0 0
      %836 = vmatmul.mubr.bf16.gmra.mrb[0].mxu0 %v700
      %v837 = vpop.f32.mrb[0].mxu0
      %v838 = vadd.f32 %v627, %v837
      %v839 = vpop.f32.mrb[0].mxu0
      %v840 = vpop.f32.mrb[0].mxu0
      %v841 = vadd.f32 %v630, %v840
      %v842 = vpop.f32.mrb[0].mxu0
      %843 = vmatprep.mubr.bf16.mxu0 0
      %844 = vmatmul.mubr.bf16.gmra.mrb[0].mxu0 %v702
      %v845 = vpop.f32.mrb[0].mxu0
      %v846 = vadd.f32 %v635, %v845
      %v847 = vpop.f32.mrb[0].mxu0
      %v848 = vpop.f32.mrb[0].mxu0
      %v849 = vadd.f32 %v638, %v848
      %v850 = vpop.f32.mrb[0].mxu0
      %851 = vmatprep.mubr.bf16.mxu0 0
      %852 = vmatmul.mubr.bf16.gmra.mrb[0].mxu0 %v704
      %v853 = vpop.f32.mrb[0].mxu0
      %v854 = vadd.f32 %v643, %v853
      %v855 = vpop.f32.mrb[0].mxu0
      %v856 = vpop.f32.mrb[0].mxu0
      %v857 = vadd.f32 %v646, %v856
      %v858 = vpop.f32.mrb[0].mxu0
      %859 = vmatprep.mubr.bf16.mxu0 0
      %860 = vmatmul.mubr.bf16.gmra.mrb[0].mxu0 %v706
      %v861 = vpop.f32.mrb[0].mxu0
      %v862 = vadd.f32 %v651, %v861
      %v863 = vpop.f32.mrb[0].mxu0
      %v864 = vpop.f32.mrb[0].mxu0
      %v865 = vadd.f32 %v654, %v864
      %v866 = vpop.f32.mrb[0].mxu0
      %867 = vmatprep.mubr.bf16.mxu0 0
      %868 = vmatmul.mubr.bf16.gmra.mrb[0].mxu0 %v708
      %v869 = vpop.f32.mrb[0].mxu0
      %v870 = vadd.f32 %v659, %v869
      %v871 = vpop.f32.mrb[0].mxu0
      %v872 = vpop.f32.mrb[0].mxu0
      %v873 = vadd.f32 %v662, %v872
      %v874 = vpop.f32.mrb[0].mxu0
      %875 = vmatprep.mubr.bf16.mxu0 0
      %876 = vmatmul.mubr.bf16.gmra.mrb[0].mxu0 %v710
      %v877 = vpop.f32.mrb[0].mxu0
      %v878 = vadd.f32 %v667, %v877
      %v879 = vpop.f32.mrb[0].mxu0
      %v880 = vpop.f32.mrb[0].mxu0
      %v881 = vadd.f32 %v670, %v880
      %v882 = vpop.f32.mrb[0].mxu0
      %883 = vdwg.mxu0
      %s884 = scalar_lea.vmem %s1, 16
      %v885 = vld [vmem:[%s884] sm:$0xf]
      %v886 = vld [vmem:[%s884 + $0x4] sm:$0x3]
      %v889 = vunpack.c.l.b16 %v207
      %v890 = vunpack.c.l.b16 %v208
      %v891 = vpack.c.b16 %v889, %v283
      %v892 = vpack.c.b16 %v890, %v890
      %v894 = vshll.u32 %v891, 16
      %v896 = vrot.slane %v894, 1
      %v897 = vsel %vm302, %v437, %v896
      %v898 = vshrl.u32 %v891, 16
      %v900 = vor.u32 %v898, %v896
      %v902 = vshll.u32 %v892, 16
      %v904 = vrot.slane %v902, 1
      %v905 = vsel %vm302, %v900, %v904
      %v908 = vunpack.c.l.b16 %v885
      %v909 = vunpack.c.l.b16 %v886
      %v910 = vpack.c.b16 %v909, %v908
      %v912 = vsel %vm448, %v897, 0
      %v915 = vsel %vm448, %v905, 0
      %v918 = vsel %vm500, %v910, 0
      %920 = vmatprep.subr.bf16.mxu0 0
      %921 = vmatpush1.bf16.msra.mxu0 %v918
      %922 = vmatprep.subr.bf16.mxu0 0
      %923 = vmatpush1.bf16.msra.mxu0 0
      %924 = vmatprep.subr.bf16.mxu0 0
      %925 = vmatpush1.bf16.msra.mxu0 0
      %926 = vmatprep.subr.bf16.mxu0 0
      %927 = vmatpush1.bf16.msra.mxu0 0
      %928 = vmatprep.subr.bf16.mxu0 0
      %929 = vmatpush1.bf16.msra.mxu0 0
      %930 = vmatprep.subr.bf16.mxu0 0
      %931 = vmatpush1.bf16.msra.mxu0 0
      %932 = vmatprep.subr.bf16.mxu0 0
      %933 = vmatpush1.bf16.msra.mxu0 0
      %934 = vmatprep.subr.bf16.mxu0 0
      %935 = vmatpush1.bf16.msra.mxu0 0
      %936 = vmatprep.subr.bf16.mxu0 0
      %937 = vmatpush1.bf16.msra.mxu0 0
      %938 = vmatprep.subr.bf16.mxu0 0
      %939 = vmatpush1.bf16.msra.mxu0 0
      %940 = vmatprep.subr.bf16.mxu0 0
      %941 = vmatpush1.bf16.msra.mxu0 0
      %942 = vmatprep.subr.bf16.mxu0 0
      %943 = vmatpush1.bf16.msra.mxu0 0
      %944 = vmatprep.subr.bf16.mxu0 0
      %945 = vmatpush1.bf16.msra.mxu0 0
      %946 = vmatprep.subr.bf16.mxu0 0
      %947 = vmatpush1.bf16.msra.mxu0 0
      %948 = vmatprep.subr.bf16.mxu0 0
      %949 = vmatpush1.bf16.msra.mxu0 0
      %950 = vmatprep.subr.bf16.mxu0 0
      %951 = vmatpush1.bf16.msra.mxu0 0
      %952 = vmatprep.mubr.bf16.mxu0 0
      %953 = vmatmul.mubr.bf16.gmra.mrb[0].mxu0 %v453
      %v954 = vpop.f32.mrb[0].mxu0
      %v955 = vadd.f32 0.0, %v954
      %v956 = vpop.f32.mrb[0].mxu0
      %v957 = vpop.f32.mrb[0].mxu0
      %v958 = vadd.f32 0.0, %v957
      %v959 = vpop.f32.mrb[0].mxu0
      %960 = vmatprep.mubr.bf16.mxu0 0
      %961 = vmatmul.mubr.bf16.gmra.mrb[0].mxu0 %v456
      %v962 = vpop.f32.mrb[0].mxu0
      %v963 = vadd.f32 0.0, %v962
      %v964 = vpop.f32.mrb[0].mxu0
      %v965 = vpop.f32.mrb[0].mxu0
      %v966 = vadd.f32 0.0, %v965
      %v967 = vpop.f32.mrb[0].mxu0
      %968 = vmatprep.mubr.bf16.mxu0 0
      %969 = vmatmul.mubr.bf16.gmra.mrb[0].mxu0 %v459
      %v970 = vpop.f32.mrb[0].mxu0
      %v971 = vadd.f32 0.0, %v970
      %v972 = vpop.f32.mrb[0].mxu0
      %v973 = vpop.f32.mrb[0].mxu0
      %v974 = vadd.f32 0.0, %v973
      %v975 = vpop.f32.mrb[0].mxu0
      %976 = vmatprep.mubr.bf16.mxu0 0
      %977 = vmatmul.mubr.bf16.gmra.mrb[0].mxu0 %v462
      %v978 = vpop.f32.mrb[0].mxu0
      %v979 = vadd.f32 0.0, %v978
      %v980 = vpop.f32.mrb[0].mxu0
      %v981 = vpop.f32.mrb[0].mxu0
      %v982 = vadd.f32 0.0, %v981
      %v983 = vpop.f32.mrb[0].mxu0
      %984 = vmatprep.mubr.bf16.mxu0 0
      %985 = vmatmul.mubr.bf16.gmra.mrb[0].mxu0 %v465
      %v986 = vpop.f32.mrb[0].mxu0
      %v987 = vadd.f32 0.0, %v986
      %v988 = vpop.f32.mrb[0].mxu0
      %v989 = vpop.f32.mrb[0].mxu0
      %v990 = vadd.f32 0.0, %v989
      %v991 = vpop.f32.mrb[0].mxu0
      %992 = vmatprep.mubr.bf16.mxu0 0
      %993 = vmatmul.mubr.bf16.gmra.mrb[0].mxu0 %v468
      %v994 = vpop.f32.mrb[0].mxu0
      %v995 = vadd.f32 0.0, %v994
      %v996 = vpop.f32.mrb[0].mxu0
      %v997 = vpop.f32.mrb[0].mxu0
      %v998 = vadd.f32 0.0, %v997
      %v999 = vpop.f32.mrb[0].mxu0
      %1000 = vmatprep.mubr.bf16.mxu0 0
      %1001 = vmatmul.mubr.bf16.gmra.mrb[0].mxu0 %v471
      %v1002 = vpop.f32.mrb[0].mxu0
      %v1003 = vadd.f32 0.0, %v1002
      %v1004 = vpop.f32.mrb[0].mxu0
      %v1005 = vpop.f32.mrb[0].mxu0
      %v1006 = vadd.f32 0.0, %v1005
      %v1007 = vpop.f32.mrb[0].mxu0
      %1008 = vmatprep.mubr.bf16.mxu0 0
      %1009 = vmatmul.mubr.bf16.gmra.mrb[0].mxu0 %v474
      %v1010 = vpop.f32.mrb[0].mxu0
      %v1011 = vadd.f32 0.0, %v1010
      %v1012 = vpop.f32.mrb[0].mxu0
      %v1013 = vpop.f32.mrb[0].mxu0
      %v1014 = vadd.f32 0.0, %v1013
      %v1015 = vpop.f32.mrb[0].mxu0
      %1016 = vmatprep.mubr.bf16.mxu0 0
      %1017 = vmatmul.mubr.bf16.gmra.mrb[0].mxu0 %v477
      %v1018 = vpop.f32.mrb[0].mxu0
      %v1019 = vadd.f32 0.0, %v1018
      %v1020 = vpop.f32.mrb[0].mxu0
      %v1021 = vpop.f32.mrb[0].mxu0
      %v1022 = vadd.f32 0.0, %v1021
      %v1023 = vpop.f32.mrb[0].mxu0
      %1024 = vmatprep.mubr.bf16.mxu0 0
      %1025 = vmatmul.mubr.bf16.gmra.mrb[0].mxu0 %v480
      %v1026 = vpop.f32.mrb[0].mxu0
      %v1027 = vadd.f32 0.0, %v1026
      %v1028 = vpop.f32.mrb[0].mxu0
      %v1029 = vpop.f32.mrb[0].mxu0
      %v1030 = vadd.f32 0.0, %v1029
      %v1031 = vpop.f32.mrb[0].mxu0
      %1032 = vmatprep.mubr.bf16.mxu0 0
      %1033 = vmatmul.mubr.bf16.gmra.mrb[0].mxu0 %v483
      %v1034 = vpop.f32.mrb[0].mxu0
      %v1035 = vadd.f32 0.0, %v1034
      %v1036 = vpop.f32.mrb[0].mxu0
      %v1037 = vpop.f32.mrb[0].mxu0
      %v1038 = vadd.f32 0.0, %v1037
      %v1039 = vpop.f32.mrb[0].mxu0
      %1040 = vmatprep.mubr.bf16.mxu0 0
      %1041 = vmatmul.mubr.bf16.gmra.mrb[0].mxu0 %v486
      %v1042 = vpop.f32.mrb[0].mxu0
      %v1043 = vadd.f32 0.0, %v1042
      %v1044 = vpop.f32.mrb[0].mxu0
      %v1045 = vpop.f32.mrb[0].mxu0
      %v1046 = vadd.f32 0.0, %v1045
      %v1047 = vpop.f32.mrb[0].mxu0
      %1048 = vmatprep.mubr.bf16.mxu0 0
      %1049 = vmatmul.mubr.bf16.gmra.mrb[0].mxu0 %v489
      %v1050 = vpop.f32.mrb[0].mxu0
      %v1051 = vadd.f32 0.0, %v1050
      %v1052 = vpop.f32.mrb[0].mxu0
      %v1053 = vpop.f32.mrb[0].mxu0
      %v1054 = vadd.f32 0.0, %v1053
      %v1055 = vpop.f32.mrb[0].mxu0
      %1056 = vmatprep.mubr.bf16.mxu0 0
      %1057 = vmatmul.mubr.bf16.gmra.mrb[0].mxu0 %v492
      %v1058 = vpop.f32.mrb[0].mxu0
      %v1059 = vadd.f32 0.0, %v1058
      %v1060 = vpop.f32.mrb[0].mxu0
      %v1061 = vpop.f32.mrb[0].mxu0
      %v1062 = vadd.f32 0.0, %v1061
      %v1063 = vpop.f32.mrb[0].mxu0
      %1064 = vmatprep.mubr.bf16.mxu0 0
      %1065 = vmatmul.mubr.bf16.gmra.mrb[0].mxu0 %v495
      %v1066 = vpop.f32.mrb[0].mxu0
      %v1067 = vadd.f32 0.0, %v1066
      %v1068 = vpop.f32.mrb[0].mxu0
      %v1069 = vpop.f32.mrb[0].mxu0
      %v1070 = vadd.f32 0.0, %v1069
      %v1071 = vpop.f32.mrb[0].mxu0
      %1072 = vmatprep.mubr.bf16.mxu0 0
      %1073 = vmatmul.mubr.bf16.gmra.mrb[0].mxu0 %v912
      %v1074 = vpop.f32.mrb[0].mxu0
      %v1075 = vadd.f32 0.0, %v1074
      %v1076 = vpop.f32.mrb[0].mxu0
      %v1077 = vpop.f32.mrb[0].mxu0
      %v1078 = vadd.f32 0.0, %v1077
      %v1079 = vpop.f32.mrb[0].mxu0
      %1080 = vmatprep.mubr.bf16.mxu0 0
      %1081 = vmatmul.mubr.bf16.gmra.mrb[0].mxu0 %v915
      %v1082 = vpop.f32.mrb[0].mxu0
      %v1083 = vadd.f32 0.0, %v1082
      %v1084 = vpop.f32.mrb[0].mxu0
      %v1085 = vpop.f32.mrb[0].mxu0
      %v1086 = vadd.f32 0.0, %v1085
      %v1087 = vpop.f32.mrb[0].mxu0
      %1088 = vdwg.mxu0
      %v1089 = vadd.f32 %v750, %v955
      %v1090 = vadd.f32 %v753, %v958
      %v1091 = vadd.f32 %v758, %v963
      %v1092 = vadd.f32 %v761, %v966
      %v1093 = vadd.f32 %v766, %v971
      %v1094 = vadd.f32 %v769, %v974
      %v1095 = vadd.f32 %v774, %v979
      %v1096 = vadd.f32 %v777, %v982
      %v1097 = vadd.f32 %v782, %v987
      %v1098 = vadd.f32 %v785, %v990
      %v1099 = vadd.f32 %v790, %v995
      %v1100 = vadd.f32 %v793, %v998
      %v1101 = vadd.f32 %v798, %v1003
      %v1102 = vadd.f32 %v801, %v1006
      %v1103 = vadd.f32 %v806, %v1011
      %v1104 = vadd.f32 %v809, %v1014
      %v1105 = vadd.f32 %v814, %v1019
      %v1106 = vadd.f32 %v817, %v1022
      %v1107 = vadd.f32 %v822, %v1027
      %v1108 = vadd.f32 %v825, %v1030
      %v1109 = vadd.f32 %v830, %v1035
      %v1110 = vadd.f32 %v833, %v1038
      %v1111 = vadd.f32 %v838, %v1043
      %v1112 = vadd.f32 %v841, %v1046
      %v1113 = vadd.f32 %v846, %v1051
      %v1114 = vadd.f32 %v849, %v1054
      %v1115 = vadd.f32 %v854, %v1059
      %v1116 = vadd.f32 %v857, %v1062
      %v1117 = vadd.f32 %v862, %v1067
      %v1118 = vadd.f32 %v865, %v1070
      %v1119 = vadd.f32 %v870, %v1075
      %v1120 = vadd.f32 %v873, %v1078
      %v1121 = vadd.f32 %v878, %v1083
      %v1122 = vadd.f32 %v881, %v1086
      %s1123 = scalar_lea.vmem %s1, 24
      %v1124 = vld [vmem:[%s1123] sm:$0xf]
      %v1125 = vld [vmem:[%s1123 + $0x4] sm:$0x3]
      %vm1126 = vcmask 1046528
      %v1127 = vrot.slane %v285, 1
      %v1128 = vrot.slane %v286, 1
      %v1129 = vsel %vm1126, %v1127, %v1128
      %v1130 = vrot.slane %v287, 1
      %v1131 = vsel %vm1126, %v1128, %v1130
      %v1132 = vrot.slane %v288, 1
      %v1133 = vsel %vm1126, %v1130, %v1132
      %v1134 = vrot.slane %v289, 1
      %v1135 = vsel %vm1126, %v1132, %v1134
      %v1136 = vrot.slane %v290, 1
      %v1137 = vsel %vm1126, %v1134, %v1136
      %v1138 = vrot.slane %v291, 1
      %v1139 = vsel %vm1126, %v1136, %v1138
      %v1140 = vrot.slane %v292, 1
      %v1141 = vsel %vm1126, %v1138, %v1140
      %v1142 = vrot.slane %v293, 1
      %v1143 = vsel %vm1126, %v1140, %v1142
      %v1144 = vrot.slane %v294, 1
      %v1145 = vsel %vm1126, %v1142, %v1144
      %v1146 = vrot.slane %v295, 1
      %v1147 = vsel %vm1126, %v1144, %v1146
      %v1148 = vrot.slane %v296, 1
      %v1149 = vsel %vm1126, %v1146, %v1148
      %v1150 = vrot.slane %v297, 1
      %v1151 = vsel %vm1126, %v1148, %v1150
      %v1152 = vrot.slane %v298, 1
      %v1153 = vsel %vm1126, %v1150, %v1152
      %v1154 = vrot.slane %v299, 1
      %v1155 = vsel %vm1126, %v1152, %v1154
      %v1156 = vrot.slane %v300, 1
      %v1157 = vsel %vm1126, %v1154, %v1156
      %v1158 = vrot.slane %v891, 1
      %v1159 = vsel %vm1126, %v1156, %v1158
      %v1160 = vrot.slane %v892, 1
      %v1161 = vsel %vm1126, %v1158, %v1160
      %v1164 = vunpack.c.l.b16 %v1124
      %v1165 = vunpack.c.l.b16 %v1125
      %v1166 = vpack.c.b16 %v1165, %v1164
      %v1168 = vsel %vm448, %v1129, 0
      %v1171 = vsel %vm448, %v1131, 0
      %v1174 = vsel %vm448, %v1133, 0
      %v1177 = vsel %vm448, %v1135, 0
      %v1180 = vsel %vm448, %v1137, 0
      %v1183 = vsel %vm448, %v1139, 0
      %v1186 = vsel %vm448, %v1141, 0
      %v1189 = vsel %vm448, %v1143, 0
      %v1192 = vsel %vm448, %v1145, 0
      %v1195 = vsel %vm448, %v1147, 0
      %v1198 = vsel %vm448, %v1149, 0
      %v1201 = vsel %vm448, %v1151, 0
      %v1204 = vsel %vm448, %v1153, 0
      %v1207 = vsel %vm448, %v1155, 0
      %v1210 = vsel %vm448, %v1157, 0
      %v1213 = vsel %vm448, %v1159, 0
      %v1216 = vsel %vm448, %v1161, 0
      %v1219 = vsel %vm500, %v1166, 0
      %1221 = vmatprep.subr.bf16.mxu0 0
      %1222 = vmatpush1.bf16.msra.mxu0 %v1219
      %1223 = vmatprep.subr.bf16.mxu0 0
      %1224 = vmatpush1.bf16.msra.mxu0 0
      %1225 = vmatprep.subr.bf16.mxu0 0
      %1226 = vmatpush1.bf16.msra.mxu0 0
      %1227 = vmatprep.subr.bf16.mxu0 0
      %1228 = vmatpush1.bf16.msra.mxu0 0
      %1229 = vmatprep.subr.bf16.mxu0 0
      %1230 = vmatpush1.bf16.msra.mxu0 0
      %1231 = vmatprep.subr.bf16.mxu0 0
      %1232 = vmatpush1.bf16.msra.mxu0 0
      %1233 = vmatprep.subr.bf16.mxu0 0
      %1234 = vmatpush1.bf16.msra.mxu0 0
      %1235 = vmatprep.subr.bf16.mxu0 0
      %1236 = vmatpush1.bf16.msra.mxu0 0
      %1237 = vmatprep.subr.bf16.mxu0 0
      %1238 = vmatpush1.bf16.msra.mxu0 0
      %1239 = vmatprep.subr.bf16.mxu0 0
      %1240 = vmatpush1.bf16.msra.mxu0 0
      %1241 = vmatprep.subr.bf16.mxu0 0
      %1242 = vmatpush1.bf16.msra.mxu0 0
      %1243 = vmatprep.subr.bf16.mxu0 0
      %1244 = vmatpush1.bf16.msra.mxu0 0
      %1245 = vmatprep.subr.bf16.mxu0 0
      %1246 = vmatpush1.bf16.msra.mxu0 0
      %1247 = vmatprep.subr.bf16.mxu0 0
      %1248 = vmatpush1.bf16.msra.mxu0 0
      %1249 = vmatprep.subr.bf16.mxu0 0
      %1250 = vmatpush1.bf16.msra.mxu0 0
      %1251 = vmatprep.subr.bf16.mxu0 0
      %1252 = vmatpush1.bf16.msra.mxu0 0
      %1253 = vmatprep.mubr.bf16.mxu0 0
      %1254 = vmatmul.mubr.bf16.gmra.mrb[0].mxu0 %v1168
      %v1255 = vpop.f32.mrb[0].mxu0
      %v1256 = vadd.f32 0.0, %v1255
      %v1257 = vpop.f32.mrb[0].mxu0
      %v1258 = vpop.f32.mrb[0].mxu0
      %v1259 = vadd.f32 0.0, %v1258
      %v1260 = vpop.f32.mrb[0].mxu0
      %1261 = vmatprep.mubr.bf16.mxu0 0
      %1262 = vmatmul.mubr.bf16.gmra.mrb[0].mxu0 %v1171
      %v1263 = vpop.f32.mrb[0].mxu0
      %v1264 = vadd.f32 0.0, %v1263
      %v1265 = vpop.f32.mrb[0].mxu0
      %v1266 = vpop.f32.mrb[0].mxu0
      %v1267 = vadd.f32 0.0, %v1266
      %v1268 = vpop.f32.mrb[0].mxu0
      %1269 = vmatprep.mubr.bf16.mxu0 0
      %1270 = vmatmul.mubr.bf16.gmra.mrb[0].mxu0 %v1174
      %v1271 = vpop.f32.mrb[0].mxu0
      %v1272 = vadd.f32 0.0, %v1271
      %v1273 = vpop.f32.mrb[0].mxu0
      %v1274 = vpop.f32.mrb[0].mxu0
      %v1275 = vadd.f32 0.0, %v1274
      %v1276 = vpop.f32.mrb[0].mxu0
      %1277 = vmatprep.mubr.bf16.mxu0 0
      %1278 = vmatmul.mubr.bf16.gmra.mrb[0].mxu0 %v1177
      %v1279 = vpop.f32.mrb[0].mxu0
      %v1280 = vadd.f32 0.0, %v1279
      %v1281 = vpop.f32.mrb[0].mxu0
      %v1282 = vpop.f32.mrb[0].mxu0
      %v1283 = vadd.f32 0.0, %v1282
      %v1284 = vpop.f32.mrb[0].mxu0
      %1285 = vmatprep.mubr.bf16.mxu0 0
      %1286 = vmatmul.mubr.bf16.gmra.mrb[0].mxu0 %v1180
      %v1287 = vpop.f32.mrb[0].mxu0
      %v1288 = vadd.f32 0.0, %v1287
      %v1289 = vpop.f32.mrb[0].mxu0
      %v1290 = vpop.f32.mrb[0].mxu0
      %v1291 = vadd.f32 0.0, %v1290
      %v1292 = vpop.f32.mrb[0].mxu0
      %1293 = vmatprep.mubr.bf16.mxu0 0
      %1294 = vmatmul.mubr.bf16.gmra.mrb[0].mxu0 %v1183
      %v1295 = vpop.f32.mrb[0].mxu0
      %v1296 = vadd.f32 0.0, %v1295
      %v1297 = vpop.f32.mrb[0].mxu0
      %v1298 = vpop.f32.mrb[0].mxu0
      %v1299 = vadd.f32 0.0, %v1298
      %v1300 = vpop.f32.mrb[0].mxu0
      %1301 = vmatprep.mubr.bf16.mxu0 0
      %1302 = vmatmul.mubr.bf16.gmra.mrb[0].mxu0 %v1186
      %v1303 = vpop.f32.mrb[0].mxu0
      %v1304 = vadd.f32 0.0, %v1303
      %v1305 = vpop.f32.mrb[0].mxu0
      %v1306 = vpop.f32.mrb[0].mxu0
      %v1307 = vadd.f32 0.0, %v1306
      %v1308 = vpop.f32.mrb[0].mxu0
      %1309 = vmatprep.mubr.bf16.mxu0 0
      %1310 = vmatmul.mubr.bf16.gmra.mrb[0].mxu0 %v1189
      %v1311 = vpop.f32.mrb[0].mxu0
      %v1312 = vadd.f32 0.0, %v1311
      %v1313 = vpop.f32.mrb[0].mxu0
      %v1314 = vpop.f32.mrb[0].mxu0
      %v1315 = vadd.f32 0.0, %v1314
      %v1316 = vpop.f32.mrb[0].mxu0
      %1317 = vmatprep.mubr.bf16.mxu0 0
      %1318 = vmatmul.mubr.bf16.gmra.mrb[0].mxu0 %v1192
      %v1319 = vpop.f32.mrb[0].mxu0
      %v1320 = vadd.f32 0.0, %v1319
      %v1321 = vpop.f32.mrb[0].mxu0
      %v1322 = vpop.f32.mrb[0].mxu0
      %v1323 = vadd.f32 0.0, %v1322
      %v1324 = vpop.f32.mrb[0].mxu0
      %1325 = vmatprep.mubr.bf16.mxu0 0
      %1326 = vmatmul.mubr.bf16.gmra.mrb[0].mxu0 %v1195
      %v1327 = vpop.f32.mrb[0].mxu0
      %v1328 = vadd.f32 0.0, %v1327
      %v1329 = vpop.f32.mrb[0].mxu0
      %v1330 = vpop.f32.mrb[0].mxu0
      %v1331 = vadd.f32 0.0, %v1330
      %v1332 = vpop.f32.mrb[0].mxu0
      %1333 = vmatprep.mubr.bf16.mxu0 0
      %1334 = vmatmul.mubr.bf16.gmra.mrb[0].mxu0 %v1198
      %v1335 = vpop.f32.mrb[0].mxu0
      %v1336 = vadd.f32 0.0, %v1335
      %v1337 = vpop.f32.mrb[0].mxu0
      %v1338 = vpop.f32.mrb[0].mxu0
      %v1339 = vadd.f32 0.0, %v1338
      %v1340 = vpop.f32.mrb[0].mxu0
      %1341 = vmatprep.mubr.bf16.mxu0 0
      %1342 = vmatmul.mubr.bf16.gmra.mrb[0].mxu0 %v1201
      %v1343 = vpop.f32.mrb[0].mxu0
      %v1344 = vadd.f32 0.0, %v1343
      %v1345 = vpop.f32.mrb[0].mxu0
      %v1346 = vpop.f32.mrb[0].mxu0
      %v1347 = vadd.f32 0.0, %v1346
      %v1348 = vpop.f32.mrb[0].mxu0
      %1349 = vmatprep.mubr.bf16.mxu0 0
      %1350 = vmatmul.mubr.bf16.gmra.mrb[0].mxu0 %v1204
      %v1351 = vpop.f32.mrb[0].mxu0
      %v1352 = vadd.f32 0.0, %v1351
      %v1353 = vpop.f32.mrb[0].mxu0
      %v1354 = vpop.f32.mrb[0].mxu0
      %v1355 = vadd.f32 0.0, %v1354
      %v1356 = vpop.f32.mrb[0].mxu0
      %1357 = vmatprep.mubr.bf16.mxu0 0
      %1358 = vmatmul.mubr.bf16.gmra.mrb[0].mxu0 %v1207
      %v1359 = vpop.f32.mrb[0].mxu0
      %v1360 = vadd.f32 0.0, %v1359
      %v1361 = vpop.f32.mrb[0].mxu0
      %v1362 = vpop.f32.mrb[0].mxu0
      %v1363 = vadd.f32 0.0, %v1362
      %v1364 = vpop.f32.mrb[0].mxu0
      %1365 = vmatprep.mubr.bf16.mxu0 0
      %1366 = vmatmul.mubr.bf16.gmra.mrb[0].mxu0 %v1210
      %v1367 = vpop.f32.mrb[0].mxu0
      %v1368 = vadd.f32 0.0, %v1367
      %v1369 = vpop.f32.mrb[0].mxu0
      %v1370 = vpop.f32.mrb[0].mxu0
      %v1371 = vadd.f32 0.0, %v1370
      %v1372 = vpop.f32.mrb[0].mxu0
      %1373 = vmatprep.mubr.bf16.mxu0 0
      %1374 = vmatmul.mubr.bf16.gmra.mrb[0].mxu0 %v1213
      %v1375 = vpop.f32.mrb[0].mxu0
      %v1376 = vadd.f32 0.0, %v1375
      %v1377 = vpop.f32.mrb[0].mxu0
      %v1378 = vpop.f32.mrb[0].mxu0
      %v1379 = vadd.f32 0.0, %v1378
      %v1380 = vpop.f32.mrb[0].mxu0
      %1381 = vmatprep.mubr.bf16.mxu0 0
      %1382 = vmatmul.mubr.bf16.gmra.mrb[0].mxu0 %v1216
      %v1383 = vpop.f32.mrb[0].mxu0
      %v1384 = vadd.f32 0.0, %v1383
      %v1385 = vpop.f32.mrb[0].mxu0
      %v1386 = vpop.f32.mrb[0].mxu0
      %v1387 = vadd.f32 0.0, %v1386
      %v1388 = vpop.f32.mrb[0].mxu0
      %1389 = vdwg.mxu0
      %v1390 = vadd.f32 %v1089, %v1256
      %v1391 = vadd.f32 %v1090, %v1259
      %v1392 = vadd.f32 %v1091, %v1264
      %v1393 = vadd.f32 %v1092, %v1267
      %v1394 = vadd.f32 %v1093, %v1272
      %v1395 = vadd.f32 %v1094, %v1275
      %v1396 = vadd.f32 %v1095, %v1280
      %v1397 = vadd.f32 %v1096, %v1283
      %v1398 = vadd.f32 %v1097, %v1288
      %v1399 = vadd.f32 %v1098, %v1291
      %v1400 = vadd.f32 %v1099, %v1296
      %v1401 = vadd.f32 %v1100, %v1299
      %v1402 = vadd.f32 %v1101, %v1304
      %v1403 = vadd.f32 %v1102, %v1307
      %v1404 = vadd.f32 %v1103, %v1312
      %v1405 = vadd.f32 %v1104, %v1315
      %v1406 = vadd.f32 %v1105, %v1320
      %v1407 = vadd.f32 %v1106, %v1323
      %v1408 = vadd.f32 %v1107, %v1328
      %v1409 = vadd.f32 %v1108, %v1331
      %v1410 = vadd.f32 %v1109, %v1336
      %v1411 = vadd.f32 %v1110, %v1339
      %v1412 = vadd.f32 %v1111, %v1344
      %v1413 = vadd.f32 %v1112, %v1347
      %v1414 = vadd.f32 %v1113, %v1352
      %v1415 = vadd.f32 %v1114, %v1355
      %v1416 = vadd.f32 %v1115, %v1360
      %v1417 = vadd.f32 %v1116, %v1363
      %v1418 = vadd.f32 %v1117, %v1368
      %v1419 = vadd.f32 %v1118, %v1371
      %v1420 = vadd.f32 %v1119, %v1376
      %v1421 = vadd.f32 %v1120, %v1379
      %v1422 = vadd.f32 %v1121, %v1384
      %v1423 = vadd.f32 %v1122, %v1387
      %v1424 = vld [vmem:[%s2] sm:$0x1]
      %v1426 = vlaneseq
      %v1427 = vshrl.u32 %v1426, 7
      %v1428 = vsub.s32 0, %v1427
      %v1429 = vrot.slane %v1424, %v1428
      %v1431 = vadd.f32 %v1390, %v1429
      %v1432 = vadd.f32 %v1391, %v1429
      %v1433 = vadd.f32 %v1392, %v1429
      %v1434 = vadd.f32 %v1393, %v1429
      %v1435 = vadd.f32 %v1394, %v1429
      %v1436 = vadd.f32 %v1395, %v1429
      %v1437 = vadd.f32 %v1396, %v1429
      %v1438 = vadd.f32 %v1397, %v1429
      %v1439 = vadd.f32 %v1398, %v1429
      %v1440 = vadd.f32 %v1399, %v1429
      %v1441 = vadd.f32 %v1400, %v1429
      %v1442 = vadd.f32 %v1401, %v1429
      %v1443 = vadd.f32 %v1402, %v1429
      %v1444 = vadd.f32 %v1403, %v1429
      %v1445 = vadd.f32 %v1404, %v1429
      %v1446 = vadd.f32 %v1405, %v1429
      %v1447 = vadd.f32 %v1406, %v1429
      %v1448 = vadd.f32 %v1407, %v1429
      %v1449 = vadd.f32 %v1408, %v1429
      %v1450 = vadd.f32 %v1409, %v1429
      %v1451 = vadd.f32 %v1410, %v1429
      %v1452 = vadd.f32 %v1411, %v1429
      %v1453 = vadd.f32 %v1412, %v1429
      %v1454 = vadd.f32 %v1413, %v1429
      %v1455 = vadd.f32 %v1414, %v1429
      %v1456 = vadd.f32 %v1415, %v1429
      %v1457 = vadd.f32 %v1416, %v1429
      %v1458 = vadd.f32 %v1417, %v1429
      %v1459 = vadd.f32 %v1418, %v1429
      %v1460 = vadd.f32 %v1419, %v1429
      %v1461 = vadd.f32 %v1420, %v1429
      %v1462 = vadd.f32 %v1421, %v1429
      %v1463 = vadd.f32 %v1422, %v1429
      %v1464 = vadd.f32 %v1423, %v1429
      %v1465 = vmax.f32 %v1431, 0.0
      %v1466 = vmax.f32 %v1432, 0.0
      %v1467 = vmax.f32 %v1433, 0.0
      %v1468 = vmax.f32 %v1434, 0.0
      %v1469 = vmax.f32 %v1435, 0.0
      %v1470 = vmax.f32 %v1436, 0.0
      %v1471 = vmax.f32 %v1437, 0.0
      %v1472 = vmax.f32 %v1438, 0.0
      %v1473 = vmax.f32 %v1439, 0.0
      %v1474 = vmax.f32 %v1440, 0.0
      %v1475 = vmax.f32 %v1441, 0.0
      %v1476 = vmax.f32 %v1442, 0.0
      %v1477 = vmax.f32 %v1443, 0.0
      %v1478 = vmax.f32 %v1444, 0.0
      %v1479 = vmax.f32 %v1445, 0.0
      %v1480 = vmax.f32 %v1446, 0.0
      %v1481 = vmax.f32 %v1447, 0.0
      %v1482 = vmax.f32 %v1448, 0.0
      %v1483 = vmax.f32 %v1449, 0.0
      %v1484 = vmax.f32 %v1450, 0.0
      %v1485 = vmax.f32 %v1451, 0.0
      %v1486 = vmax.f32 %v1452, 0.0
      %v1487 = vmax.f32 %v1453, 0.0
      %v1488 = vmax.f32 %v1454, 0.0
      %v1489 = vmax.f32 %v1455, 0.0
      %v1490 = vmax.f32 %v1456, 0.0
      %v1491 = vmax.f32 %v1457, 0.0
      %v1492 = vmax.f32 %v1458, 0.0
      %v1493 = vmax.f32 %v1459, 0.0
      %v1494 = vmax.f32 %v1460, 0.0
      %v1495 = vmax.f32 %v1461, 0.0
      %v1496 = vmax.f32 %v1462, 0.0
      %v1497 = vmax.f32 %v1463, 0.0
      %v1498 = vmax.f32 %v1464, 0.0
      %v1499 = vpack.c.bf16 %v1466, %v1465
      %v1500 = vpack.c.bf16 %v1468, %v1467
      %v1501 = vpack.c.bf16 %v1470, %v1469
      %v1502 = vpack.c.bf16 %v1472, %v1471
      %v1503 = vpack.c.bf16 %v1474, %v1473
      %v1504 = vpack.c.bf16 %v1476, %v1475
      %v1505 = vpack.c.bf16 %v1478, %v1477
      %v1506 = vpack.c.bf16 %v1480, %v1479
      %v1507 = vpack.c.bf16 %v1482, %v1481
      %v1508 = vpack.c.bf16 %v1484, %v1483
      %v1509 = vpack.c.bf16 %v1486, %v1485
      %v1510 = vpack.c.bf16 %v1488, %v1487
      %v1511 = vpack.c.bf16 %v1490, %v1489
      %v1512 = vpack.c.bf16 %v1492, %v1491
      %v1513 = vpack.c.bf16 %v1494, %v1493
      %v1514 = vpack.c.bf16 %v1496, %v1495
      %v1515 = vpack.c.bf16 %v1498, %v1497
      %v1533 = vunpack.c.l.b16 %v1499
      %v1534 = vunpack.c.h.b16 %v1499
      %v1535 = vunpack.c.l.b16 %v1500
      %v1536 = vunpack.c.h.b16 %v1500
      %v1537 = vunpack.c.l.b16 %v1501
      %v1538 = vunpack.c.h.b16 %v1501
      %v1539 = vunpack.c.l.b16 %v1502
      %v1540 = vunpack.c.h.b16 %v1502
      %v1541 = vunpack.c.l.b16 %v1503
      %v1542 = vunpack.c.h.b16 %v1503
      %v1543 = vunpack.c.l.b16 %v1504
      %v1544 = vunpack.c.h.b16 %v1504
      %v1545 = vunpack.c.l.b16 %v1505
      %v1546 = vunpack.c.h.b16 %v1505
      %v1547 = vunpack.c.l.b16 %v1506
      %v1548 = vunpack.c.h.b16 %v1506
      %v1549 = vunpack.c.l.b16 %v1507
      %v1550 = vunpack.c.h.b16 %v1507
      %v1551 = vunpack.c.l.b16 %v1508
      %v1552 = vunpack.c.h.b16 %v1508
      %v1553 = vunpack.c.l.b16 %v1509
      %v1554 = vunpack.c.h.b16 %v1509
      %v1555 = vunpack.c.l.b16 %v1510
      %v1556 = vunpack.c.h.b16 %v1510
      %v1557 = vunpack.c.l.b16 %v1511
      %v1558 = vunpack.c.h.b16 %v1511
      %v1559 = vunpack.c.l.b16 %v1512
      %v1560 = vunpack.c.h.b16 %v1512
      %v1561 = vunpack.c.l.b16 %v1513
      %v1562 = vunpack.c.h.b16 %v1513
      %v1563 = vunpack.c.l.b16 %v1514
      %v1564 = vunpack.c.h.b16 %v1514
      %v1565 = vunpack.c.l.b16 %v1515
      %v1566 = vunpack.c.h.b16 %v1515
      %v1567 = vpack.c.b16 %v1533, %v1533
      %v1568 = vpack.c.b16 %v1534, %v1534
      %v1569 = vpack.c.b16 %v1535, %v1535
      %v1570 = vpack.c.b16 %v1536, %v1536
      %v1571 = vpack.c.b16 %v1537, %v1537
      %v1572 = vpack.c.b16 %v1538, %v1538
      %v1573 = vpack.c.b16 %v1539, %v1539
      %v1574 = vpack.c.b16 %v1540, %v1540
      %v1575 = vpack.c.b16 %v1541, %v1541
      %v1576 = vpack.c.b16 %v1542, %v1542
      %v1577 = vpack.c.b16 %v1543, %v1543
      %v1578 = vpack.c.b16 %v1544, %v1544
      %v1579 = vpack.c.b16 %v1545, %v1545
      %v1580 = vpack.c.b16 %v1546, %v1546
      %v1581 = vpack.c.b16 %v1547, %v1547
      %v1582 = vpack.c.b16 %v1548, %v1548
      %v1583 = vpack.c.b16 %v1549, %v1549
      %v1584 = vpack.c.b16 %v1550, %v1550
      %v1585 = vpack.c.b16 %v1551, %v1551
      %v1586 = vpack.c.b16 %v1552, %v1552
      %v1587 = vpack.c.b16 %v1553, %v1553
      %v1588 = vpack.c.b16 %v1554, %v1554
      %v1589 = vpack.c.b16 %v1555, %v1555
      %v1590 = vpack.c.b16 %v1556, %v1556
      %v1591 = vpack.c.b16 %v1557, %v1557
      %v1592 = vpack.c.b16 %v1558, %v1558
      %v1593 = vpack.c.b16 %v1559, %v1559
      %v1594 = vpack.c.b16 %v1560, %v1560
      %v1595 = vpack.c.b16 %v1561, %v1561
      %v1596 = vpack.c.b16 %v1562, %v1562
      %v1597 = vpack.c.b16 %v1563, %v1563
      %v1598 = vpack.c.b16 %v1564, %v1564
      %v1599 = vpack.c.b16 %v1565, %v1565
      %v1600 = vpack.c.b16 %v1566, %v1566
      %vm1635 = vcmask 257024
      %1636 = vst.msk [vmem:[%s170] sm:$0xf] %vm1635, %v1567
      %1637 = vst.msk [vmem:[%s170 + $0x4] sm:$0xf] %vm1635, %v1568
      %1638 = vst.msk [vmem:[%s170 + $0x8] sm:$0xf] %vm1635, %v1569
      %1639 = vst.msk [vmem:[%s170 + $0xc] sm:$0xf] %vm1635, %v1570
      %1640 = vst.msk [vmem:[%s170 + $0x10] sm:$0xf] %vm1635, %v1571
      %1641 = vst.msk [vmem:[%s170 + $0x14] sm:$0xf] %vm1635, %v1572
      %1642 = vst.msk [vmem:[%s170 + $0x18] sm:$0xf] %vm1635, %v1573
      %1643 = vst.msk [vmem:[%s170 + $0x1c] sm:$0xf] %vm1635, %v1574
      %1644 = vst.msk [vmem:[%s170 + $0x20] sm:$0xf] %vm1635, %v1575
      %1645 = vst.msk [vmem:[%s170 + $0x24] sm:$0xf] %vm1635, %v1576
      %1646 = vst.msk [vmem:[%s170 + $0x28] sm:$0xf] %vm1635, %v1577
      %1647 = vst.msk [vmem:[%s170 + $0x2c] sm:$0xf] %vm1635, %v1578
      %1648 = vst.msk [vmem:[%s170 + $0x30] sm:$0xf] %vm1635, %v1579
      %1649 = vst.msk [vmem:[%s170 + $0x34] sm:$0xf] %vm1635, %v1580
      %1650 = vst.msk [vmem:[%s170 + $0x38] sm:$0xf] %vm1635, %v1581
      %1651 = vst.msk [vmem:[%s170 + $0x3c] sm:$0xf] %vm1635, %v1582
      %1652 = vst.msk [vmem:[%s170 + $0x40] sm:$0xf] %vm1635, %v1583
      %1653 = vst.msk [vmem:[%s170 + $0x44] sm:$0xf] %vm1635, %v1584
      %1654 = vst.msk [vmem:[%s170 + $0x48] sm:$0xf] %vm1635, %v1585
      %1655 = vst.msk [vmem:[%s170 + $0x4c] sm:$0xf] %vm1635, %v1586
      %1656 = vst.msk [vmem:[%s170 + $0x50] sm:$0xf] %vm1635, %v1587
      %1657 = vst.msk [vmem:[%s170 + $0x54] sm:$0xf] %vm1635, %v1588
      %1658 = vst.msk [vmem:[%s170 + $0x58] sm:$0xf] %vm1635, %v1589
      %1659 = vst.msk [vmem:[%s170 + $0x5c] sm:$0xf] %vm1635, %v1590
      %1660 = vst.msk [vmem:[%s170 + $0x60] sm:$0xf] %vm1635, %v1591
      %1661 = vst.msk [vmem:[%s170 + $0x64] sm:$0xf] %vm1635, %v1592
      %1662 = vst.msk [vmem:[%s170 + $0x68] sm:$0xf] %vm1635, %v1593
      %1663 = vst.msk [vmem:[%s170 + $0x6c] sm:$0xf] %vm1635, %v1594
      %1664 = vst.msk [vmem:[%s170 + $0x70] sm:$0xf] %vm1635, %v1595
      %1665 = vst.msk [vmem:[%s170 + $0x74] sm:$0xf] %vm1635, %v1596
      %1666 = vst.msk [vmem:[%s170 + $0x78] sm:$0xf] %vm1635, %v1597
      %1667 = vst.msk [vmem:[%s170 + $0x7c] sm:$0xf] %vm1635, %v1598
      %1668 = vst.msk [vmem:[%s170 + $0x80] sm:$0xf] %vm1635, %v1599
      %1669 = vst.msk [vmem:[%s170 + $0x84] sm:$0xf] %vm1635, %v1600
      %p1670 = scmp.lt.s32.totalorder %s14, 5
      %s1671 = scalar_select %p1670, %s14, 5
      %s1672 = smul.addr %s1671, 34
      %s1673 = smul.addr %s1672, 4
      %s1674 = scalar_lea.vmem %s3, %s1673
      // Predicated region
      $region33: #{spnet_forward.11} parent=31 // pred_check
        %p1675 = pneg %p100
      $region34: #{spnet_forward.11} parent=31 // pred_check_branch
        %1677 = sbr.rel (%p1675) target = $region36
      $region35: #{spnet_forward.11} parent=31 // pred_region
        _
      $region36: #{spnet_forward.11} parent=31 // pred_fallthru
        _
    $region32: #{spnet_forward.11} parent=5 // pred_fallthru
      _
    %p1678 = scmp.le.s32.totalorder 2, %s9
    // Predicated region
    $region37: #{spnet_forward.11} parent=5 // pred_check
      %p1679 = pneg %p1678
    $region38: #{spnet_forward.11} parent=5 // pred_check_branch
      %1681 = sbr.rel (%p1679) target = $region40
    $region39: #{spnet_forward.11} parent=5 // pred_region
      %s1682 = ssub.s32 %s9, 2
      // Predicated region
      $region41: #{spnet_forward.11} parent=39 // pred_check
        %p1683 = pneg %p106
      $region42: #{spnet_forward.11} parent=39 // pred_check_branch
        %1685 = sbr.rel (%p1683) target = $region44
      $region43: #{spnet_forward.11} parent=39 // pred_region
        %p1686 = scmp.lt.s32.totalorder %s15, 5
        %s1687 = scalar_select %p1686, %s15, 5
        %s1688 = smul.addr %s1687, 34
        %s1689 = smul.addr %s1688, 4
        %s1690 = scalar_lea.vmem %s3, %s1689
      $region44: #{spnet_forward.11} parent=39 // pred_fallthru
        _
    $region40: #{spnet_forward.11} parent=5 // pred_fallthru
      _
  $region6: #{spnet_forward.11} parent=0 // loop_footer
    %s13 = sadd.s32 1, %s9
  $region7: #{spnet_forward.11} parent=0 // loop_footer_branch
    %8 = sbr.rel target = $region3
  $region8: #{spnet_forward.11} parent=0 // loop_exit
    _

// kernel: spnet_forward.12
$region0: #{spnet_forward.12}
  #allocation0 [shape = 'u32[]', space=smem, size = 0x4, offset = 0x4, fixed_abs, tag = 'smem constant byte address 0x4 - core index']
  #allocation1 [shape = 'u32[144,128]{1,0:T(1,128)}', space=vmem, size = 0x12000, scoped, tag = 'internal scratch']
  %s0 = inlined_call_operand.vmem [shape: bf16[6,88,128], index: 0, kind: input, shape index: {}]
  %s1 = inlined_call_operand.vmem [shape: bf16[4,128,128], index: 1, kind: input, shape index: {}]
  %s2 = inlined_call_operand.vmem [shape: f32[1,128], index: 2, kind: input, shape index: {}]
  %s3 = inlined_call_operand.vmem [shape: bf16[6,72,128], index: 3, kind: output, shape index: {}]
  %s4 = sld [smem:[#allocation0]]
  $region45: #{spnet_forward.12} parent=0
    _
  %s6 = ssub.s32 1, %s4
  %s7 = scalar_select 0, %s6, %s4
  loop: start=0, step=1, limit=8
  $region2: #{spnet_forward.12} parent=0 // loop_pre_header
    _
  $region3: #{spnet_forward.12} parent=0 // loop_header
    %s9 = sphi 0, %s13
    %p10 = scmp.ge.s32.totalorder %s9, 8
    %s19 = sphi 0, %s21
    %s22 = sphi 0, %s19
    %s23 = sphi 0, %s22
    %s39 = sphi 0, %s23
    %s43 = sphi 0, %s43
    %s45 = sphi 0, %s43
    %s46 = sphi 0, %s45
    %s60 = sphi 0, %s46
    %s64 = sphi 0, %s64
    %s66 = sphi 0, %s64
    %s67 = sphi 0, %s66
    %s81 = sphi 0, %s67
    %s87 = sphi 0, %s89
    %s90 = sphi 0, %s87
    %s91 = sphi 0, %s90
    %s107 = sphi 0, %s91
  $region4: #{spnet_forward.12} parent=0 // loop_header_branch
    %12 = sbr.rel (%p10) target = $region8
  $region5: #{spnet_forward.12} parent=0 // loop_body
    %s14 = ssub.s32 %s9, 1
    %s15 = ssub.s32 %s9, 2
    %s16 = sadd.s32 %s9, 1
    %s17 = ssub.s32 %s9, %s16
    %p18 = scmp.eq.s32.totalorder %s17, 0
    %s20 = sadd.s32 %s19, 1
    %s21 = scalar_select %p18, %s19, %s20
    %p24 = pneg %p18
    %p25 = scmp.eq.s32.totalorder %s9, 5
    %p26 = por %p24, %p25
    %p27 = scmp.ne.s32.totalorder %s19, %s22
    %p28 = scmp.eq.s32.totalorder %s9, 0
    %p29 = por %p27, %p28
    %p30 = scmp.ne.s32.totalorder %s19, %s22
    %p31 = scmp.eq.s32.totalorder %s14, 5
    %p32 = por %p30, %p31
    %p33 = scmp.ne.s32.totalorder %s22, %s23
    %p34 = scmp.eq.s32.totalorder %s14, 0
    %p35 = por %p33, %p34
    %p36 = scmp.ne.s32.totalorder %s22, %s23
    %p37 = scmp.eq.s32.totalorder %s15, 5
    %p38 = por %p36, %p37
    %p40 = scmp.ne.s32.totalorder %s23, %s39
    %p41 = scmp.eq.s32.totalorder %s15, 0
    %p42 = por %p40, %p41
    %s44 = sadd.s32 %s43, 1
    %p47 = scmp.eq.s32.totalorder %s9, 5
    %p48 = scmp.ne.s32.totalorder %s43, %s45
    %p49 = scmp.eq.s32.totalorder %s9, 0
    %p50 = por %p48, %p49
    %p51 = scmp.ne.s32.totalorder %s43, %s45
    %p52 = scmp.eq.s32.totalorder %s14, 5
    %p53 = por %p51, %p52
    %p54 = scmp.ne.s32.totalorder %s45, %s46
    %p55 = scmp.eq.s32.totalorder %s14, 0
    %p56 = por %p54, %p55
    %p57 = scmp.ne.s32.totalorder %s45, %s46
    %p58 = scmp.eq.s32.totalorder %s15, 5
    %p59 = por %p57, %p58
    %p61 = scmp.ne.s32.totalorder %s46, %s60
    %p62 = scmp.eq.s32.totalorder %s15, 0
    %p63 = por %p61, %p62
    %s65 = sadd.s32 %s64, 1
    %p68 = scmp.eq.s32.totalorder %s9, 5
    %p69 = scmp.ne.s32.totalorder %s64, %s66
    %p70 = scmp.eq.s32.totalorder %s9, 0
    %p71 = por %p69, %p70
    %p72 = scmp.ne.s32.totalorder %s64, %s66
    %p73 = scmp.eq.s32.totalorder %s14, 5
    %p74 = por %p72, %p73
    %p75 = scmp.ne.s32.totalorder %s66, %s67
    %p76 = scmp.eq.s32.totalorder %s14, 0
    %p77 = por %p75, %p76
    %p78 = scmp.ne.s32.totalorder %s66, %s67
    %p79 = scmp.eq.s32.totalorder %s15, 5
    %p80 = por %p78, %p79
    %p82 = scmp.ne.s32.totalorder %s67, %s81
    %p83 = scmp.eq.s32.totalorder %s15, 0
    %p84 = por %p82, %p83
    %s85 = ssub.s32 %s9, %s16
    %p86 = scmp.eq.s32.totalorder %s85, 0
    %s88 = sadd.s32 %s87, 1
    %s89 = scalar_select %p86, %s87, %s88
    %p92 = pneg %p86
    %p93 = scmp.eq.s32.totalorder %s9, 5
    %p94 = por %p92, %p93
    %p95 = scmp.ne.s32.totalorder %s87, %s90
    %p96 = scmp.eq.s32.totalorder %s9, 0
    %p97 = por %p95, %p96
    %p98 = scmp.ne.s32.totalorder %s87, %s90
    %p99 = scmp.eq.s32.totalorder %s14, 5
    %p100 = por %p98, %p99
    %p101 = scmp.ne.s32.totalorder %s90, %s91
    %p102 = scmp.eq.s32.totalorder %s14, 0
    %p103 = por %p101, %p102
    %p104 = scmp.ne.s32.totalorder %s90, %s91
    %p105 = scmp.eq.s32.totalorder %s15, 5
    %p106 = por %p104, %p105
    %p108 = scmp.ne.s32.totalorder %s91, %s107
    %p109 = scmp.eq.s32.totalorder %s15, 0
    %p110 = por %p108, %p109
    %p111 = scmp.le.s32.totalorder 1, %s9
    %p112 = scmp.lt.s32.totalorder %s9, 7
    %p113 = pnand %p111, %p112
    %p114 = pneg %p113
    // Predicated region
    $region9: #{spnet_forward.12} parent=5 // pred_check
      _
    $region10: #{spnet_forward.12} parent=5 // pred_check_branch
      %116 = sbr.rel (%p113) target = $region12
    $region11: #{spnet_forward.12} parent=5 // pred_region
      %s117 = ssub.s32 %s9, 1
      // Predicated region
      $region13: #{spnet_forward.12} parent=11 // pred_check
        %p118 = pneg %p56
      $region14: #{spnet_forward.12} parent=11 // pred_check_branch
        %120 = sbr.rel (%p118) target = $region16
      $region15: #{spnet_forward.12} parent=11 // pred_region
        _
      $region16: #{spnet_forward.12} parent=11 // pred_fallthru
        _
      // Predicated region
      $region17: #{spnet_forward.12} parent=11 // pred_check
        %p121 = pneg %p77
      $region18: #{spnet_forward.12} parent=11 // pred_check_branch
        %123 = sbr.rel (%p121) target = $region20
      $region19: #{spnet_forward.12} parent=11 // pred_region
        _
      $region20: #{spnet_forward.12} parent=11 // pred_fallthru
        _
    $region12: #{spnet_forward.12} parent=5 // pred_fallthru
      _
    %p124 = scmp.lt.s32.totalorder %s9, 6
    // Predicated region
    $region21: #{spnet_forward.12} parent=5 // pred_check
      %p125 = pneg %p124
    $region22: #{spnet_forward.12} parent=5 // pred_check_branch
      %127 = sbr.rel (%p125) target = $region24
    $region23: #{spnet_forward.12} parent=5 // pred_region
      // Predicated region
      $region25: #{spnet_forward.12} parent=23 // pred_check
        %p128 = pneg %p29
      $region26: #{spnet_forward.12} parent=23 // pred_check_branch
        %130 = sbr.rel (%p128) target = $region28
      $region27: #{spnet_forward.12} parent=23 // pred_region
        %p131 = scmp.lt.s32.totalorder %s9, 5
        %s132 = scalar_select %p131, %s9, 5
        %s133 = smul.addr %s132, 11
        %s134 = smul.addr %s133, 4
        %s135 = scalar_lea.vmem %s0, %s134
      $region28: #{spnet_forward.12} parent=23 // pred_fallthru
        _
    $region24: #{spnet_forward.12} parent=5 // pred_fallthru
      _
    %p136 = scmp.le.s32.totalorder 1, %s9
    %p137 = scmp.lt.s32.totalorder %s9, 7
    %p138 = pnand %p136, %p137
    %p139 = pneg %p138
    // Predicated region
    $region29: #{spnet_forward.12} parent=5 // pred_check
      _
    $region30: #{spnet_forward.12} parent=5 // pred_check_branch
      %141 = sbr.rel (%p138) target = $region32
    $region31: #{spnet_forward.12} parent=5 // pred_region
      %s142 = ssub.s32 %s9, 1
      %p143 = scmp.lt.s32.totalorder %s14, 5
      %s144 = scalar_select %p143, %s14, 5
      %s145 = smul.addr %s144, 11
      %s146 = smul.addr %s145, 4
      %s147 = scalar_lea.vmem %s0, %s146
      %p148 = pneg %p35
      %p149 = pneg %p32
      %p150 = pneg %p56
      %p151 = pneg %p53
      %p152 = pneg %p77
      %p153 = pneg %p74
      %p154 = pneg %p103
      %p155 = pneg %p100
      %p156 = scmp.lt.s32.totalorder %s14, 5
      %s157 = scalar_select %p156, %s14, 5
      %s158 = smul.addr %s157, 9
      %s159 = smul.addr %s158, 4
      %s160 = scalar_lea.vmem %s3, %s159
      %p161 = scmp.lt.s32.totalorder %s14, 5
      %s162 = scalar_select %p161, %s14, 5
      %s163 = smul.addr %s162, 11
      %s164 = smul.addr %s163, 4
      %s165 = scalar_lea.vmem %s0, %s164
      %p166 = scmp.lt.s32.totalorder %s14, 5
      %s167 = scalar_select %p166, %s14, 5
      %s168 = smul.addr %s167, 9
      %s169 = smul.addr %s168, 4
      %s170 = scalar_lea.vmem %s3, %s169
      %v172 = vld [vmem:[%s165] sm:$0xf]
      %v173 = vld [vmem:[%s165 + $0x4] sm:$0xf]
      %v174 = vld [vmem:[%s165 + $0x8] sm:$0xf]
      %v175 = vld [vmem:[%s165 + $0xc] sm:$0xf]
      %v176 = vld [vmem:[%s165 + $0x10] sm:$0xf]
      %v177 = vld [vmem:[%s165 + $0x14] sm:$0xf]
      %v178 = vld [vmem:[%s165 + $0x18] sm:$0xf]
      %v179 = vld [vmem:[%s165 + $0x1c] sm:$0xf]
      %v180 = vld [vmem:[%s165 + $0x20] sm:$0xf]
      %v181 = vld [vmem:[%s165 + $0x24] sm:$0xf]
      %v182 = vld [vmem:[%s165 + $0x28] sm:$0xf]
      %v183 = vld [vmem:[%s1] sm:$0xf]
      %v184 = vld [vmem:[%s1 + $0x4] sm:$0xf]
      %v185 = vld [vmem:[%s1 + $0x8] sm:$0xf]
      %v186 = vld [vmem:[%s1 + $0xc] sm:$0xf]
      %v187 = vld [vmem:[%s1 + $0x10] sm:$0xf]
      %v188 = vld [vmem:[%s1 + $0x14] sm:$0xf]
      %v189 = vld [vmem:[%s1 + $0x18] sm:$0xf]
      %v190 = vld [vmem:[%s1 + $0x1c] sm:$0xf]
      %v191 = vld [vmem:[%s1 + $0x20] sm:$0xf]
      %v192 = vld [vmem:[%s1 + $0x24] sm:$0xf]
      %v193 = vld [vmem:[%s1 + $0x28] sm:$0xf]
      %v194 = vld [vmem:[%s1 + $0x2c] sm:$0xf]
      %v195 = vld [vmem:[%s1 + $0x30] sm:$0xf]
      %v196 = vld [vmem:[%s1 + $0x34] sm:$0xf]
      %v197 = vld [vmem:[%s1 + $0x38] sm:$0xf]
      %v198 = vld [vmem:[%s1 + $0x3c] sm:$0xf]
      %s199 = scalar_lea.vmem %s1, 64
      %v200 = vld [vmem:[%s199] sm:$0xf]
      %v201 = vld [vmem:[%s199 + $0x4] sm:$0xf]
      %v202 = vld [vmem:[%s199 + $0x8] sm:$0xf]
      %v203 = vld [vmem:[%s199 + $0xc] sm:$0xf]
      %v204 = vld [vmem:[%s199 + $0x10] sm:$0xf]
      %v205 = vld [vmem:[%s199 + $0x14] sm:$0xf]
      %v206 = vld [vmem:[%s199 + $0x18] sm:$0xf]
      %v207 = vld [vmem:[%s199 + $0x1c] sm:$0xf]
      %v208 = vld [vmem:[%s199 + $0x20] sm:$0xf]
      %v209 = vld [vmem:[%s199 + $0x24] sm:$0xf]
      %v210 = vld [vmem:[%s199 + $0x28] sm:$0xf]
      %v211 = vld [vmem:[%s199 + $0x2c] sm:$0xf]
      %v212 = vld [vmem:[%s199 + $0x30] sm:$0xf]
      %v213 = vld [vmem:[%s199 + $0x34] sm:$0xf]
      %v214 = vld [vmem:[%s199 + $0x38] sm:$0xf]
      %v215 = vld [vmem:[%s199 + $0x3c] sm:$0xf]
      %v226 = vunpack.c.l.b16 %v172
      %v227 = vunpack.c.l.b16 %v173
      %v228 = vunpack.c.l.b16 %v174
      %v229 = vunpack.c.l.b16 %v175
      %v230 = vunpack.c.l.b16 %v176
      %v231 = vunpack.c.l.b16 %v177
      %v232 = vunpack.c.l.b16 %v178
      %v233 = vunpack.c.l.b16 %v179
      %v234 = vunpack.c.l.b16 %v180
      %v235 = vunpack.c.l.b16 %v181
      %v236 = vpack.c.b16 %v227, %v226
      %v237 = vpack.c.b16 %v229, %v228
      %v238 = vpack.c.b16 %v231, %v230
      %v239 = vpack.c.b16 %v233, %v232
      %v240 = vpack.c.b16 %v235, %v234
      %vm241 = vsmask.f32 7424
      %v243 = vshrl.u32 %v236, 16
      %v245 = vshll.u32 %v236, 16
      %v247 = vrot.slane %v245, 1
      %v248 = vor.u32 %v243, %v247
      %v250 = vshll.u32 %v237, 16
      %v252 = vrot.slane %v250, 1
      %v253 = vsel %vm241, %v248, %v252
      %v254 = vshrl.u32 %v237, 16
      %v256 = vor.u32 %v254, %v252
      %v258 = vshll.u32 %v238, 16
      %v260 = vrot.slane %v258, 1
      %v261 = vsel %vm241, %v256, %v260
      %v262 = vshrl.u32 %v238, 16
      %v264 = vor.u32 %v262, %v260
      %v266 = vshll.u32 %v239, 16
      %v268 = vrot.slane %v266, 1
      %v269 = vsel %vm241, %v264, %v268
      %v270 = vshrl.u32 %v239, 16
      %v272 = vor.u32 %v270, %v268
      %v274 = vshll.u32 %v240, 16
      %v276 = vrot.slane %v274, 1
      %v277 = vsel %vm241, %v272, %v276
      %v278 = vshrl.u32 %v240, 16
      %v280 = vor.u32 %v278, %v276
      %v302 = vunpack.c.l.b16 %v200
      %v303 = vunpack.c.l.b16 %v201
      %v304 = vunpack.c.l.b16 %v202
      %v305 = vunpack.c.l.b16 %v203
      %v306 = vunpack.c.l.b16 %v204
      %v307 = vunpack.c.l.b16 %v205
      %v308 = vunpack.c.l.b16 %v206
      %v309 = vunpack.c.l.b16 %v207
      %v310 = vunpack.c.l.b16 %v208
      %v311 = vunpack.c.l.b16 %v209
      %v312 = vunpack.c.l.b16 %v210
      %v313 = vunpack.c.l.b16 %v211
      %v314 = vunpack.c.l.b16 %v212
      %v315 = vunpack.c.l.b16 %v213
      %v316 = vunpack.c.l.b16 %v214
      %v317 = vunpack.c.l.b16 %v215
      %v318 = vpack.c.b16 %v303, %v302
      %v319 = vpack.c.b16 %v305, %v304
      %v320 = vpack.c.b16 %v307, %v306
      %v321 = vpack.c.b16 %v309, %v308
      %v322 = vpack.c.b16 %v311, %v310
      %v323 = vpack.c.b16 %v313, %v312
      %v324 = vpack.c.b16 %v315, %v314
      %v325 = vpack.c.b16 %v317, %v316
      %334 = vmatprep.subr.bf16.mxu0 0
      %335 = vmatpush1.bf16.msra.mxu0 %v318
      %336 = vmatprep.subr.bf16.mxu0 0
      %337 = vmatpush1.bf16.msra.mxu0 %v319
      %338 = vmatprep.subr.bf16.mxu0 0
      %339 = vmatpush1.bf16.msra.mxu0 %v320
      %340 = vmatprep.subr.bf16.mxu0 0
      %341 = vmatpush1.bf16.msra.mxu0 %v321
      %342 = vmatprep.subr.bf16.mxu0 0
      %343 = vmatpush1.bf16.msra.mxu0 %v322
      %344 = vmatprep.subr.bf16.mxu0 0
      %345 = vmatpush1.bf16.msra.mxu0 %v323
      %346 = vmatprep.subr.bf16.mxu0 0
      %347 = vmatpush1.bf16.msra.mxu0 %v324
      %348 = vmatprep.subr.bf16.mxu0 0
      %349 = vmatpush1.bf16.msra.mxu0 %v325
      %350 = vmatprep.subr.bf16.mxu0 0
      %351 = vmatpush1.bf16.msra.mxu0 0
      %352 = vmatprep.subr.bf16.mxu0 0
      %353 = vmatpush1.bf16.msra.mxu0 0
      %354 = vmatprep.subr.bf16.mxu0 0
      %355 = vmatpush1.bf16.msra.mxu0 0
      %356 = vmatprep.subr.bf16.mxu0 0
      %357 = vmatpush1.bf16.msra.mxu0 0
      %358 = vmatprep.subr.bf16.mxu0 0
      %359 = vmatpush1.bf16.msra.mxu0 0
      %360 = vmatprep.subr.bf16.mxu0 0
      %361 = vmatpush1.bf16.msra.mxu0 0
      %362 = vmatprep.subr.bf16.mxu0 0
      %363 = vmatpush1.bf16.msra.mxu0 0
      %364 = vmatprep.subr.bf16.mxu0 0
      %365 = vmatpush1.bf16.msra.mxu0 0
      %366 = vmatprep.mubr.bf16.mxu0 0
      %367 = vmatmul.mubr.bf16.gmra.mrb[0].mxu0 %v253
      %v368 = vpop.f32.mrb[0].mxu0
      %v369 = vadd.f32 0.0, %v368
      %v370 = vpop.f32.mrb[0].mxu0
      %v371 = vpop.f32.mrb[0].mxu0
      %v372 = vadd.f32 0.0, %v371
      %v373 = vpop.f32.mrb[0].mxu0
      %374 = vmatprep.mubr.bf16.mxu0 0
      %375 = vmatmul.mubr.bf16.gmra.mrb[0].mxu0 %v261
      %v376 = vpop.f32.mrb[0].mxu0
      %v377 = vadd.f32 0.0, %v376
      %v378 = vpop.f32.mrb[0].mxu0
      %v379 = vpop.f32.mrb[0].mxu0
      %v380 = vadd.f32 0.0, %v379
      %v381 = vpop.f32.mrb[0].mxu0
      %382 = vmatprep.mubr.bf16.mxu0 0
      %383 = vmatmul.mubr.bf16.gmra.mrb[0].mxu0 %v269
      %v384 = vpop.f32.mrb[0].mxu0
      %v385 = vadd.f32 0.0, %v384
      %v386 = vpop.f32.mrb[0].mxu0
      %v387 = vpop.f32.mrb[0].mxu0
      %v388 = vadd.f32 0.0, %v387
      %v389 = vpop.f32.mrb[0].mxu0
      %390 = vmatprep.mubr.bf16.mxu0 0
      %391 = vmatmul.mubr.bf16.gmra.mrb[0].mxu0 %v277
      %v392 = vpop.f32.mrb[0].mxu0
      %v393 = vadd.f32 0.0, %v392
      %v394 = vpop.f32.mrb[0].mxu0
      %v395 = vpop.f32.mrb[0].mxu0
      %v396 = vadd.f32 0.0, %v395
      %v397 = vpop.f32.mrb[0].mxu0
      %398 = vmatprep.mubr.bf16.mxu0 0
      %399 = vmatmul.mubr.bf16.gmra.mrb[0].mxu0 %v280
      %v400 = vpop.f32.mrb[0].mxu0
      %v401 = vadd.f32 0.0, %v400
      %v402 = vpop.f32.mrb[0].mxu0
      %v403 = vpop.f32.mrb[0].mxu0
      %v404 = vpop.f32.mrb[0].mxu0
      %405 = vdwg.mxu0
      %v406 = vpack.c.b16 %v234, %v234
      %v428 = vunpack.c.l.b16 %v183
      %v429 = vunpack.c.l.b16 %v184
      %v430 = vunpack.c.l.b16 %v185
      %v431 = vunpack.c.l.b16 %v186
      %v432 = vunpack.c.l.b16 %v187
      %v433 = vunpack.c.l.b16 %v188
      %v434 = vunpack.c.l.b16 %v189
      %v435 = vunpack.c.l.b16 %v190
      %v436 = vunpack.c.l.b16 %v191
      %v437 = vunpack.c.l.b16 %v192
      %v438 = vunpack.c.l.b16 %v193
      %v439 = vunpack.c.l.b16 %v194
      %v440 = vunpack.c.l.b16 %v195
      %v441 = vunpack.c.l.b16 %v196
      %v442 = vunpack.c.l.b16 %v197
      %v443 = vunpack.c.l.b16 %v198
      %v444 = vpack.c.b16 %v429, %v428
      %v445 = vpack.c.b16 %v431, %v430
      %v446 = vpack.c.b16 %v433, %v432
      %v447 = vpack.c.b16 %v435, %v434
      %v448 = vpack.c.b16 %v437, %v436
      %v449 = vpack.c.b16 %v439, %v438
      %v450 = vpack.c.b16 %v441, %v440
      %v451 = vpack.c.b16 %v443, %v442
      %460 = vmatprep.subr.bf16.mxu0 0
      %461 = vmatpush1.bf16.msra.mxu0 %v444
      %462 = vmatprep.subr.bf16.mxu0 0
      %463 = vmatpush1.bf16.msra.mxu0 %v445
      %464 = vmatprep.subr.bf16.mxu0 0
      %465 = vmatpush1.bf16.msra.mxu0 %v446
      %466 = vmatprep.subr.bf16.mxu0 0
      %467 = vmatpush1.bf16.msra.mxu0 %v447
      %468 = vmatprep.subr.bf16.mxu0 0
      %469 = vmatpush1.bf16.msra.mxu0 %v448
      %470 = vmatprep.subr.bf16.mxu0 0
      %471 = vmatpush1.bf16.msra.mxu0 %v449
      %472 = vmatprep.subr.bf16.mxu0 0
      %473 = vmatpush1.bf16.msra.mxu0 %v450
      %474 = vmatprep.subr.bf16.mxu0 0
      %475 = vmatpush1.bf16.msra.mxu0 %v451
      %476 = vmatprep.subr.bf16.mxu0 0
      %477 = vmatpush1.bf16.msra.mxu0 0
      %478 = vmatprep.subr.bf16.mxu0 0
      %479 = vmatpush1.bf16.msra.mxu0 0
      %480 = vmatprep.subr.bf16.mxu0 0
      %481 = vmatpush1.bf16.msra.mxu0 0
      %482 = vmatprep.subr.bf16.mxu0 0
      %483 = vmatpush1.bf16.msra.mxu0 0
      %484 = vmatprep.subr.bf16.mxu0 0
      %485 = vmatpush1.bf16.msra.mxu0 0
      %486 = vmatprep.subr.bf16.mxu0 0
      %487 = vmatpush1.bf16.msra.mxu0 0
      %488 = vmatprep.subr.bf16.mxu0 0
      %489 = vmatpush1.bf16.msra.mxu0 0
      %490 = vmatprep.subr.bf16.mxu0 0
      %491 = vmatpush1.bf16.msra.mxu0 0
      %492 = vmatprep.mubr.bf16.mxu0 0
      %493 = vmatmul.mubr.bf16.gmra.mrb[0].mxu0 %v236
      %v494 = vpop.f32.mrb[0].mxu0
      %v495 = vadd.f32 %v369, %v494
      %v496 = vpop.f32.mrb[0].mxu0
      %v497 = vpop.f32.mrb[0].mxu0
      %v498 = vadd.f32 %v372, %v497
      %v499 = vpop.f32.mrb[0].mxu0
      %500 = vmatprep.mubr.bf16.mxu0 0
      %501 = vmatmul.mubr.bf16.gmra.mrb[0].mxu0 %v237
      %v502 = vpop.f32.mrb[0].mxu0
      %v503 = vadd.f32 %v377, %v502
      %v504 = vpop.f32.mrb[0].mxu0
      %v505 = vpop.f32.mrb[0].mxu0
      %v506 = vadd.f32 %v380, %v505
      %v507 = vpop.f32.mrb[0].mxu0
      %508 = vmatprep.mubr.bf16.mxu0 0
      %509 = vmatmul.mubr.bf16.gmra.mrb[0].mxu0 %v238
      %v510 = vpop.f32.mrb[0].mxu0
      %v511 = vadd.f32 %v385, %v510
      %v512 = vpop.f32.mrb[0].mxu0
      %v513 = vpop.f32.mrb[0].mxu0
      %v514 = vadd.f32 %v388, %v513
      %v515 = vpop.f32.mrb[0].mxu0
      %516 = vmatprep.mubr.bf16.mxu0 0
      %517 = vmatmul.mubr.bf16.gmra.mrb[0].mxu0 %v239
      %v518 = vpop.f32.mrb[0].mxu0
      %v519 = vadd.f32 %v393, %v518
      %v520 = vpop.f32.mrb[0].mxu0
      %v521 = vpop.f32.mrb[0].mxu0
      %v522 = vadd.f32 %v396, %v521
      %v523 = vpop.f32.mrb[0].mxu0
      %524 = vmatprep.mubr.bf16.mxu0 0
      %525 = vmatmul.mubr.bf16.gmra.mrb[0].mxu0 %v406
      %v526 = vpop.f32.mrb[0].mxu0
      %v527 = vadd.f32 %v401, %v526
      %v528 = vpop.f32.mrb[0].mxu0
      %v529 = vpop.f32.mrb[0].mxu0
      %v530 = vpop.f32.mrb[0].mxu0
      %531 = vdwg.mxu0
      %s532 = scalar_lea.vmem %s1, 128
      %v533 = vld [vmem:[%s532] sm:$0xf]
      %v534 = vld [vmem:[%s532 + $0x4] sm:$0xf]
      %v535 = vld [vmem:[%s532 + $0x8] sm:$0xf]
      %v536 = vld [vmem:[%s532 + $0xc] sm:$0xf]
      %v537 = vld [vmem:[%s532 + $0x10] sm:$0xf]
      %v538 = vld [vmem:[%s532 + $0x14] sm:$0xf]
      %v539 = vld [vmem:[%s532 + $0x18] sm:$0xf]
      %v540 = vld [vmem:[%s532 + $0x1c] sm:$0xf]
      %v541 = vld [vmem:[%s532 + $0x20] sm:$0xf]
      %v542 = vld [vmem:[%s532 + $0x24] sm:$0xf]
      %v543 = vld [vmem:[%s532 + $0x28] sm:$0xf]
      %v544 = vld [vmem:[%s532 + $0x2c] sm:$0xf]
      %v545 = vld [vmem:[%s532 + $0x30] sm:$0xf]
      %v546 = vld [vmem:[%s532 + $0x34] sm:$0xf]
      %v547 = vld [vmem:[%s532 + $0x38] sm:$0xf]
      %v548 = vld [vmem:[%s532 + $0x3c] sm:$0xf]
      %v550 = vunpack.c.l.b16 %v182
      %v551 = vpack.c.b16 %v228, %v227
      %v552 = vpack.c.b16 %v230, %v229
      %v553 = vpack.c.b16 %v232, %v231
      %v554 = vpack.c.b16 %v234, %v233
      %v555 = vpack.c.b16 %v550, %v235
      %v557 = vshrl.u32 %v551, 16
      %v559 = vshll.u32 %v551, 16
      %v561 = vrot.slane %v559, 1
      %v562 = vor.u32 %v557, %v561
      %v564 = vshll.u32 %v552, 16
      %v566 = vrot.slane %v564, 1
      %v567 = vsel %vm241, %v562, %v566
      %v568 = vshrl.u32 %v552, 16
      %v570 = vor.u32 %v568, %v566
      %v572 = vshll.u32 %v553, 16
      %v574 = vrot.slane %v572, 1
      %v575 = vsel %vm241, %v570, %v574
      %v576 = vshrl.u32 %v553, 16
      %v578 = vor.u32 %v576, %v574
      %v580 = vshll.u32 %v554, 16
      %v582 = vrot.slane %v580, 1
      %v583 = vsel %vm241, %v578, %v582
      %v584 = vshrl.u32 %v554, 16
      %v586 = vor.u32 %v584, %v582
      %v588 = vshll.u32 %v555, 16
      %v590 = vrot.slane %v588, 1
      %v591 = vsel %vm241, %v586, %v590
      %v592 = vshrl.u32 %v555, 16
      %v594 = vor.u32 %v592, %v590
      %v616 = vunpack.c.l.b16 %v533
      %v617 = vunpack.c.l.b16 %v534
      %v618 = vunpack.c.l.b16 %v535
      %v619 = vunpack.c.l.b16 %v536
      %v620 = vunpack.c.l.b16 %v537
      %v621 = vunpack.c.l.b16 %v538
      %v622 = vunpack.c.l.b16 %v539
      %v623 = vunpack.c.l.b16 %v540
      %v624 = vunpack.c.l.b16 %v541
      %v625 = vunpack.c.l.b16 %v542
      %v626 = vunpack.c.l.b16 %v543
      %v627 = vunpack.c.l.b16 %v544
      %v628 = vunpack.c.l.b16 %v545
      %v629 = vunpack.c.l.b16 %v546
      %v630 = vunpack.c.l.b16 %v547
      %v631 = vunpack.c.l.b16 %v548
      %v632 = vpack.c.b16 %v617, %v616
      %v633 = vpack.c.b16 %v619, %v618
      %v634 = vpack.c.b16 %v621, %v620
      %v635 = vpack.c.b16 %v623, %v622
      %v636 = vpack.c.b16 %v625, %v624
      %v637 = vpack.c.b16 %v627, %v626
      %v638 = vpack.c.b16 %v629, %v628
      %v639 = vpack.c.b16 %v631, %v630
      %648 = vmatprep.subr.bf16.mxu0 0
      %649 = vmatpush1.bf16.msra.mxu0 %v632
      %650 = vmatprep.subr.bf16.mxu0 0
      %651 = vmatpush1.bf16.msra.mxu0 %v633
      %652 = vmatprep.subr.bf16.mxu0 0
      %653 = vmatpush1.bf16.msra.mxu0 %v634
      %654 = vmatprep.subr.bf16.mxu0 0
      %655 = vmatpush1.bf16.msra.mxu0 %v635
      %656 = vmatprep.subr.bf16.mxu0 0
      %657 = vmatpush1.bf16.msra.mxu0 %v636
      %658 = vmatprep.subr.bf16.mxu0 0
      %659 = vmatpush1.bf16.msra.mxu0 %v637
      %660 = vmatprep.subr.bf16.mxu0 0
      %661 = vmatpush1.bf16.msra.mxu0 %v638
      %662 = vmatprep.subr.bf16.mxu0 0
      %663 = vmatpush1.bf16.msra.mxu0 %v639
      %664 = vmatprep.subr.bf16.mxu0 0
      %665 = vmatpush1.bf16.msra.mxu0 0
      %666 = vmatprep.subr.bf16.mxu0 0
      %667 = vmatpush1.bf16.msra.mxu0 0
      %668 = vmatprep.subr.bf16.mxu0 0
      %669 = vmatpush1.bf16.msra.mxu0 0
      %670 = vmatprep.subr.bf16.mxu0 0
      %671 = vmatpush1.bf16.msra.mxu0 0
      %672 = vmatprep.subr.bf16.mxu0 0
      %673 = vmatpush1.bf16.msra.mxu0 0
      %674 = vmatprep.subr.bf16.mxu0 0
      %675 = vmatpush1.bf16.msra.mxu0 0
      %676 = vmatprep.subr.bf16.mxu0 0
      %677 = vmatpush1.bf16.msra.mxu0 0
      %678 = vmatprep.subr.bf16.mxu0 0
      %679 = vmatpush1.bf16.msra.mxu0 0
      %680 = vmatprep.mubr.bf16.mxu0 0
      %681 = vmatmul.mubr.bf16.gmra.mrb[0].mxu0 %v567
      %v682 = vpop.f32.mrb[0].mxu0
      %v683 = vadd.f32 0.0, %v682
      %v684 = vpop.f32.mrb[0].mxu0
      %v685 = vpop.f32.mrb[0].mxu0
      %v686 = vadd.f32 0.0, %v685
      %v687 = vpop.f32.mrb[0].mxu0
      %688 = vmatprep.mubr.bf16.mxu0 0
      %689 = vmatmul.mubr.bf16.gmra.mrb[0].mxu0 %v575
      %v690 = vpop.f32.mrb[0].mxu0
      %v691 = vadd.f32 0.0, %v690
      %v692 = vpop.f32.mrb[0].mxu0
      %v693 = vpop.f32.mrb[0].mxu0
      %v694 = vadd.f32 0.0, %v693
      %v695 = vpop.f32.mrb[0].mxu0
      %696 = vmatprep.mubr.bf16.mxu0 0
      %697 = vmatmul.mubr.bf16.gmra.mrb[0].mxu0 %v583
      %v698 = vpop.f32.mrb[0].mxu0
      %v699 = vadd.f32 0.0, %v698
      %v700 = vpop.f32.mrb[0].mxu0
      %v701 = vpop.f32.mrb[0].mxu0
      %v702 = vadd.f32 0.0, %v701
      %v703 = vpop.f32.mrb[0].mxu0
      %704 = vmatprep.mubr.bf16.mxu0 0
      %705 = vmatmul.mubr.bf16.gmra.mrb[0].mxu0 %v591
      %v706 = vpop.f32.mrb[0].mxu0
      %v707 = vadd.f32 0.0, %v706
      %v708 = vpop.f32.mrb[0].mxu0
      %v709 = vpop.f32.mrb[0].mxu0
      %v710 = vadd.f32 0.0, %v709
      %v711 = vpop.f32.mrb[0].mxu0
      %712 = vmatprep.mubr.bf16.mxu0 0
      %713 = vmatmul.mubr.bf16.gmra.mrb[0].mxu0 %v594
      %v714 = vpop.f32.mrb[0].mxu0
      %v715 = vadd.f32 0.0, %v714
      %v716 = vpop.f32.mrb[0].mxu0
      %v717 = vpop.f32.mrb[0].mxu0
      %v718 = vpop.f32.mrb[0].mxu0
      %719 = vdwg.mxu0
      %v720 = vadd.f32 %v495, %v683
      %v721 = vadd.f32 %v498, %v686
      %v722 = vadd.f32 %v503, %v691
      %v723 = vadd.f32 %v506, %v694
      %v724 = vadd.f32 %v511, %v699
      %v725 = vadd.f32 %v514, %v702
      %v726 = vadd.f32 %v519, %v707
      %v727 = vadd.f32 %v522, %v710
      %v728 = vadd.f32 %v527, %v715
      %s729 = scalar_lea.vmem %s1, 192
      %v730 = vld [vmem:[%s729] sm:$0xf]
      %v731 = vld [vmem:[%s729 + $0x4] sm:$0xf]
      %v732 = vld [vmem:[%s729 + $0x8] sm:$0xf]
      %v733 = vld [vmem:[%s729 + $0xc] sm:$0xf]
      %v734 = vld [vmem:[%s729 + $0x10] sm:$0xf]
      %v735 = vld [vmem:[%s729 + $0x14] sm:$0xf]
      %v736 = vld [vmem:[%s729 + $0x18] sm:$0xf]
      %v737 = vld [vmem:[%s729 + $0x1c] sm:$0xf]
      %v738 = vld [vmem:[%s729 + $0x20] sm:$0xf]
      %v739 = vld [vmem:[%s729 + $0x24] sm:$0xf]
      %v740 = vld [vmem:[%s729 + $0x28] sm:$0xf]
      %v741 = vld [vmem:[%s729 + $0x2c] sm:$0xf]
      %v742 = vld [vmem:[%s729 + $0x30] sm:$0xf]
      %v743 = vld [vmem:[%s729 + $0x34] sm:$0xf]
      %v744 = vld [vmem:[%s729 + $0x38] sm:$0xf]
      %v745 = vld [vmem:[%s729 + $0x3c] sm:$0xf]
      %vm746 = vcmask 1046528
      %v747 = vrot.slane %v551, 1
      %v748 = vrot.slane %v552, 1
      %v749 = vsel %vm746, %v747, %v748
      %v750 = vrot.slane %v553, 1
      %v751 = vsel %vm746, %v748, %v750
      %v752 = vrot.slane %v554, 1
      %v753 = vsel %vm746, %v750, %v752
      %v754 = vrot.slane %v555, 1
      %v755 = vsel %vm746, %v752, %v754
      %v777 = vunpack.c.l.b16 %v730
      %v778 = vunpack.c.l.b16 %v731
      %v779 = vunpack.c.l.b16 %v732
      %v780 = vunpack.c.l.b16 %v733
      %v781 = vunpack.c.l.b16 %v734
      %v782 = vunpack.c.l.b16 %v735
      %v783 = vunpack.c.l.b16 %v736
      %v784 = vunpack.c.l.b16 %v737
      %v785 = vunpack.c.l.b16 %v738
      %v786 = vunpack.c.l.b16 %v739
      %v787 = vunpack.c.l.b16 %v740
      %v788 = vunpack.c.l.b16 %v741
      %v789 = vunpack.c.l.b16 %v742
      %v790 = vunpack.c.l.b16 %v743
      %v791 = vunpack.c.l.b16 %v744
      %v792 = vunpack.c.l.b16 %v745
      %v793 = vpack.c.b16 %v778, %v777
      %v794 = vpack.c.b16 %v780, %v779
      %v795 = vpack.c.b16 %v782, %v781
      %v796 = vpack.c.b16 %v784, %v783
      %v797 = vpack.c.b16 %v786, %v785
      %v798 = vpack.c.b16 %v788, %v787
      %v799 = vpack.c.b16 %v790, %v789
      %v800 = vpack.c.b16 %v792, %v791
      %809 = vmatprep.subr.bf16.mxu0 0
      %810 = vmatpush1.bf16.msra.mxu0 %v793
      %811 = vmatprep.subr.bf16.mxu0 0
      %812 = vmatpush1.bf16.msra.mxu0 %v794
      %813 = vmatprep.subr.bf16.mxu0 0
      %814 = vmatpush1.bf16.msra.mxu0 %v795
      %815 = vmatprep.subr.bf16.mxu0 0
      %816 = vmatpush1.bf16.msra.mxu0 %v796
      %817 = vmatprep.subr.bf16.mxu0 0
      %818 = vmatpush1.bf16.msra.mxu0 %v797
      %819 = vmatprep.subr.bf16.mxu0 0
      %820 = vmatpush1.bf16.msra.mxu0 %v798
      %821 = vmatprep.subr.bf16.mxu0 0
      %822 = vmatpush1.bf16.msra.mxu0 %v799
      %823 = vmatprep.subr.bf16.mxu0 0
      %824 = vmatpush1.bf16.msra.mxu0 %v800
      %825 = vmatprep.subr.bf16.mxu0 0
      %826 = vmatpush1.bf16.msra.mxu0 0
      %827 = vmatprep.subr.bf16.mxu0 0
      %828 = vmatpush1.bf16.msra.mxu0 0
      %829 = vmatprep.subr.bf16.mxu0 0
      %830 = vmatpush1.bf16.msra.mxu0 0
      %831 = vmatprep.subr.bf16.mxu0 0
      %832 = vmatpush1.bf16.msra.mxu0 0
      %833 = vmatprep.subr.bf16.mxu0 0
      %834 = vmatpush1.bf16.msra.mxu0 0
      %835 = vmatprep.subr.bf16.mxu0 0
      %836 = vmatpush1.bf16.msra.mxu0 0
      %837 = vmatprep.subr.bf16.mxu0 0
      %838 = vmatpush1.bf16.msra.mxu0 0
      %839 = vmatprep.subr.bf16.mxu0 0
      %840 = vmatpush1.bf16.msra.mxu0 0
      %841 = vmatprep.mubr.bf16.mxu0 0
      %842 = vmatmul.mubr.bf16.gmra.mrb[0].mxu0 %v749
      %v843 = vpop.f32.mrb[0].mxu0
      %v844 = vadd.f32 0.0, %v843
      %v845 = vpop.f32.mrb[0].mxu0
      %v846 = vpop.f32.mrb[0].mxu0
      %v847 = vadd.f32 0.0, %v846
      %v848 = vpop.f32.mrb[0].mxu0
      %849 = vmatprep.mubr.bf16.mxu0 0
      %850 = vmatmul.mubr.bf16.gmra.mrb[0].mxu0 %v751
      %v851 = vpop.f32.mrb[0].mxu0
      %v852 = vadd.f32 0.0, %v851
      %v853 = vpop.f32.mrb[0].mxu0
      %v854 = vpop.f32.mrb[0].mxu0
      %v855 = vadd.f32 0.0, %v854
      %v856 = vpop.f32.mrb[0].mxu0
      %857 = vmatprep.mubr.bf16.mxu0 0
      %858 = vmatmul.mubr.bf16.gmra.mrb[0].mxu0 %v753
      %v859 = vpop.f32.mrb[0].mxu0
      %v860 = vadd.f32 0.0, %v859
      %v861 = vpop.f32.mrb[0].mxu0
      %v862 = vpop.f32.mrb[0].mxu0
      %v863 = vadd.f32 0.0, %v862
      %v864 = vpop.f32.mrb[0].mxu0
      %865 = vmatprep.mubr.bf16.mxu0 0
      %866 = vmatmul.mubr.bf16.gmra.mrb[0].mxu0 %v755
      %v867 = vpop.f32.mrb[0].mxu0
      %v868 = vadd.f32 0.0, %v867
      %v869 = vpop.f32.mrb[0].mxu0
      %v870 = vpop.f32.mrb[0].mxu0
      %v871 = vadd.f32 0.0, %v870
      %v872 = vpop.f32.mrb[0].mxu0
      %873 = vmatprep.mubr.bf16.mxu0 0
      %874 = vmatmul.mubr.bf16.gmra.mrb[0].mxu0 %v754
      %v875 = vpop.f32.mrb[0].mxu0
      %v876 = vadd.f32 0.0, %v875
      %v877 = vpop.f32.mrb[0].mxu0
      %v878 = vpop.f32.mrb[0].mxu0
      %v879 = vpop.f32.mrb[0].mxu0
      %880 = vdwg.mxu0
      %v881 = vadd.f32 %v720, %v844
      %v882 = vadd.f32 %v721, %v847
      %v883 = vadd.f32 %v722, %v852
      %v884 = vadd.f32 %v723, %v855
      %v885 = vadd.f32 %v724, %v860
      %v886 = vadd.f32 %v725, %v863
      %v887 = vadd.f32 %v726, %v868
      %v888 = vadd.f32 %v727, %v871
      %v889 = vadd.f32 %v728, %v876
      %v890 = vld [vmem:[%s2] sm:$0x1]
      %v892 = vlaneseq
      %v893 = vshrl.u32 %v892, 7
      %v894 = vsub.s32 0, %v893
      %v895 = vrot.slane %v890, %v894
      %v897 = vadd.f32 %v881, %v895
      %v898 = vadd.f32 %v882, %v895
      %v899 = vadd.f32 %v883, %v895
      %v900 = vadd.f32 %v884, %v895
      %v901 = vadd.f32 %v885, %v895
      %v902 = vadd.f32 %v886, %v895
      %v903 = vadd.f32 %v887, %v895
      %v904 = vadd.f32 %v888, %v895
      %v905 = vadd.f32 %v889, %v895
      %v906 = vmax.f32 %v897, 0.0
      %v907 = vmax.f32 %v898, 0.0
      %v908 = vmax.f32 %v899, 0.0
      %v909 = vmax.f32 %v900, 0.0
      %v910 = vmax.f32 %v901, 0.0
      %v911 = vmax.f32 %v902, 0.0
      %v912 = vmax.f32 %v903, 0.0
      %v913 = vmax.f32 %v904, 0.0
      %v914 = vmax.f32 %v905, 0.0
      %v915 = vpack.c.bf16 %v907, %v906
      %v916 = vpack.c.bf16 %v909, %v908
      %v917 = vpack.c.bf16 %v911, %v910
      %v918 = vpack.c.bf16 %v913, %v912
      %v919 = vpack.c.bf16 %v914, %v914
      %v925 = vunpack.c.l.b16 %v915
      %v926 = vunpack.c.h.b16 %v915
      %v927 = vunpack.c.l.b16 %v916
      %v928 = vunpack.c.h.b16 %v916
      %v929 = vunpack.c.l.b16 %v917
      %v930 = vunpack.c.h.b16 %v917
      %v931 = vunpack.c.l.b16 %v918
      %v932 = vunpack.c.h.b16 %v918
      %v933 = vunpack.c.l.b16 %v919
      %v934 = vpack.c.b16 %v925, %v925
      %v935 = vpack.c.b16 %v926, %v926
      %v936 = vpack.c.b16 %v927, %v927
      %v937 = vpack.c.b16 %v928, %v928
      %v938 = vpack.c.b16 %v929, %v929
      %v939 = vpack.c.b16 %v930, %v930
      %v940 = vpack.c.b16 %v931, %v931
      %v941 = vpack.c.b16 %v932, %v932
      %v942 = vpack.c.b16 %v933, %v933
      %952 = vst [vmem:[%s170] sm:$0xf] %v934
      %953 = vst [vmem:[%s170 + $0x4] sm:$0xf] %v935
      %954 = vst [vmem:[%s170 + $0x8] sm:$0xf] %v936
      %955 = vst [vmem:[%s170 + $0xc] sm:$0xf] %v937
      %956 = vst [vmem:[%s170 + $0x10] sm:$0xf] %v938
      %957 = vst [vmem:[%s170 + $0x14] sm:$0xf] %v939
      %958 = vst [vmem:[%s170 + $0x18] sm:$0xf] %v940
      %959 = vst [vmem:[%s170 + $0x1c] sm:$0xf] %v941
      %960 = vst [vmem:[%s170 + $0x20] sm:$0xf] %v942
      %p961 = scmp.lt.s32.totalorder %s14, 5
      %s962 = scalar_select %p961, %s14, 5
      %s963 = smul.addr %s962, 9
      %s964 = smul.addr %s963, 4
      %s965 = scalar_lea.vmem %s3, %s964
      // Predicated region
      $region33: #{spnet_forward.12} parent=31 // pred_check
        %p966 = pneg %p100
      $region34: #{spnet_forward.12} parent=31 // pred_check_branch
        %968 = sbr.rel (%p966) target = $region36
      $region35: #{spnet_forward.12} parent=31 // pred_region
        _
      $region36: #{spnet_forward.12} parent=31 // pred_fallthru
        _
    $region32: #{spnet_forward.12} parent=5 // pred_fallthru
      _
    %p969 = scmp.le.s32.totalorder 2, %s9
    // Predicated region
    $region37: #{spnet_forward.12} parent=5 // pred_check
      %p970 = pneg %p969
    $region38: #{spnet_forward.12} parent=5 // pred_check_branch
      %972 = sbr.rel (%p970) target = $region40
    $region39: #{spnet_forward.12} parent=5 // pred_region
      %s973 = ssub.s32 %s9, 2
      // Predicated region
      $region41: #{spnet_forward.12} parent=39 // pred_check
        %p974 = pneg %p106
      $region42: #{spnet_forward.12} parent=39 // pred_check_branch
        %976 = sbr.rel (%p974) target = $region44
      $region43: #{spnet_forward.12} parent=39 // pred_region
        %p977 = scmp.lt.s32.totalorder %s15, 5
        %s978 = scalar_select %p977, %s15, 5
        %s979 = smul.addr %s978, 9
        %s980 = smul.addr %s979, 4
        %s981 = scalar_lea.vmem %s3, %s980
      $region44: #{spnet_forward.12} parent=39 // pred_fallthru
        _
    $region40: #{spnet_forward.12} parent=5 // pred_fallthru
      _
  $region6: #{spnet_forward.12} parent=0 // loop_footer
    %s13 = sadd.s32 1, %s9
  $region7: #{spnet_forward.12} parent=0 // loop_footer_branch
    %8 = sbr.rel target = $region3
  $region8: #{spnet_forward.12} parent=0 // loop_exit
    _

// kernel: squeeze.3
$region0: #{squeeze.3}
  %s0 = inlined_call_operand.vmem [shape: bf16[2,1,4,4,256], index: 0, kind: input, shape index: {}]
  %s1 = inlined_call_operand.vmem [shape: bf16[32,256], index: 1, kind: output, shape index: {}]
  $region1: #{squeeze.3} parent=0
    #allocation0 [shape = 'u8[32768]{0}', space=vmem, size = 0x8000, scoped, tag = 'scoped mem for output reshape']
    #allocation1 [shape = 'u8[65536]{0}', space=vmem, size = 0x10000, scoped, tag = 'scoped mem for input reshape']
    %s3 = smul.u32 2, 2
    %s4 = sshllo.u32 0, %s3
    %s5 = smul.addr 2, 15
    %s6 = scalar_lea.vmem %s0, %s5
    %s7 = sshrl.u32 %s4, 1
    %s8 = sor.u32 %s4, %s7
    %s9 = sand.u32 %s8, 85
    %s10 = sshrl.u32 %s9, 1
    %s11 = sor.u32 %s9, %s10
    %s12 = sand.u32 51, %s11
    %s13 = sshrl.u32 %s12, 2
    %s14 = sor.u32 %s12, %s13
    %s15 = sand.u32 15, %s14
    %v16 = vld [vmem:[%s6] sm:%s15]
    %v17 = vunpack.c.l.bf16 %v16
    %v18 = vunpack.c.h.bf16 %v16
    %s19 = scalar_lea.vmem [#allocation1], 120
    %20 = vst [vmem:[%s19] sm:%s4] %v17
    %s21 = smul.addr 2, 14
    %s22 = scalar_lea.vmem %s0, %s21
    %s23 = sshrl.u32 %s4, 1
    %s24 = sor.u32 %s4, %s23
    %s25 = sand.u32 %s24, 85
    %s26 = sshrl.u32 %s25, 1
    %s27 = sor.u32 %s25, %s26
    %s28 = sand.u32 51, %s27
    %s29 = sshrl.u32 %s28, 2
    %s30 = sor.u32 %s28, %s29
    %s31 = sand.u32 15, %s30
    %v32 = vld [vmem:[%s22] sm:%s31]
    %v33 = vunpack.c.l.bf16 %v32
    %v34 = vunpack.c.h.bf16 %v32
    %s35 = scalar_lea.vmem [#allocation1], 112
    %36 = vst [vmem:[%s35] sm:%s4] %v33
    %s37 = smul.addr 2, 13
    %s38 = scalar_lea.vmem %s0, %s37
    %s39 = sshrl.u32 %s4, 1
    %s40 = sor.u32 %s4, %s39
    %s41 = sand.u32 %s40, 85
    %s42 = sshrl.u32 %s41, 1
    %s43 = sor.u32 %s41, %s42
    %s44 = sand.u32 51, %s43
    %s45 = sshrl.u32 %s44, 2
    %s46 = sor.u32 %s44, %s45
    %s47 = sand.u32 15, %s46
    %v48 = vld [vmem:[%s38] sm:%s47]
    %v49 = vunpack.c.l.bf16 %v48
    %v50 = vunpack.c.h.bf16 %v48
    %s51 = scalar_lea.vmem [#allocation1], 104
    %52 = vst [vmem:[%s51] sm:%s4] %v49
    %s53 = smul.addr 2, 12
    %s54 = scalar_lea.vmem %s0, %s53
    %s55 = sshrl.u32 %s4, 1
    %s56 = sor.u32 %s4, %s55
    %s57 = sand.u32 %s56, 85
    %s58 = sshrl.u32 %s57, 1
    %s59 = sor.u32 %s57, %s58
    %s60 = sand.u32 51, %s59
    %s61 = sshrl.u32 %s60, 2
    %s62 = sor.u32 %s60, %s61
    %s63 = sand.u32 15, %s62
    %v64 = vld [vmem:[%s54] sm:%s63]
    %v65 = vunpack.c.l.bf16 %v64
    %v66 = vunpack.c.h.bf16 %v64
    %s67 = scalar_lea.vmem [#allocation1], 96
    %68 = vst [vmem:[%s67] sm:%s4] %v65
    %s69 = smul.addr 2, 11
    %s70 = scalar_lea.vmem %s0, %s69
    %s71 = sshrl.u32 %s4, 1
    %s72 = sor.u32 %s4, %s71
    %s73 = sand.u32 %s72, 85
    %s74 = sshrl.u32 %s73, 1
    %s75 = sor.u32 %s73, %s74
    %s76 = sand.u32 51, %s75
    %s77 = sshrl.u32 %s76, 2
    %s78 = sor.u32 %s76, %s77
    %s79 = sand.u32 15, %s78
    %v80 = vld [vmem:[%s70] sm:%s79]
    %v81 = vunpack.c.l.bf16 %v80
    %v82 = vunpack.c.h.bf16 %v80
    %s83 = scalar_lea.vmem [#allocation1], 88
    %84 = vst [vmem:[%s83] sm:%s4] %v81
    %s85 = smul.addr 2, 10
    %s86 = scalar_lea.vmem %s0, %s85
    %s87 = sshrl.u32 %s4, 1
    %s88 = sor.u32 %s4, %s87
    %s89 = sand.u32 %s88, 85
    %s90 = sshrl.u32 %s89, 1
    %s91 = sor.u32 %s89, %s90
    %s92 = sand.u32 51, %s91
    %s93 = sshrl.u32 %s92, 2
    %s94 = sor.u32 %s92, %s93
    %s95 = sand.u32 15, %s94
    %v96 = vld [vmem:[%s86] sm:%s95]
    %v97 = vunpack.c.l.bf16 %v96
    %v98 = vunpack.c.h.bf16 %v96
    %s99 = scalar_lea.vmem [#allocation1], 80
    %100 = vst [vmem:[%s99] sm:%s4] %v97
    %s101 = smul.addr 2, 9
    %s102 = scalar_lea.vmem %s0, %s101
    %s103 = sshrl.u32 %s4, 1
    %s104 = sor.u32 %s4, %s103
    %s105 = sand.u32 %s104, 85
    %s106 = sshrl.u32 %s105, 1
    %s107 = sor.u32 %s105, %s106
    %s108 = sand.u32 51, %s107
    %s109 = sshrl.u32 %s108, 2
    %s110 = sor.u32 %s108, %s109
    %s111 = sand.u32 15, %s110
    %v112 = vld [vmem:[%s102] sm:%s111]
    %v113 = vunpack.c.l.bf16 %v112
    %v114 = vunpack.c.h.bf16 %v112
    %s115 = scalar_lea.vmem [#allocation1], 72
    %116 = vst [vmem:[%s115] sm:%s4] %v113
    %s117 = smul.addr 2, 8
    %s118 = scalar_lea.vmem %s0, %s117
    %s119 = sshrl.u32 %s4, 1
    %s120 = sor.u32 %s4, %s119
    %s121 = sand.u32 %s120, 85
    %s122 = sshrl.u32 %s121, 1
    %s123 = sor.u32 %s121, %s122
    %s124 = sand.u32 51, %s123
    %s125 = sshrl.u32 %s124, 2
    %s126 = sor.u32 %s124, %s125
    %s127 = sand.u32 15, %s126
    %v128 = vld [vmem:[%s118] sm:%s127]
    %v129 = vunpack.c.l.bf16 %v128
    %v130 = vunpack.c.h.bf16 %v128
    %s131 = scalar_lea.vmem [#allocation1], 64
    %132 = vst [vmem:[%s131] sm:%s4] %v129
    %s133 = smul.addr 2, 7
    %s134 = scalar_lea.vmem %s0, %s133
    %s135 = sshrl.u32 %s4, 1
    %s136 = sor.u32 %s4, %s135
    %s137 = sand.u32 %s136, 85
    %s138 = sshrl.u32 %s137, 1
    %s139 = sor.u32 %s137, %s138
    %s140 = sand.u32 51, %s139
    %s141 = sshrl.u32 %s140, 2
    %s142 = sor.u32 %s140, %s141
    %s143 = sand.u32 15, %s142
    %v144 = vld [vmem:[%s134] sm:%s143]
    %v145 = vunpack.c.l.bf16 %v144
    %v146 = vunpack.c.h.bf16 %v144
    %s147 = scalar_lea.vmem [#allocation1], 56
    %148 = vst [vmem:[%s147] sm:%s4] %v145
    %s149 = smul.addr 2, 6
    %s150 = scalar_lea.vmem %s0, %s149
    %s151 = sshrl.u32 %s4, 1
    %s152 = sor.u32 %s4, %s151
    %s153 = sand.u32 %s152, 85
    %s154 = sshrl.u32 %s153, 1
    %s155 = sor.u32 %s153, %s154
    %s156 = sand.u32 51, %s155
    %s157 = sshrl.u32 %s156, 2
    %s158 = sor.u32 %s156, %s157
    %s159 = sand.u32 15, %s158
    %v160 = vld [vmem:[%s150] sm:%s159]
    %v161 = vunpack.c.l.bf16 %v160
    %v162 = vunpack.c.h.bf16 %v160
    %s163 = scalar_lea.vmem [#allocation1], 48
    %164 = vst [vmem:[%s163] sm:%s4] %v161
    %s165 = smul.addr 2, 5
    %s166 = scalar_lea.vmem %s0, %s165
    %s167 = sshrl.u32 %s4, 1
    %s168 = sor.u32 %s4, %s167
    %s169 = sand.u32 %s168, 85
    %s170 = sshrl.u32 %s169, 1
    %s171 = sor.u32 %s169, %s170
    %s172 = sand.u32 51, %s171
    %s173 = sshrl.u32 %s172, 2
    %s174 = sor.u32 %s172, %s173
    %s175 = sand.u32 15, %s174
    %v176 = vld [vmem:[%s166] sm:%s175]
    %v177 = vunpack.c.l.bf16 %v176
    %v178 = vunpack.c.h.bf16 %v176
    %s179 = scalar_lea.vmem [#allocation1], 40
    %180 = vst [vmem:[%s179] sm:%s4] %v177
    %s181 = smul.addr 2, 4
    %s182 = scalar_lea.vmem %s0, %s181
    %s183 = sshrl.u32 %s4, 1
    %s184 = sor.u32 %s4, %s183
    %s185 = sand.u32 %s184, 85
    %s186 = sshrl.u32 %s185, 1
    %s187 = sor.u32 %s185, %s186
    %s188 = sand.u32 51, %s187
    %s189 = sshrl.u32 %s188, 2
    %s190 = sor.u32 %s188, %s189
    %s191 = sand.u32 15, %s190
    %v192 = vld [vmem:[%s182] sm:%s191]
    %v193 = vunpack.c.l.bf16 %v192
    %v194 = vunpack.c.h.bf16 %v192
    %s195 = scalar_lea.vmem [#allocation1], 32
    %196 = vst [vmem:[%s195] sm:%s4] %v193
    %s197 = smul.addr 2, 3
    %s198 = scalar_lea.vmem %s0, %s197
    %s199 = sshrl.u32 %s4, 1
    %s200 = sor.u32 %s4, %s199
    %s201 = sand.u32 %s200, 85
    %s202 = sshrl.u32 %s201, 1
    %s203 = sor.u32 %s201, %s202
    %s204 = sand.u32 51, %s203
    %s205 = sshrl.u32 %s204, 2
    %s206 = sor.u32 %s204, %s205
    %s207 = sand.u32 15, %s206
    %v208 = vld [vmem:[%s198] sm:%s207]
    %v209 = vunpack.c.l.bf16 %v208
    %v210 = vunpack.c.h.bf16 %v208
    %s211 = scalar_lea.vmem [#allocation1], 24
    %212 = vst [vmem:[%s211] sm:%s4] %v209
    %s213 = smul.addr 2, 2
    %s214 = scalar_lea.vmem %s0, %s213
    %s215 = sshrl.u32 %s4, 1
    %s216 = sor.u32 %s4, %s215
    %s217 = sand.u32 %s216, 85
    %s218 = sshrl.u32 %s217, 1
    %s219 = sor.u32 %s217, %s218
    %s220 = sand.u32 51, %s219
    %s221 = sshrl.u32 %s220, 2
    %s222 = sor.u32 %s220, %s221
    %s223 = sand.u32 15, %s222
    %v224 = vld [vmem:[%s214] sm:%s223]
    %v225 = vunpack.c.l.bf16 %v224
    %v226 = vunpack.c.h.bf16 %v224
    %s227 = scalar_lea.vmem [#allocation1], 16
    %228 = vst [vmem:[%s227] sm:%s4] %v225
    %s229 = scalar_lea.vmem %s0, 2
    %s230 = sshrl.u32 %s4, 1
    %s231 = sor.u32 %s4, %s230
    %s232 = sand.u32 %s231, 85
    %s233 = sshrl.u32 %s232, 1
    %s234 = sor.u32 %s232, %s233
    %s235 = sand.u32 51, %s234
    %s236 = sshrl.u32 %s235, 2
    %s237 = sor.u32 %s235, %s236
    %s238 = sand.u32 15, %s237
    %v239 = vld [vmem:[%s229] sm:%s238]
    %v240 = vunpack.c.l.bf16 %v239
    %v241 = vunpack.c.h.bf16 %v239
    %s242 = scalar_lea.vmem [#allocation1], 8
    %243 = vst [vmem:[%s242] sm:%s4] %v240
    %s244 = sshrl.u32 %s4, 1
    %s245 = sor.u32 %s4, %s244
    %s246 = sand.u32 %s245, 85
    %s247 = sshrl.u32 %s246, 1
    %s248 = sor.u32 %s246, %s247
    %s249 = sand.u32 51, %s248
    %s250 = sshrl.u32 %s249, 2
    %s251 = sor.u32 %s249, %s250
    %s252 = sand.u32 15, %s251
    %v253 = vld [vmem:[%s0] sm:%s252]
    %v254 = vunpack.c.l.bf16 %v253
    %v255 = vunpack.c.h.bf16 %v253
    %256 = vst [vmem:[#allocation1] sm:%s4] %v254
    %v257 = vld [vmem:[#allocation1] sm:$0xf]
    %258 = vst [vmem:[#allocation0] sm:$0xf] %v257
    %s259 = scalar_lea.vmem [#allocation1], 8
    %v260 = vld [vmem:[%s259] sm:$0xf]
    %s261 = scalar_lea.vmem [#allocation0], 8
    %262 = vst [vmem:[%s261] sm:$0xf] %v260
    %s263 = scalar_lea.vmem [#allocation1], 16
    %v264 = vld [vmem:[%s263] sm:$0xf]
    %s265 = scalar_lea.vmem [#allocation0], 4
    %266 = vst [vmem:[%s265] sm:$0xf] %v264
    %s267 = scalar_lea.vmem [#allocation1], 24
    %v268 = vld [vmem:[%s267] sm:$0xf]
    %s269 = scalar_lea.vmem [#allocation0], 12
    %270 = vst [vmem:[%s269] sm:$0xf] %v268
    %s271 = scalar_lea.vmem [#allocation1], 32
    %v272 = vld [vmem:[%s271] sm:$0xf]
    %s273 = scalar_lea.vmem [#allocation0], 16
    %274 = vst [vmem:[%s273] sm:$0xf] %v272
    %s275 = scalar_lea.vmem [#allocation1], 40
    %v276 = vld [vmem:[%s275] sm:$0xf]
    %s277 = scalar_lea.vmem [#allocation0], 24
    %278 = vst [vmem:[%s277] sm:$0xf] %v276
    %s279 = scalar_lea.vmem [#allocation1], 48
    %v280 = vld [vmem:[%s279] sm:$0xf]
    %s281 = scalar_lea.vmem [#allocation0], 20
    %282 = vst [vmem:[%s281] sm:$0xf] %v280
    %s283 = scalar_lea.vmem [#allocation1], 56
    %v284 = vld [vmem:[%s283] sm:$0xf]
    %s285 = scalar_lea.vmem [#allocation0], 28
    %286 = vst [vmem:[%s285] sm:$0xf] %v284
    %s287 = scalar_lea.vmem [#allocation1], 64
    %v288 = vld [vmem:[%s287] sm:$0xf]
    %s289 = scalar_lea.vmem [#allocation0], 32
    %290 = vst [vmem:[%s289] sm:$0xf] %v288
    %s291 = scalar_lea.vmem [#allocation1], 72
    %v292 = vld [vmem:[%s291] sm:$0xf]
    %s293 = scalar_lea.vmem [#allocation0], 40
    %294 = vst [vmem:[%s293] sm:$0xf] %v292
    %s295 = scalar_lea.vmem [#allocation1], 80
    %v296 = vld [vmem:[%s295] sm:$0xf]
    %s297 = scalar_lea.vmem [#allocation0], 36
    %298 = vst [vmem:[%s297] sm:$0xf] %v296
    %s299 = scalar_lea.vmem [#allocation1], 88
    %v300 = vld [vmem:[%s299] sm:$0xf]
    %s301 = scalar_lea.vmem [#allocation0], 44
    %302 = vst [vmem:[%s301] sm:$0xf] %v300
    %s303 = scalar_lea.vmem [#allocation1], 96
    %v304 = vld [vmem:[%s303] sm:$0xf]
    %s305 = scalar_lea.vmem [#allocation0], 48
    %306 = vst [vmem:[%s305] sm:$0xf] %v304
    %s307 = scalar_lea.vmem [#allocation1], 104
    %v308 = vld [vmem:[%s307] sm:$0xf]
    %s309 = scalar_lea.vmem [#allocation0], 56
    %310 = vst [vmem:[%s309] sm:$0xf] %v308
    %s311 = scalar_lea.vmem [#allocation1], 112
    %v312 = vld [vmem:[%s311] sm:$0xf]
    %s313 = scalar_lea.vmem [#allocation0], 52
    %314 = vst [vmem:[%s313] sm:$0xf] %v312
    %s315 = scalar_lea.vmem [#allocation1], 120
    %v316 = vld [vmem:[%s315] sm:$0xf]
    %s317 = scalar_lea.vmem [#allocation0], 60
    %318 = vst [vmem:[%s317] sm:$0xf] %v316
    %s320 = smul.u32 4, 2
    %s321 = sshllo.u32 0, %s320
    %s322 = sshrl.u32 %s320, 1
    %v323 = vld [vmem:[#allocation0] sm:%s321]
    %v324 = vpack.c.bf16 0.0, %v323
    %s325 = sshllo.u32 0, %s322
    %326 = vst [vmem:[%s1] sm:%s325] %v324
    %s327 = scalar_lea.vmem [#allocation0], 8
    %v328 = vld [vmem:[%s327] sm:%s321]
    %v329 = vpack.c.bf16 0.0, %v328
    %s330 = sshllo.u32 0, %s322
    %s331 = scalar_lea.vmem %s1, 4
    %332 = vst [vmem:[%s331] sm:%s330] %v329
    %s333 = scalar_lea.vmem [#allocation0], 16
    %v334 = vld [vmem:[%s333] sm:%s321]
    %v335 = vpack.c.bf16 0.0, %v334
    %s336 = sshllo.u32 0, %s322
    %s337 = smul.addr 4, 2
    %s338 = scalar_lea.vmem %s1, %s337
    %339 = vst [vmem:[%s338] sm:%s336] %v335
    %s340 = scalar_lea.vmem [#allocation0], 24
    %v341 = vld [vmem:[%s340] sm:%s321]
    %v342 = vpack.c.bf16 0.0, %v341
    %s343 = sshllo.u32 0, %s322
    %s344 = smul.addr 4, 3
    %s345 = scalar_lea.vmem %s1, %s344
    %346 = vst [vmem:[%s345] sm:%s343] %v342
    %s347 = scalar_lea.vmem [#allocation0], 32
    %v348 = vld [vmem:[%s347] sm:%s321]
    %v349 = vpack.c.bf16 0.0, %v348
    %s350 = sshllo.u32 0, %s322
    %s351 = smul.addr 4, 4
    %s352 = scalar_lea.vmem %s1, %s351
    %353 = vst [vmem:[%s352] sm:%s350] %v349
    %s354 = scalar_lea.vmem [#allocation0], 40
    %v355 = vld [vmem:[%s354] sm:%s321]
    %v356 = vpack.c.bf16 0.0, %v355
    %s357 = sshllo.u32 0, %s322
    %s358 = smul.addr 4, 5
    %s359 = scalar_lea.vmem %s1, %s358
    %360 = vst [vmem:[%s359] sm:%s357] %v356
    %s361 = scalar_lea.vmem [#allocation0], 48
    %v362 = vld [vmem:[%s361] sm:%s321]
    %v363 = vpack.c.bf16 0.0, %v362
    %s364 = sshllo.u32 0, %s322
    %s365 = smul.addr 4, 6
    %s366 = scalar_lea.vmem %s1, %s365
    %367 = vst [vmem:[%s366] sm:%s364] %v363
    %s368 = scalar_lea.vmem [#allocation0], 56
    %v369 = vld [vmem:[%s368] sm:%s321]
    %v370 = vpack.c.bf16 0.0, %v369
    %s371 = sshllo.u32 0, %s322
    %s372 = smul.addr 4, 7
    %s373 = scalar_lea.vmem %s1, %s372
    %374 = vst [vmem:[%s373] sm:%s371] %v370

// kernel: spnet_forward.14
$region0: #{spnet_forward.14}
  #allocation0 [shape = 'u32[]', space=smem, size = 0x4, offset = 0x4, fixed_abs, tag = 'smem constant byte address 0x4 - core index']
  #allocation1 [shape = 'u32[144,128]{1,0:T(1,128)}', space=vmem, size = 0x12000, scoped, tag = 'internal scratch']
  %s0 = inlined_call_operand.vmem [shape: bf16[32,256], index: 0, kind: input, shape index: {}]
  %s1 = inlined_call_operand.vmem [shape: bf16[256,128], index: 1, kind: input, shape index: {}]
  %s2 = inlined_call_operand.vmem [shape: f32[1,128], index: 2, kind: input, shape index: {}]
  %s3 = inlined_call_operand.vmem [shape: bf16[32,128], index: 3, kind: output, shape index: {}]
  %s4 = sld [smem:[#allocation0]]
  $region22: #{spnet_forward.14} parent=0
    _
  %s6 = ssub.s32 1, %s4
  %s7 = scalar_select 0, %s6, %s4
  // Predicated region
  $region2: #{spnet_forward.14} parent=0 // pred_check
    _
  $region3: #{spnet_forward.14} parent=0 // pred_check_branch
    %9 = sbr.rel (0) target = $region5
  $region4: #{spnet_forward.14} parent=0 // pred_region
    _
  $region5: #{spnet_forward.14} parent=0 // pred_fallthru
    _
  // Predicated region
  $region6: #{spnet_forward.14} parent=0 // pred_check
    _
  $region7: #{spnet_forward.14} parent=0 // pred_check_branch
    %11 = sbr.rel (0) target = $region9
  $region8: #{spnet_forward.14} parent=0 // pred_region
    _
  $region9: #{spnet_forward.14} parent=0 // pred_fallthru
    _
  // Predicated region
  $region10: #{spnet_forward.14} parent=0 // pred_check
    _
  $region11: #{spnet_forward.14} parent=0 // pred_check_branch
    %13 = sbr.rel (0) target = $region13
  $region12: #{spnet_forward.14} parent=0 // pred_region
    _
  $region13: #{spnet_forward.14} parent=0 // pred_fallthru
    _
  %v15 = vld [vmem:[%s0] sm:$0xff]
  %v16 = vld [vmem:[%s0 + $0x8] sm:$0xff]
  %v17 = vld [vmem:[%s0 + $0x10] sm:$0xff]
  %v18 = vld [vmem:[%s0 + $0x18] sm:$0xff]
  %v19 = vld [vmem:[%s1] sm:$0xf]
  %v20 = vld [vmem:[%s1 + $0x4] sm:$0xf]
  %v21 = vld [vmem:[%s1 + $0x8] sm:$0xf]
  %v22 = vld [vmem:[%s1 + $0xc] sm:$0xf]
  %v23 = vld [vmem:[%s1 + $0x10] sm:$0xf]
  %v24 = vld [vmem:[%s1 + $0x14] sm:$0xf]
  %v25 = vld [vmem:[%s1 + $0x18] sm:$0xf]
  %v26 = vld [vmem:[%s1 + $0x1c] sm:$0xf]
  %v27 = vld [vmem:[%s1 + $0x20] sm:$0xf]
  %v28 = vld [vmem:[%s1 + $0x24] sm:$0xf]
  %v29 = vld [vmem:[%s1 + $0x28] sm:$0xf]
  %v30 = vld [vmem:[%s1 + $0x2c] sm:$0xf]
  %v31 = vld [vmem:[%s1 + $0x30] sm:$0xf]
  %v32 = vld [vmem:[%s1 + $0x34] sm:$0xf]
  %v33 = vld [vmem:[%s1 + $0x38] sm:$0xf]
  %v34 = vld [vmem:[%s1 + $0x3c] sm:$0xf]
  %v35 = vld [vmem:[%s1 + $0x40] sm:$0xf]
  %v36 = vld [vmem:[%s1 + $0x44] sm:$0xf]
  %v37 = vld [vmem:[%s1 + $0x48] sm:$0xf]
  %v38 = vld [vmem:[%s1 + $0x4c] sm:$0xf]
  %v39 = vld [vmem:[%s1 + $0x50] sm:$0xf]
  %v40 = vld [vmem:[%s1 + $0x54] sm:$0xf]
  %v41 = vld [vmem:[%s1 + $0x58] sm:$0xf]
  %v42 = vld [vmem:[%s1 + $0x5c] sm:$0xf]
  %v43 = vld [vmem:[%s1 + $0x60] sm:$0xf]
  %v44 = vld [vmem:[%s1 + $0x64] sm:$0xf]
  %v45 = vld [vmem:[%s1 + $0x68] sm:$0xf]
  %v46 = vld [vmem:[%s1 + $0x6c] sm:$0xf]
  %v47 = vld [vmem:[%s1 + $0x70] sm:$0xf]
  %v48 = vld [vmem:[%s1 + $0x74] sm:$0xf]
  %v49 = vld [vmem:[%s1 + $0x78] sm:$0xf]
  %v50 = vld [vmem:[%s1 + $0x7c] sm:$0xf]
  %v51 = vld [vmem:[%s2] sm:$0x1]
  %v53 = vlaneseq
  %v54 = vshrl.u32 %v53, 7
  %v55 = vsub.s32 0, %v54
  %v56 = vrot.slane %v51, %v55
  %v62 = vunpack.c.l.b16 %v15
  %v63 = vunpack.c.h.b16 %v15
  %v64 = vunpack.c.l.b16 %v16
  %v65 = vunpack.c.h.b16 %v16
  %v66 = vunpack.c.l.b16 %v17
  %v67 = vunpack.c.h.b16 %v17
  %v68 = vunpack.c.l.b16 %v18
  %v69 = vunpack.c.h.b16 %v18
  %v70 = vpack.c.b16 %v64, %v62
  %v71 = vpack.c.b16 %v65, %v63
  %v72 = vpack.c.b16 %v68, %v66
  %v73 = vpack.c.b16 %v69, %v67
  %v110 = vunpack.c.l.b16 %v19
  %v111 = vunpack.c.l.b16 %v20
  %v112 = vunpack.c.l.b16 %v21
  %v113 = vunpack.c.l.b16 %v22
  %v114 = vunpack.c.l.b16 %v23
  %v115 = vunpack.c.l.b16 %v24
  %v116 = vunpack.c.l.b16 %v25
  %v117 = vunpack.c.l.b16 %v26
  %v118 = vunpack.c.l.b16 %v27
  %v119 = vunpack.c.l.b16 %v28
  %v120 = vunpack.c.l.b16 %v29
  %v121 = vunpack.c.l.b16 %v30
  %v122 = vunpack.c.l.b16 %v31
  %v123 = vunpack.c.l.b16 %v32
  %v124 = vunpack.c.l.b16 %v33
  %v125 = vunpack.c.l.b16 %v34
  %v126 = vunpack.c.l.b16 %v35
  %v127 = vunpack.c.l.b16 %v36
  %v128 = vunpack.c.l.b16 %v37
  %v129 = vunpack.c.l.b16 %v38
  %v130 = vunpack.c.l.b16 %v39
  %v131 = vunpack.c.l.b16 %v40
  %v132 = vunpack.c.l.b16 %v41
  %v133 = vunpack.c.l.b16 %v42
  %v134 = vunpack.c.l.b16 %v43
  %v135 = vunpack.c.l.b16 %v44
  %v136 = vunpack.c.l.b16 %v45
  %v137 = vunpack.c.l.b16 %v46
  %v138 = vunpack.c.l.b16 %v47
  %v139 = vunpack.c.l.b16 %v48
  %v140 = vunpack.c.l.b16 %v49
  %v141 = vunpack.c.l.b16 %v50
  %v142 = vpack.c.b16 %v111, %v110
  %v143 = vpack.c.b16 %v113, %v112
  %v144 = vpack.c.b16 %v115, %v114
  %v145 = vpack.c.b16 %v117, %v116
  %v146 = vpack.c.b16 %v119, %v118
  %v147 = vpack.c.b16 %v121, %v120
  %v148 = vpack.c.b16 %v123, %v122
  %v149 = vpack.c.b16 %v125, %v124
  %v150 = vpack.c.b16 %v127, %v126
  %v151 = vpack.c.b16 %v129, %v128
  %v152 = vpack.c.b16 %v131, %v130
  %v153 = vpack.c.b16 %v133, %v132
  %v154 = vpack.c.b16 %v135, %v134
  %v155 = vpack.c.b16 %v137, %v136
  %v156 = vpack.c.b16 %v139, %v138
  %v157 = vpack.c.b16 %v141, %v140
  %174 = vmatprep.subr.bf16.mxu0 0
  %175 = vmatpush1.bf16.msra.mxu0 %v142
  %176 = vmatprep.subr.bf16.mxu0 0
  %177 = vmatpush1.bf16.msra.mxu0 %v143
  %178 = vmatprep.subr.bf16.mxu0 0
  %179 = vmatpush1.bf16.msra.mxu0 %v144
  %180 = vmatprep.subr.bf16.mxu0 0
  %181 = vmatpush1.bf16.msra.mxu0 %v145
  %182 = vmatprep.subr.bf16.mxu0 0
  %183 = vmatpush1.bf16.msra.mxu0 %v146
  %184 = vmatprep.subr.bf16.mxu0 0
  %185 = vmatpush1.bf16.msra.mxu0 %v147
  %186 = vmatprep.subr.bf16.mxu0 0
  %187 = vmatpush1.bf16.msra.mxu0 %v148
  %188 = vmatprep.subr.bf16.mxu0 0
  %189 = vmatpush1.bf16.msra.mxu0 %v149
  %190 = vmatprep.subr.bf16.mxu0 0
  %191 = vmatpush1.bf16.msra.mxu0 %v150
  %192 = vmatprep.subr.bf16.mxu0 0
  %193 = vmatpush1.bf16.msra.mxu0 %v151
  %194 = vmatprep.subr.bf16.mxu0 0
  %195 = vmatpush1.bf16.msra.mxu0 %v152
  %196 = vmatprep.subr.bf16.mxu0 0
  %197 = vmatpush1.bf16.msra.mxu0 %v153
  %198 = vmatprep.subr.bf16.mxu0 0
  %199 = vmatpush1.bf16.msra.mxu0 %v154
  %200 = vmatprep.subr.bf16.mxu0 0
  %201 = vmatpush1.bf16.msra.mxu0 %v155
  %202 = vmatprep.subr.bf16.mxu0 0
  %203 = vmatpush1.bf16.msra.mxu0 %v156
  %204 = vmatprep.subr.bf16.mxu0 0
  %205 = vmatpush1.bf16.msra.mxu0 %v157
  %206 = vmatprep.mubr.bf16.mxu0 %v71
  %207 = vmatmul.mubr.bf16.gmra.mrb[0].mxu0 %v70
  %v208 = vpop.f32.mrb[0].mxu0
  %v209 = vadd.f32 %v56, %v208
  %v210 = vpop.f32.mrb[0].mxu0
  %v211 = vpop.f32.mrb[0].mxu0
  %v212 = vadd.f32 %v56, %v211
  %v213 = vpop.f32.mrb[0].mxu0
  %214 = vmatprep.mubr.bf16.mxu0 %v73
  %215 = vmatmul.mubr.bf16.gmra.mrb[0].mxu0 %v72
  %v216 = vpop.f32.mrb[0].mxu0
  %v217 = vadd.f32 %v56, %v216
  %v218 = vpop.f32.mrb[0].mxu0
  %v219 = vpop.f32.mrb[0].mxu0
  %v220 = vadd.f32 %v56, %v219
  %v221 = vpop.f32.mrb[0].mxu0
  %222 = vdwg.mxu0
  %v223 = vpack.c.bf16 %v212, %v209
  %v224 = vpack.c.bf16 %v220, %v217
  %v227 = vunpack.c.l.b16 %v223
  %v228 = vunpack.c.h.b16 %v223
  %v229 = vunpack.c.l.b16 %v224
  %v230 = vunpack.c.h.b16 %v224
  %v231 = vpack.c.b16 %v227, %v227
  %v232 = vpack.c.b16 %v228, %v228
  %v233 = vpack.c.b16 %v229, %v229
  %v234 = vpack.c.b16 %v230, %v230
  %239 = vst [vmem:[%s3] sm:$0xf] %v231
  %240 = vst [vmem:[%s3 + $0x4] sm:$0xf] %v232
  %241 = vst [vmem:[%s3 + $0x8] sm:$0xf] %v233
  %242 = vst [vmem:[%s3 + $0xc] sm:$0xf] %v234
  // Predicated region
  $region14: #{spnet_forward.14} parent=0 // pred_check
    _
  $region15: #{spnet_forward.14} parent=0 // pred_check_branch
    %244 = sbr.rel (0) target = $region17
  $region16: #{spnet_forward.14} parent=0 // pred_region
    _
  $region17: #{spnet_forward.14} parent=0 // pred_fallthru
    _
  // Predicated region
  $region18: #{spnet_forward.14} parent=0 // pred_check
    _
  $region19: #{spnet_forward.14} parent=0 // pred_check_branch
    %246 = sbr.rel (0) target = $region21
  $region20: #{spnet_forward.14} parent=0 // pred_region
    _
  $region21: #{spnet_forward.14} parent=0 // pred_fallthru
    _

// kernel: spnet_forward.13
$region0: #{spnet_forward.13}
  #allocation0 [shape = 'u32[]', space=smem, size = 0x4, offset = 0x4, fixed_abs, tag = 'smem constant byte address 0x4 - core index']
  #allocation1 [shape = 'u32[144,128]{1,0:T(1,128)}', space=vmem, size = 0x12000, scoped, tag = 'internal scratch']
  %s0 = inlined_call_operand.vmem [shape: bf16[6,32,512], index: 0, kind: input, shape index: {}]
  %s1 = inlined_call_operand.vmem [shape: bf16[4,512,256], index: 1, kind: input, shape index: {}]
  %s2 = inlined_call_operand.vmem [shape: f32[1,256], index: 2, kind: input, shape index: {}]
  %s3 = inlined_call_operand.vmem [shape: bf16[6,20,256], index: 3, kind: output, shape index: {}]
  %s4 = sld [smem:[#allocation0]]
  $region45: #{spnet_forward.13} parent=0
    _
  %s6 = ssub.s32 1, %s4
  %s7 = scalar_select 0, %s6, %s4
  loop: start=0, step=1, limit=8
  $region2: #{spnet_forward.13} parent=0 // loop_pre_header
    _
  $region3: #{spnet_forward.13} parent=0 // loop_header
    %s9 = sphi 0, %s13
    %p10 = scmp.ge.s32.totalorder %s9, 8
    %s19 = sphi 0, %s21
    %s22 = sphi 0, %s19
    %s23 = sphi 0, %s22
    %s39 = sphi 0, %s23
    %s43 = sphi 0, %s43
    %s45 = sphi 0, %s43
    %s46 = sphi 0, %s45
    %s60 = sphi 0, %s46
    %s64 = sphi 0, %s64
    %s66 = sphi 0, %s64
    %s67 = sphi 0, %s66
    %s81 = sphi 0, %s67
    %s87 = sphi 0, %s89
    %s90 = sphi 0, %s87
    %s91 = sphi 0, %s90
    %s107 = sphi 0, %s91
  $region4: #{spnet_forward.13} parent=0 // loop_header_branch
    %12 = sbr.rel (%p10) target = $region8
  $region5: #{spnet_forward.13} parent=0 // loop_body
    %s14 = ssub.s32 %s9, 1
    %s15 = ssub.s32 %s9, 2
    %s16 = sadd.s32 %s9, 1
    %s17 = ssub.s32 %s9, %s16
    %p18 = scmp.eq.s32.totalorder %s17, 0
    %s20 = sadd.s32 %s19, 1
    %s21 = scalar_select %p18, %s19, %s20
    %p24 = pneg %p18
    %p25 = scmp.eq.s32.totalorder %s9, 5
    %p26 = por %p24, %p25
    %p27 = scmp.ne.s32.totalorder %s19, %s22
    %p28 = scmp.eq.s32.totalorder %s9, 0
    %p29 = por %p27, %p28
    %p30 = scmp.ne.s32.totalorder %s19, %s22
    %p31 = scmp.eq.s32.totalorder %s14, 5
    %p32 = por %p30, %p31
    %p33 = scmp.ne.s32.totalorder %s22, %s23
    %p34 = scmp.eq.s32.totalorder %s14, 0
    %p35 = por %p33, %p34
    %p36 = scmp.ne.s32.totalorder %s22, %s23
    %p37 = scmp.eq.s32.totalorder %s15, 5
    %p38 = por %p36, %p37
    %p40 = scmp.ne.s32.totalorder %s23, %s39
    %p41 = scmp.eq.s32.totalorder %s15, 0
    %p42 = por %p40, %p41
    %s44 = sadd.s32 %s43, 1
    %p47 = scmp.eq.s32.totalorder %s9, 5
    %p48 = scmp.ne.s32.totalorder %s43, %s45
    %p49 = scmp.eq.s32.totalorder %s9, 0
    %p50 = por %p48, %p49
    %p51 = scmp.ne.s32.totalorder %s43, %s45
    %p52 = scmp.eq.s32.totalorder %s14, 5
    %p53 = por %p51, %p52
    %p54 = scmp.ne.s32.totalorder %s45, %s46
    %p55 = scmp.eq.s32.totalorder %s14, 0
    %p56 = por %p54, %p55
    %p57 = scmp.ne.s32.totalorder %s45, %s46
    %p58 = scmp.eq.s32.totalorder %s15, 5
    %p59 = por %p57, %p58
    %p61 = scmp.ne.s32.totalorder %s46, %s60
    %p62 = scmp.eq.s32.totalorder %s15, 0
    %p63 = por %p61, %p62
    %s65 = sadd.s32 %s64, 1
    %p68 = scmp.eq.s32.totalorder %s9, 5
    %p69 = scmp.ne.s32.totalorder %s64, %s66
    %p70 = scmp.eq.s32.totalorder %s9, 0
    %p71 = por %p69, %p70
    %p72 = scmp.ne.s32.totalorder %s64, %s66
    %p73 = scmp.eq.s32.totalorder %s14, 5
    %p74 = por %p72, %p73
    %p75 = scmp.ne.s32.totalorder %s66, %s67
    %p76 = scmp.eq.s32.totalorder %s14, 0
    %p77 = por %p75, %p76
    %p78 = scmp.ne.s32.totalorder %s66, %s67
    %p79 = scmp.eq.s32.totalorder %s15, 5
    %p80 = por %p78, %p79
    %p82 = scmp.ne.s32.totalorder %s67, %s81
    %p83 = scmp.eq.s32.totalorder %s15, 0
    %p84 = por %p82, %p83
    %s85 = ssub.s32 %s9, %s16
    %p86 = scmp.eq.s32.totalorder %s85, 0
    %s88 = sadd.s32 %s87, 1
    %s89 = scalar_select %p86, %s87, %s88
    %p92 = pneg %p86
    %p93 = scmp.eq.s32.totalorder %s9, 5
    %p94 = por %p92, %p93
    %p95 = scmp.ne.s32.totalorder %s87, %s90
    %p96 = scmp.eq.s32.totalorder %s9, 0
    %p97 = por %p95, %p96
    %p98 = scmp.ne.s32.totalorder %s87, %s90
    %p99 = scmp.eq.s32.totalorder %s14, 5
    %p100 = por %p98, %p99
    %p101 = scmp.ne.s32.totalorder %s90, %s91
    %p102 = scmp.eq.s32.totalorder %s14, 0
    %p103 = por %p101, %p102
    %p104 = scmp.ne.s32.totalorder %s90, %s91
    %p105 = scmp.eq.s32.totalorder %s15, 5
    %p106 = por %p104, %p105
    %p108 = scmp.ne.s32.totalorder %s91, %s107
    %p109 = scmp.eq.s32.totalorder %s15, 0
    %p110 = por %p108, %p109
    %p111 = scmp.le.s32.totalorder 1, %s9
    %p112 = scmp.lt.s32.totalorder %s9, 7
    %p113 = pnand %p111, %p112
    %p114 = pneg %p113
    // Predicated region
    $region9: #{spnet_forward.13} parent=5 // pred_check
      _
    $region10: #{spnet_forward.13} parent=5 // pred_check_branch
      %116 = sbr.rel (%p113) target = $region12
    $region11: #{spnet_forward.13} parent=5 // pred_region
      %s117 = ssub.s32 %s9, 1
      // Predicated region
      $region13: #{spnet_forward.13} parent=11 // pred_check
        %p118 = pneg %p56
      $region14: #{spnet_forward.13} parent=11 // pred_check_branch
        %120 = sbr.rel (%p118) target = $region16
      $region15: #{spnet_forward.13} parent=11 // pred_region
        _
      $region16: #{spnet_forward.13} parent=11 // pred_fallthru
        _
      // Predicated region
      $region17: #{spnet_forward.13} parent=11 // pred_check
        %p121 = pneg %p77
      $region18: #{spnet_forward.13} parent=11 // pred_check_branch
        %123 = sbr.rel (%p121) target = $region20
      $region19: #{spnet_forward.13} parent=11 // pred_region
        _
      $region20: #{spnet_forward.13} parent=11 // pred_fallthru
        _
    $region12: #{spnet_forward.13} parent=5 // pred_fallthru
      _
    %p124 = scmp.lt.s32.totalorder %s9, 6
    // Predicated region
    $region21: #{spnet_forward.13} parent=5 // pred_check
      %p125 = pneg %p124
    $region22: #{spnet_forward.13} parent=5 // pred_check_branch
      %127 = sbr.rel (%p125) target = $region24
    $region23: #{spnet_forward.13} parent=5 // pred_region
      // Predicated region
      $region25: #{spnet_forward.13} parent=23 // pred_check
        %p128 = pneg %p29
      $region26: #{spnet_forward.13} parent=23 // pred_check_branch
        %130 = sbr.rel (%p128) target = $region28
      $region27: #{spnet_forward.13} parent=23 // pred_region
        %p131 = scmp.lt.s32.totalorder %s9, 5
        %s132 = scalar_select %p131, %s9, 5
        %s133 = smul.addr %s132, 16
        %s134 = smul.addr %s133, 4
        %s135 = scalar_lea.vmem %s0, %s134
      $region28: #{spnet_forward.13} parent=23 // pred_fallthru
        _
    $region24: #{spnet_forward.13} parent=5 // pred_fallthru
      _
    %p136 = scmp.le.s32.totalorder 1, %s9
    %p137 = scmp.lt.s32.totalorder %s9, 7
    %p138 = pnand %p136, %p137
    %p139 = pneg %p138
    // Predicated region
    $region29: #{spnet_forward.13} parent=5 // pred_check
      _
    $region30: #{spnet_forward.13} parent=5 // pred_check_branch
      %141 = sbr.rel (%p138) target = $region32
    $region31: #{spnet_forward.13} parent=5 // pred_region
      %s142 = ssub.s32 %s9, 1
      %p143 = scmp.lt.s32.totalorder %s14, 5
      %s144 = scalar_select %p143, %s14, 5
      %s145 = smul.addr %s144, 16
      %s146 = smul.addr %s145, 4
      %s147 = scalar_lea.vmem %s0, %s146
      %p148 = pneg %p35
      %p149 = pneg %p32
      %p150 = pneg %p56
      %p151 = pneg %p53
      %p152 = pneg %p77
      %p153 = pneg %p74
      %p154 = pneg %p103
      %p155 = pneg %p100
      %p156 = scmp.lt.s32.totalorder %s14, 5
      %s157 = scalar_select %p156, %s14, 5
      %s158 = smul.addr %s157, 6
      %s159 = smul.addr %s158, 4
      %s160 = scalar_lea.vmem %s3, %s159
      %p161 = scmp.lt.s32.totalorder %s14, 5
      %s162 = scalar_select %p161, %s14, 5
      %s163 = smul.addr %s162, 16
      %s164 = smul.addr %s163, 4
      %s165 = scalar_lea.vmem %s0, %s164
      %p166 = scmp.lt.s32.totalorder %s14, 5
      %s167 = scalar_select %p166, %s14, 5
      %s168 = smul.addr %s167, 6
      %s169 = smul.addr %s168, 4
      %s170 = scalar_lea.vmem %s3, %s169
      %v171 = vld [vmem:[%s165] sm:$0xff]
      %v172 = vld [vmem:[%s165 + $0x8] sm:$0xff]
      %v173 = vld [vmem:[%s165 + $0x10] sm:$0xff]
      %v174 = vld [vmem:[%s165 + $0x18] sm:$0xff]
      %v175 = vld [vmem:[%s165 + $0x20] sm:$0xff]
      %v176 = vld [vmem:[%s165 + $0x28] sm:$0xff]
      %v177 = vld [vmem:[%s165 + $0x30] sm:$0xff]
      %v178 = vld [vmem:[%s165 + $0x38] sm:$0xff]
      %v179 = vld [vmem:[%s1] sm:$0xff]
      %v180 = vld [vmem:[%s1 + $0x8] sm:$0xff]
      %v181 = vld [vmem:[%s1 + $0x10] sm:$0xff]
      %v182 = vld [vmem:[%s1 + $0x18] sm:$0xff]
      %v183 = vld [vmem:[%s1 + $0x20] sm:$0xff]
      %v184 = vld [vmem:[%s1 + $0x28] sm:$0xff]
      %v185 = vld [vmem:[%s1 + $0x30] sm:$0xff]
      %v186 = vld [vmem:[%s1 + $0x38] sm:$0xff]
      %v187 = vld [vmem:[%s1 + $0x40] sm:$0xff]
      %v188 = vld [vmem:[%s1 + $0x48] sm:$0xff]
      %v189 = vld [vmem:[%s1 + $0x50] sm:$0xff]
      %v190 = vld [vmem:[%s1 + $0x58] sm:$0xff]
      %v191 = vld [vmem:[%s1 + $0x60] sm:$0xff]
      %v192 = vld [vmem:[%s1 + $0x68] sm:$0xff]
      %v193 = vld [vmem:[%s1 + $0x70] sm:$0xff]
      %v194 = vld [vmem:[%s1 + $0x78] sm:$0xff]
      %v195 = vld [vmem:[%s1 + $0x80] sm:$0xff]
      %v196 = vld [vmem:[%s1 + $0x88] sm:$0xff]
      %v197 = vld [vmem:[%s1 + $0x90] sm:$0xff]
      %v198 = vld [vmem:[%s1 + $0x98] sm:$0xff]
      %v199 = vld [vmem:[%s1 + $0xa0] sm:$0xff]
      %v200 = vld [vmem:[%s1 + $0xa8] sm:$0xff]
      %v201 = vld [vmem:[%s1 + $0xb0] sm:$0xff]
      %v202 = vld [vmem:[%s1 + $0xb8] sm:$0xff]
      %v203 = vld [vmem:[%s1 + $0xc0] sm:$0xff]
      %v204 = vld [vmem:[%s1 + $0xc8] sm:$0xff]
      %v205 = vld [vmem:[%s1 + $0xd0] sm:$0xff]
      %v206 = vld [vmem:[%s1 + $0xd8] sm:$0xff]
      %v207 = vld [vmem:[%s1 + $0xe0] sm:$0xff]
      %v208 = vld [vmem:[%s1 + $0xe8] sm:$0xff]
      %v209 = vld [vmem:[%s1 + $0xf0] sm:$0xff]
      %v210 = vld [vmem:[%s1 + $0xf8] sm:$0xff]
      %v211 = vld [vmem:[%s1 + $0x100] sm:$0xff]
      %v212 = vld [vmem:[%s1 + $0x108] sm:$0xff]
      %v213 = vld [vmem:[%s1 + $0x110] sm:$0xff]
      %v214 = vld [vmem:[%s1 + $0x118] sm:$0xff]
      %v215 = vld [vmem:[%s1 + $0x120] sm:$0xff]
      %v216 = vld [vmem:[%s1 + $0x128] sm:$0xff]
      %v217 = vld [vmem:[%s1 + $0x130] sm:$0xff]
      %v218 = vld [vmem:[%s1 + $0x138] sm:$0xff]
      %v219 = vld [vmem:[%s1 + $0x140] sm:$0xff]
      %v220 = vld [vmem:[%s1 + $0x148] sm:$0xff]
      %v221 = vld [vmem:[%s1 + $0x150] sm:$0xff]
      %v222 = vld [vmem:[%s1 + $0x158] sm:$0xff]
      %v223 = vld [vmem:[%s1 + $0x160] sm:$0xff]
      %v224 = vld [vmem:[%s1 + $0x168] sm:$0xff]
      %v225 = vld [vmem:[%s1 + $0x170] sm:$0xff]
      %v226 = vld [vmem:[%s1 + $0x178] sm:$0xff]
      %v227 = vld [vmem:[%s1 + $0x180] sm:$0xff]
      %v228 = vld [vmem:[%s1 + $0x188] sm:$0xff]
      %v229 = vld [vmem:[%s1 + $0x190] sm:$0xff]
      %v230 = vld [vmem:[%s1 + $0x198] sm:$0xff]
      %v231 = vld [vmem:[%s1 + $0x1a0] sm:$0xff]
      %v232 = vld [vmem:[%s1 + $0x1a8] sm:$0xff]
      %v233 = vld [vmem:[%s1 + $0x1b0] sm:$0xff]
      %v234 = vld [vmem:[%s1 + $0x1b8] sm:$0xff]
      %v235 = vld [vmem:[%s1 + $0x1c0] sm:$0xff]
      %v236 = vld [vmem:[%s1 + $0x1c8] sm:$0xff]
      %v237 = vld [vmem:[%s1 + $0x1d0] sm:$0xff]
      %v238 = vld [vmem:[%s1 + $0x1d8] sm:$0xff]
      %v239 = vld [vmem:[%s1 + $0x1e0] sm:$0xff]
      %v240 = vld [vmem:[%s1 + $0x1e8] sm:$0xff]
      %v241 = vld [vmem:[%s1 + $0x1f0] sm:$0xff]
      %v242 = vld [vmem:[%s1 + $0x1f8] sm:$0xff]
      %s243 = scalar_lea.vmem %s1, 512
      %v244 = vld [vmem:[%s243] sm:$0xff]
      %v245 = vld [vmem:[%s243 + $0x8] sm:$0xff]
      %v246 = vld [vmem:[%s243 + $0x10] sm:$0xff]
      %v247 = vld [vmem:[%s243 + $0x18] sm:$0xff]
      %v248 = vld [vmem:[%s243 + $0x20] sm:$0xff]
      %v249 = vld [vmem:[%s243 + $0x28] sm:$0xff]
      %v250 = vld [vmem:[%s243 + $0x30] sm:$0xff]
      %v251 = vld [vmem:[%s243 + $0x38] sm:$0xff]
      %v252 = vld [vmem:[%s243 + $0x40] sm:$0xff]
      %v253 = vld [vmem:[%s243 + $0x48] sm:$0xff]
      %v254 = vld [vmem:[%s243 + $0x50] sm:$0xff]
      %v255 = vld [vmem:[%s243 + $0x58] sm:$0xff]
      %v256 = vld [vmem:[%s243 + $0x60] sm:$0xff]
      %v257 = vld [vmem:[%s243 + $0x68] sm:$0xff]
      %v258 = vld [vmem:[%s243 + $0x70] sm:$0xff]
      %v259 = vld [vmem:[%s243 + $0x78] sm:$0xff]
      %v260 = vld [vmem:[%s243 + $0x80] sm:$0xff]
      %v261 = vld [vmem:[%s243 + $0x88] sm:$0xff]
      %v262 = vld [vmem:[%s243 + $0x90] sm:$0xff]
      %v263 = vld [vmem:[%s243 + $0x98] sm:$0xff]
      %v264 = vld [vmem:[%s243 + $0xa0] sm:$0xff]
      %v265 = vld [vmem:[%s243 + $0xa8] sm:$0xff]
      %v266 = vld [vmem:[%s243 + $0xb0] sm:$0xff]
      %v267 = vld [vmem:[%s243 + $0xb8] sm:$0xff]
      %v268 = vld [vmem:[%s243 + $0xc0] sm:$0xff]
      %v269 = vld [vmem:[%s243 + $0xc8] sm:$0xff]
      %v270 = vld [vmem:[%s243 + $0xd0] sm:$0xff]
      %v271 = vld [vmem:[%s243 + $0xd8] sm:$0xff]
      %v272 = vld [vmem:[%s243 + $0xe0] sm:$0xff]
      %v273 = vld [vmem:[%s243 + $0xe8] sm:$0xff]
      %v274 = vld [vmem:[%s243 + $0xf0] sm:$0xff]
      %v275 = vld [vmem:[%s243 + $0xf8] sm:$0xff]
      %v276 = vld [vmem:[%s243 + $0x100] sm:$0xff]
      %v277 = vld [vmem:[%s243 + $0x108] sm:$0xff]
      %v278 = vld [vmem:[%s243 + $0x110] sm:$0xff]
      %v279 = vld [vmem:[%s243 + $0x118] sm:$0xff]
      %v280 = vld [vmem:[%s243 + $0x120] sm:$0xff]
      %v281 = vld [vmem:[%s243 + $0x128] sm:$0xff]
      %v282 = vld [vmem:[%s243 + $0x130] sm:$0xff]
      %v283 = vld [vmem:[%s243 + $0x138] sm:$0xff]
      %v284 = vld [vmem:[%s243 + $0x140] sm:$0xff]
      %v285 = vld [vmem:[%s243 + $0x148] sm:$0xff]
      %v286 = vld [vmem:[%s243 + $0x150] sm:$0xff]
      %v287 = vld [vmem:[%s243 + $0x158] sm:$0xff]
      %v288 = vld [vmem:[%s243 + $0x160] sm:$0xff]
      %v289 = vld [vmem:[%s243 + $0x168] sm:$0xff]
      %v290 = vld [vmem:[%s243 + $0x170] sm:$0xff]
      %v291 = vld [vmem:[%s243 + $0x178] sm:$0xff]
      %v292 = vld [vmem:[%s243 + $0x180] sm:$0xff]
      %v293 = vld [vmem:[%s243 + $0x188] sm:$0xff]
      %v294 = vld [vmem:[%s243 + $0x190] sm:$0xff]
      %v295 = vld [vmem:[%s243 + $0x198] sm:$0xff]
      %v296 = vld [vmem:[%s243 + $0x1a0] sm:$0xff]
      %v297 = vld [vmem:[%s243 + $0x1a8] sm:$0xff]
      %v298 = vld [vmem:[%s243 + $0x1b0] sm:$0xff]
      %v299 = vld [vmem:[%s243 + $0x1b8] sm:$0xff]
      %v300 = vld [vmem:[%s243 + $0x1c0] sm:$0xff]
      %v301 = vld [vmem:[%s243 + $0x1c8] sm:$0xff]
      %v302 = vld [vmem:[%s243 + $0x1d0] sm:$0xff]
      %v303 = vld [vmem:[%s243 + $0x1d8] sm:$0xff]
      %v304 = vld [vmem:[%s243 + $0x1e0] sm:$0xff]
      %v305 = vld [vmem:[%s243 + $0x1e8] sm:$0xff]
      %v306 = vld [vmem:[%s243 + $0x1f0] sm:$0xff]
      %v307 = vld [vmem:[%s243 + $0x1f8] sm:$0xff]
      %v314 = vunpack.c.l.b16 %v171
      %v315 = vunpack.c.h.b16 %v171
      %v316 = vunpack.c.l.b16 %v172
      %v317 = vunpack.c.h.b16 %v172
      %v318 = vunpack.c.l.b16 %v173
      %v319 = vunpack.c.h.b16 %v173
      %v320 = vunpack.c.l.b16 %v174
      %v321 = vunpack.c.h.b16 %v174
      %v322 = vunpack.c.l.b16 %v175
      %v323 = vunpack.c.h.b16 %v175
      %v324 = vunpack.c.l.b16 %v176
      %v325 = vunpack.c.h.b16 %v176
      %v326 = vpack.c.b16 %v318, %v314
      %v327 = vpack.c.b16 %v319, %v315
      %v328 = vpack.c.b16 %v320, %v316
      %v329 = vpack.c.b16 %v321, %v317
      %v330 = vpack.c.b16 %v322, %v322
      %v331 = vpack.c.b16 %v323, %v323
      %v332 = vpack.c.b16 %v324, %v324
      %v333 = vpack.c.b16 %v325, %v325
      %vm334 = vsmask.f32 7424
      %v336 = vshrl.u32 %v326, 16
      %v338 = vshll.u32 %v326, 16
      %v340 = vrot.slane %v338, 1
      %v341 = vor.u32 %v336, %v340
      %v343 = vshll.u32 %v330, 16
      %v345 = vrot.slane %v343, 1
      %v346 = vsel %vm334, %v341, %v345
      %v348 = vshrl.u32 %v327, 16
      %v350 = vshll.u32 %v327, 16
      %v352 = vrot.slane %v350, 1
      %v353 = vor.u32 %v348, %v352
      %v355 = vshll.u32 %v331, 16
      %v357 = vrot.slane %v355, 1
      %v358 = vsel %vm334, %v353, %v357
      %v360 = vshrl.u32 %v328, 16
      %v362 = vshll.u32 %v328, 16
      %v364 = vrot.slane %v362, 1
      %v365 = vor.u32 %v360, %v364
      %v367 = vshll.u32 %v332, 16
      %v369 = vrot.slane %v367, 1
      %v370 = vsel %vm334, %v365, %v369
      %v372 = vshrl.u32 %v329, 16
      %v374 = vshll.u32 %v329, 16
      %v376 = vrot.slane %v374, 1
      %v377 = vor.u32 %v372, %v376
      %v379 = vshll.u32 %v333, 16
      %v381 = vrot.slane %v379, 1
      %v382 = vsel %vm334, %v377, %v381
      %v383 = vshrl.u32 %v330, 16
      %v385 = vor.u32 %v383, %v345
      %v386 = vshrl.u32 %v331, 16
      %v388 = vor.u32 %v386, %v357
      %v389 = vshrl.u32 %v332, 16
      %v391 = vor.u32 %v389, %v369
      %v392 = vshrl.u32 %v333, 16
      %v394 = vor.u32 %v392, %v381
      %v467 = vunpack.c.l.b16 %v244
      %v468 = vunpack.c.h.b16 %v244
      %v469 = vunpack.c.l.b16 %v245
      %v470 = vunpack.c.h.b16 %v245
      %v471 = vunpack.c.l.b16 %v246
      %v472 = vunpack.c.h.b16 %v246
      %v473 = vunpack.c.l.b16 %v247
      %v474 = vunpack.c.h.b16 %v247
      %v475 = vunpack.c.l.b16 %v248
      %v476 = vunpack.c.h.b16 %v248
      %v477 = vunpack.c.l.b16 %v249
      %v478 = vunpack.c.h.b16 %v249
      %v479 = vunpack.c.l.b16 %v250
      %v480 = vunpack.c.h.b16 %v250
      %v481 = vunpack.c.l.b16 %v251
      %v482 = vunpack.c.h.b16 %v251
      %v483 = vunpack.c.l.b16 %v252
      %v484 = vunpack.c.h.b16 %v252
      %v485 = vunpack.c.l.b16 %v253
      %v486 = vunpack.c.h.b16 %v253
      %v487 = vunpack.c.l.b16 %v254
      %v488 = vunpack.c.h.b16 %v254
      %v489 = vunpack.c.l.b16 %v255
      %v490 = vunpack.c.h.b16 %v255
      %v491 = vunpack.c.l.b16 %v256
      %v492 = vunpack.c.h.b16 %v256
      %v493 = vunpack.c.l.b16 %v257
      %v494 = vunpack.c.h.b16 %v257
      %v495 = vunpack.c.l.b16 %v258
      %v496 = vunpack.c.h.b16 %v258
      %v497 = vunpack.c.l.b16 %v259
      %v498 = vunpack.c.h.b16 %v259
      %v499 = vunpack.c.l.b16 %v260
      %v500 = vunpack.c.h.b16 %v260
      %v501 = vunpack.c.l.b16 %v261
      %v502 = vunpack.c.h.b16 %v261
      %v503 = vunpack.c.l.b16 %v262
      %v504 = vunpack.c.h.b16 %v262
      %v505 = vunpack.c.l.b16 %v263
      %v506 = vunpack.c.h.b16 %v263
      %v507 = vunpack.c.l.b16 %v264
      %v508 = vunpack.c.h.b16 %v264
      %v509 = vunpack.c.l.b16 %v265
      %v510 = vunpack.c.h.b16 %v265
      %v511 = vunpack.c.l.b16 %v266
      %v512 = vunpack.c.h.b16 %v266
      %v513 = vunpack.c.l.b16 %v267
      %v514 = vunpack.c.h.b16 %v267
      %v515 = vunpack.c.l.b16 %v268
      %v516 = vunpack.c.h.b16 %v268
      %v517 = vunpack.c.l.b16 %v269
      %v518 = vunpack.c.h.b16 %v269
      %v519 = vunpack.c.l.b16 %v270
      %v520 = vunpack.c.h.b16 %v270
      %v521 = vunpack.c.l.b16 %v271
      %v522 = vunpack.c.h.b16 %v271
      %v523 = vunpack.c.l.b16 %v272
      %v524 = vunpack.c.h.b16 %v272
      %v525 = vunpack.c.l.b16 %v273
      %v526 = vunpack.c.h.b16 %v273
      %v527 = vunpack.c.l.b16 %v274
      %v528 = vunpack.c.h.b16 %v274
      %v529 = vunpack.c.l.b16 %v275
      %v530 = vunpack.c.h.b16 %v275
      %v531 = vunpack.c.l.b16 %v276
      %v532 = vunpack.c.h.b16 %v276
      %v533 = vunpack.c.l.b16 %v277
      %v534 = vunpack.c.h.b16 %v277
      %v535 = vunpack.c.l.b16 %v278
      %v536 = vunpack.c.h.b16 %v278
      %v537 = vunpack.c.l.b16 %v279
      %v538 = vunpack.c.h.b16 %v279
      %v539 = vunpack.c.l.b16 %v280
      %v540 = vunpack.c.h.b16 %v280
      %v541 = vunpack.c.l.b16 %v281
      %v542 = vunpack.c.h.b16 %v281
      %v543 = vunpack.c.l.b16 %v282
      %v544 = vunpack.c.h.b16 %v282
      %v545 = vunpack.c.l.b16 %v283
      %v546 = vunpack.c.h.b16 %v283
      %v547 = vunpack.c.l.b16 %v284
      %v548 = vunpack.c.h.b16 %v284
      %v549 = vunpack.c.l.b16 %v285
      %v550 = vunpack.c.h.b16 %v285
      %v551 = vunpack.c.l.b16 %v286
      %v552 = vunpack.c.h.b16 %v286
      %v553 = vunpack.c.l.b16 %v287
      %v554 = vunpack.c.h.b16 %v287
      %v555 = vunpack.c.l.b16 %v288
      %v556 = vunpack.c.h.b16 %v288
      %v557 = vunpack.c.l.b16 %v289
      %v558 = vunpack.c.h.b16 %v289
      %v559 = vunpack.c.l.b16 %v290
      %v560 = vunpack.c.h.b16 %v290
      %v561 = vunpack.c.l.b16 %v291
      %v562 = vunpack.c.h.b16 %v291
      %v563 = vunpack.c.l.b16 %v292
      %v564 = vunpack.c.h.b16 %v292
      %v565 = vunpack.c.l.b16 %v293
      %v566 = vunpack.c.h.b16 %v293
      %v567 = vunpack.c.l.b16 %v294
      %v568 = vunpack.c.h.b16 %v294
      %v569 = vunpack.c.l.b16 %v295
      %v570 = vunpack.c.h.b16 %v295
      %v571 = vunpack.c.l.b16 %v296
      %v572 = vunpack.c.h.b16 %v296
      %v573 = vunpack.c.l.b16 %v297
      %v574 = vunpack.c.h.b16 %v297
      %v575 = vunpack.c.l.b16 %v298
      %v576 = vunpack.c.h.b16 %v298
      %v577 = vunpack.c.l.b16 %v299
      %v578 = vunpack.c.h.b16 %v299
      %v579 = vunpack.c.l.b16 %v300
      %v580 = vunpack.c.h.b16 %v300
      %v581 = vunpack.c.l.b16 %v301
      %v582 = vunpack.c.h.b16 %v301
      %v583 = vunpack.c.l.b16 %v302
      %v584 = vunpack.c.h.b16 %v302
      %v585 = vunpack.c.l.b16 %v303
      %v586 = vunpack.c.h.b16 %v303
      %v587 = vunpack.c.l.b16 %v304
      %v588 = vunpack.c.h.b16 %v304
      %v589 = vunpack.c.l.b16 %v305
      %v590 = vunpack.c.h.b16 %v305
      %v591 = vunpack.c.l.b16 %v306
      %v592 = vunpack.c.h.b16 %v306
      %v593 = vunpack.c.l.b16 %v307
      %v594 = vunpack.c.h.b16 %v307
      %v595 = vpack.c.b16 %v469, %v467
      %v596 = vpack.c.b16 %v470, %v468
      %v597 = vpack.c.b16 %v473, %v471
      %v598 = vpack.c.b16 %v474, %v472
      %v599 = vpack.c.b16 %v477, %v475
      %v600 = vpack.c.b16 %v478, %v476
      %v601 = vpack.c.b16 %v481, %v479
      %v602 = vpack.c.b16 %v482, %v480
      %v603 = vpack.c.b16 %v485, %v483
      %v604 = vpack.c.b16 %v486, %v484
      %v605 = vpack.c.b16 %v489, %v487
      %v606 = vpack.c.b16 %v490, %v488
      %v607 = vpack.c.b16 %v493, %v491
      %v608 = vpack.c.b16 %v494, %v492
      %v609 = vpack.c.b16 %v497, %v495
      %v610 = vpack.c.b16 %v498, %v496
      %v611 = vpack.c.b16 %v501, %v499
      %v612 = vpack.c.b16 %v502, %v500
      %v613 = vpack.c.b16 %v505, %v503
      %v614 = vpack.c.b16 %v506, %v504
      %v615 = vpack.c.b16 %v509, %v507
      %v616 = vpack.c.b16 %v510, %v508
      %v617 = vpack.c.b16 %v513, %v511
      %v618 = vpack.c.b16 %v514, %v512
      %v619 = vpack.c.b16 %v517, %v515
      %v620 = vpack.c.b16 %v518, %v516
      %v621 = vpack.c.b16 %v521, %v519
      %v622 = vpack.c.b16 %v522, %v520
      %v623 = vpack.c.b16 %v525, %v523
      %v624 = vpack.c.b16 %v526, %v524
      %v625 = vpack.c.b16 %v529, %v527
      %v626 = vpack.c.b16 %v530, %v528
      %v627 = vpack.c.b16 %v533, %v531
      %v628 = vpack.c.b16 %v534, %v532
      %v629 = vpack.c.b16 %v537, %v535
      %v630 = vpack.c.b16 %v538, %v536
      %v631 = vpack.c.b16 %v541, %v539
      %v632 = vpack.c.b16 %v542, %v540
      %v633 = vpack.c.b16 %v545, %v543
      %v634 = vpack.c.b16 %v546, %v544
      %v635 = vpack.c.b16 %v549, %v547
      %v636 = vpack.c.b16 %v550, %v548
      %v637 = vpack.c.b16 %v553, %v551
      %v638 = vpack.c.b16 %v554, %v552
      %v639 = vpack.c.b16 %v557, %v555
      %v640 = vpack.c.b16 %v558, %v556
      %v641 = vpack.c.b16 %v561, %v559
      %v642 = vpack.c.b16 %v562, %v560
      %v643 = vpack.c.b16 %v565, %v563
      %v644 = vpack.c.b16 %v566, %v564
      %v645 = vpack.c.b16 %v569, %v567
      %v646 = vpack.c.b16 %v570, %v568
      %v647 = vpack.c.b16 %v573, %v571
      %v648 = vpack.c.b16 %v574, %v572
      %v649 = vpack.c.b16 %v577, %v575
      %v650 = vpack.c.b16 %v578, %v576
      %v651 = vpack.c.b16 %v581, %v579
      %v652 = vpack.c.b16 %v582, %v580
      %v653 = vpack.c.b16 %v585, %v583
      %v654 = vpack.c.b16 %v586, %v584
      %v655 = vpack.c.b16 %v589, %v587
      %v656 = vpack.c.b16 %v590, %v588
      %v657 = vpack.c.b16 %v593, %v591
      %v658 = vpack.c.b16 %v594, %v592
      %723 = vmatprep.subr.bf16.mxu0 %v596
      %724 = vmatpush1.bf16.msra.mxu0 %v595
      %725 = vmatprep.subr.bf16.mxu0 %v598
      %726 = vmatpush1.bf16.msra.mxu0 %v597
      %727 = vmatprep.subr.bf16.mxu0 %v600
      %728 = vmatpush1.bf16.msra.mxu0 %v599
      %729 = vmatprep.subr.bf16.mxu0 %v602
      %730 = vmatpush1.bf16.msra.mxu0 %v601
      %731 = vmatprep.subr.bf16.mxu0 %v604
      %732 = vmatpush1.bf16.msra.mxu0 %v603
      %733 = vmatprep.subr.bf16.mxu0 %v606
      %734 = vmatpush1.bf16.msra.mxu0 %v605
      %735 = vmatprep.subr.bf16.mxu0 %v608
      %736 = vmatpush1.bf16.msra.mxu0 %v607
      %737 = vmatprep.subr.bf16.mxu0 %v610
      %738 = vmatpush1.bf16.msra.mxu0 %v609
      %739 = vmatprep.subr.bf16.mxu0 %v612
      %740 = vmatpush1.bf16.msra.mxu0 %v611
      %741 = vmatprep.subr.bf16.mxu0 %v614
      %742 = vmatpush1.bf16.msra.mxu0 %v613
      %743 = vmatprep.subr.bf16.mxu0 %v616
      %744 = vmatpush1.bf16.msra.mxu0 %v615
      %745 = vmatprep.subr.bf16.mxu0 %v618
      %746 = vmatpush1.bf16.msra.mxu0 %v617
      %747 = vmatprep.subr.bf16.mxu0 %v620
      %748 = vmatpush1.bf16.msra.mxu0 %v619
      %749 = vmatprep.subr.bf16.mxu0 %v622
      %750 = vmatpush1.bf16.msra.mxu0 %v621
      %751 = vmatprep.subr.bf16.mxu0 %v624
      %752 = vmatpush1.bf16.msra.mxu0 %v623
      %753 = vmatprep.subr.bf16.mxu0 %v626
      %754 = vmatpush1.bf16.msra.mxu0 %v625
      %755 = vmatprep.mubr.bf16.mxu0 %v358
      %756 = vmatmul.mubr.bf16.gmra.mrb[0].mxu0 %v346
      %v757 = vpop.f32.mrb[0].mxu0
      %v758 = vadd.f32 0.0, %v757
      %v759 = vpop.f32.mrb[0].mxu0
      %v760 = vadd.f32 0.0, %v759
      %v761 = vpop.f32.mrb[0].mxu0
      %v762 = vadd.f32 0.0, %v761
      %v763 = vpop.f32.mrb[0].mxu0
      %v764 = vadd.f32 0.0, %v763
      %765 = vmatprep.mubr.bf16.mxu0 %v388
      %766 = vmatmul.mubr.bf16.gmra.mrb[0].mxu0 %v385
      %v767 = vpop.f32.mrb[0].mxu0
      %v768 = vadd.f32 0.0, %v767
      %v769 = vpop.f32.mrb[0].mxu0
      %v770 = vadd.f32 0.0, %v769
      %v771 = vpop.f32.mrb[0].mxu0
      %v772 = vpop.f32.mrb[0].mxu0
      %773 = vdwg.mxu0
      %774 = vmatprep.subr.bf16.mxu0 %v628
      %775 = vmatpush1.bf16.msra.mxu0 %v627
      %776 = vmatprep.subr.bf16.mxu0 %v630
      %777 = vmatpush1.bf16.msra.mxu0 %v629
      %778 = vmatprep.subr.bf16.mxu0 %v632
      %779 = vmatpush1.bf16.msra.mxu0 %v631
      %780 = vmatprep.subr.bf16.mxu0 %v634
      %781 = vmatpush1.bf16.msra.mxu0 %v633
      %782 = vmatprep.subr.bf16.mxu0 %v636
      %783 = vmatpush1.bf16.msra.mxu0 %v635
      %784 = vmatprep.subr.bf16.mxu0 %v638
      %785 = vmatpush1.bf16.msra.mxu0 %v637
      %786 = vmatprep.subr.bf16.mxu0 %v640
      %787 = vmatpush1.bf16.msra.mxu0 %v639
      %788 = vmatprep.subr.bf16.mxu0 %v642
      %789 = vmatpush1.bf16.msra.mxu0 %v641
      %790 = vmatprep.subr.bf16.mxu0 %v644
      %791 = vmatpush1.bf16.msra.mxu0 %v643
      %792 = vmatprep.subr.bf16.mxu0 %v646
      %793 = vmatpush1.bf16.msra.mxu0 %v645
      %794 = vmatprep.subr.bf16.mxu0 %v648
      %795 = vmatpush1.bf16.msra.mxu0 %v647
      %796 = vmatprep.subr.bf16.mxu0 %v650
      %797 = vmatpush1.bf16.msra.mxu0 %v649
      %798 = vmatprep.subr.bf16.mxu0 %v652
      %799 = vmatpush1.bf16.msra.mxu0 %v651
      %800 = vmatprep.subr.bf16.mxu0 %v654
      %801 = vmatpush1.bf16.msra.mxu0 %v653
      %802 = vmatprep.subr.bf16.mxu0 %v656
      %803 = vmatpush1.bf16.msra.mxu0 %v655
      %804 = vmatprep.subr.bf16.mxu0 %v658
      %805 = vmatpush1.bf16.msra.mxu0 %v657
      %806 = vmatprep.mubr.bf16.mxu0 %v382
      %807 = vmatmul.mubr.bf16.gmra.mrb[0].mxu0 %v370
      %v808 = vpop.f32.mrb[0].mxu0
      %v809 = vadd.f32 %v758, %v808
      %v810 = vpop.f32.mrb[0].mxu0
      %v811 = vadd.f32 %v760, %v810
      %v812 = vpop.f32.mrb[0].mxu0
      %v813 = vadd.f32 %v762, %v812
      %v814 = vpop.f32.mrb[0].mxu0
      %v815 = vadd.f32 %v764, %v814
      %816 = vmatprep.mubr.bf16.mxu0 %v394
      %817 = vmatmul.mubr.bf16.gmra.mrb[0].mxu0 %v391
      %v818 = vpop.f32.mrb[0].mxu0
      %v819 = vadd.f32 %v768, %v818
      %v820 = vpop.f32.mrb[0].mxu0
      %v821 = vadd.f32 %v770, %v820
      %v822 = vpop.f32.mrb[0].mxu0
      %v823 = vpop.f32.mrb[0].mxu0
      %824 = vdwg.mxu0
      %v897 = vunpack.c.l.b16 %v179
      %v898 = vunpack.c.h.b16 %v179
      %v899 = vunpack.c.l.b16 %v180
      %v900 = vunpack.c.h.b16 %v180
      %v901 = vunpack.c.l.b16 %v181
      %v902 = vunpack.c.h.b16 %v181
      %v903 = vunpack.c.l.b16 %v182
      %v904 = vunpack.c.h.b16 %v182
      %v905 = vunpack.c.l.b16 %v183
      %v906 = vunpack.c.h.b16 %v183
      %v907 = vunpack.c.l.b16 %v184
      %v908 = vunpack.c.h.b16 %v184
      %v909 = vunpack.c.l.b16 %v185
      %v910 = vunpack.c.h.b16 %v185
      %v911 = vunpack.c.l.b16 %v186
      %v912 = vunpack.c.h.b16 %v186
      %v913 = vunpack.c.l.b16 %v187
      %v914 = vunpack.c.h.b16 %v187
      %v915 = vunpack.c.l.b16 %v188
      %v916 = vunpack.c.h.b16 %v188
      %v917 = vunpack.c.l.b16 %v189
      %v918 = vunpack.c.h.b16 %v189
      %v919 = vunpack.c.l.b16 %v190
      %v920 = vunpack.c.h.b16 %v190
      %v921 = vunpack.c.l.b16 %v191
      %v922 = vunpack.c.h.b16 %v191
      %v923 = vunpack.c.l.b16 %v192
      %v924 = vunpack.c.h.b16 %v192
      %v925 = vunpack.c.l.b16 %v193
      %v926 = vunpack.c.h.b16 %v193
      %v927 = vunpack.c.l.b16 %v194
      %v928 = vunpack.c.h.b16 %v194
      %v929 = vunpack.c.l.b16 %v195
      %v930 = vunpack.c.h.b16 %v195
      %v931 = vunpack.c.l.b16 %v196
      %v932 = vunpack.c.h.b16 %v196
      %v933 = vunpack.c.l.b16 %v197
      %v934 = vunpack.c.h.b16 %v197
      %v935 = vunpack.c.l.b16 %v198
      %v936 = vunpack.c.h.b16 %v198
      %v937 = vunpack.c.l.b16 %v199
      %v938 = vunpack.c.h.b16 %v199
      %v939 = vunpack.c.l.b16 %v200
      %v940 = vunpack.c.h.b16 %v200
      %v941 = vunpack.c.l.b16 %v201
      %v942 = vunpack.c.h.b16 %v201
      %v943 = vunpack.c.l.b16 %v202
      %v944 = vunpack.c.h.b16 %v202
      %v945 = vunpack.c.l.b16 %v203
      %v946 = vunpack.c.h.b16 %v203
      %v947 = vunpack.c.l.b16 %v204
      %v948 = vunpack.c.h.b16 %v204
      %v949 = vunpack.c.l.b16 %v205
      %v950 = vunpack.c.h.b16 %v205
      %v951 = vunpack.c.l.b16 %v206
      %v952 = vunpack.c.h.b16 %v206
      %v953 = vunpack.c.l.b16 %v207
      %v954 = vunpack.c.h.b16 %v207
      %v955 = vunpack.c.l.b16 %v208
      %v956 = vunpack.c.h.b16 %v208
      %v957 = vunpack.c.l.b16 %v209
      %v958 = vunpack.c.h.b16 %v209
      %v959 = vunpack.c.l.b16 %v210
      %v960 = vunpack.c.h.b16 %v210
      %v961 = vunpack.c.l.b16 %v211
      %v962 = vunpack.c.h.b16 %v211
      %v963 = vunpack.c.l.b16 %v212
      %v964 = vunpack.c.h.b16 %v212
      %v965 = vunpack.c.l.b16 %v213
      %v966 = vunpack.c.h.b16 %v213
      %v967 = vunpack.c.l.b16 %v214
      %v968 = vunpack.c.h.b16 %v214
      %v969 = vunpack.c.l.b16 %v215
      %v970 = vunpack.c.h.b16 %v215
      %v971 = vunpack.c.l.b16 %v216
      %v972 = vunpack.c.h.b16 %v216
      %v973 = vunpack.c.l.b16 %v217
      %v974 = vunpack.c.h.b16 %v217
      %v975 = vunpack.c.l.b16 %v218
      %v976 = vunpack.c.h.b16 %v218
      %v977 = vunpack.c.l.b16 %v219
      %v978 = vunpack.c.h.b16 %v219
      %v979 = vunpack.c.l.b16 %v220
      %v980 = vunpack.c.h.b16 %v220
      %v981 = vunpack.c.l.b16 %v221
      %v982 = vunpack.c.h.b16 %v221
      %v983 = vunpack.c.l.b16 %v222
      %v984 = vunpack.c.h.b16 %v222
      %v985 = vunpack.c.l.b16 %v223
      %v986 = vunpack.c.h.b16 %v223
      %v987 = vunpack.c.l.b16 %v224
      %v988 = vunpack.c.h.b16 %v224
      %v989 = vunpack.c.l.b16 %v225
      %v990 = vunpack.c.h.b16 %v225
      %v991 = vunpack.c.l.b16 %v226
      %v992 = vunpack.c.h.b16 %v226
      %v993 = vunpack.c.l.b16 %v227
      %v994 = vunpack.c.h.b16 %v227
      %v995 = vunpack.c.l.b16 %v228
      %v996 = vunpack.c.h.b16 %v228
      %v997 = vunpack.c.l.b16 %v229
      %v998 = vunpack.c.h.b16 %v229
      %v999 = vunpack.c.l.b16 %v230
      %v1000 = vunpack.c.h.b16 %v230
      %v1001 = vunpack.c.l.b16 %v231
      %v1002 = vunpack.c.h.b16 %v231
      %v1003 = vunpack.c.l.b16 %v232
      %v1004 = vunpack.c.h.b16 %v232
      %v1005 = vunpack.c.l.b16 %v233
      %v1006 = vunpack.c.h.b16 %v233
      %v1007 = vunpack.c.l.b16 %v234
      %v1008 = vunpack.c.h.b16 %v234
      %v1009 = vunpack.c.l.b16 %v235
      %v1010 = vunpack.c.h.b16 %v235
      %v1011 = vunpack.c.l.b16 %v236
      %v1012 = vunpack.c.h.b16 %v236
      %v1013 = vunpack.c.l.b16 %v237
      %v1014 = vunpack.c.h.b16 %v237
      %v1015 = vunpack.c.l.b16 %v238
      %v1016 = vunpack.c.h.b16 %v238
      %v1017 = vunpack.c.l.b16 %v239
      %v1018 = vunpack.c.h.b16 %v239
      %v1019 = vunpack.c.l.b16 %v240
      %v1020 = vunpack.c.h.b16 %v240
      %v1021 = vunpack.c.l.b16 %v241
      %v1022 = vunpack.c.h.b16 %v241
      %v1023 = vunpack.c.l.b16 %v242
      %v1024 = vunpack.c.h.b16 %v242
      %v1025 = vpack.c.b16 %v899, %v897
      %v1026 = vpack.c.b16 %v900, %v898
      %v1027 = vpack.c.b16 %v903, %v901
      %v1028 = vpack.c.b16 %v904, %v902
      %v1029 = vpack.c.b16 %v907, %v905
      %v1030 = vpack.c.b16 %v908, %v906
      %v1031 = vpack.c.b16 %v911, %v909
      %v1032 = vpack.c.b16 %v912, %v910
      %v1033 = vpack.c.b16 %v915, %v913
      %v1034 = vpack.c.b16 %v916, %v914
      %v1035 = vpack.c.b16 %v919, %v917
      %v1036 = vpack.c.b16 %v920, %v918
      %v1037 = vpack.c.b16 %v923, %v921
      %v1038 = vpack.c.b16 %v924, %v922
      %v1039 = vpack.c.b16 %v927, %v925
      %v1040 = vpack.c.b16 %v928, %v926
      %v1041 = vpack.c.b16 %v931, %v929
      %v1042 = vpack.c.b16 %v932, %v930
      %v1043 = vpack.c.b16 %v935, %v933
      %v1044 = vpack.c.b16 %v936, %v934
      %v1045 = vpack.c.b16 %v939, %v937
      %v1046 = vpack.c.b16 %v940, %v938
      %v1047 = vpack.c.b16 %v943, %v941
      %v1048 = vpack.c.b16 %v944, %v942
      %v1049 = vpack.c.b16 %v947, %v945
      %v1050 = vpack.c.b16 %v948, %v946
      %v1051 = vpack.c.b16 %v951, %v949
      %v1052 = vpack.c.b16 %v952, %v950
      %v1053 = vpack.c.b16 %v955, %v953
      %v1054 = vpack.c.b16 %v956, %v954
      %v1055 = vpack.c.b16 %v959, %v957
      %v1056 = vpack.c.b16 %v960, %v958
      %v1057 = vpack.c.b16 %v963, %v961
      %v1058 = vpack.c.b16 %v964, %v962
      %v1059 = vpack.c.b16 %v967, %v965
      %v1060 = vpack.c.b16 %v968, %v966
      %v1061 = vpack.c.b16 %v971, %v969
      %v1062 = vpack.c.b16 %v972, %v970
      %v1063 = vpack.c.b16 %v975, %v973
      %v1064 = vpack.c.b16 %v976, %v974
      %v1065 = vpack.c.b16 %v979, %v977
      %v1066 = vpack.c.b16 %v980, %v978
      %v1067 = vpack.c.b16 %v983, %v981
      %v1068 = vpack.c.b16 %v984, %v982
      %v1069 = vpack.c.b16 %v987, %v985
      %v1070 = vpack.c.b16 %v988, %v986
      %v1071 = vpack.c.b16 %v991, %v989
      %v1072 = vpack.c.b16 %v992, %v990
      %v1073 = vpack.c.b16 %v995, %v993
      %v1074 = vpack.c.b16 %v996, %v994
      %v1075 = vpack.c.b16 %v999, %v997
      %v1076 = vpack.c.b16 %v1000, %v998
      %v1077 = vpack.c.b16 %v1003, %v1001
      %v1078 = vpack.c.b16 %v1004, %v1002
      %v1079 = vpack.c.b16 %v1007, %v1005
      %v1080 = vpack.c.b16 %v1008, %v1006
      %v1081 = vpack.c.b16 %v1011, %v1009
      %v1082 = vpack.c.b16 %v1012, %v1010
      %v1083 = vpack.c.b16 %v1015, %v1013
      %v1084 = vpack.c.b16 %v1016, %v1014
      %v1085 = vpack.c.b16 %v1019, %v1017
      %v1086 = vpack.c.b16 %v1020, %v1018
      %v1087 = vpack.c.b16 %v1023, %v1021
      %v1088 = vpack.c.b16 %v1024, %v1022
      %1153 = vmatprep.subr.bf16.mxu0 %v1026
      %1154 = vmatpush1.bf16.msra.mxu0 %v1025
      %1155 = vmatprep.subr.bf16.mxu0 %v1028
      %1156 = vmatpush1.bf16.msra.mxu0 %v1027
      %1157 = vmatprep.subr.bf16.mxu0 %v1030
      %1158 = vmatpush1.bf16.msra.mxu0 %v1029
      %1159 = vmatprep.subr.bf16.mxu0 %v1032
      %1160 = vmatpush1.bf16.msra.mxu0 %v1031
      %1161 = vmatprep.subr.bf16.mxu0 %v1034
      %1162 = vmatpush1.bf16.msra.mxu0 %v1033
      %1163 = vmatprep.subr.bf16.mxu0 %v1036
      %1164 = vmatpush1.bf16.msra.mxu0 %v1035
      %1165 = vmatprep.subr.bf16.mxu0 %v1038
      %1166 = vmatpush1.bf16.msra.mxu0 %v1037
      %1167 = vmatprep.subr.bf16.mxu0 %v1040
      %1168 = vmatpush1.bf16.msra.mxu0 %v1039
      %1169 = vmatprep.subr.bf16.mxu0 %v1042
      %1170 = vmatpush1.bf16.msra.mxu0 %v1041
      %1171 = vmatprep.subr.bf16.mxu0 %v1044
      %1172 = vmatpush1.bf16.msra.mxu0 %v1043
      %1173 = vmatprep.subr.bf16.mxu0 %v1046
      %1174 = vmatpush1.bf16.msra.mxu0 %v1045
      %1175 = vmatprep.subr.bf16.mxu0 %v1048
      %1176 = vmatpush1.bf16.msra.mxu0 %v1047
      %1177 = vmatprep.subr.bf16.mxu0 %v1050
      %1178 = vmatpush1.bf16.msra.mxu0 %v1049
      %1179 = vmatprep.subr.bf16.mxu0 %v1052
      %1180 = vmatpush1.bf16.msra.mxu0 %v1051
      %1181 = vmatprep.subr.bf16.mxu0 %v1054
      %1182 = vmatpush1.bf16.msra.mxu0 %v1053
      %1183 = vmatprep.subr.bf16.mxu0 %v1056
      %1184 = vmatpush1.bf16.msra.mxu0 %v1055
      %1185 = vmatprep.mubr.bf16.mxu0 %v327
      %1186 = vmatmul.mubr.bf16.gmra.mrb[0].mxu0 %v326
      %v1187 = vpop.f32.mrb[0].mxu0
      %v1188 = vadd.f32 %v809, %v1187
      %v1189 = vpop.f32.mrb[0].mxu0
      %v1190 = vadd.f32 %v811, %v1189
      %v1191 = vpop.f32.mrb[0].mxu0
      %v1192 = vadd.f32 %v813, %v1191
      %v1193 = vpop.f32.mrb[0].mxu0
      %v1194 = vadd.f32 %v815, %v1193
      %1195 = vmatprep.mubr.bf16.mxu0 %v331
      %1196 = vmatmul.mubr.bf16.gmra.mrb[0].mxu0 %v330
      %v1197 = vpop.f32.mrb[0].mxu0
      %v1198 = vadd.f32 %v819, %v1197
      %v1199 = vpop.f32.mrb[0].mxu0
      %v1200 = vadd.f32 %v821, %v1199
      %v1201 = vpop.f32.mrb[0].mxu0
      %v1202 = vpop.f32.mrb[0].mxu0
      %1203 = vdwg.mxu0
      %1204 = vmatprep.subr.bf16.mxu0 %v1058
      %1205 = vmatpush1.bf16.msra.mxu0 %v1057
      %1206 = vmatprep.subr.bf16.mxu0 %v1060
      %1207 = vmatpush1.bf16.msra.mxu0 %v1059
      %1208 = vmatprep.subr.bf16.mxu0 %v1062
      %1209 = vmatpush1.bf16.msra.mxu0 %v1061
      %1210 = vmatprep.subr.bf16.mxu0 %v1064
      %1211 = vmatpush1.bf16.msra.mxu0 %v1063
      %1212 = vmatprep.subr.bf16.mxu0 %v1066
      %1213 = vmatpush1.bf16.msra.mxu0 %v1065
      %1214 = vmatprep.subr.bf16.mxu0 %v1068
      %1215 = vmatpush1.bf16.msra.mxu0 %v1067
      %1216 = vmatprep.subr.bf16.mxu0 %v1070
      %1217 = vmatpush1.bf16.msra.mxu0 %v1069
      %1218 = vmatprep.subr.bf16.mxu0 %v1072
      %1219 = vmatpush1.bf16.msra.mxu0 %v1071
      %1220 = vmatprep.subr.bf16.mxu0 %v1074
      %1221 = vmatpush1.bf16.msra.mxu0 %v1073
      %1222 = vmatprep.subr.bf16.mxu0 %v1076
      %1223 = vmatpush1.bf16.msra.mxu0 %v1075
      %1224 = vmatprep.subr.bf16.mxu0 %v1078
      %1225 = vmatpush1.bf16.msra.mxu0 %v1077
      %1226 = vmatprep.subr.bf16.mxu0 %v1080
      %1227 = vmatpush1.bf16.msra.mxu0 %v1079
      %1228 = vmatprep.subr.bf16.mxu0 %v1082
      %1229 = vmatpush1.bf16.msra.mxu0 %v1081
      %1230 = vmatprep.subr.bf16.mxu0 %v1084
      %1231 = vmatpush1.bf16.msra.mxu0 %v1083
      %1232 = vmatprep.subr.bf16.mxu0 %v1086
      %1233 = vmatpush1.bf16.msra.mxu0 %v1085
      %1234 = vmatprep.subr.bf16.mxu0 %v1088
      %1235 = vmatpush1.bf16.msra.mxu0 %v1087
      %1236 = vmatprep.mubr.bf16.mxu0 %v329
      %1237 = vmatmul.mubr.bf16.gmra.mrb[0].mxu0 %v328
      %v1238 = vpop.f32.mrb[0].mxu0
      %v1239 = vadd.f32 %v1188, %v1238
      %v1240 = vpop.f32.mrb[0].mxu0
      %v1241 = vadd.f32 %v1190, %v1240
      %v1242 = vpop.f32.mrb[0].mxu0
      %v1243 = vadd.f32 %v1192, %v1242
      %v1244 = vpop.f32.mrb[0].mxu0
      %v1245 = vadd.f32 %v1194, %v1244
      %1246 = vmatprep.mubr.bf16.mxu0 %v333
      %1247 = vmatmul.mubr.bf16.gmra.mrb[0].mxu0 %v332
      %v1248 = vpop.f32.mrb[0].mxu0
      %v1249 = vadd.f32 %v1198, %v1248
      %v1250 = vpop.f32.mrb[0].mxu0
      %v1251 = vadd.f32 %v1200, %v1250
      %v1252 = vpop.f32.mrb[0].mxu0
      %v1253 = vpop.f32.mrb[0].mxu0
      %1254 = vdwg.mxu0
      %s1255 = scalar_lea.vmem %s1, 1024
      %v1256 = vld [vmem:[%s1255] sm:$0xff]
      %v1257 = vld [vmem:[%s1255 + $0x8] sm:$0xff]
      %v1258 = vld [vmem:[%s1255 + $0x10] sm:$0xff]
      %v1259 = vld [vmem:[%s1255 + $0x18] sm:$0xff]
      %v1260 = vld [vmem:[%s1255 + $0x20] sm:$0xff]
      %v1261 = vld [vmem:[%s1255 + $0x28] sm:$0xff]
      %v1262 = vld [vmem:[%s1255 + $0x30] sm:$0xff]
      %v1263 = vld [vmem:[%s1255 + $0x38] sm:$0xff]
      %v1264 = vld [vmem:[%s1255 + $0x40] sm:$0xff]
      %v1265 = vld [vmem:[%s1255 + $0x48] sm:$0xff]
      %v1266 = vld [vmem:[%s1255 + $0x50] sm:$0xff]
      %v1267 = vld [vmem:[%s1255 + $0x58] sm:$0xff]
      %v1268 = vld [vmem:[%s1255 + $0x60] sm:$0xff]
      %v1269 = vld [vmem:[%s1255 + $0x68] sm:$0xff]
      %v1270 = vld [vmem:[%s1255 + $0x70] sm:$0xff]
      %v1271 = vld [vmem:[%s1255 + $0x78] sm:$0xff]
      %v1272 = vld [vmem:[%s1255 + $0x80] sm:$0xff]
      %v1273 = vld [vmem:[%s1255 + $0x88] sm:$0xff]
      %v1274 = vld [vmem:[%s1255 + $0x90] sm:$0xff]
      %v1275 = vld [vmem:[%s1255 + $0x98] sm:$0xff]
      %v1276 = vld [vmem:[%s1255 + $0xa0] sm:$0xff]
      %v1277 = vld [vmem:[%s1255 + $0xa8] sm:$0xff]
      %v1278 = vld [vmem:[%s1255 + $0xb0] sm:$0xff]
      %v1279 = vld [vmem:[%s1255 + $0xb8] sm:$0xff]
      %v1280 = vld [vmem:[%s1255 + $0xc0] sm:$0xff]
      %v1281 = vld [vmem:[%s1255 + $0xc8] sm:$0xff]
      %v1282 = vld [vmem:[%s1255 + $0xd0] sm:$0xff]
      %v1283 = vld [vmem:[%s1255 + $0xd8] sm:$0xff]
      %v1284 = vld [vmem:[%s1255 + $0xe0] sm:$0xff]
      %v1285 = vld [vmem:[%s1255 + $0xe8] sm:$0xff]
      %v1286 = vld [vmem:[%s1255 + $0xf0] sm:$0xff]
      %v1287 = vld [vmem:[%s1255 + $0xf8] sm:$0xff]
      %v1288 = vld [vmem:[%s1255 + $0x100] sm:$0xff]
      %v1289 = vld [vmem:[%s1255 + $0x108] sm:$0xff]
      %v1290 = vld [vmem:[%s1255 + $0x110] sm:$0xff]
      %v1291 = vld [vmem:[%s1255 + $0x118] sm:$0xff]
      %v1292 = vld [vmem:[%s1255 + $0x120] sm:$0xff]
      %v1293 = vld [vmem:[%s1255 + $0x128] sm:$0xff]
      %v1294 = vld [vmem:[%s1255 + $0x130] sm:$0xff]
      %v1295 = vld [vmem:[%s1255 + $0x138] sm:$0xff]
      %v1296 = vld [vmem:[%s1255 + $0x140] sm:$0xff]
      %v1297 = vld [vmem:[%s1255 + $0x148] sm:$0xff]
      %v1298 = vld [vmem:[%s1255 + $0x150] sm:$0xff]
      %v1299 = vld [vmem:[%s1255 + $0x158] sm:$0xff]
      %v1300 = vld [vmem:[%s1255 + $0x160] sm:$0xff]
      %v1301 = vld [vmem:[%s1255 + $0x168] sm:$0xff]
      %v1302 = vld [vmem:[%s1255 + $0x170] sm:$0xff]
      %v1303 = vld [vmem:[%s1255 + $0x178] sm:$0xff]
      %v1304 = vld [vmem:[%s1255 + $0x180] sm:$0xff]
      %v1305 = vld [vmem:[%s1255 + $0x188] sm:$0xff]
      %v1306 = vld [vmem:[%s1255 + $0x190] sm:$0xff]
      %v1307 = vld [vmem:[%s1255 + $0x198] sm:$0xff]
      %v1308 = vld [vmem:[%s1255 + $0x1a0] sm:$0xff]
      %v1309 = vld [vmem:[%s1255 + $0x1a8] sm:$0xff]
      %v1310 = vld [vmem:[%s1255 + $0x1b0] sm:$0xff]
      %v1311 = vld [vmem:[%s1255 + $0x1b8] sm:$0xff]
      %v1312 = vld [vmem:[%s1255 + $0x1c0] sm:$0xff]
      %v1313 = vld [vmem:[%s1255 + $0x1c8] sm:$0xff]
      %v1314 = vld [vmem:[%s1255 + $0x1d0] sm:$0xff]
      %v1315 = vld [vmem:[%s1255 + $0x1d8] sm:$0xff]
      %v1316 = vld [vmem:[%s1255 + $0x1e0] sm:$0xff]
      %v1317 = vld [vmem:[%s1255 + $0x1e8] sm:$0xff]
      %v1318 = vld [vmem:[%s1255 + $0x1f0] sm:$0xff]
      %v1319 = vld [vmem:[%s1255 + $0x1f8] sm:$0xff]
      %v1322 = vunpack.c.l.b16 %v177
      %v1323 = vunpack.c.h.b16 %v177
      %v1324 = vunpack.c.l.b16 %v178
      %v1325 = vunpack.c.h.b16 %v178
      %v1326 = vpack.c.b16 %v1322, %v322
      %v1327 = vpack.c.b16 %v1323, %v323
      %v1328 = vpack.c.b16 %v1324, %v324
      %v1329 = vpack.c.b16 %v1325, %v325
      %vm1330 = vsmask.f32 5376
      %v1331 = vrot.slane %v336, 2
      %v1332 = vrot.slane %v338, 3
      %v1333 = vor.u32 %v1331, %v1332
      %v1335 = vshrl.u32 %v1326, 16
      %v1337 = vrot.slane %v1335, 2
      %v1338 = vshll.u32 %v1326, 16
      %v1340 = vrot.slane %v1338, 3
      %v1341 = vor.u32 %v1337, %v1340
      %v1342 = vsel %vm1330, %v1333, %v1341
      %v1343 = vrot.slane %v348, 2
      %v1344 = vrot.slane %v350, 3
      %v1345 = vor.u32 %v1343, %v1344
      %v1347 = vshrl.u32 %v1327, 16
      %v1349 = vrot.slane %v1347, 2
      %v1350 = vshll.u32 %v1327, 16
      %v1352 = vrot.slane %v1350, 3
      %v1353 = vor.u32 %v1349, %v1352
      %v1354 = vsel %vm1330, %v1345, %v1353
      %v1355 = vrot.slane %v360, 2
      %v1356 = vrot.slane %v362, 3
      %v1357 = vor.u32 %v1355, %v1356
      %v1359 = vshrl.u32 %v1328, 16
      %v1361 = vrot.slane %v1359, 2
      %v1362 = vshll.u32 %v1328, 16
      %v1364 = vrot.slane %v1362, 3
      %v1365 = vor.u32 %v1361, %v1364
      %v1366 = vsel %vm1330, %v1357, %v1365
      %v1367 = vrot.slane %v372, 2
      %v1368 = vrot.slane %v374, 3
      %v1369 = vor.u32 %v1367, %v1368
      %v1371 = vshrl.u32 %v1329, 16
      %v1373 = vrot.slane %v1371, 2
      %v1374 = vshll.u32 %v1329, 16
      %v1376 = vrot.slane %v1374, 3
      %v1377 = vor.u32 %v1373, %v1376
      %v1378 = vsel %vm1330, %v1369, %v1377
      %v1451 = vunpack.c.l.b16 %v1256
      %v1452 = vunpack.c.h.b16 %v1256
      %v1453 = vunpack.c.l.b16 %v1257
      %v1454 = vunpack.c.h.b16 %v1257
      %v1455 = vunpack.c.l.b16 %v1258
      %v1456 = vunpack.c.h.b16 %v1258
      %v1457 = vunpack.c.l.b16 %v1259
      %v1458 = vunpack.c.h.b16 %v1259
      %v1459 = vunpack.c.l.b16 %v1260
      %v1460 = vunpack.c.h.b16 %v1260
      %v1461 = vunpack.c.l.b16 %v1261
      %v1462 = vunpack.c.h.b16 %v1261
      %v1463 = vunpack.c.l.b16 %v1262
      %v1464 = vunpack.c.h.b16 %v1262
      %v1465 = vunpack.c.l.b16 %v1263
      %v1466 = vunpack.c.h.b16 %v1263
      %v1467 = vunpack.c.l.b16 %v1264
      %v1468 = vunpack.c.h.b16 %v1264
      %v1469 = vunpack.c.l.b16 %v1265
      %v1470 = vunpack.c.h.b16 %v1265
      %v1471 = vunpack.c.l.b16 %v1266
      %v1472 = vunpack.c.h.b16 %v1266
      %v1473 = vunpack.c.l.b16 %v1267
      %v1474 = vunpack.c.h.b16 %v1267
      %v1475 = vunpack.c.l.b16 %v1268
      %v1476 = vunpack.c.h.b16 %v1268
      %v1477 = vunpack.c.l.b16 %v1269
      %v1478 = vunpack.c.h.b16 %v1269
      %v1479 = vunpack.c.l.b16 %v1270
      %v1480 = vunpack.c.h.b16 %v1270
      %v1481 = vunpack.c.l.b16 %v1271
      %v1482 = vunpack.c.h.b16 %v1271
      %v1483 = vunpack.c.l.b16 %v1272
      %v1484 = vunpack.c.h.b16 %v1272
      %v1485 = vunpack.c.l.b16 %v1273
      %v1486 = vunpack.c.h.b16 %v1273
      %v1487 = vunpack.c.l.b16 %v1274
      %v1488 = vunpack.c.h.b16 %v1274
      %v1489 = vunpack.c.l.b16 %v1275
      %v1490 = vunpack.c.h.b16 %v1275
      %v1491 = vunpack.c.l.b16 %v1276
      %v1492 = vunpack.c.h.b16 %v1276
      %v1493 = vunpack.c.l.b16 %v1277
      %v1494 = vunpack.c.h.b16 %v1277
      %v1495 = vunpack.c.l.b16 %v1278
      %v1496 = vunpack.c.h.b16 %v1278
      %v1497 = vunpack.c.l.b16 %v1279
      %v1498 = vunpack.c.h.b16 %v1279
      %v1499 = vunpack.c.l.b16 %v1280
      %v1500 = vunpack.c.h.b16 %v1280
      %v1501 = vunpack.c.l.b16 %v1281
      %v1502 = vunpack.c.h.b16 %v1281
      %v1503 = vunpack.c.l.b16 %v1282
      %v1504 = vunpack.c.h.b16 %v1282
      %v1505 = vunpack.c.l.b16 %v1283
      %v1506 = vunpack.c.h.b16 %v1283
      %v1507 = vunpack.c.l.b16 %v1284
      %v1508 = vunpack.c.h.b16 %v1284
      %v1509 = vunpack.c.l.b16 %v1285
      %v1510 = vunpack.c.h.b16 %v1285
      %v1511 = vunpack.c.l.b16 %v1286
      %v1512 = vunpack.c.h.b16 %v1286
      %v1513 = vunpack.c.l.b16 %v1287
      %v1514 = vunpack.c.h.b16 %v1287
      %v1515 = vunpack.c.l.b16 %v1288
      %v1516 = vunpack.c.h.b16 %v1288
      %v1517 = vunpack.c.l.b16 %v1289
      %v1518 = vunpack.c.h.b16 %v1289
      %v1519 = vunpack.c.l.b16 %v1290
      %v1520 = vunpack.c.h.b16 %v1290
      %v1521 = vunpack.c.l.b16 %v1291
      %v1522 = vunpack.c.h.b16 %v1291
      %v1523 = vunpack.c.l.b16 %v1292
      %v1524 = vunpack.c.h.b16 %v1292
      %v1525 = vunpack.c.l.b16 %v1293
      %v1526 = vunpack.c.h.b16 %v1293
      %v1527 = vunpack.c.l.b16 %v1294
      %v1528 = vunpack.c.h.b16 %v1294
      %v1529 = vunpack.c.l.b16 %v1295
      %v1530 = vunpack.c.h.b16 %v1295
      %v1531 = vunpack.c.l.b16 %v1296
      %v1532 = vunpack.c.h.b16 %v1296
      %v1533 = vunpack.c.l.b16 %v1297
      %v1534 = vunpack.c.h.b16 %v1297
      %v1535 = vunpack.c.l.b16 %v1298
      %v1536 = vunpack.c.h.b16 %v1298
      %v1537 = vunpack.c.l.b16 %v1299
      %v1538 = vunpack.c.h.b16 %v1299
      %v1539 = vunpack.c.l.b16 %v1300
      %v1540 = vunpack.c.h.b16 %v1300
      %v1541 = vunpack.c.l.b16 %v1301
      %v1542 = vunpack.c.h.b16 %v1301
      %v1543 = vunpack.c.l.b16 %v1302
      %v1544 = vunpack.c.h.b16 %v1302
      %v1545 = vunpack.c.l.b16 %v1303
      %v1546 = vunpack.c.h.b16 %v1303
      %v1547 = vunpack.c.l.b16 %v1304
      %v1548 = vunpack.c.h.b16 %v1304
      %v1549 = vunpack.c.l.b16 %v1305
      %v1550 = vunpack.c.h.b16 %v1305
      %v1551 = vunpack.c.l.b16 %v1306
      %v1552 = vunpack.c.h.b16 %v1306
      %v1553 = vunpack.c.l.b16 %v1307
      %v1554 = vunpack.c.h.b16 %v1307
      %v1555 = vunpack.c.l.b16 %v1308
      %v1556 = vunpack.c.h.b16 %v1308
      %v1557 = vunpack.c.l.b16 %v1309
      %v1558 = vunpack.c.h.b16 %v1309
      %v1559 = vunpack.c.l.b16 %v1310
      %v1560 = vunpack.c.h.b16 %v1310
      %v1561 = vunpack.c.l.b16 %v1311
      %v1562 = vunpack.c.h.b16 %v1311
      %v1563 = vunpack.c.l.b16 %v1312
      %v1564 = vunpack.c.h.b16 %v1312
      %v1565 = vunpack.c.l.b16 %v1313
      %v1566 = vunpack.c.h.b16 %v1313
      %v1567 = vunpack.c.l.b16 %v1314
      %v1568 = vunpack.c.h.b16 %v1314
      %v1569 = vunpack.c.l.b16 %v1315
      %v1570 = vunpack.c.h.b16 %v1315
      %v1571 = vunpack.c.l.b16 %v1316
      %v1572 = vunpack.c.h.b16 %v1316
      %v1573 = vunpack.c.l.b16 %v1317
      %v1574 = vunpack.c.h.b16 %v1317
      %v1575 = vunpack.c.l.b16 %v1318
      %v1576 = vunpack.c.h.b16 %v1318
      %v1577 = vunpack.c.l.b16 %v1319
      %v1578 = vunpack.c.h.b16 %v1319
      %v1579 = vpack.c.b16 %v1453, %v1451
      %v1580 = vpack.c.b16 %v1454, %v1452
      %v1581 = vpack.c.b16 %v1457, %v1455
      %v1582 = vpack.c.b16 %v1458, %v1456
      %v1583 = vpack.c.b16 %v1461, %v1459
      %v1584 = vpack.c.b16 %v1462, %v1460
      %v1585 = vpack.c.b16 %v1465, %v1463
      %v1586 = vpack.c.b16 %v1466, %v1464
      %v1587 = vpack.c.b16 %v1469, %v1467
      %v1588 = vpack.c.b16 %v1470, %v1468
      %v1589 = vpack.c.b16 %v1473, %v1471
      %v1590 = vpack.c.b16 %v1474, %v1472
      %v1591 = vpack.c.b16 %v1477, %v1475
      %v1592 = vpack.c.b16 %v1478, %v1476
      %v1593 = vpack.c.b16 %v1481, %v1479
      %v1594 = vpack.c.b16 %v1482, %v1480
      %v1595 = vpack.c.b16 %v1485, %v1483
      %v1596 = vpack.c.b16 %v1486, %v1484
      %v1597 = vpack.c.b16 %v1489, %v1487
      %v1598 = vpack.c.b16 %v1490, %v1488
      %v1599 = vpack.c.b16 %v1493, %v1491
      %v1600 = vpack.c.b16 %v1494, %v1492
      %v1601 = vpack.c.b16 %v1497, %v1495
      %v1602 = vpack.c.b16 %v1498, %v1496
      %v1603 = vpack.c.b16 %v1501, %v1499
      %v1604 = vpack.c.b16 %v1502, %v1500
      %v1605 = vpack.c.b16 %v1505, %v1503
      %v1606 = vpack.c.b16 %v1506, %v1504
      %v1607 = vpack.c.b16 %v1509, %v1507
      %v1608 = vpack.c.b16 %v1510, %v1508
      %v1609 = vpack.c.b16 %v1513, %v1511
      %v1610 = vpack.c.b16 %v1514, %v1512
      %v1611 = vpack.c.b16 %v1517, %v1515
      %v1612 = vpack.c.b16 %v1518, %v1516
      %v1613 = vpack.c.b16 %v1521, %v1519
      %v1614 = vpack.c.b16 %v1522, %v1520
      %v1615 = vpack.c.b16 %v1525, %v1523
      %v1616 = vpack.c.b16 %v1526, %v1524
      %v1617 = vpack.c.b16 %v1529, %v1527
      %v1618 = vpack.c.b16 %v1530, %v1528
      %v1619 = vpack.c.b16 %v1533, %v1531
      %v1620 = vpack.c.b16 %v1534, %v1532
      %v1621 = vpack.c.b16 %v1537, %v1535
      %v1622 = vpack.c.b16 %v1538, %v1536
      %v1623 = vpack.c.b16 %v1541, %v1539
      %v1624 = vpack.c.b16 %v1542, %v1540
      %v1625 = vpack.c.b16 %v1545, %v1543
      %v1626 = vpack.c.b16 %v1546, %v1544
      %v1627 = vpack.c.b16 %v1549, %v1547
      %v1628 = vpack.c.b16 %v1550, %v1548
      %v1629 = vpack.c.b16 %v1553, %v1551
      %v1630 = vpack.c.b16 %v1554, %v1552
      %v1631 = vpack.c.b16 %v1557, %v1555
      %v1632 = vpack.c.b16 %v1558, %v1556
      %v1633 = vpack.c.b16 %v1561, %v1559
      %v1634 = vpack.c.b16 %v1562, %v1560
      %v1635 = vpack.c.b16 %v1565, %v1563
      %v1636 = vpack.c.b16 %v1566, %v1564
      %v1637 = vpack.c.b16 %v1569, %v1567
      %v1638 = vpack.c.b16 %v1570, %v1568
      %v1639 = vpack.c.b16 %v1573, %v1571
      %v1640 = vpack.c.b16 %v1574, %v1572
      %v1641 = vpack.c.b16 %v1577, %v1575
      %v1642 = vpack.c.b16 %v1578, %v1576
      %1707 = vmatprep.subr.bf16.mxu0 %v1580
      %1708 = vmatpush1.bf16.msra.mxu0 %v1579
      %1709 = vmatprep.subr.bf16.mxu0 %v1582
      %1710 = vmatpush1.bf16.msra.mxu0 %v1581
      %1711 = vmatprep.subr.bf16.mxu0 %v1584
      %1712 = vmatpush1.bf16.msra.mxu0 %v1583
      %1713 = vmatprep.subr.bf16.mxu0 %v1586
      %1714 = vmatpush1.bf16.msra.mxu0 %v1585
      %1715 = vmatprep.subr.bf16.mxu0 %v1588
      %1716 = vmatpush1.bf16.msra.mxu0 %v1587
      %1717 = vmatprep.subr.bf16.mxu0 %v1590
      %1718 = vmatpush1.bf16.msra.mxu0 %v1589
      %1719 = vmatprep.subr.bf16.mxu0 %v1592
      %1720 = vmatpush1.bf16.msra.mxu0 %v1591
      %1721 = vmatprep.subr.bf16.mxu0 %v1594
      %1722 = vmatpush1.bf16.msra.mxu0 %v1593
      %1723 = vmatprep.subr.bf16.mxu0 %v1596
      %1724 = vmatpush1.bf16.msra.mxu0 %v1595
      %1725 = vmatprep.subr.bf16.mxu0 %v1598
      %1726 = vmatpush1.bf16.msra.mxu0 %v1597
      %1727 = vmatprep.subr.bf16.mxu0 %v1600
      %1728 = vmatpush1.bf16.msra.mxu0 %v1599
      %1729 = vmatprep.subr.bf16.mxu0 %v1602
      %1730 = vmatpush1.bf16.msra.mxu0 %v1601
      %1731 = vmatprep.subr.bf16.mxu0 %v1604
      %1732 = vmatpush1.bf16.msra.mxu0 %v1603
      %1733 = vmatprep.subr.bf16.mxu0 %v1606
      %1734 = vmatpush1.bf16.msra.mxu0 %v1605
      %1735 = vmatprep.subr.bf16.mxu0 %v1608
      %1736 = vmatpush1.bf16.msra.mxu0 %v1607
      %1737 = vmatprep.subr.bf16.mxu0 %v1610
      %1738 = vmatpush1.bf16.msra.mxu0 %v1609
      %1739 = vmatprep.mubr.bf16.mxu0 %v1354
      %1740 = vmatmul.mubr.bf16.gmra.mrb[0].mxu0 %v1342
      %v1741 = vpop.f32.mrb[0].mxu0
      %v1742 = vadd.f32 0.0, %v1741
      %v1743 = vpop.f32.mrb[0].mxu0
      %v1744 = vadd.f32 0.0, %v1743
      %v1745 = vpop.f32.mrb[0].mxu0
      %v1746 = vadd.f32 0.0, %v1745
      %v1747 = vpop.f32.mrb[0].mxu0
      %v1748 = vadd.f32 0.0, %v1747
      %1749 = vmatprep.mubr.bf16.mxu0 %v1353
      %1750 = vmatmul.mubr.bf16.gmra.mrb[0].mxu0 %v1341
      %v1751 = vpop.f32.mrb[0].mxu0
      %v1752 = vadd.f32 0.0, %v1751
      %v1753 = vpop.f32.mrb[0].mxu0
      %v1754 = vadd.f32 0.0, %v1753
      %v1755 = vpop.f32.mrb[0].mxu0
      %v1756 = vpop.f32.mrb[0].mxu0
      %1757 = vdwg.mxu0
      %1758 = vmatprep.subr.bf16.mxu0 %v1612
      %1759 = vmatpush1.bf16.msra.mxu0 %v1611
      %1760 = vmatprep.subr.bf16.mxu0 %v1614
      %1761 = vmatpush1.bf16.msra.mxu0 %v1613
      %1762 = vmatprep.subr.bf16.mxu0 %v1616
      %1763 = vmatpush1.bf16.msra.mxu0 %v1615
      %1764 = vmatprep.subr.bf16.mxu0 %v1618
      %1765 = vmatpush1.bf16.msra.mxu0 %v1617
      %1766 = vmatprep.subr.bf16.mxu0 %v1620
      %1767 = vmatpush1.bf16.msra.mxu0 %v1619
      %1768 = vmatprep.subr.bf16.mxu0 %v1622
      %1769 = vmatpush1.bf16.msra.mxu0 %v1621
      %1770 = vmatprep.subr.bf16.mxu0 %v1624
      %1771 = vmatpush1.bf16.msra.mxu0 %v1623
      %1772 = vmatprep.subr.bf16.mxu0 %v1626
      %1773 = vmatpush1.bf16.msra.mxu0 %v1625
      %1774 = vmatprep.subr.bf16.mxu0 %v1628
      %1775 = vmatpush1.bf16.msra.mxu0 %v1627
      %1776 = vmatprep.subr.bf16.mxu0 %v1630
      %1777 = vmatpush1.bf16.msra.mxu0 %v1629
      %1778 = vmatprep.subr.bf16.mxu0 %v1632
      %1779 = vmatpush1.bf16.msra.mxu0 %v1631
      %1780 = vmatprep.subr.bf16.mxu0 %v1634
      %1781 = vmatpush1.bf16.msra.mxu0 %v1633
      %1782 = vmatprep.subr.bf16.mxu0 %v1636
      %1783 = vmatpush1.bf16.msra.mxu0 %v1635
      %1784 = vmatprep.subr.bf16.mxu0 %v1638
      %1785 = vmatpush1.bf16.msra.mxu0 %v1637
      %1786 = vmatprep.subr.bf16.mxu0 %v1640
      %1787 = vmatpush1.bf16.msra.mxu0 %v1639
      %1788 = vmatprep.subr.bf16.mxu0 %v1642
      %1789 = vmatpush1.bf16.msra.mxu0 %v1641
      %1790 = vmatprep.mubr.bf16.mxu0 %v1378
      %1791 = vmatmul.mubr.bf16.gmra.mrb[0].mxu0 %v1366
      %v1792 = vpop.f32.mrb[0].mxu0
      %v1793 = vadd.f32 %v1742, %v1792
      %v1794 = vpop.f32.mrb[0].mxu0
      %v1795 = vadd.f32 %v1744, %v1794
      %v1796 = vpop.f32.mrb[0].mxu0
      %v1797 = vadd.f32 %v1746, %v1796
      %v1798 = vpop.f32.mrb[0].mxu0
      %v1799 = vadd.f32 %v1748, %v1798
      %1800 = vmatprep.mubr.bf16.mxu0 %v1377
      %1801 = vmatmul.mubr.bf16.gmra.mrb[0].mxu0 %v1365
      %v1802 = vpop.f32.mrb[0].mxu0
      %v1803 = vadd.f32 %v1752, %v1802
      %v1804 = vpop.f32.mrb[0].mxu0
      %v1805 = vadd.f32 %v1754, %v1804
      %v1806 = vpop.f32.mrb[0].mxu0
      %v1807 = vpop.f32.mrb[0].mxu0
      %1808 = vdwg.mxu0
      %v1809 = vadd.f32 %v1239, %v1793
      %v1810 = vadd.f32 %v1241, %v1795
      %v1811 = vadd.f32 %v1243, %v1797
      %v1812 = vadd.f32 %v1245, %v1799
      %v1813 = vadd.f32 %v1249, %v1803
      %v1814 = vadd.f32 %v1251, %v1805
      %s1815 = scalar_lea.vmem %s1, 1536
      %v1816 = vld [vmem:[%s1815] sm:$0xff]
      %v1817 = vld [vmem:[%s1815 + $0x8] sm:$0xff]
      %v1818 = vld [vmem:[%s1815 + $0x10] sm:$0xff]
      %v1819 = vld [vmem:[%s1815 + $0x18] sm:$0xff]
      %v1820 = vld [vmem:[%s1815 + $0x20] sm:$0xff]
      %v1821 = vld [vmem:[%s1815 + $0x28] sm:$0xff]
      %v1822 = vld [vmem:[%s1815 + $0x30] sm:$0xff]
      %v1823 = vld [vmem:[%s1815 + $0x38] sm:$0xff]
      %v1824 = vld [vmem:[%s1815 + $0x40] sm:$0xff]
      %v1825 = vld [vmem:[%s1815 + $0x48] sm:$0xff]
      %v1826 = vld [vmem:[%s1815 + $0x50] sm:$0xff]
      %v1827 = vld [vmem:[%s1815 + $0x58] sm:$0xff]
      %v1828 = vld [vmem:[%s1815 + $0x60] sm:$0xff]
      %v1829 = vld [vmem:[%s1815 + $0x68] sm:$0xff]
      %v1830 = vld [vmem:[%s1815 + $0x70] sm:$0xff]
      %v1831 = vld [vmem:[%s1815 + $0x78] sm:$0xff]
      %v1832 = vld [vmem:[%s1815 + $0x80] sm:$0xff]
      %v1833 = vld [vmem:[%s1815 + $0x88] sm:$0xff]
      %v1834 = vld [vmem:[%s1815 + $0x90] sm:$0xff]
      %v1835 = vld [vmem:[%s1815 + $0x98] sm:$0xff]
      %v1836 = vld [vmem:[%s1815 + $0xa0] sm:$0xff]
      %v1837 = vld [vmem:[%s1815 + $0xa8] sm:$0xff]
      %v1838 = vld [vmem:[%s1815 + $0xb0] sm:$0xff]
      %v1839 = vld [vmem:[%s1815 + $0xb8] sm:$0xff]
      %v1840 = vld [vmem:[%s1815 + $0xc0] sm:$0xff]
      %v1841 = vld [vmem:[%s1815 + $0xc8] sm:$0xff]
      %v1842 = vld [vmem:[%s1815 + $0xd0] sm:$0xff]
      %v1843 = vld [vmem:[%s1815 + $0xd8] sm:$0xff]
      %v1844 = vld [vmem:[%s1815 + $0xe0] sm:$0xff]
      %v1845 = vld [vmem:[%s1815 + $0xe8] sm:$0xff]
      %v1846 = vld [vmem:[%s1815 + $0xf0] sm:$0xff]
      %v1847 = vld [vmem:[%s1815 + $0xf8] sm:$0xff]
      %v1848 = vld [vmem:[%s1815 + $0x100] sm:$0xff]
      %v1849 = vld [vmem:[%s1815 + $0x108] sm:$0xff]
      %v1850 = vld [vmem:[%s1815 + $0x110] sm:$0xff]
      %v1851 = vld [vmem:[%s1815 + $0x118] sm:$0xff]
      %v1852 = vld [vmem:[%s1815 + $0x120] sm:$0xff]
      %v1853 = vld [vmem:[%s1815 + $0x128] sm:$0xff]
      %v1854 = vld [vmem:[%s1815 + $0x130] sm:$0xff]
      %v1855 = vld [vmem:[%s1815 + $0x138] sm:$0xff]
      %v1856 = vld [vmem:[%s1815 + $0x140] sm:$0xff]
      %v1857 = vld [vmem:[%s1815 + $0x148] sm:$0xff]
      %v1858 = vld [vmem:[%s1815 + $0x150] sm:$0xff]
      %v1859 = vld [vmem:[%s1815 + $0x158] sm:$0xff]
      %v1860 = vld [vmem:[%s1815 + $0x160] sm:$0xff]
      %v1861 = vld [vmem:[%s1815 + $0x168] sm:$0xff]
      %v1862 = vld [vmem:[%s1815 + $0x170] sm:$0xff]
      %v1863 = vld [vmem:[%s1815 + $0x178] sm:$0xff]
      %v1864 = vld [vmem:[%s1815 + $0x180] sm:$0xff]
      %v1865 = vld [vmem:[%s1815 + $0x188] sm:$0xff]
      %v1866 = vld [vmem:[%s1815 + $0x190] sm:$0xff]
      %v1867 = vld [vmem:[%s1815 + $0x198] sm:$0xff]
      %v1868 = vld [vmem:[%s1815 + $0x1a0] sm:$0xff]
      %v1869 = vld [vmem:[%s1815 + $0x1a8] sm:$0xff]
      %v1870 = vld [vmem:[%s1815 + $0x1b0] sm:$0xff]
      %v1871 = vld [vmem:[%s1815 + $0x1b8] sm:$0xff]
      %v1872 = vld [vmem:[%s1815 + $0x1c0] sm:$0xff]
      %v1873 = vld [vmem:[%s1815 + $0x1c8] sm:$0xff]
      %v1874 = vld [vmem:[%s1815 + $0x1d0] sm:$0xff]
      %v1875 = vld [vmem:[%s1815 + $0x1d8] sm:$0xff]
      %v1876 = vld [vmem:[%s1815 + $0x1e0] sm:$0xff]
      %v1877 = vld [vmem:[%s1815 + $0x1e8] sm:$0xff]
      %v1878 = vld [vmem:[%s1815 + $0x1f0] sm:$0xff]
      %v1879 = vld [vmem:[%s1815 + $0x1f8] sm:$0xff]
      %vm1880 = vcmask 1044480
      %v1881 = vrot.slane %v326, 3
      %v1882 = vrot.slane %v1326, 3
      %v1883 = vsel %vm1880, %v1881, %v1882
      %v1884 = vrot.slane %v327, 3
      %v1885 = vrot.slane %v1327, 3
      %v1886 = vsel %vm1880, %v1884, %v1885
      %v1887 = vrot.slane %v328, 3
      %v1888 = vrot.slane %v1328, 3
      %v1889 = vsel %vm1880, %v1887, %v1888
      %v1890 = vrot.slane %v329, 3
      %v1891 = vrot.slane %v1329, 3
      %v1892 = vsel %vm1880, %v1890, %v1891
      %v1965 = vunpack.c.l.b16 %v1816
      %v1966 = vunpack.c.h.b16 %v1816
      %v1967 = vunpack.c.l.b16 %v1817
      %v1968 = vunpack.c.h.b16 %v1817
      %v1969 = vunpack.c.l.b16 %v1818
      %v1970 = vunpack.c.h.b16 %v1818
      %v1971 = vunpack.c.l.b16 %v1819
      %v1972 = vunpack.c.h.b16 %v1819
      %v1973 = vunpack.c.l.b16 %v1820
      %v1974 = vunpack.c.h.b16 %v1820
      %v1975 = vunpack.c.l.b16 %v1821
      %v1976 = vunpack.c.h.b16 %v1821
      %v1977 = vunpack.c.l.b16 %v1822
      %v1978 = vunpack.c.h.b16 %v1822
      %v1979 = vunpack.c.l.b16 %v1823
      %v1980 = vunpack.c.h.b16 %v1823
      %v1981 = vunpack.c.l.b16 %v1824
      %v1982 = vunpack.c.h.b16 %v1824
      %v1983 = vunpack.c.l.b16 %v1825
      %v1984 = vunpack.c.h.b16 %v1825
      %v1985 = vunpack.c.l.b16 %v1826
      %v1986 = vunpack.c.h.b16 %v1826
      %v1987 = vunpack.c.l.b16 %v1827
      %v1988 = vunpack.c.h.b16 %v1827
      %v1989 = vunpack.c.l.b16 %v1828
      %v1990 = vunpack.c.h.b16 %v1828
      %v1991 = vunpack.c.l.b16 %v1829
      %v1992 = vunpack.c.h.b16 %v1829
      %v1993 = vunpack.c.l.b16 %v1830
      %v1994 = vunpack.c.h.b16 %v1830
      %v1995 = vunpack.c.l.b16 %v1831
      %v1996 = vunpack.c.h.b16 %v1831
      %v1997 = vunpack.c.l.b16 %v1832
      %v1998 = vunpack.c.h.b16 %v1832
      %v1999 = vunpack.c.l.b16 %v1833
      %v2000 = vunpack.c.h.b16 %v1833
      %v2001 = vunpack.c.l.b16 %v1834
      %v2002 = vunpack.c.h.b16 %v1834
      %v2003 = vunpack.c.l.b16 %v1835
      %v2004 = vunpack.c.h.b16 %v1835
      %v2005 = vunpack.c.l.b16 %v1836
      %v2006 = vunpack.c.h.b16 %v1836
      %v2007 = vunpack.c.l.b16 %v1837
      %v2008 = vunpack.c.h.b16 %v1837
      %v2009 = vunpack.c.l.b16 %v1838
      %v2010 = vunpack.c.h.b16 %v1838
      %v2011 = vunpack.c.l.b16 %v1839
      %v2012 = vunpack.c.h.b16 %v1839
      %v2013 = vunpack.c.l.b16 %v1840
      %v2014 = vunpack.c.h.b16 %v1840
      %v2015 = vunpack.c.l.b16 %v1841
      %v2016 = vunpack.c.h.b16 %v1841
      %v2017 = vunpack.c.l.b16 %v1842
      %v2018 = vunpack.c.h.b16 %v1842
      %v2019 = vunpack.c.l.b16 %v1843
      %v2020 = vunpack.c.h.b16 %v1843
      %v2021 = vunpack.c.l.b16 %v1844
      %v2022 = vunpack.c.h.b16 %v1844
      %v2023 = vunpack.c.l.b16 %v1845
      %v2024 = vunpack.c.h.b16 %v1845
      %v2025 = vunpack.c.l.b16 %v1846
      %v2026 = vunpack.c.h.b16 %v1846
      %v2027 = vunpack.c.l.b16 %v1847
      %v2028 = vunpack.c.h.b16 %v1847
      %v2029 = vunpack.c.l.b16 %v1848
      %v2030 = vunpack.c.h.b16 %v1848
      %v2031 = vunpack.c.l.b16 %v1849
      %v2032 = vunpack.c.h.b16 %v1849
      %v2033 = vunpack.c.l.b16 %v1850
      %v2034 = vunpack.c.h.b16 %v1850
      %v2035 = vunpack.c.l.b16 %v1851
      %v2036 = vunpack.c.h.b16 %v1851
      %v2037 = vunpack.c.l.b16 %v1852
      %v2038 = vunpack.c.h.b16 %v1852
      %v2039 = vunpack.c.l.b16 %v1853
      %v2040 = vunpack.c.h.b16 %v1853
      %v2041 = vunpack.c.l.b16 %v1854
      %v2042 = vunpack.c.h.b16 %v1854
      %v2043 = vunpack.c.l.b16 %v1855
      %v2044 = vunpack.c.h.b16 %v1855
      %v2045 = vunpack.c.l.b16 %v1856
      %v2046 = vunpack.c.h.b16 %v1856
      %v2047 = vunpack.c.l.b16 %v1857
      %v2048 = vunpack.c.h.b16 %v1857
      %v2049 = vunpack.c.l.b16 %v1858
      %v2050 = vunpack.c.h.b16 %v1858
      %v2051 = vunpack.c.l.b16 %v1859
      %v2052 = vunpack.c.h.b16 %v1859
      %v2053 = vunpack.c.l.b16 %v1860
      %v2054 = vunpack.c.h.b16 %v1860
      %v2055 = vunpack.c.l.b16 %v1861
      %v2056 = vunpack.c.h.b16 %v1861
      %v2057 = vunpack.c.l.b16 %v1862
      %v2058 = vunpack.c.h.b16 %v1862
      %v2059 = vunpack.c.l.b16 %v1863
      %v2060 = vunpack.c.h.b16 %v1863
      %v2061 = vunpack.c.l.b16 %v1864
      %v2062 = vunpack.c.h.b16 %v1864
      %v2063 = vunpack.c.l.b16 %v1865
      %v2064 = vunpack.c.h.b16 %v1865
      %v2065 = vunpack.c.l.b16 %v1866
      %v2066 = vunpack.c.h.b16 %v1866
      %v2067 = vunpack.c.l.b16 %v1867
      %v2068 = vunpack.c.h.b16 %v1867
      %v2069 = vunpack.c.l.b16 %v1868
      %v2070 = vunpack.c.h.b16 %v1868
      %v2071 = vunpack.c.l.b16 %v1869
      %v2072 = vunpack.c.h.b16 %v1869
      %v2073 = vunpack.c.l.b16 %v1870
      %v2074 = vunpack.c.h.b16 %v1870
      %v2075 = vunpack.c.l.b16 %v1871
      %v2076 = vunpack.c.h.b16 %v1871
      %v2077 = vunpack.c.l.b16 %v1872
      %v2078 = vunpack.c.h.b16 %v1872
      %v2079 = vunpack.c.l.b16 %v1873
      %v2080 = vunpack.c.h.b16 %v1873
      %v2081 = vunpack.c.l.b16 %v1874
      %v2082 = vunpack.c.h.b16 %v1874
      %v2083 = vunpack.c.l.b16 %v1875
      %v2084 = vunpack.c.h.b16 %v1875
      %v2085 = vunpack.c.l.b16 %v1876
      %v2086 = vunpack.c.h.b16 %v1876
      %v2087 = vunpack.c.l.b16 %v1877
      %v2088 = vunpack.c.h.b16 %v1877
      %v2089 = vunpack.c.l.b16 %v1878
      %v2090 = vunpack.c.h.b16 %v1878
      %v2091 = vunpack.c.l.b16 %v1879
      %v2092 = vunpack.c.h.b16 %v1879
      %v2093 = vpack.c.b16 %v1967, %v1965
      %v2094 = vpack.c.b16 %v1968, %v1966
      %v2095 = vpack.c.b16 %v1971, %v1969
      %v2096 = vpack.c.b16 %v1972, %v1970
      %v2097 = vpack.c.b16 %v1975, %v1973
      %v2098 = vpack.c.b16 %v1976, %v1974
      %v2099 = vpack.c.b16 %v1979, %v1977
      %v2100 = vpack.c.b16 %v1980, %v1978
      %v2101 = vpack.c.b16 %v1983, %v1981
      %v2102 = vpack.c.b16 %v1984, %v1982
      %v2103 = vpack.c.b16 %v1987, %v1985
      %v2104 = vpack.c.b16 %v1988, %v1986
      %v2105 = vpack.c.b16 %v1991, %v1989
      %v2106 = vpack.c.b16 %v1992, %v1990
      %v2107 = vpack.c.b16 %v1995, %v1993
      %v2108 = vpack.c.b16 %v1996, %v1994
      %v2109 = vpack.c.b16 %v1999, %v1997
      %v2110 = vpack.c.b16 %v2000, %v1998
      %v2111 = vpack.c.b16 %v2003, %v2001
      %v2112 = vpack.c.b16 %v2004, %v2002
      %v2113 = vpack.c.b16 %v2007, %v2005
      %v2114 = vpack.c.b16 %v2008, %v2006
      %v2115 = vpack.c.b16 %v2011, %v2009
      %v2116 = vpack.c.b16 %v2012, %v2010
      %v2117 = vpack.c.b16 %v2015, %v2013
      %v2118 = vpack.c.b16 %v2016, %v2014
      %v2119 = vpack.c.b16 %v2019, %v2017
      %v2120 = vpack.c.b16 %v2020, %v2018
      %v2121 = vpack.c.b16 %v2023, %v2021
      %v2122 = vpack.c.b16 %v2024, %v2022
      %v2123 = vpack.c.b16 %v2027, %v2025
      %v2124 = vpack.c.b16 %v2028, %v2026
      %v2125 = vpack.c.b16 %v2031, %v2029
      %v2126 = vpack.c.b16 %v2032, %v2030
      %v2127 = vpack.c.b16 %v2035, %v2033
      %v2128 = vpack.c.b16 %v2036, %v2034
      %v2129 = vpack.c.b16 %v2039, %v2037
      %v2130 = vpack.c.b16 %v2040, %v2038
      %v2131 = vpack.c.b16 %v2043, %v2041
      %v2132 = vpack.c.b16 %v2044, %v2042
      %v2133 = vpack.c.b16 %v2047, %v2045
      %v2134 = vpack.c.b16 %v2048, %v2046
      %v2135 = vpack.c.b16 %v2051, %v2049
      %v2136 = vpack.c.b16 %v2052, %v2050
      %v2137 = vpack.c.b16 %v2055, %v2053
      %v2138 = vpack.c.b16 %v2056, %v2054
      %v2139 = vpack.c.b16 %v2059, %v2057
      %v2140 = vpack.c.b16 %v2060, %v2058
      %v2141 = vpack.c.b16 %v2063, %v2061
      %v2142 = vpack.c.b16 %v2064, %v2062
      %v2143 = vpack.c.b16 %v2067, %v2065
      %v2144 = vpack.c.b16 %v2068, %v2066
      %v2145 = vpack.c.b16 %v2071, %v2069
      %v2146 = vpack.c.b16 %v2072, %v2070
      %v2147 = vpack.c.b16 %v2075, %v2073
      %v2148 = vpack.c.b16 %v2076, %v2074
      %v2149 = vpack.c.b16 %v2079, %v2077
      %v2150 = vpack.c.b16 %v2080, %v2078
      %v2151 = vpack.c.b16 %v2083, %v2081
      %v2152 = vpack.c.b16 %v2084, %v2082
      %v2153 = vpack.c.b16 %v2087, %v2085
      %v2154 = vpack.c.b16 %v2088, %v2086
      %v2155 = vpack.c.b16 %v2091, %v2089
      %v2156 = vpack.c.b16 %v2092, %v2090
      %2221 = vmatprep.subr.bf16.mxu0 %v2094
      %2222 = vmatpush1.bf16.msra.mxu0 %v2093
      %2223 = vmatprep.subr.bf16.mxu0 %v2096
      %2224 = vmatpush1.bf16.msra.mxu0 %v2095
      %2225 = vmatprep.subr.bf16.mxu0 %v2098
      %2226 = vmatpush1.bf16.msra.mxu0 %v2097
      %2227 = vmatprep.subr.bf16.mxu0 %v2100
      %2228 = vmatpush1.bf16.msra.mxu0 %v2099
      %2229 = vmatprep.subr.bf16.mxu0 %v2102
      %2230 = vmatpush1.bf16.msra.mxu0 %v2101
      %2231 = vmatprep.subr.bf16.mxu0 %v2104
      %2232 = vmatpush1.bf16.msra.mxu0 %v2103
      %2233 = vmatprep.subr.bf16.mxu0 %v2106
      %2234 = vmatpush1.bf16.msra.mxu0 %v2105
      %2235 = vmatprep.subr.bf16.mxu0 %v2108
      %2236 = vmatpush1.bf16.msra.mxu0 %v2107
      %2237 = vmatprep.subr.bf16.mxu0 %v2110
      %2238 = vmatpush1.bf16.msra.mxu0 %v2109
      %2239 = vmatprep.subr.bf16.mxu0 %v2112
      %2240 = vmatpush1.bf16.msra.mxu0 %v2111
      %2241 = vmatprep.subr.bf16.mxu0 %v2114
      %2242 = vmatpush1.bf16.msra.mxu0 %v2113
      %2243 = vmatprep.subr.bf16.mxu0 %v2116
      %2244 = vmatpush1.bf16.msra.mxu0 %v2115
      %2245 = vmatprep.subr.bf16.mxu0 %v2118
      %2246 = vmatpush1.bf16.msra.mxu0 %v2117
      %2247 = vmatprep.subr.bf16.mxu0 %v2120
      %2248 = vmatpush1.bf16.msra.mxu0 %v2119
      %2249 = vmatprep.subr.bf16.mxu0 %v2122
      %2250 = vmatpush1.bf16.msra.mxu0 %v2121
      %2251 = vmatprep.subr.bf16.mxu0 %v2124
      %2252 = vmatpush1.bf16.msra.mxu0 %v2123
      %2253 = vmatprep.mubr.bf16.mxu0 %v1886
      %2254 = vmatmul.mubr.bf16.gmra.mrb[0].mxu0 %v1883
      %v2255 = vpop.f32.mrb[0].mxu0
      %v2256 = vadd.f32 0.0, %v2255
      %v2257 = vpop.f32.mrb[0].mxu0
      %v2258 = vadd.f32 0.0, %v2257
      %v2259 = vpop.f32.mrb[0].mxu0
      %v2260 = vadd.f32 0.0, %v2259
      %v2261 = vpop.f32.mrb[0].mxu0
      %v2262 = vadd.f32 0.0, %v2261
      %2263 = vmatprep.mubr.bf16.mxu0 %v1885
      %2264 = vmatmul.mubr.bf16.gmra.mrb[0].mxu0 %v1882
      %v2265 = vpop.f32.mrb[0].mxu0
      %v2266 = vadd.f32 0.0, %v2265
      %v2267 = vpop.f32.mrb[0].mxu0
      %v2268 = vadd.f32 0.0, %v2267
      %v2269 = vpop.f32.mrb[0].mxu0
      %v2270 = vpop.f32.mrb[0].mxu0
      %2271 = vdwg.mxu0
      %2272 = vmatprep.subr.bf16.mxu0 %v2126
      %2273 = vmatpush1.bf16.msra.mxu0 %v2125
      %2274 = vmatprep.subr.bf16.mxu0 %v2128
      %2275 = vmatpush1.bf16.msra.mxu0 %v2127
      %2276 = vmatprep.subr.bf16.mxu0 %v2130
      %2277 = vmatpush1.bf16.msra.mxu0 %v2129
      %2278 = vmatprep.subr.bf16.mxu0 %v2132
      %2279 = vmatpush1.bf16.msra.mxu0 %v2131
      %2280 = vmatprep.subr.bf16.mxu0 %v2134
      %2281 = vmatpush1.bf16.msra.mxu0 %v2133
      %2282 = vmatprep.subr.bf16.mxu0 %v2136
      %2283 = vmatpush1.bf16.msra.mxu0 %v2135
      %2284 = vmatprep.subr.bf16.mxu0 %v2138
      %2285 = vmatpush1.bf16.msra.mxu0 %v2137
      %2286 = vmatprep.subr.bf16.mxu0 %v2140
      %2287 = vmatpush1.bf16.msra.mxu0 %v2139
      %2288 = vmatprep.subr.bf16.mxu0 %v2142
      %2289 = vmatpush1.bf16.msra.mxu0 %v2141
      %2290 = vmatprep.subr.bf16.mxu0 %v2144
      %2291 = vmatpush1.bf16.msra.mxu0 %v2143
      %2292 = vmatprep.subr.bf16.mxu0 %v2146
      %2293 = vmatpush1.bf16.msra.mxu0 %v2145
      %2294 = vmatprep.subr.bf16.mxu0 %v2148
      %2295 = vmatpush1.bf16.msra.mxu0 %v2147
      %2296 = vmatprep.subr.bf16.mxu0 %v2150
      %2297 = vmatpush1.bf16.msra.mxu0 %v2149
      %2298 = vmatprep.subr.bf16.mxu0 %v2152
      %2299 = vmatpush1.bf16.msra.mxu0 %v2151
      %2300 = vmatprep.subr.bf16.mxu0 %v2154
      %2301 = vmatpush1.bf16.msra.mxu0 %v2153
      %2302 = vmatprep.subr.bf16.mxu0 %v2156
      %2303 = vmatpush1.bf16.msra.mxu0 %v2155
      %2304 = vmatprep.mubr.bf16.mxu0 %v1892
      %2305 = vmatmul.mubr.bf16.gmra.mrb[0].mxu0 %v1889
      %v2306 = vpop.f32.mrb[0].mxu0
      %v2307 = vadd.f32 %v2256, %v2306
      %v2308 = vpop.f32.mrb[0].mxu0
      %v2309 = vadd.f32 %v2258, %v2308
      %v2310 = vpop.f32.mrb[0].mxu0
      %v2311 = vadd.f32 %v2260, %v2310
      %v2312 = vpop.f32.mrb[0].mxu0
      %v2313 = vadd.f32 %v2262, %v2312
      %2314 = vmatprep.mubr.bf16.mxu0 %v1891
      %2315 = vmatmul.mubr.bf16.gmra.mrb[0].mxu0 %v1888
      %v2316 = vpop.f32.mrb[0].mxu0
      %v2317 = vadd.f32 %v2266, %v2316
      %v2318 = vpop.f32.mrb[0].mxu0
      %v2319 = vadd.f32 %v2268, %v2318
      %v2320 = vpop.f32.mrb[0].mxu0
      %v2321 = vpop.f32.mrb[0].mxu0
      %2322 = vdwg.mxu0
      %v2323 = vadd.f32 %v1809, %v2307
      %v2324 = vadd.f32 %v1810, %v2309
      %v2325 = vadd.f32 %v1811, %v2311
      %v2326 = vadd.f32 %v1812, %v2313
      %v2327 = vadd.f32 %v1813, %v2317
      %v2328 = vadd.f32 %v1814, %v2319
      %v2329 = vld [vmem:[%s2] sm:$0x3]
      %v2331 = vlaneseq
      %v2332 = vshrl.u32 %v2331, 7
      %v2333 = vsub.s32 0, %v2332
      %v2334 = vrot.slane %v2329, %v2333
      %v2335 = vlaneseq
      %v2336 = vshrl.u32 %v2335, 7
      %v2337 = vsub.s32 1, %v2336
      %v2338 = vrot.slane %v2329, %v2337
      %v2341 = vadd.f32 %v2323, %v2334
      %v2342 = vadd.f32 %v2324, %v2338
      %v2343 = vadd.f32 %v2325, %v2334
      %v2344 = vadd.f32 %v2326, %v2338
      %v2345 = vadd.f32 %v2327, %v2334
      %v2346 = vadd.f32 %v2328, %v2338
      %v2347 = vmax.f32 %v2341, 0.0
      %v2348 = vmax.f32 %v2342, 0.0
      %v2349 = vmax.f32 %v2343, 0.0
      %v2350 = vmax.f32 %v2344, 0.0
      %v2351 = vmax.f32 %v2345, 0.0
      %v2352 = vmax.f32 %v2346, 0.0
      %v2353 = vpack.c.bf16 %v2349, %v2347
      %v2354 = vpack.c.bf16 %v2350, %v2348
      %v2355 = vpack.c.bf16 %v2351, %v2351
      %v2356 = vpack.c.bf16 %v2352, %v2352
      %v2361 = vunpack.c.l.b16 %v2353
      %v2362 = vunpack.c.l.b16 %v2354
      %v2363 = vunpack.c.h.b16 %v2353
      %v2364 = vunpack.c.h.b16 %v2354
      %v2365 = vunpack.c.l.b16 %v2355
      %v2366 = vunpack.c.l.b16 %v2356
      %v2367 = vpack.c.b16 %v2362, %v2361
      %v2368 = vpack.c.b16 %v2364, %v2363
      %v2369 = vpack.c.b16 %v2366, %v2365
      %2373 = vst [vmem:[%s170] sm:$0xff] %v2367
      %2374 = vst [vmem:[%s170 + $0x8] sm:$0xff] %v2368
      %2375 = vst [vmem:[%s170 + $0x10] sm:$0x33] %v2369
      %p2376 = scmp.lt.s32.totalorder %s14, 5
      %s2377 = scalar_select %p2376, %s14, 5
      %s2378 = smul.addr %s2377, 6
      %s2379 = smul.addr %s2378, 4
      %s2380 = scalar_lea.vmem %s3, %s2379
      // Predicated region
      $region33: #{spnet_forward.13} parent=31 // pred_check
        %p2381 = pneg %p100
      $region34: #{spnet_forward.13} parent=31 // pred_check_branch
        %2383 = sbr.rel (%p2381) target = $region36
      $region35: #{spnet_forward.13} parent=31 // pred_region
        _
      $region36: #{spnet_forward.13} parent=31 // pred_fallthru
        _
    $region32: #{spnet_forward.13} parent=5 // pred_fallthru
      _
    %p2384 = scmp.le.s32.totalorder 2, %s9
    // Predicated region
    $region37: #{spnet_forward.13} parent=5 // pred_check
      %p2385 = pneg %p2384
    $region38: #{spnet_forward.13} parent=5 // pred_check_branch
      %2387 = sbr.rel (%p2385) target = $region40
    $region39: #{spnet_forward.13} parent=5 // pred_region
      %s2388 = ssub.s32 %s9, 2
      // Predicated region
      $region41: #{spnet_forward.13} parent=39 // pred_check
        %p2389 = pneg %p106
      $region42: #{spnet_forward.13} parent=39 // pred_check_branch
        %2391 = sbr.rel (%p2389) target = $region44
      $region43: #{spnet_forward.13} parent=39 // pred_region
        %p2392 = scmp.lt.s32.totalorder %s15, 5
        %s2393 = scalar_select %p2392, %s15, 5
        %s2394 = smul.addr %s2393, 6
        %s2395 = smul.addr %s2394, 4
        %s2396 = scalar_lea.vmem %s3, %s2395
      $region44: #{spnet_forward.13} parent=39 // pred_fallthru
        _
    $region40: #{spnet_forward.13} parent=5 // pred_fallthru
      _
  $region6: #{spnet_forward.13} parent=0 // loop_footer
    %s13 = sadd.s32 1, %s9
  $region7: #{spnet_forward.13} parent=0 // loop_footer_branch
    %8 = sbr.rel target = $region3
  $region8: #{spnet_forward.13} parent=0 // loop_exit
    _

// kernel: spnet_forward.15
$region0: #{spnet_forward.15}
  #allocation0 [shape = 'u32[]', space=smem, size = 0x4, offset = 0x4, fixed_abs, tag = 'smem constant byte address 0x4 - core index']
  #allocation1 [shape = 'u32[144,128]{1,0:T(1,128)}', space=vmem, size = 0x12000, scoped, tag = 'internal scratch']
  %s0 = inlined_call_operand.vmem [shape: bf16[64,256], index: 0, kind: input, shape index: {}]
  %s1 = inlined_call_operand.vmem [shape: bf16[256,256], index: 1, kind: input, shape index: {}]
  %s2 = inlined_call_operand.vmem [shape: f32[1,256], index: 2, kind: input, shape index: {}]
  %s3 = inlined_call_operand.vmem [shape: bf16[64,256], index: 3, kind: output, shape index: {}]
  %s4 = sld [smem:[#allocation0]]
  $region22: #{spnet_forward.15} parent=0
    _
  %s6 = ssub.s32 1, %s4
  %s7 = scalar_select 0, %s6, %s4
  // Predicated region
  $region2: #{spnet_forward.15} parent=0 // pred_check
    _
  $region3: #{spnet_forward.15} parent=0 // pred_check_branch
    %9 = sbr.rel (0) target = $region5
  $region4: #{spnet_forward.15} parent=0 // pred_region
    _
  $region5: #{spnet_forward.15} parent=0 // pred_fallthru
    _
  // Predicated region
  $region6: #{spnet_forward.15} parent=0 // pred_check
    _
  $region7: #{spnet_forward.15} parent=0 // pred_check_branch
    %11 = sbr.rel (0) target = $region9
  $region8: #{spnet_forward.15} parent=0 // pred_region
    _
  $region9: #{spnet_forward.15} parent=0 // pred_fallthru
    _
  // Predicated region
  $region10: #{spnet_forward.15} parent=0 // pred_check
    _
  $region11: #{spnet_forward.15} parent=0 // pred_check_branch
    %13 = sbr.rel (0) target = $region13
  $region12: #{spnet_forward.15} parent=0 // pred_region
    _
  $region13: #{spnet_forward.15} parent=0 // pred_fallthru
    _
  %v14 = vld [vmem:[%s0] sm:$0xff]
  %v15 = vld [vmem:[%s0 + $0x8] sm:$0xff]
  %v16 = vld [vmem:[%s0 + $0x10] sm:$0xff]
  %v17 = vld [vmem:[%s0 + $0x18] sm:$0xff]
  %v18 = vld [vmem:[%s0 + $0x20] sm:$0xff]
  %v19 = vld [vmem:[%s0 + $0x28] sm:$0xff]
  %v20 = vld [vmem:[%s0 + $0x30] sm:$0xff]
  %v21 = vld [vmem:[%s0 + $0x38] sm:$0xff]
  %v22 = vld [vmem:[%s1] sm:$0xff]
  %v23 = vld [vmem:[%s1 + $0x8] sm:$0xff]
  %v24 = vld [vmem:[%s1 + $0x10] sm:$0xff]
  %v25 = vld [vmem:[%s1 + $0x18] sm:$0xff]
  %v26 = vld [vmem:[%s1 + $0x20] sm:$0xff]
  %v27 = vld [vmem:[%s1 + $0x28] sm:$0xff]
  %v28 = vld [vmem:[%s1 + $0x30] sm:$0xff]
  %v29 = vld [vmem:[%s1 + $0x38] sm:$0xff]
  %v30 = vld [vmem:[%s1 + $0x40] sm:$0xff]
  %v31 = vld [vmem:[%s1 + $0x48] sm:$0xff]
  %v32 = vld [vmem:[%s1 + $0x50] sm:$0xff]
  %v33 = vld [vmem:[%s1 + $0x58] sm:$0xff]
  %v34 = vld [vmem:[%s1 + $0x60] sm:$0xff]
  %v35 = vld [vmem:[%s1 + $0x68] sm:$0xff]
  %v36 = vld [vmem:[%s1 + $0x70] sm:$0xff]
  %v37 = vld [vmem:[%s1 + $0x78] sm:$0xff]
  %v38 = vld [vmem:[%s1 + $0x80] sm:$0xff]
  %v39 = vld [vmem:[%s1 + $0x88] sm:$0xff]
  %v40 = vld [vmem:[%s1 + $0x90] sm:$0xff]
  %v41 = vld [vmem:[%s1 + $0x98] sm:$0xff]
  %v42 = vld [vmem:[%s1 + $0xa0] sm:$0xff]
  %v43 = vld [vmem:[%s1 + $0xa8] sm:$0xff]
  %v44 = vld [vmem:[%s1 + $0xb0] sm:$0xff]
  %v45 = vld [vmem:[%s1 + $0xb8] sm:$0xff]
  %v46 = vld [vmem:[%s1 + $0xc0] sm:$0xff]
  %v47 = vld [vmem:[%s1 + $0xc8] sm:$0xff]
  %v48 = vld [vmem:[%s1 + $0xd0] sm:$0xff]
  %v49 = vld [vmem:[%s1 + $0xd8] sm:$0xff]
  %v50 = vld [vmem:[%s1 + $0xe0] sm:$0xff]
  %v51 = vld [vmem:[%s1 + $0xe8] sm:$0xff]
  %v52 = vld [vmem:[%s1 + $0xf0] sm:$0xff]
  %v53 = vld [vmem:[%s1 + $0xf8] sm:$0xff]
  %v54 = vld [vmem:[%s2] sm:$0x3]
  %v56 = vlaneseq
  %v57 = vshrl.u32 %v56, 7
  %v58 = vsub.s32 0, %v57
  %v59 = vrot.slane %v54, %v58
  %v60 = vlaneseq
  %v61 = vshrl.u32 %v60, 7
  %v62 = vsub.s32 1, %v61
  %v63 = vrot.slane %v54, %v62
  %v74 = vunpack.c.l.b16 %v14
  %v75 = vunpack.c.h.b16 %v14
  %v76 = vunpack.c.l.b16 %v15
  %v77 = vunpack.c.h.b16 %v15
  %v78 = vunpack.c.l.b16 %v16
  %v79 = vunpack.c.h.b16 %v16
  %v80 = vunpack.c.l.b16 %v17
  %v81 = vunpack.c.h.b16 %v17
  %v82 = vunpack.c.l.b16 %v18
  %v83 = vunpack.c.h.b16 %v18
  %v84 = vunpack.c.l.b16 %v19
  %v85 = vunpack.c.h.b16 %v19
  %v86 = vunpack.c.l.b16 %v20
  %v87 = vunpack.c.h.b16 %v20
  %v88 = vunpack.c.l.b16 %v21
  %v89 = vunpack.c.h.b16 %v21
  %v90 = vpack.c.b16 %v76, %v74
  %v91 = vpack.c.b16 %v77, %v75
  %v92 = vpack.c.b16 %v80, %v78
  %v93 = vpack.c.b16 %v81, %v79
  %v94 = vpack.c.b16 %v84, %v82
  %v95 = vpack.c.b16 %v85, %v83
  %v96 = vpack.c.b16 %v88, %v86
  %v97 = vpack.c.b16 %v89, %v87
  %v138 = vunpack.c.l.b16 %v22
  %v139 = vunpack.c.h.b16 %v22
  %v140 = vunpack.c.l.b16 %v23
  %v141 = vunpack.c.h.b16 %v23
  %v142 = vunpack.c.l.b16 %v24
  %v143 = vunpack.c.h.b16 %v24
  %v144 = vunpack.c.l.b16 %v25
  %v145 = vunpack.c.h.b16 %v25
  %v146 = vunpack.c.l.b16 %v26
  %v147 = vunpack.c.h.b16 %v26
  %v148 = vunpack.c.l.b16 %v27
  %v149 = vunpack.c.h.b16 %v27
  %v150 = vunpack.c.l.b16 %v28
  %v151 = vunpack.c.h.b16 %v28
  %v152 = vunpack.c.l.b16 %v29
  %v153 = vunpack.c.h.b16 %v29
  %v154 = vunpack.c.l.b16 %v30
  %v155 = vunpack.c.h.b16 %v30
  %v156 = vunpack.c.l.b16 %v31
  %v157 = vunpack.c.h.b16 %v31
  %v158 = vunpack.c.l.b16 %v32
  %v159 = vunpack.c.h.b16 %v32
  %v160 = vunpack.c.l.b16 %v33
  %v161 = vunpack.c.h.b16 %v33
  %v162 = vunpack.c.l.b16 %v34
  %v163 = vunpack.c.h.b16 %v34
  %v164 = vunpack.c.l.b16 %v35
  %v165 = vunpack.c.h.b16 %v35
  %v166 = vunpack.c.l.b16 %v36
  %v167 = vunpack.c.h.b16 %v36
  %v168 = vunpack.c.l.b16 %v37
  %v169 = vunpack.c.h.b16 %v37
  %v170 = vunpack.c.l.b16 %v38
  %v171 = vunpack.c.h.b16 %v38
  %v172 = vunpack.c.l.b16 %v39
  %v173 = vunpack.c.h.b16 %v39
  %v174 = vunpack.c.l.b16 %v40
  %v175 = vunpack.c.h.b16 %v40
  %v176 = vunpack.c.l.b16 %v41
  %v177 = vunpack.c.h.b16 %v41
  %v178 = vunpack.c.l.b16 %v42
  %v179 = vunpack.c.h.b16 %v42
  %v180 = vunpack.c.l.b16 %v43
  %v181 = vunpack.c.h.b16 %v43
  %v182 = vunpack.c.l.b16 %v44
  %v183 = vunpack.c.h.b16 %v44
  %v184 = vunpack.c.l.b16 %v45
  %v185 = vunpack.c.h.b16 %v45
  %v186 = vunpack.c.l.b16 %v46
  %v187 = vunpack.c.h.b16 %v46
  %v188 = vunpack.c.l.b16 %v47
  %v189 = vunpack.c.h.b16 %v47
  %v190 = vunpack.c.l.b16 %v48
  %v191 = vunpack.c.h.b16 %v48
  %v192 = vunpack.c.l.b16 %v49
  %v193 = vunpack.c.h.b16 %v49
  %v194 = vunpack.c.l.b16 %v50
  %v195 = vunpack.c.h.b16 %v50
  %v196 = vunpack.c.l.b16 %v51
  %v197 = vunpack.c.h.b16 %v51
  %v198 = vunpack.c.l.b16 %v52
  %v199 = vunpack.c.h.b16 %v52
  %v200 = vunpack.c.l.b16 %v53
  %v201 = vunpack.c.h.b16 %v53
  %v202 = vpack.c.b16 %v140, %v138
  %v203 = vpack.c.b16 %v141, %v139
  %v204 = vpack.c.b16 %v144, %v142
  %v205 = vpack.c.b16 %v145, %v143
  %v206 = vpack.c.b16 %v148, %v146
  %v207 = vpack.c.b16 %v149, %v147
  %v208 = vpack.c.b16 %v152, %v150
  %v209 = vpack.c.b16 %v153, %v151
  %v210 = vpack.c.b16 %v156, %v154
  %v211 = vpack.c.b16 %v157, %v155
  %v212 = vpack.c.b16 %v160, %v158
  %v213 = vpack.c.b16 %v161, %v159
  %v214 = vpack.c.b16 %v164, %v162
  %v215 = vpack.c.b16 %v165, %v163
  %v216 = vpack.c.b16 %v168, %v166
  %v217 = vpack.c.b16 %v169, %v167
  %v218 = vpack.c.b16 %v172, %v170
  %v219 = vpack.c.b16 %v173, %v171
  %v220 = vpack.c.b16 %v176, %v174
  %v221 = vpack.c.b16 %v177, %v175
  %v222 = vpack.c.b16 %v180, %v178
  %v223 = vpack.c.b16 %v181, %v179
  %v224 = vpack.c.b16 %v184, %v182
  %v225 = vpack.c.b16 %v185, %v183
  %v226 = vpack.c.b16 %v188, %v186
  %v227 = vpack.c.b16 %v189, %v187
  %v228 = vpack.c.b16 %v192, %v190
  %v229 = vpack.c.b16 %v193, %v191
  %v230 = vpack.c.b16 %v196, %v194
  %v231 = vpack.c.b16 %v197, %v195
  %v232 = vpack.c.b16 %v200, %v198
  %v233 = vpack.c.b16 %v201, %v199
  %266 = vmatprep.subr.bf16.mxu0 %v203
  %267 = vmatpush1.bf16.msra.mxu0 %v202
  %268 = vmatprep.subr.bf16.mxu0 %v205
  %269 = vmatpush1.bf16.msra.mxu0 %v204
  %270 = vmatprep.subr.bf16.mxu0 %v207
  %271 = vmatpush1.bf16.msra.mxu0 %v206
  %272 = vmatprep.subr.bf16.mxu0 %v209
  %273 = vmatpush1.bf16.msra.mxu0 %v208
  %274 = vmatprep.subr.bf16.mxu0 %v211
  %275 = vmatpush1.bf16.msra.mxu0 %v210
  %276 = vmatprep.subr.bf16.mxu0 %v213
  %277 = vmatpush1.bf16.msra.mxu0 %v212
  %278 = vmatprep.subr.bf16.mxu0 %v215
  %279 = vmatpush1.bf16.msra.mxu0 %v214
  %280 = vmatprep.subr.bf16.mxu0 %v217
  %281 = vmatpush1.bf16.msra.mxu0 %v216
  %282 = vmatprep.subr.bf16.mxu0 %v219
  %283 = vmatpush1.bf16.msra.mxu0 %v218
  %284 = vmatprep.subr.bf16.mxu0 %v221
  %285 = vmatpush1.bf16.msra.mxu0 %v220
  %286 = vmatprep.subr.bf16.mxu0 %v223
  %287 = vmatpush1.bf16.msra.mxu0 %v222
  %288 = vmatprep.subr.bf16.mxu0 %v225
  %289 = vmatpush1.bf16.msra.mxu0 %v224
  %290 = vmatprep.subr.bf16.mxu0 %v227
  %291 = vmatpush1.bf16.msra.mxu0 %v226
  %292 = vmatprep.subr.bf16.mxu0 %v229
  %293 = vmatpush1.bf16.msra.mxu0 %v228
  %294 = vmatprep.subr.bf16.mxu0 %v231
  %295 = vmatpush1.bf16.msra.mxu0 %v230
  %296 = vmatprep.subr.bf16.mxu0 %v233
  %297 = vmatpush1.bf16.msra.mxu0 %v232
  %298 = vmatprep.mubr.bf16.mxu0 %v91
  %299 = vmatmul.mubr.bf16.gmra.mrb[0].mxu0 %v90
  %v300 = vpop.f32.mrb[0].mxu0
  %v301 = vadd.f32 %v59, %v300
  %v302 = vpop.f32.mrb[0].mxu0
  %v303 = vadd.f32 %v63, %v302
  %v304 = vpop.f32.mrb[0].mxu0
  %v305 = vadd.f32 %v59, %v304
  %v306 = vpop.f32.mrb[0].mxu0
  %v307 = vadd.f32 %v63, %v306
  %308 = vmatprep.mubr.bf16.mxu0 %v93
  %309 = vmatmul.mubr.bf16.gmra.mrb[0].mxu0 %v92
  %v310 = vpop.f32.mrb[0].mxu0
  %v311 = vadd.f32 %v59, %v310
  %v312 = vpop.f32.mrb[0].mxu0
  %v313 = vadd.f32 %v63, %v312
  %v314 = vpop.f32.mrb[0].mxu0
  %v315 = vadd.f32 %v59, %v314
  %v316 = vpop.f32.mrb[0].mxu0
  %v317 = vadd.f32 %v63, %v316
  %318 = vmatprep.mubr.bf16.mxu0 %v95
  %319 = vmatmul.mubr.bf16.gmra.mrb[0].mxu0 %v94
  %v320 = vpop.f32.mrb[0].mxu0
  %v321 = vadd.f32 %v59, %v320
  %v322 = vpop.f32.mrb[0].mxu0
  %v323 = vadd.f32 %v63, %v322
  %v324 = vpop.f32.mrb[0].mxu0
  %v325 = vadd.f32 %v59, %v324
  %v326 = vpop.f32.mrb[0].mxu0
  %v327 = vadd.f32 %v63, %v326
  %328 = vmatprep.mubr.bf16.mxu0 %v97
  %329 = vmatmul.mubr.bf16.gmra.mrb[0].mxu0 %v96
  %v330 = vpop.f32.mrb[0].mxu0
  %v331 = vadd.f32 %v59, %v330
  %v332 = vpop.f32.mrb[0].mxu0
  %v333 = vadd.f32 %v63, %v332
  %v334 = vpop.f32.mrb[0].mxu0
  %v335 = vadd.f32 %v59, %v334
  %v336 = vpop.f32.mrb[0].mxu0
  %v337 = vadd.f32 %v63, %v336
  %338 = vdwg.mxu0
  %v339 = vpack.c.bf16 %v305, %v301
  %v340 = vpack.c.bf16 %v307, %v303
  %v341 = vpack.c.bf16 %v315, %v311
  %v342 = vpack.c.bf16 %v317, %v313
  %v343 = vpack.c.bf16 %v325, %v321
  %v344 = vpack.c.bf16 %v327, %v323
  %v345 = vpack.c.bf16 %v335, %v331
  %v346 = vpack.c.bf16 %v337, %v333
  %v355 = vunpack.c.l.b16 %v339
  %v356 = vunpack.c.l.b16 %v340
  %v357 = vunpack.c.h.b16 %v339
  %v358 = vunpack.c.h.b16 %v340
  %v359 = vunpack.c.l.b16 %v341
  %v360 = vunpack.c.l.b16 %v342
  %v361 = vunpack.c.h.b16 %v341
  %v362 = vunpack.c.h.b16 %v342
  %v363 = vunpack.c.l.b16 %v343
  %v364 = vunpack.c.l.b16 %v344
  %v365 = vunpack.c.h.b16 %v343
  %v366 = vunpack.c.h.b16 %v344
  %v367 = vunpack.c.l.b16 %v345
  %v368 = vunpack.c.l.b16 %v346
  %v369 = vunpack.c.h.b16 %v345
  %v370 = vunpack.c.h.b16 %v346
  %v371 = vpack.c.b16 %v356, %v355
  %v372 = vpack.c.b16 %v358, %v357
  %v373 = vpack.c.b16 %v360, %v359
  %v374 = vpack.c.b16 %v362, %v361
  %v375 = vpack.c.b16 %v364, %v363
  %v376 = vpack.c.b16 %v366, %v365
  %v377 = vpack.c.b16 %v368, %v367
  %v378 = vpack.c.b16 %v370, %v369
  %387 = vst [vmem:[%s3] sm:$0xff] %v371
  %388 = vst [vmem:[%s3 + $0x8] sm:$0xff] %v372
  %389 = vst [vmem:[%s3 + $0x10] sm:$0xff] %v373
  %390 = vst [vmem:[%s3 + $0x18] sm:$0xff] %v374
  %391 = vst [vmem:[%s3 + $0x20] sm:$0xff] %v375
  %392 = vst [vmem:[%s3 + $0x28] sm:$0xff] %v376
  %393 = vst [vmem:[%s3 + $0x30] sm:$0xff] %v377
  %394 = vst [vmem:[%s3 + $0x38] sm:$0xff] %v378
  // Predicated region
  $region14: #{spnet_forward.15} parent=0 // pred_check
    _
  $region15: #{spnet_forward.15} parent=0 // pred_check_branch
    %396 = sbr.rel (0) target = $region17
  $region16: #{spnet_forward.15} parent=0 // pred_region
    _
  $region17: #{spnet_forward.15} parent=0 // pred_fallthru
    _
  // Predicated region
  $region18: #{spnet_forward.15} parent=0 // pred_check
    _
  $region19: #{spnet_forward.15} parent=0 // pred_check_branch
    %398 = sbr.rel (0) target = $region21
  $region20: #{spnet_forward.15} parent=0 // pred_region
    _
  $region21: #{spnet_forward.15} parent=0 // pred_fallthru
    _

// kernel: spnet_forward.17
$region0: #{spnet_forward.17}
  #allocation0 [shape = 'u32[]', space=smem, size = 0x4, offset = 0x4, fixed_abs, tag = 'smem constant byte address 0x4 - core index']
  #allocation1 [shape = 'u32[144,128]{1,0:T(1,128)}', space=vmem, size = 0x12000, scoped, tag = 'internal scratch']
  %s0 = inlined_call_operand.vmem [shape: bf16[32,256], index: 0, kind: input, shape index: {}]
  %s1 = inlined_call_operand.vmem [shape: bf16[256,256], index: 1, kind: input, shape index: {}]
  %s2 = inlined_call_operand.vmem [shape: f32[1,256], index: 2, kind: input, shape index: {}]
  %s3 = inlined_call_operand.vmem [shape: bf16[32,256], index: 3, kind: input, shape index: {}]
  %s4 = inlined_call_operand.vmem [shape: bf16[32,256], index: 4, kind: output, shape index: {}]
  %s5 = sld [smem:[#allocation0]]
  $region26: #{spnet_forward.17} parent=0
    _
  %s7 = ssub.s32 1, %s5
  %s8 = scalar_select 0, %s7, %s5
  // Predicated region
  $region2: #{spnet_forward.17} parent=0 // pred_check
    _
  $region3: #{spnet_forward.17} parent=0 // pred_check_branch
    %10 = sbr.rel (0) target = $region5
  $region4: #{spnet_forward.17} parent=0 // pred_region
    _
  $region5: #{spnet_forward.17} parent=0 // pred_fallthru
    _
  // Predicated region
  $region6: #{spnet_forward.17} parent=0 // pred_check
    _
  $region7: #{spnet_forward.17} parent=0 // pred_check_branch
    %12 = sbr.rel (0) target = $region9
  $region8: #{spnet_forward.17} parent=0 // pred_region
    _
  $region9: #{spnet_forward.17} parent=0 // pred_fallthru
    _
  // Predicated region
  $region10: #{spnet_forward.17} parent=0 // pred_check
    _
  $region11: #{spnet_forward.17} parent=0 // pred_check_branch
    %14 = sbr.rel (0) target = $region13
  $region12: #{spnet_forward.17} parent=0 // pred_region
    _
  $region13: #{spnet_forward.17} parent=0 // pred_fallthru
    _
  // Predicated region
  $region14: #{spnet_forward.17} parent=0 // pred_check
    _
  $region15: #{spnet_forward.17} parent=0 // pred_check_branch
    %16 = sbr.rel (0) target = $region17
  $region16: #{spnet_forward.17} parent=0 // pred_region
    _
  $region17: #{spnet_forward.17} parent=0 // pred_fallthru
    _
  %v17 = vld [vmem:[%s0] sm:$0xff]
  %v18 = vld [vmem:[%s0 + $0x8] sm:$0xff]
  %v19 = vld [vmem:[%s0 + $0x10] sm:$0xff]
  %v20 = vld [vmem:[%s0 + $0x18] sm:$0xff]
  %v21 = vld [vmem:[%s1] sm:$0xff]
  %v22 = vld [vmem:[%s1 + $0x8] sm:$0xff]
  %v23 = vld [vmem:[%s1 + $0x10] sm:$0xff]
  %v24 = vld [vmem:[%s1 + $0x18] sm:$0xff]
  %v25 = vld [vmem:[%s1 + $0x20] sm:$0xff]
  %v26 = vld [vmem:[%s1 + $0x28] sm:$0xff]
  %v27 = vld [vmem:[%s1 + $0x30] sm:$0xff]
  %v28 = vld [vmem:[%s1 + $0x38] sm:$0xff]
  %v29 = vld [vmem:[%s1 + $0x40] sm:$0xff]
  %v30 = vld [vmem:[%s1 + $0x48] sm:$0xff]
  %v31 = vld [vmem:[%s1 + $0x50] sm:$0xff]
  %v32 = vld [vmem:[%s1 + $0x58] sm:$0xff]
  %v33 = vld [vmem:[%s1 + $0x60] sm:$0xff]
  %v34 = vld [vmem:[%s1 + $0x68] sm:$0xff]
  %v35 = vld [vmem:[%s1 + $0x70] sm:$0xff]
  %v36 = vld [vmem:[%s1 + $0x78] sm:$0xff]
  %v37 = vld [vmem:[%s1 + $0x80] sm:$0xff]
  %v38 = vld [vmem:[%s1 + $0x88] sm:$0xff]
  %v39 = vld [vmem:[%s1 + $0x90] sm:$0xff]
  %v40 = vld [vmem:[%s1 + $0x98] sm:$0xff]
  %v41 = vld [vmem:[%s1 + $0xa0] sm:$0xff]
  %v42 = vld [vmem:[%s1 + $0xa8] sm:$0xff]
  %v43 = vld [vmem:[%s1 + $0xb0] sm:$0xff]
  %v44 = vld [vmem:[%s1 + $0xb8] sm:$0xff]
  %v45 = vld [vmem:[%s1 + $0xc0] sm:$0xff]
  %v46 = vld [vmem:[%s1 + $0xc8] sm:$0xff]
  %v47 = vld [vmem:[%s1 + $0xd0] sm:$0xff]
  %v48 = vld [vmem:[%s1 + $0xd8] sm:$0xff]
  %v49 = vld [vmem:[%s1 + $0xe0] sm:$0xff]
  %v50 = vld [vmem:[%s1 + $0xe8] sm:$0xff]
  %v51 = vld [vmem:[%s1 + $0xf0] sm:$0xff]
  %v52 = vld [vmem:[%s1 + $0xf8] sm:$0xff]
  %v53 = vld [vmem:[%s2] sm:$0x3]
  %v55 = vlaneseq
  %v56 = vshrl.u32 %v55, 7
  %v57 = vsub.s32 0, %v56
  %v58 = vrot.slane %v53, %v57
  %v59 = vlaneseq
  %v60 = vshrl.u32 %v59, 7
  %v61 = vsub.s32 1, %v60
  %v62 = vrot.slane %v53, %v61
  %v69 = vunpack.c.l.b16 %v17
  %v70 = vunpack.c.h.b16 %v17
  %v71 = vunpack.c.l.b16 %v18
  %v72 = vunpack.c.h.b16 %v18
  %v73 = vunpack.c.l.b16 %v19
  %v74 = vunpack.c.h.b16 %v19
  %v75 = vunpack.c.l.b16 %v20
  %v76 = vunpack.c.h.b16 %v20
  %v77 = vpack.c.b16 %v71, %v69
  %v78 = vpack.c.b16 %v72, %v70
  %v79 = vpack.c.b16 %v75, %v73
  %v80 = vpack.c.b16 %v76, %v74
  %v117 = vunpack.c.l.b16 %v21
  %v118 = vunpack.c.h.b16 %v21
  %v119 = vunpack.c.l.b16 %v22
  %v120 = vunpack.c.h.b16 %v22
  %v121 = vunpack.c.l.b16 %v23
  %v122 = vunpack.c.h.b16 %v23
  %v123 = vunpack.c.l.b16 %v24
  %v124 = vunpack.c.h.b16 %v24
  %v125 = vunpack.c.l.b16 %v25
  %v126 = vunpack.c.h.b16 %v25
  %v127 = vunpack.c.l.b16 %v26
  %v128 = vunpack.c.h.b16 %v26
  %v129 = vunpack.c.l.b16 %v27
  %v130 = vunpack.c.h.b16 %v27
  %v131 = vunpack.c.l.b16 %v28
  %v132 = vunpack.c.h.b16 %v28
  %v133 = vunpack.c.l.b16 %v29
  %v134 = vunpack.c.h.b16 %v29
  %v135 = vunpack.c.l.b16 %v30
  %v136 = vunpack.c.h.b16 %v30
  %v137 = vunpack.c.l.b16 %v31
  %v138 = vunpack.c.h.b16 %v31
  %v139 = vunpack.c.l.b16 %v32
  %v140 = vunpack.c.h.b16 %v32
  %v141 = vunpack.c.l.b16 %v33
  %v142 = vunpack.c.h.b16 %v33
  %v143 = vunpack.c.l.b16 %v34
  %v144 = vunpack.c.h.b16 %v34
  %v145 = vunpack.c.l.b16 %v35
  %v146 = vunpack.c.h.b16 %v35
  %v147 = vunpack.c.l.b16 %v36
  %v148 = vunpack.c.h.b16 %v36
  %v149 = vunpack.c.l.b16 %v37
  %v150 = vunpack.c.h.b16 %v37
  %v151 = vunpack.c.l.b16 %v38
  %v152 = vunpack.c.h.b16 %v38
  %v153 = vunpack.c.l.b16 %v39
  %v154 = vunpack.c.h.b16 %v39
  %v155 = vunpack.c.l.b16 %v40
  %v156 = vunpack.c.h.b16 %v40
  %v157 = vunpack.c.l.b16 %v41
  %v158 = vunpack.c.h.b16 %v41
  %v159 = vunpack.c.l.b16 %v42
  %v160 = vunpack.c.h.b16 %v42
  %v161 = vunpack.c.l.b16 %v43
  %v162 = vunpack.c.h.b16 %v43
  %v163 = vunpack.c.l.b16 %v44
  %v164 = vunpack.c.h.b16 %v44
  %v165 = vunpack.c.l.b16 %v45
  %v166 = vunpack.c.h.b16 %v45
  %v167 = vunpack.c.l.b16 %v46
  %v168 = vunpack.c.h.b16 %v46
  %v169 = vunpack.c.l.b16 %v47
  %v170 = vunpack.c.h.b16 %v47
  %v171 = vunpack.c.l.b16 %v48
  %v172 = vunpack.c.h.b16 %v48
  %v173 = vunpack.c.l.b16 %v49
  %v174 = vunpack.c.h.b16 %v49
  %v175 = vunpack.c.l.b16 %v50
  %v176 = vunpack.c.h.b16 %v50
  %v177 = vunpack.c.l.b16 %v51
  %v178 = vunpack.c.h.b16 %v51
  %v179 = vunpack.c.l.b16 %v52
  %v180 = vunpack.c.h.b16 %v52
  %v181 = vpack.c.b16 %v119, %v117
  %v182 = vpack.c.b16 %v120, %v118
  %v183 = vpack.c.b16 %v123, %v121
  %v184 = vpack.c.b16 %v124, %v122
  %v185 = vpack.c.b16 %v127, %v125
  %v186 = vpack.c.b16 %v128, %v126
  %v187 = vpack.c.b16 %v131, %v129
  %v188 = vpack.c.b16 %v132, %v130
  %v189 = vpack.c.b16 %v135, %v133
  %v190 = vpack.c.b16 %v136, %v134
  %v191 = vpack.c.b16 %v139, %v137
  %v192 = vpack.c.b16 %v140, %v138
  %v193 = vpack.c.b16 %v143, %v141
  %v194 = vpack.c.b16 %v144, %v142
  %v195 = vpack.c.b16 %v147, %v145
  %v196 = vpack.c.b16 %v148, %v146
  %v197 = vpack.c.b16 %v151, %v149
  %v198 = vpack.c.b16 %v152, %v150
  %v199 = vpack.c.b16 %v155, %v153
  %v200 = vpack.c.b16 %v156, %v154
  %v201 = vpack.c.b16 %v159, %v157
  %v202 = vpack.c.b16 %v160, %v158
  %v203 = vpack.c.b16 %v163, %v161
  %v204 = vpack.c.b16 %v164, %v162
  %v205 = vpack.c.b16 %v167, %v165
  %v206 = vpack.c.b16 %v168, %v166
  %v207 = vpack.c.b16 %v171, %v169
  %v208 = vpack.c.b16 %v172, %v170
  %v209 = vpack.c.b16 %v175, %v173
  %v210 = vpack.c.b16 %v176, %v174
  %v211 = vpack.c.b16 %v179, %v177
  %v212 = vpack.c.b16 %v180, %v178
  %245 = vmatprep.subr.bf16.mxu0 %v182
  %246 = vmatpush1.bf16.msra.mxu0 %v181
  %247 = vmatprep.subr.bf16.mxu0 %v184
  %248 = vmatpush1.bf16.msra.mxu0 %v183
  %249 = vmatprep.subr.bf16.mxu0 %v186
  %250 = vmatpush1.bf16.msra.mxu0 %v185
  %251 = vmatprep.subr.bf16.mxu0 %v188
  %252 = vmatpush1.bf16.msra.mxu0 %v187
  %253 = vmatprep.subr.bf16.mxu0 %v190
  %254 = vmatpush1.bf16.msra.mxu0 %v189
  %255 = vmatprep.subr.bf16.mxu0 %v192
  %256 = vmatpush1.bf16.msra.mxu0 %v191
  %257 = vmatprep.subr.bf16.mxu0 %v194
  %258 = vmatpush1.bf16.msra.mxu0 %v193
  %259 = vmatprep.subr.bf16.mxu0 %v196
  %260 = vmatpush1.bf16.msra.mxu0 %v195
  %261 = vmatprep.subr.bf16.mxu0 %v198
  %262 = vmatpush1.bf16.msra.mxu0 %v197
  %263 = vmatprep.subr.bf16.mxu0 %v200
  %264 = vmatpush1.bf16.msra.mxu0 %v199
  %265 = vmatprep.subr.bf16.mxu0 %v202
  %266 = vmatpush1.bf16.msra.mxu0 %v201
  %267 = vmatprep.subr.bf16.mxu0 %v204
  %268 = vmatpush1.bf16.msra.mxu0 %v203
  %269 = vmatprep.subr.bf16.mxu0 %v206
  %270 = vmatpush1.bf16.msra.mxu0 %v205
  %271 = vmatprep.subr.bf16.mxu0 %v208
  %272 = vmatpush1.bf16.msra.mxu0 %v207
  %273 = vmatprep.subr.bf16.mxu0 %v210
  %274 = vmatpush1.bf16.msra.mxu0 %v209
  %275 = vmatprep.subr.bf16.mxu0 %v212
  %276 = vmatpush1.bf16.msra.mxu0 %v211
  %277 = vmatprep.mubr.bf16.mxu0 %v78
  %278 = vmatmul.mubr.bf16.gmra.mrb[0].mxu0 %v77
  %v279 = vpop.f32.mrb[0].mxu0
  %v280 = vadd.f32 %v58, %v279
  %v281 = vpop.f32.mrb[0].mxu0
  %v282 = vadd.f32 %v62, %v281
  %v283 = vpop.f32.mrb[0].mxu0
  %v284 = vadd.f32 %v58, %v283
  %v285 = vpop.f32.mrb[0].mxu0
  %v286 = vadd.f32 %v62, %v285
  %287 = vmatprep.mubr.bf16.mxu0 %v80
  %288 = vmatmul.mubr.bf16.gmra.mrb[0].mxu0 %v79
  %v289 = vpop.f32.mrb[0].mxu0
  %v290 = vadd.f32 %v58, %v289
  %v291 = vpop.f32.mrb[0].mxu0
  %v292 = vadd.f32 %v62, %v291
  %v293 = vpop.f32.mrb[0].mxu0
  %v294 = vadd.f32 %v58, %v293
  %v295 = vpop.f32.mrb[0].mxu0
  %v296 = vadd.f32 %v62, %v295
  %297 = vdwg.mxu0
  %v298 = vld [vmem:[%s3] sm:$0xff]
  %v299 = vld [vmem:[%s3 + $0x8] sm:$0xff]
  %v300 = vld [vmem:[%s3 + $0x10] sm:$0xff]
  %v301 = vld [vmem:[%s3 + $0x18] sm:$0xff]
  %v302 = vunpack.c.l.bf16 %v298
  %v303 = vunpack.c.h.bf16 %v298
  %v304 = vunpack.c.l.bf16 %v299
  %v305 = vunpack.c.h.bf16 %v299
  %v306 = vunpack.c.l.bf16 %v300
  %v307 = vunpack.c.h.bf16 %v300
  %v308 = vunpack.c.l.bf16 %v301
  %v309 = vunpack.c.h.bf16 %v301
  %v310 = vadd.f32 %v280, %v302
  %v311 = vadd.f32 %v282, %v303
  %v312 = vadd.f32 %v284, %v304
  %v313 = vadd.f32 %v286, %v305
  %v314 = vadd.f32 %v290, %v306
  %v315 = vadd.f32 %v292, %v307
  %v316 = vadd.f32 %v294, %v308
  %v317 = vadd.f32 %v296, %v309
  %v318 = vunpack.c.l.bf16 %v17
  %v319 = vunpack.c.h.bf16 %v17
  %v320 = vunpack.c.l.bf16 %v18
  %v321 = vunpack.c.h.bf16 %v18
  %v322 = vunpack.c.l.bf16 %v19
  %v323 = vunpack.c.h.bf16 %v19
  %v324 = vunpack.c.l.bf16 %v20
  %v325 = vunpack.c.h.bf16 %v20
  %v326 = vadd.f32 %v310, %v318
  %v327 = vadd.f32 %v311, %v319
  %v328 = vadd.f32 %v312, %v320
  %v329 = vadd.f32 %v313, %v321
  %v330 = vadd.f32 %v314, %v322
  %v331 = vadd.f32 %v315, %v323
  %v332 = vadd.f32 %v316, %v324
  %v333 = vadd.f32 %v317, %v325
  %v334 = vpack.c.bf16 %v328, %v326
  %v335 = vpack.c.bf16 %v329, %v327
  %v336 = vpack.c.bf16 %v332, %v330
  %v337 = vpack.c.bf16 %v333, %v331
  %v342 = vunpack.c.l.b16 %v334
  %v343 = vunpack.c.l.b16 %v335
  %v344 = vunpack.c.h.b16 %v334
  %v345 = vunpack.c.h.b16 %v335
  %v346 = vunpack.c.l.b16 %v336
  %v347 = vunpack.c.l.b16 %v337
  %v348 = vunpack.c.h.b16 %v336
  %v349 = vunpack.c.h.b16 %v337
  %v350 = vpack.c.b16 %v343, %v342
  %v351 = vpack.c.b16 %v345, %v344
  %v352 = vpack.c.b16 %v347, %v346
  %v353 = vpack.c.b16 %v349, %v348
  %358 = vst [vmem:[%s4] sm:$0xff] %v350
  %359 = vst [vmem:[%s4 + $0x8] sm:$0xff] %v351
  %360 = vst [vmem:[%s4 + $0x10] sm:$0xff] %v352
  %361 = vst [vmem:[%s4 + $0x18] sm:$0xff] %v353
  // Predicated region
  $region18: #{spnet_forward.17} parent=0 // pred_check
    _
  $region19: #{spnet_forward.17} parent=0 // pred_check_branch
    %363 = sbr.rel (0) target = $region21
  $region20: #{spnet_forward.17} parent=0 // pred_region
    _
  $region21: #{spnet_forward.17} parent=0 // pred_fallthru
    _
  // Predicated region
  $region22: #{spnet_forward.17} parent=0 // pred_check
    _
  $region23: #{spnet_forward.17} parent=0 // pred_check_branch
    %365 = sbr.rel (0) target = $region25
  $region24: #{spnet_forward.17} parent=0 // pred_region
    _
  $region25: #{spnet_forward.17} parent=0 // pred_fallthru
    _

// kernel: spnet_forward.16
$region0: #{spnet_forward.16}
  #allocation0 [shape = 'u32[]', space=smem, size = 0x4, offset = 0x4, fixed_abs, tag = 'smem constant byte address 0x4 - core index']
  #allocation1 [shape = 'u32[144,128]{1,0:T(1,128)}', space=vmem, size = 0x12000, scoped, tag = 'internal scratch']
  #allocation2 [shape = 'f32[16,1]{1,0:T(8,128)}', space=vmem, size = 0x2000, scoped, tag = 'scratch operand']
  #allocation3 [shape = 'f32[16,1]{1,0:T(8,128)}', space=vmem, size = 0x2000, scoped, tag = 'scratch operand']
  #allocation4 [shape = 'f32[16,128]{1,0:T(8,128)}', space=vmem, size = 0x2000, scoped, tag = 'scratch operand']
  %s0 = inlined_call_operand.vmem [shape: bf16[2,16,128], index: 0, kind: input, shape index: {}]
  %s1 = inlined_call_operand.vmem [shape: bf16[2,128,256], index: 1, kind: input, shape index: {}]
  %s2 = inlined_call_operand.vmem [shape: bf16[128,256], index: 2, kind: input, shape index: {}]
  %s3 = inlined_call_operand.vmem [shape: bf16[2,16,256], index: 3, kind: output, shape index: {}]
  %s4 = sld [smem:[#allocation0]]
  $region53: #{spnet_forward.16} parent=0
    _
  %s6 = ssub.s32 1, %s4
  %s7 = scalar_select 0, %s6, %s4
  loop: start=0, step=1, limit=4
  $region2: #{spnet_forward.16} parent=0 // loop_pre_header
    _
  $region3: #{spnet_forward.16} parent=0 // loop_header
    %s9 = sphi 0, %s13
    %p10 = scmp.ge.s32.totalorder %s9, 4
    %s16 = sphi 0, %s35
    %s17 = sphi 0, %s31
    %s18 = sphi 0, %s27
    %s19 = sphi 0, %s16
    %s20 = sphi 0, %s17
    %s21 = sphi 0, %s18
    %s22 = sphi 0, %s19
    %s23 = sphi 0, %s20
    %s24 = sphi 0, %s21
    %s40 = sphi 0, %s42
    %s43 = sphi 0, %s40
    %s44 = sphi 0, %s43
    %s60 = sphi 0, %s44
    %s68 = sphi 0, %s70
    %s71 = sphi 0, %s68
    %s72 = sphi 0, %s71
    %s88 = sphi 0, %s72
    %s92 = sphi 0, %s92
    %s94 = sphi 0, %s92
    %s95 = sphi 0, %s94
    %s109 = sphi 0, %s95
    %s117 = sphi 0, %s119
    %s120 = sphi 0, %s117
    %s121 = sphi 0, %s120
    %s137 = sphi 0, %s121
  $region4: #{spnet_forward.16} parent=0 // loop_header_branch
    %12 = sbr.rel (%p10) target = $region8
  $region5: #{spnet_forward.16} parent=0 // loop_body
    %s14 = ssub.s32 %s9, 1
    %s15 = ssub.s32 %s9, 2
    %s25 = sadd.s32 1, %s18
    %p26 = scmp.ge.s32.totalorder %s25, 1
    %s27 = scalar_select %p26, 0, %s25
    %s28 = sadd.s32 1, %s17
    %s29 = scalar_select %p26, %s28, %s17
    %p30 = scmp.ge.s32.totalorder %s29, 1
    %s31 = scalar_select %p30, 0, %s29
    %s32 = sadd.s32 1, %s16
    %s33 = scalar_select %p30, %s32, %s16
    %p34 = scmp.ge.s32.totalorder %s33, 2
    %s35 = scalar_select %p34, 0, %s33
    %s36 = ssub.s32 %s16, %s35
    %s37 = ssub.s32 %s17, %s31
    %s38 = sor.u32 %s36, %s37
    %p39 = scmp.eq.s32.totalorder %s38, 0
    %s41 = sadd.s32 %s40, 1
    %s42 = scalar_select %p39, %s40, %s41
    %p45 = pneg %p39
    %p46 = scmp.eq.s32.totalorder %s9, 1
    %p47 = por %p45, %p46
    %p48 = scmp.ne.s32.totalorder %s40, %s43
    %p49 = scmp.eq.s32.totalorder %s9, 0
    %p50 = por %p48, %p49
    %p51 = scmp.ne.s32.totalorder %s40, %s43
    %p52 = scmp.eq.s32.totalorder %s14, 1
    %p53 = por %p51, %p52
    %p54 = scmp.ne.s32.totalorder %s43, %s44
    %p55 = scmp.eq.s32.totalorder %s14, 0
    %p56 = por %p54, %p55
    %p57 = scmp.ne.s32.totalorder %s43, %s44
    %p58 = scmp.eq.s32.totalorder %s15, 1
    %p59 = por %p57, %p58
    %p61 = scmp.ne.s32.totalorder %s44, %s60
    %p62 = scmp.eq.s32.totalorder %s15, 0
    %p63 = por %p61, %p62
    %s64 = ssub.s32 %s16, %s35
    %s65 = ssub.s32 %s18, %s27
    %s66 = sor.u32 %s64, %s65
    %p67 = scmp.eq.s32.totalorder %s66, 0
    %s69 = sadd.s32 %s68, 1
    %s70 = scalar_select %p67, %s68, %s69
    %p73 = pneg %p67
    %p74 = scmp.eq.s32.totalorder %s9, 1
    %p75 = por %p73, %p74
    %p76 = scmp.ne.s32.totalorder %s68, %s71
    %p77 = scmp.eq.s32.totalorder %s9, 0
    %p78 = por %p76, %p77
    %p79 = scmp.ne.s32.totalorder %s68, %s71
    %p80 = scmp.eq.s32.totalorder %s14, 1
    %p81 = por %p79, %p80
    %p82 = scmp.ne.s32.totalorder %s71, %s72
    %p83 = scmp.eq.s32.totalorder %s14, 0
    %p84 = por %p82, %p83
    %p85 = scmp.ne.s32.totalorder %s71, %s72
    %p86 = scmp.eq.s32.totalorder %s15, 1
    %p87 = por %p85, %p86
    %p89 = scmp.ne.s32.totalorder %s72, %s88
    %p90 = scmp.eq.s32.totalorder %s15, 0
    %p91 = por %p89, %p90
    %s93 = sadd.s32 %s92, 1
    %p96 = scmp.eq.s32.totalorder %s9, 1
    %p97 = scmp.ne.s32.totalorder %s92, %s94
    %p98 = scmp.eq.s32.totalorder %s9, 0
    %p99 = por %p97, %p98
    %p100 = scmp.ne.s32.totalorder %s92, %s94
    %p101 = scmp.eq.s32.totalorder %s14, 1
    %p102 = por %p100, %p101
    %p103 = scmp.ne.s32.totalorder %s94, %s95
    %p104 = scmp.eq.s32.totalorder %s14, 0
    %p105 = por %p103, %p104
    %p106 = scmp.ne.s32.totalorder %s94, %s95
    %p107 = scmp.eq.s32.totalorder %s15, 1
    %p108 = por %p106, %p107
    %p110 = scmp.ne.s32.totalorder %s95, %s109
    %p111 = scmp.eq.s32.totalorder %s15, 0
    %p112 = por %p110, %p111
    %s113 = ssub.s32 %s16, %s35
    %s114 = ssub.s32 %s17, %s31
    %s115 = sor.u32 %s113, %s114
    %p116 = scmp.eq.s32.totalorder %s115, 0
    %s118 = sadd.s32 %s117, 1
    %s119 = scalar_select %p116, %s117, %s118
    %p122 = pneg %p116
    %p123 = scmp.eq.s32.totalorder %s9, 1
    %p124 = por %p122, %p123
    %p125 = scmp.ne.s32.totalorder %s117, %s120
    %p126 = scmp.eq.s32.totalorder %s9, 0
    %p127 = por %p125, %p126
    %p128 = scmp.ne.s32.totalorder %s117, %s120
    %p129 = scmp.eq.s32.totalorder %s14, 1
    %p130 = por %p128, %p129
    %p131 = scmp.ne.s32.totalorder %s120, %s121
    %p132 = scmp.eq.s32.totalorder %s14, 0
    %p133 = por %p131, %p132
    %p134 = scmp.ne.s32.totalorder %s120, %s121
    %p135 = scmp.eq.s32.totalorder %s15, 1
    %p136 = por %p134, %p135
    %p138 = scmp.ne.s32.totalorder %s121, %s137
    %p139 = scmp.eq.s32.totalorder %s15, 0
    %p140 = por %p138, %p139
    %p141 = scmp.le.s32.totalorder 1, %s9
    %p142 = scmp.lt.s32.totalorder %s9, 3
    %p143 = pnand %p141, %p142
    %p144 = pneg %p143
    // Predicated region
    $region9: #{spnet_forward.16} parent=5 // pred_check
      _
    $region10: #{spnet_forward.16} parent=5 // pred_check_branch
      %146 = sbr.rel (%p143) target = $region12
    $region11: #{spnet_forward.16} parent=5 // pred_region
      %s147 = ssub.s32 %s9, 1
      // Predicated region
      $region13: #{spnet_forward.16} parent=11 // pred_check
        %p148 = pneg %p105
      $region14: #{spnet_forward.16} parent=11 // pred_check_branch
        %150 = sbr.rel (%p148) target = $region16
      $region15: #{spnet_forward.16} parent=11 // pred_region
        _
      $region16: #{spnet_forward.16} parent=11 // pred_fallthru
        _
    $region12: #{spnet_forward.16} parent=5 // pred_fallthru
      _
    %p151 = scmp.lt.s32.totalorder %s9, 2
    // Predicated region
    $region17: #{spnet_forward.16} parent=5 // pred_check
      %p152 = pneg %p151
    $region18: #{spnet_forward.16} parent=5 // pred_check_branch
      %154 = sbr.rel (%p152) target = $region20
    $region19: #{spnet_forward.16} parent=5 // pred_region
      // Predicated region
      $region21: #{spnet_forward.16} parent=19 // pred_check
        %p155 = pneg %p50
      $region22: #{spnet_forward.16} parent=19 // pred_check_branch
        %157 = sbr.rel (%p155) target = $region24
      $region23: #{spnet_forward.16} parent=19 // pred_region
        %s158 = smul.u32 2, %s17
        %p159 = scmp.lt.s32.totalorder %s16, 1
        %s160 = scalar_select %p159, %s16, 1
        %p161 = scmp.lt.s32.totalorder %s158, 1
        %s162 = scalar_select %p161, %s158, 1
        %s163 = smul.addr %s160, 2
        %s164 = sadd.s32 %s162, %s163
        %s165 = smul.addr %s164, 4
        %s166 = scalar_lea.vmem %s0, %s165
        %s167 = smul.u32 2, %s17
      $region24: #{spnet_forward.16} parent=19 // pred_fallthru
        _
      // Predicated region
      $region25: #{spnet_forward.16} parent=19 // pred_check
        %p168 = pneg %p78
      $region26: #{spnet_forward.16} parent=19 // pred_check_branch
        %170 = sbr.rel (%p168) target = $region28
      $region27: #{spnet_forward.16} parent=19 // pred_region
        %s171 = smul.u32 16, %s18
        %p172 = scmp.lt.s32.totalorder %s16, 1
        %s173 = scalar_select %p172, %s16, 1
        %p174 = scmp.lt.s32.totalorder %s171, 15
        %s175 = scalar_select %p174, %s171, 15
        %s176 = smul.addr %s175, 2
        %s177 = smul.addr %s173, 32
        %s178 = sadd.s32 %s176, %s177
        %s179 = smul.addr %s178, 4
        %s180 = scalar_lea.vmem %s1, %s179
        %s181 = smul.u32 16, %s18
      $region28: #{spnet_forward.16} parent=19 // pred_fallthru
        _
    $region20: #{spnet_forward.16} parent=5 // pred_fallthru
      _
    %p182 = scmp.le.s32.totalorder 1, %s9
    %p183 = scmp.lt.s32.totalorder %s9, 3
    %p184 = pnand %p182, %p183
    %p185 = pneg %p184
    // Predicated region
    $region29: #{spnet_forward.16} parent=5 // pred_check
      _
    $region30: #{spnet_forward.16} parent=5 // pred_check_branch
      %187 = sbr.rel (%p184) target = $region32
    $region31: #{spnet_forward.16} parent=5 // pred_region
      %s188 = ssub.s32 %s9, 1
      %s189 = smul.u32 2, %s20
      %p190 = scmp.lt.s32.totalorder %s19, 1
      %s191 = scalar_select %p190, %s19, 1
      %p192 = scmp.lt.s32.totalorder %s189, 1
      %s193 = scalar_select %p192, %s189, 1
      %s194 = smul.addr %s191, 2
      %s195 = sadd.s32 %s193, %s194
      %s196 = smul.addr %s195, 4
      %s197 = scalar_lea.vmem %s0, %s196
      %p198 = pneg %p56
      %p199 = pneg %p53
      %s200 = smul.u32 16, %s21
      %p201 = scmp.lt.s32.totalorder %s19, 1
      %s202 = scalar_select %p201, %s19, 1
      %p203 = scmp.lt.s32.totalorder %s200, 15
      %s204 = scalar_select %p203, %s200, 15
      %s205 = smul.addr %s204, 2
      %s206 = smul.addr %s202, 32
      %s207 = sadd.s32 %s205, %s206
      %s208 = smul.addr %s207, 4
      %s209 = scalar_lea.vmem %s1, %s208
      %p210 = pneg %p84
      %p211 = pneg %p81
      %p212 = pneg %p105
      %p213 = pneg %p102
      %p214 = pneg %p133
      %p215 = pneg %p130
      %s216 = smul.u32 2, %s20
      %p217 = scmp.lt.s32.totalorder %s19, 1
      %s218 = scalar_select %p217, %s19, 1
      %p219 = scmp.lt.s32.totalorder %s216, 1
      %s220 = scalar_select %p219, %s216, 1
      %s221 = smul.addr %s220, 2
      %s222 = smul.addr %s218, 4
      %s223 = sadd.s32 %s221, %s222
      %s224 = smul.addr %s223, 4
      %s225 = scalar_lea.vmem %s3, %s224
      %s226 = smul.u32 2, %s20
      %p227 = scmp.lt.s32.totalorder %s19, 1
      %s228 = scalar_select %p227, %s19, 1
      %p229 = scmp.lt.s32.totalorder %s226, 1
      %s230 = scalar_select %p229, %s226, 1
      %s231 = smul.addr %s228, 2
      %s232 = sadd.s32 %s230, %s231
      %s233 = smul.addr %s232, 4
      %s234 = scalar_lea.vmem %s0, %s233
      %s235 = smul.u32 2, %s20
      %s236 = smul.u32 16, %s21
      %p237 = scmp.lt.s32.totalorder %s19, 1
      %s238 = scalar_select %p237, %s19, 1
      %p239 = scmp.lt.s32.totalorder %s236, 15
      %s240 = scalar_select %p239, %s236, 15
      %s241 = smul.addr %s240, 2
      %s242 = smul.addr %s238, 32
      %s243 = sadd.s32 %s241, %s242
      %s244 = smul.addr %s243, 4
      %s245 = scalar_lea.vmem %s1, %s244
      %s246 = smul.u32 16, %s21
      %s247 = smul.u32 2, %s20
      %p248 = scmp.lt.s32.totalorder %s19, 1
      %s249 = scalar_select %p248, %s19, 1
      %p250 = scmp.lt.s32.totalorder %s247, 1
      %s251 = scalar_select %p250, %s247, 1
      %s252 = smul.addr %s251, 2
      %s253 = smul.addr %s249, 4
      %s254 = sadd.s32 %s252, %s253
      %s255 = smul.addr %s254, 4
      %s256 = scalar_lea.vmem %s3, %s255
      %s257 = smul.u32 2, %s20
      %p259 = scmp.eq.s32.totalorder %s21, 0
      // Predicated region
      $region33: #{spnet_forward.16} parent=31 // pred_check
        %p260 = pneg %p259
      $region34: #{spnet_forward.16} parent=31 // pred_check_branch
        %262 = sbr.rel (%p260) target = $region36
      $region35: #{spnet_forward.16} parent=31 // pred_region
        %vm263 = vcmask 7168
        %264 = vst.msk [vmem:[#allocation2] sm:$0xff] %vm263, -1e+30
        %265 = vst.msk [vmem:[#allocation2 + $0x8] sm:$0xff] %vm263, -1e+30
        %266 = vst.msk [vmem:[#allocation3] sm:$0xff] %vm263, 0.0
        %267 = vst.msk [vmem:[#allocation3 + $0x8] sm:$0xff] %vm263, 0.0
        %268 = vst [vmem:[#allocation4] sm:$0xff] 0.0
        %269 = vst [vmem:[#allocation4 + $0x8] sm:$0xff] 0.0
      $region36: #{spnet_forward.16} parent=31 // pred_fallthru
        _
      %v270 = vld [vmem:[%s234] sm:$0xf]
      %v271 = vld [vmem:[%s234 + $0x4] sm:$0xf]
      %v272 = vld [vmem:[%s245] sm:$0xff]
      %v273 = vld [vmem:[%s245 + $0x8] sm:$0xff]
      %v274 = vld [vmem:[%s245 + $0x10] sm:$0xff]
      %v275 = vld [vmem:[%s245 + $0x18] sm:$0xff]
      %v276 = vld [vmem:[%s245 + $0x20] sm:$0xff]
      %v277 = vld [vmem:[%s245 + $0x28] sm:$0xff]
      %v278 = vld [vmem:[%s245 + $0x30] sm:$0xff]
      %v279 = vld [vmem:[%s245 + $0x38] sm:$0xff]
      %v280 = vld [vmem:[%s245 + $0x40] sm:$0xff]
      %v281 = vld [vmem:[%s245 + $0x48] sm:$0xff]
      %v282 = vld [vmem:[%s245 + $0x50] sm:$0xff]
      %v283 = vld [vmem:[%s245 + $0x58] sm:$0xff]
      %v284 = vld [vmem:[%s245 + $0x60] sm:$0xff]
      %v285 = vld [vmem:[%s245 + $0x68] sm:$0xff]
      %v286 = vld [vmem:[%s245 + $0x70] sm:$0xff]
      %v287 = vld [vmem:[%s245 + $0x78] sm:$0xff]
      %v290 = vunpack.c.l.b16 %v270
      %v291 = vunpack.c.l.b16 %v271
      %v292 = vpack.c.b16 %v291, %v290
      %v310 = vunpack.c.l.b16 %v272
      %v311 = vunpack.c.l.b16 %v273
      %v312 = vunpack.c.l.b16 %v274
      %v313 = vunpack.c.l.b16 %v275
      %v314 = vunpack.c.l.b16 %v276
      %v315 = vunpack.c.l.b16 %v277
      %v316 = vunpack.c.l.b16 %v278
      %v317 = vunpack.c.l.b16 %v279
      %v318 = vunpack.c.l.b16 %v280
      %v319 = vunpack.c.l.b16 %v281
      %v320 = vunpack.c.l.b16 %v282
      %v321 = vunpack.c.l.b16 %v283
      %v322 = vunpack.c.l.b16 %v284
      %v323 = vunpack.c.l.b16 %v285
      %v324 = vunpack.c.l.b16 %v286
      %v325 = vunpack.c.l.b16 %v287
      %v326 = vpack.c.b16 %v311, %v310
      %v327 = vpack.c.b16 %v313, %v312
      %v328 = vpack.c.b16 %v315, %v314
      %v329 = vpack.c.b16 %v317, %v316
      %v330 = vpack.c.b16 %v319, %v318
      %v331 = vpack.c.b16 %v321, %v320
      %v332 = vpack.c.b16 %v323, %v322
      %v333 = vpack.c.b16 %v325, %v324
      %342 = vmatprep.subr.bf16.mxu0 0
      %343 = vmatpush1.bf16.xpose.msra.mxu0 %v326
      %344 = vmatprep.subr.bf16.mxu0 0
      %345 = vmatpush1.bf16.xpose.msra.mxu0 %v327
      %346 = vmatprep.subr.bf16.mxu0 0
      %347 = vmatpush1.bf16.xpose.msra.mxu0 %v328
      %348 = vmatprep.subr.bf16.mxu0 0
      %349 = vmatpush1.bf16.xpose.msra.mxu0 %v329
      %350 = vmatprep.subr.bf16.mxu0 0
      %351 = vmatpush1.bf16.xpose.msra.mxu0 %v330
      %352 = vmatprep.subr.bf16.mxu0 0
      %353 = vmatpush1.bf16.xpose.msra.mxu0 %v331
      %354 = vmatprep.subr.bf16.mxu0 0
      %355 = vmatpush1.bf16.xpose.msra.mxu0 %v332
      %356 = vmatprep.subr.bf16.mxu0 0
      %357 = vmatpush1.bf16.xpose.msra.mxu0 %v333
      %358 = vmatprep.subr.bf16.mxu0 0
      %359 = vmatpush1.bf16.xpose.msra.mxu0 0
      %360 = vmatprep.subr.bf16.mxu0 0
      %361 = vmatpush1.bf16.xpose.msra.mxu0 0
      %362 = vmatprep.subr.bf16.mxu0 0
      %363 = vmatpush1.bf16.xpose.msra.mxu0 0
      %364 = vmatprep.subr.bf16.mxu0 0
      %365 = vmatpush1.bf16.xpose.msra.mxu0 0
      %366 = vmatprep.subr.bf16.mxu0 0
      %367 = vmatpush1.bf16.xpose.msra.mxu0 0
      %368 = vmatprep.subr.bf16.mxu0 0
      %369 = vmatpush1.bf16.xpose.msra.mxu0 0
      %370 = vmatprep.subr.bf16.mxu0 0
      %371 = vmatpush1.bf16.xpose.msra.mxu0 0
      %372 = vmatprep.subr.bf16.mxu0 0
      %373 = vmatpush1.bf16.xpose.msra.mxu0 0
      %374 = vmatprep.mubr.bf16.mxu0 0
      %375 = vmatmul.mubr.bf16.gmra.mrb[0].mxu0 %v292
      %v376 = vpop.f32.mrb[0].mxu0
      %v377 = vadd.f32 0.0, %v376
      %v378 = vpop.f32.mrb[0].mxu0
      %v379 = vpop.f32.mrb[0].mxu0
      %v380 = vadd.f32 0.0, %v379
      %v381 = vpop.f32.mrb[0].mxu0
      %382 = vdwg.mxu0
      %s383 = smul.u32 %s21, 128
      %v384 = vlaneseq
      %v385 = vand.u32 %v384, 127
      %v386 = vstv %s383
      %v387 = vadd.s32 %v386, %v385
      %vm388 = vcmp.lt.s32.totalorder %v387, 32
      %v389 = vsel %vm388, %v377, -1e+30
      %v390 = vsel %vm388, %v380, -1e+30
      %v391 = vld [vmem:[#allocation2] sm:$0xff]
      %v392 = vld [vmem:[#allocation2 + $0x8] sm:$0xff]
      %393 = vmax.xlane.f32.xlu0 %v389
      %v394 = vpop.xlane.xlu0 %393
      %395 = vmax.xlane.f32.xlu0 %v390
      %v396 = vpop.xlane.xlu0 %395
      %v397 = vmax.f32 %v391, %v394
      %v398 = vmax.f32 %v392, %v396
      %v399 = vsub.f32 %v391, %v397
      %v400 = vsub.f32 %v392, %v398
      %v401 = vmul.f32 %v399, 1.442695
      %v402 = vpow.pop %v401
      %v403 = vmul.f32 %v400, 1.442695
      %v404 = vpow.pop %v403
      %406 = vset.pattern.permute.xlu0 0
      %407 = vperm.xlu0 %406, %v397
      %v408 = vpop.permute.xlu0 %407
      %411 = vset.pattern.permute.xlu0 0
      %412 = vperm.xlu0 %411, %v398
      %v413 = vpop.permute.xlu0 %412
      %v415 = vsub.f32 %v389, %v408
      %v416 = vsub.f32 %v390, %v413
      %v417 = vmul.f32 %v415, 1.442695
      %v418 = vpow.pop %v417
      %v419 = vmul.f32 %v416, 1.442695
      %v420 = vpow.pop %v419
      %v421 = vld [vmem:[#allocation3] sm:$0xff]
      %v422 = vld [vmem:[#allocation3 + $0x8] sm:$0xff]
      %v423 = vmul.f32 %v402, %v421
      %v424 = vmul.f32 %v404, %v422
      %425 = vadd.xlane.f32.xlu0 %v418
      %v426 = vpop.xlane.xlu0 %425
      %427 = vadd.xlane.f32.xlu0 %v420
      %v428 = vpop.xlane.xlu0 %427
      %v429 = vadd.f32 %v423, %v426
      %v430 = vadd.f32 %v424, %v428
      %vm431 = vcmask 7168
      %432 = vst.msk [vmem:[#allocation3] sm:$0xff] %vm431, %v429
      %433 = vst.msk [vmem:[#allocation3 + $0x8] sm:$0xff] %vm431, %v430
      %v434 = vld [vmem:[#allocation4] sm:$0xff]
      %v435 = vld [vmem:[#allocation4 + $0x8] sm:$0xff]
      %437 = vset.pattern.permute.xlu0 0
      %438 = vperm.xlu0 %437, %v402
      %v439 = vpop.permute.xlu0 %438
      %442 = vset.pattern.permute.xlu0 0
      %443 = vperm.xlu0 %442, %v404
      %v444 = vpop.permute.xlu0 %443
      %v446 = vmul.f32 %v439, %v434
      %v447 = vmul.f32 %v444, %v435
      %v448 = vpack.c.bf16 %v420, %v418
      %v449 = vunpack.c.h.b16 %v272
      %v450 = vunpack.c.h.b16 %v273
      %v451 = vunpack.c.h.b16 %v274
      %v452 = vunpack.c.h.b16 %v275
      %v453 = vunpack.c.h.b16 %v276
      %v454 = vunpack.c.h.b16 %v277
      %v455 = vunpack.c.h.b16 %v278
      %v456 = vunpack.c.h.b16 %v279
      %v457 = vunpack.c.h.b16 %v280
      %v458 = vunpack.c.h.b16 %v281
      %v459 = vunpack.c.h.b16 %v282
      %v460 = vunpack.c.h.b16 %v283
      %v461 = vunpack.c.h.b16 %v284
      %v462 = vunpack.c.h.b16 %v285
      %v463 = vunpack.c.h.b16 %v286
      %v464 = vunpack.c.h.b16 %v287
      %v465 = vpack.c.b16 %v450, %v449
      %v466 = vpack.c.b16 %v452, %v451
      %v467 = vpack.c.b16 %v454, %v453
      %v468 = vpack.c.b16 %v456, %v455
      %v469 = vpack.c.b16 %v458, %v457
      %v470 = vpack.c.b16 %v460, %v459
      %v471 = vpack.c.b16 %v462, %v461
      %v472 = vpack.c.b16 %v464, %v463
      %481 = vmatprep.subr.bf16.mxu0 0
      %482 = vmatpush1.bf16.msra.mxu0 %v465
      %483 = vmatprep.subr.bf16.mxu0 0
      %484 = vmatpush1.bf16.msra.mxu0 %v466
      %485 = vmatprep.subr.bf16.mxu0 0
      %486 = vmatpush1.bf16.msra.mxu0 %v467
      %487 = vmatprep.subr.bf16.mxu0 0
      %488 = vmatpush1.bf16.msra.mxu0 %v468
      %489 = vmatprep.subr.bf16.mxu0 0
      %490 = vmatpush1.bf16.msra.mxu0 %v469
      %491 = vmatprep.subr.bf16.mxu0 0
      %492 = vmatpush1.bf16.msra.mxu0 %v470
      %493 = vmatprep.subr.bf16.mxu0 0
      %494 = vmatpush1.bf16.msra.mxu0 %v471
      %495 = vmatprep.subr.bf16.mxu0 0
      %496 = vmatpush1.bf16.msra.mxu0 %v472
      %497 = vmatprep.subr.bf16.mxu0 0
      %498 = vmatpush1.bf16.msra.mxu0 0
      %499 = vmatprep.subr.bf16.mxu0 0
      %500 = vmatpush1.bf16.msra.mxu0 0
      %501 = vmatprep.subr.bf16.mxu0 0
      %502 = vmatpush1.bf16.msra.mxu0 0
      %503 = vmatprep.subr.bf16.mxu0 0
      %504 = vmatpush1.bf16.msra.mxu0 0
      %505 = vmatprep.subr.bf16.mxu0 0
      %506 = vmatpush1.bf16.msra.mxu0 0
      %507 = vmatprep.subr.bf16.mxu0 0
      %508 = vmatpush1.bf16.msra.mxu0 0
      %509 = vmatprep.subr.bf16.mxu0 0
      %510 = vmatpush1.bf16.msra.mxu0 0
      %511 = vmatprep.subr.bf16.mxu0 0
      %512 = vmatpush1.bf16.msra.mxu0 0
      %513 = vmatprep.mubr.bf16.mxu0 0
      %514 = vmatmul.mubr.bf16.gmra.mrb[0].mxu0 %v448
      %v515 = vpop.f32.mrb[0].mxu0
      %v516 = vadd.f32 0.0, %v515
      %v517 = vpop.f32.mrb[0].mxu0
      %v518 = vpop.f32.mrb[0].mxu0
      %v519 = vadd.f32 0.0, %v518
      %v520 = vpop.f32.mrb[0].mxu0
      %521 = vdwg.mxu0
      %v522 = vadd.f32 %v446, %v516
      %v523 = vadd.f32 %v447, %v519
      %524 = vst [vmem:[#allocation4] sm:$0xff] %v522
      %525 = vst [vmem:[#allocation4 + $0x8] sm:$0xff] %v523
      %526 = vst.msk [vmem:[#allocation2] sm:$0xff] %vm431, %v397
      %527 = vst.msk [vmem:[#allocation2 + $0x8] sm:$0xff] %vm431, %v398
      // Predicated region
      $region37: #{spnet_forward.16} parent=31 // pred_check
        %p528 = pneg %p259
      $region38: #{spnet_forward.16} parent=31 // pred_check_branch
        %530 = sbr.rel (%p528) target = $region40
      $region39: #{spnet_forward.16} parent=31 // pred_region
        %v531 = vld [vmem:[#allocation4] sm:$0xff]
        %v532 = vld [vmem:[#allocation4 + $0x8] sm:$0xff]
        %v533 = vld [vmem:[#allocation3] sm:$0xff]
        %v534 = vld [vmem:[#allocation3 + $0x8] sm:$0xff]
        %v535 = vrcp.pop %v533
        %v536 = vrcp.pop %v534
        %538 = vset.pattern.permute.xlu0 0
        %539 = vperm.xlu0 %538, %v535
        %v540 = vpop.permute.xlu0 %539
        %543 = vset.pattern.permute.xlu0 0
        %544 = vperm.xlu0 %543, %v536
        %v545 = vpop.permute.xlu0 %544
        %v547 = vmul.f32 %v531, %v540
        %v548 = vmul.f32 %v532, %v545
        %v549 = vpack.c.bf16 %v548, %v547
        %v550 = vld [vmem:[%s2] sm:$0xff]
        %v551 = vld [vmem:[%s2 + $0x8] sm:$0xff]
        %v552 = vld [vmem:[%s2 + $0x10] sm:$0xff]
        %v553 = vld [vmem:[%s2 + $0x18] sm:$0xff]
        %v554 = vld [vmem:[%s2 + $0x20] sm:$0xff]
        %v555 = vld [vmem:[%s2 + $0x28] sm:$0xff]
        %v556 = vld [vmem:[%s2 + $0x30] sm:$0xff]
        %v557 = vld [vmem:[%s2 + $0x38] sm:$0xff]
        %v558 = vld [vmem:[%s2 + $0x40] sm:$0xff]
        %v559 = vld [vmem:[%s2 + $0x48] sm:$0xff]
        %v560 = vld [vmem:[%s2 + $0x50] sm:$0xff]
        %v561 = vld [vmem:[%s2 + $0x58] sm:$0xff]
        %v562 = vld [vmem:[%s2 + $0x60] sm:$0xff]
        %v563 = vld [vmem:[%s2 + $0x68] sm:$0xff]
        %v564 = vld [vmem:[%s2 + $0x70] sm:$0xff]
        %v565 = vld [vmem:[%s2 + $0x78] sm:$0xff]
        %v582 = vunpack.c.l.b16 %v550
        %v583 = vunpack.c.h.b16 %v550
        %v584 = vunpack.c.l.b16 %v551
        %v585 = vunpack.c.h.b16 %v551
        %v586 = vunpack.c.l.b16 %v552
        %v587 = vunpack.c.h.b16 %v552
        %v588 = vunpack.c.l.b16 %v553
        %v589 = vunpack.c.h.b16 %v553
        %v590 = vunpack.c.l.b16 %v554
        %v591 = vunpack.c.h.b16 %v554
        %v592 = vunpack.c.l.b16 %v555
        %v593 = vunpack.c.h.b16 %v555
        %v594 = vunpack.c.l.b16 %v556
        %v595 = vunpack.c.h.b16 %v556
        %v596 = vunpack.c.l.b16 %v557
        %v597 = vunpack.c.h.b16 %v557
        %v598 = vunpack.c.l.b16 %v558
        %v599 = vunpack.c.h.b16 %v558
        %v600 = vunpack.c.l.b16 %v559
        %v601 = vunpack.c.h.b16 %v559
        %v602 = vunpack.c.l.b16 %v560
        %v603 = vunpack.c.h.b16 %v560
        %v604 = vunpack.c.l.b16 %v561
        %v605 = vunpack.c.h.b16 %v561
        %v606 = vunpack.c.l.b16 %v562
        %v607 = vunpack.c.h.b16 %v562
        %v608 = vunpack.c.l.b16 %v563
        %v609 = vunpack.c.h.b16 %v563
        %v610 = vunpack.c.l.b16 %v564
        %v611 = vunpack.c.h.b16 %v564
        %v612 = vunpack.c.l.b16 %v565
        %v613 = vunpack.c.h.b16 %v565
        %v614 = vpack.c.b16 %v584, %v582
        %v615 = vpack.c.b16 %v585, %v583
        %v616 = vpack.c.b16 %v588, %v586
        %v617 = vpack.c.b16 %v589, %v587
        %v618 = vpack.c.b16 %v592, %v590
        %v619 = vpack.c.b16 %v593, %v591
        %v620 = vpack.c.b16 %v596, %v594
        %v621 = vpack.c.b16 %v597, %v595
        %v622 = vpack.c.b16 %v600, %v598
        %v623 = vpack.c.b16 %v601, %v599
        %v624 = vpack.c.b16 %v604, %v602
        %v625 = vpack.c.b16 %v605, %v603
        %v626 = vpack.c.b16 %v608, %v606
        %v627 = vpack.c.b16 %v609, %v607
        %v628 = vpack.c.b16 %v612, %v610
        %v629 = vpack.c.b16 %v613, %v611
        %646 = vmatprep.subr.bf16.mxu0 %v615
        %647 = vmatpush1.bf16.msra.mxu0 %v614
        %648 = vmatprep.subr.bf16.mxu0 %v617
        %649 = vmatpush1.bf16.msra.mxu0 %v616
        %650 = vmatprep.subr.bf16.mxu0 %v619
        %651 = vmatpush1.bf16.msra.mxu0 %v618
        %652 = vmatprep.subr.bf16.mxu0 %v621
        %653 = vmatpush1.bf16.msra.mxu0 %v620
        %654 = vmatprep.subr.bf16.mxu0 %v623
        %655 = vmatpush1.bf16.msra.mxu0 %v622
        %656 = vmatprep.subr.bf16.mxu0 %v625
        %657 = vmatpush1.bf16.msra.mxu0 %v624
        %658 = vmatprep.subr.bf16.mxu0 %v627
        %659 = vmatpush1.bf16.msra.mxu0 %v626
        %660 = vmatprep.subr.bf16.mxu0 %v629
        %661 = vmatpush1.bf16.msra.mxu0 %v628
        %662 = vmatprep.subr.bf16.mxu0 0
        %663 = vmatpush1.bf16.msra.mxu0 0
        %664 = vmatprep.subr.bf16.mxu0 0
        %665 = vmatpush1.bf16.msra.mxu0 0
        %666 = vmatprep.subr.bf16.mxu0 0
        %667 = vmatpush1.bf16.msra.mxu0 0
        %668 = vmatprep.subr.bf16.mxu0 0
        %669 = vmatpush1.bf16.msra.mxu0 0
        %670 = vmatprep.subr.bf16.mxu0 0
        %671 = vmatpush1.bf16.msra.mxu0 0
        %672 = vmatprep.subr.bf16.mxu0 0
        %673 = vmatpush1.bf16.msra.mxu0 0
        %674 = vmatprep.subr.bf16.mxu0 0
        %675 = vmatpush1.bf16.msra.mxu0 0
        %676 = vmatprep.subr.bf16.mxu0 0
        %677 = vmatpush1.bf16.msra.mxu0 0
        %678 = vmatprep.mubr.bf16.mxu0 0
        %679 = vmatmul.mubr.bf16.gmra.mrb[0].mxu0 %v549
        %v680 = vpop.f32.mrb[0].mxu0
        %v681 = vadd.f32 0.0, %v680
        %v682 = vpop.f32.mrb[0].mxu0
        %v683 = vadd.f32 0.0, %v682
        %v684 = vpop.f32.mrb[0].mxu0
        %v685 = vadd.f32 0.0, %v684
        %v686 = vpop.f32.mrb[0].mxu0
        %v687 = vadd.f32 0.0, %v686
        %688 = vdwg.mxu0
        %v689 = vpack.c.bf16 %v685, %v681
        %v690 = vpack.c.bf16 %v687, %v683
        %v693 = vunpack.c.l.b16 %v689
        %v694 = vunpack.c.l.b16 %v690
        %v695 = vunpack.c.h.b16 %v689
        %v696 = vunpack.c.h.b16 %v690
        %v697 = vpack.c.b16 %v694, %v693
        %v698 = vpack.c.b16 %v696, %v695
        %701 = vst [vmem:[%s256] sm:$0xff] %v697
        %702 = vst [vmem:[%s256 + $0x8] sm:$0xff] %v698
      $region40: #{spnet_forward.16} parent=31 // pred_fallthru
        _
      %s703 = smul.u32 2, %s20
      %p704 = scmp.lt.s32.totalorder %s19, 1
      %s705 = scalar_select %p704, %s19, 1
      %p706 = scmp.lt.s32.totalorder %s703, 1
      %s707 = scalar_select %p706, %s703, 1
      %s708 = smul.addr %s707, 2
      %s709 = smul.addr %s705, 4
      %s710 = sadd.s32 %s708, %s709
      %s711 = smul.addr %s710, 4
      %s712 = scalar_lea.vmem %s3, %s711
      // Predicated region
      $region41: #{spnet_forward.16} parent=31 // pred_check
        %p713 = pneg %p130
      $region42: #{spnet_forward.16} parent=31 // pred_check_branch
        %715 = sbr.rel (%p713) target = $region44
      $region43: #{spnet_forward.16} parent=31 // pred_region
        %s716 = smul.u32 2, %s20
      $region44: #{spnet_forward.16} parent=31 // pred_fallthru
        _
    $region32: #{spnet_forward.16} parent=5 // pred_fallthru
      _
    %p717 = scmp.le.s32.totalorder 2, %s9
    // Predicated region
    $region45: #{spnet_forward.16} parent=5 // pred_check
      %p718 = pneg %p717
    $region46: #{spnet_forward.16} parent=5 // pred_check_branch
      %720 = sbr.rel (%p718) target = $region48
    $region47: #{spnet_forward.16} parent=5 // pred_region
      %s721 = ssub.s32 %s9, 2
      // Predicated region
      $region49: #{spnet_forward.16} parent=47 // pred_check
        %p722 = pneg %p136
      $region50: #{spnet_forward.16} parent=47 // pred_check_branch
        %724 = sbr.rel (%p722) target = $region52
      $region51: #{spnet_forward.16} parent=47 // pred_region
        %s725 = smul.u32 2, %s23
        %p726 = scmp.lt.s32.totalorder %s22, 1
        %s727 = scalar_select %p726, %s22, 1
        %p728 = scmp.lt.s32.totalorder %s725, 1
        %s729 = scalar_select %p728, %s725, 1
        %s730 = smul.addr %s729, 2
        %s731 = smul.addr %s727, 4
        %s732 = sadd.s32 %s730, %s731
        %s733 = smul.addr %s732, 4
        %s734 = scalar_lea.vmem %s3, %s733
      $region52: #{spnet_forward.16} parent=47 // pred_fallthru
        _
    $region48: #{spnet_forward.16} parent=5 // pred_fallthru
      _
  $region6: #{spnet_forward.16} parent=0 // loop_footer
    %s13 = sadd.s32 1, %s9
  $region7: #{spnet_forward.16} parent=0 // loop_footer_branch
    %8 = sbr.rel target = $region3
  $region8: #{spnet_forward.16} parent=0 // loop_exit
    _

// kernel: spnet_forward.21
$region0: #{spnet_forward.21}
  #allocation0 [shape = 'u32[]', space=smem, size = 0x4, offset = 0x4, fixed_abs, tag = 'smem constant byte address 0x4 - core index']
  #allocation1 [shape = 'u32[144,128]{1,0:T(1,128)}', space=vmem, size = 0x12000, scoped, tag = 'internal scratch']
  %s0 = inlined_call_operand.vmem [shape: bf16[512,128], index: 0, kind: input, shape index: {}]
  %s1 = inlined_call_operand.vmem [shape: bf16[128,128], index: 1, kind: input, shape index: {}]
  %s2 = inlined_call_operand.vmem [shape: f32[1,128], index: 2, kind: input, shape index: {}]
  %s3 = inlined_call_operand.vmem [shape: f32[512,128], index: 3, kind: output, shape index: {}]
  %s4 = sld [smem:[#allocation0]]
  $region45: #{spnet_forward.21} parent=0
    _
  %s6 = ssub.s32 1, %s4
  %s7 = scalar_select 0, %s6, %s4
  loop: start=0, step=1, limit=4
  $region2: #{spnet_forward.21} parent=0 // loop_pre_header
    _
  $region3: #{spnet_forward.21} parent=0 // loop_header
    %s9 = sphi 0, %s13
    %p10 = scmp.ge.s32.totalorder %s9, 4
    %s19 = sphi 0, %s21
    %s22 = sphi 0, %s19
    %s23 = sphi 0, %s22
    %s39 = sphi 0, %s23
    %s43 = sphi 0, %s43
    %s45 = sphi 0, %s43
    %s46 = sphi 0, %s45
    %s60 = sphi 0, %s46
    %s64 = sphi 0, %s64
    %s66 = sphi 0, %s64
    %s67 = sphi 0, %s66
    %s81 = sphi 0, %s67
    %s87 = sphi 0, %s89
    %s90 = sphi 0, %s87
    %s91 = sphi 0, %s90
    %s107 = sphi 0, %s91
  $region4: #{spnet_forward.21} parent=0 // loop_header_branch
    %12 = sbr.rel (%p10) target = $region8
  $region5: #{spnet_forward.21} parent=0 // loop_body
    %s14 = ssub.s32 %s9, 1
    %s15 = ssub.s32 %s9, 2
    %s16 = sadd.s32 %s9, 1
    %s17 = ssub.s32 %s9, %s16
    %p18 = scmp.eq.s32.totalorder %s17, 0
    %s20 = sadd.s32 %s19, 1
    %s21 = scalar_select %p18, %s19, %s20
    %p24 = pneg %p18
    %p25 = scmp.eq.s32.totalorder %s9, 1
    %p26 = por %p24, %p25
    %p27 = scmp.ne.s32.totalorder %s19, %s22
    %p28 = scmp.eq.s32.totalorder %s9, 0
    %p29 = por %p27, %p28
    %p30 = scmp.ne.s32.totalorder %s19, %s22
    %p31 = scmp.eq.s32.totalorder %s14, 1
    %p32 = por %p30, %p31
    %p33 = scmp.ne.s32.totalorder %s22, %s23
    %p34 = scmp.eq.s32.totalorder %s14, 0
    %p35 = por %p33, %p34
    %p36 = scmp.ne.s32.totalorder %s22, %s23
    %p37 = scmp.eq.s32.totalorder %s15, 1
    %p38 = por %p36, %p37
    %p40 = scmp.ne.s32.totalorder %s23, %s39
    %p41 = scmp.eq.s32.totalorder %s15, 0
    %p42 = por %p40, %p41
    %s44 = sadd.s32 %s43, 1
    %p47 = scmp.eq.s32.totalorder %s9, 1
    %p48 = scmp.ne.s32.totalorder %s43, %s45
    %p49 = scmp.eq.s32.totalorder %s9, 0
    %p50 = por %p48, %p49
    %p51 = scmp.ne.s32.totalorder %s43, %s45
    %p52 = scmp.eq.s32.totalorder %s14, 1
    %p53 = por %p51, %p52
    %p54 = scmp.ne.s32.totalorder %s45, %s46
    %p55 = scmp.eq.s32.totalorder %s14, 0
    %p56 = por %p54, %p55
    %p57 = scmp.ne.s32.totalorder %s45, %s46
    %p58 = scmp.eq.s32.totalorder %s15, 1
    %p59 = por %p57, %p58
    %p61 = scmp.ne.s32.totalorder %s46, %s60
    %p62 = scmp.eq.s32.totalorder %s15, 0
    %p63 = por %p61, %p62
    %s65 = sadd.s32 %s64, 1
    %p68 = scmp.eq.s32.totalorder %s9, 1
    %p69 = scmp.ne.s32.totalorder %s64, %s66
    %p70 = scmp.eq.s32.totalorder %s9, 0
    %p71 = por %p69, %p70
    %p72 = scmp.ne.s32.totalorder %s64, %s66
    %p73 = scmp.eq.s32.totalorder %s14, 1
    %p74 = por %p72, %p73
    %p75 = scmp.ne.s32.totalorder %s66, %s67
    %p76 = scmp.eq.s32.totalorder %s14, 0
    %p77 = por %p75, %p76
    %p78 = scmp.ne.s32.totalorder %s66, %s67
    %p79 = scmp.eq.s32.totalorder %s15, 1
    %p80 = por %p78, %p79
    %p82 = scmp.ne.s32.totalorder %s67, %s81
    %p83 = scmp.eq.s32.totalorder %s15, 0
    %p84 = por %p82, %p83
    %s85 = ssub.s32 %s9, %s16
    %p86 = scmp.eq.s32.totalorder %s85, 0
    %s88 = sadd.s32 %s87, 1
    %s89 = scalar_select %p86, %s87, %s88
    %p92 = pneg %p86
    %p93 = scmp.eq.s32.totalorder %s9, 1
    %p94 = por %p92, %p93
    %p95 = scmp.ne.s32.totalorder %s87, %s90
    %p96 = scmp.eq.s32.totalorder %s9, 0
    %p97 = por %p95, %p96
    %p98 = scmp.ne.s32.totalorder %s87, %s90
    %p99 = scmp.eq.s32.totalorder %s14, 1
    %p100 = por %p98, %p99
    %p101 = scmp.ne.s32.totalorder %s90, %s91
    %p102 = scmp.eq.s32.totalorder %s14, 0
    %p103 = por %p101, %p102
    %p104 = scmp.ne.s32.totalorder %s90, %s91
    %p105 = scmp.eq.s32.totalorder %s15, 1
    %p106 = por %p104, %p105
    %p108 = scmp.ne.s32.totalorder %s91, %s107
    %p109 = scmp.eq.s32.totalorder %s15, 0
    %p110 = por %p108, %p109
    %p111 = scmp.le.s32.totalorder 1, %s9
    %p112 = scmp.lt.s32.totalorder %s9, 3
    %p113 = pnand %p111, %p112
    %p114 = pneg %p113
    // Predicated region
    $region9: #{spnet_forward.21} parent=5 // pred_check
      _
    $region10: #{spnet_forward.21} parent=5 // pred_check_branch
      %116 = sbr.rel (%p113) target = $region12
    $region11: #{spnet_forward.21} parent=5 // pred_region
      %s117 = ssub.s32 %s9, 1
      // Predicated region
      $region13: #{spnet_forward.21} parent=11 // pred_check
        %p118 = pneg %p56
      $region14: #{spnet_forward.21} parent=11 // pred_check_branch
        %120 = sbr.rel (%p118) target = $region16
      $region15: #{spnet_forward.21} parent=11 // pred_region
        _
      $region16: #{spnet_forward.21} parent=11 // pred_fallthru
        _
      // Predicated region
      $region17: #{spnet_forward.21} parent=11 // pred_check
        %p121 = pneg %p77
      $region18: #{spnet_forward.21} parent=11 // pred_check_branch
        %123 = sbr.rel (%p121) target = $region20
      $region19: #{spnet_forward.21} parent=11 // pred_region
        _
      $region20: #{spnet_forward.21} parent=11 // pred_fallthru
        _
    $region12: #{spnet_forward.21} parent=5 // pred_fallthru
      _
    %p124 = scmp.lt.s32.totalorder %s9, 2
    // Predicated region
    $region21: #{spnet_forward.21} parent=5 // pred_check
      %p125 = pneg %p124
    $region22: #{spnet_forward.21} parent=5 // pred_check_branch
      %127 = sbr.rel (%p125) target = $region24
    $region23: #{spnet_forward.21} parent=5 // pred_region
      // Predicated region
      $region25: #{spnet_forward.21} parent=23 // pred_check
        %p128 = pneg %p29
      $region26: #{spnet_forward.21} parent=23 // pred_check_branch
        %130 = sbr.rel (%p128) target = $region28
      $region27: #{spnet_forward.21} parent=23 // pred_region
        %s131 = smul.u32 32, %s9
        %p132 = scmp.lt.s32.totalorder %s131, 63
        %s133 = scalar_select %p132, %s131, 63
        %s134 = smul.addr %s133, 4
        %s135 = scalar_lea.vmem %s0, %s134
        %s136 = smul.u32 32, %s9
      $region28: #{spnet_forward.21} parent=23 // pred_fallthru
        _
    $region24: #{spnet_forward.21} parent=5 // pred_fallthru
      _
    %p137 = scmp.le.s32.totalorder 1, %s9
    %p138 = scmp.lt.s32.totalorder %s9, 3
    %p139 = pnand %p137, %p138
    %p140 = pneg %p139
    // Predicated region
    $region29: #{spnet_forward.21} parent=5 // pred_check
      _
    $region30: #{spnet_forward.21} parent=5 // pred_check_branch
      %142 = sbr.rel (%p139) target = $region32
    $region31: #{spnet_forward.21} parent=5 // pred_region
      %s143 = ssub.s32 %s9, 1
      %s144 = smul.u32 32, %s14
      %p145 = scmp.lt.s32.totalorder %s144, 63
      %s146 = scalar_select %p145, %s144, 63
      %s147 = smul.addr %s146, 4
      %s148 = scalar_lea.vmem %s0, %s147
      %p149 = pneg %p35
      %p150 = pneg %p32
      %p151 = pneg %p56
      %p152 = pneg %p53
      %p153 = pneg %p77
      %p154 = pneg %p74
      %p155 = pneg %p103
      %p156 = pneg %p100
      %s157 = smul.u32 32, %s14
      %p158 = scmp.lt.s32.totalorder %s157, 63
      %s159 = scalar_select %p158, %s157, 63
      %s160 = smul.addr %s159, 8
      %s161 = scalar_lea.vmem %s3, %s160
      %s162 = smul.u32 32, %s14
      %p163 = scmp.lt.s32.totalorder %s162, 63
      %s164 = scalar_select %p163, %s162, 63
      %s165 = smul.addr %s164, 4
      %s166 = scalar_lea.vmem %s0, %s165
      %s167 = smul.u32 32, %s14
      %s168 = smul.u32 32, %s14
      %p169 = scmp.lt.s32.totalorder %s168, 63
      %s170 = scalar_select %p169, %s168, 63
      %s171 = smul.addr %s170, 8
      %s172 = scalar_lea.vmem %s3, %s171
      %s173 = smul.u32 32, %s14
      %v175 = vld [vmem:[%s166] sm:$0xf]
      %v176 = vld [vmem:[%s166 + $0x4] sm:$0xf]
      %v177 = vld [vmem:[%s166 + $0x8] sm:$0xf]
      %v178 = vld [vmem:[%s166 + $0xc] sm:$0xf]
      %v179 = vld [vmem:[%s166 + $0x10] sm:$0xf]
      %v180 = vld [vmem:[%s166 + $0x14] sm:$0xf]
      %v181 = vld [vmem:[%s166 + $0x18] sm:$0xf]
      %v182 = vld [vmem:[%s166 + $0x1c] sm:$0xf]
      %v183 = vld [vmem:[%s166 + $0x20] sm:$0xf]
      %v184 = vld [vmem:[%s166 + $0x24] sm:$0xf]
      %v185 = vld [vmem:[%s166 + $0x28] sm:$0xf]
      %v186 = vld [vmem:[%s166 + $0x2c] sm:$0xf]
      %v187 = vld [vmem:[%s166 + $0x30] sm:$0xf]
      %v188 = vld [vmem:[%s166 + $0x34] sm:$0xf]
      %v189 = vld [vmem:[%s166 + $0x38] sm:$0xf]
      %v190 = vld [vmem:[%s166 + $0x3c] sm:$0xf]
      %v191 = vld [vmem:[%s166 + $0x40] sm:$0xf]
      %v192 = vld [vmem:[%s166 + $0x44] sm:$0xf]
      %v193 = vld [vmem:[%s166 + $0x48] sm:$0xf]
      %v194 = vld [vmem:[%s166 + $0x4c] sm:$0xf]
      %v195 = vld [vmem:[%s166 + $0x50] sm:$0xf]
      %v196 = vld [vmem:[%s166 + $0x54] sm:$0xf]
      %v197 = vld [vmem:[%s166 + $0x58] sm:$0xf]
      %v198 = vld [vmem:[%s166 + $0x5c] sm:$0xf]
      %v199 = vld [vmem:[%s166 + $0x60] sm:$0xf]
      %v200 = vld [vmem:[%s166 + $0x64] sm:$0xf]
      %v201 = vld [vmem:[%s166 + $0x68] sm:$0xf]
      %v202 = vld [vmem:[%s166 + $0x6c] sm:$0xf]
      %v203 = vld [vmem:[%s166 + $0x70] sm:$0xf]
      %v204 = vld [vmem:[%s166 + $0x74] sm:$0xf]
      %v205 = vld [vmem:[%s166 + $0x78] sm:$0xf]
      %v206 = vld [vmem:[%s166 + $0x7c] sm:$0xf]
      %v207 = vld [vmem:[%s1] sm:$0xf]
      %v208 = vld [vmem:[%s1 + $0x4] sm:$0xf]
      %v209 = vld [vmem:[%s1 + $0x8] sm:$0xf]
      %v210 = vld [vmem:[%s1 + $0xc] sm:$0xf]
      %v211 = vld [vmem:[%s1 + $0x10] sm:$0xf]
      %v212 = vld [vmem:[%s1 + $0x14] sm:$0xf]
      %v213 = vld [vmem:[%s1 + $0x18] sm:$0xf]
      %v214 = vld [vmem:[%s1 + $0x1c] sm:$0xf]
      %v215 = vld [vmem:[%s1 + $0x20] sm:$0xf]
      %v216 = vld [vmem:[%s1 + $0x24] sm:$0xf]
      %v217 = vld [vmem:[%s1 + $0x28] sm:$0xf]
      %v218 = vld [vmem:[%s1 + $0x2c] sm:$0xf]
      %v219 = vld [vmem:[%s1 + $0x30] sm:$0xf]
      %v220 = vld [vmem:[%s1 + $0x34] sm:$0xf]
      %v221 = vld [vmem:[%s1 + $0x38] sm:$0xf]
      %v222 = vld [vmem:[%s1 + $0x3c] sm:$0xf]
      %v223 = vld [vmem:[%s2] sm:$0x1]
      %v225 = vlaneseq
      %v226 = vshrl.u32 %v225, 7
      %v227 = vsub.s32 0, %v226
      %v228 = vrot.slane %v223, %v227
      %v262 = vunpack.c.l.b16 %v175
      %v263 = vunpack.c.l.b16 %v176
      %v264 = vunpack.c.l.b16 %v177
      %v265 = vunpack.c.l.b16 %v178
      %v266 = vunpack.c.l.b16 %v179
      %v267 = vunpack.c.l.b16 %v180
      %v268 = vunpack.c.l.b16 %v181
      %v269 = vunpack.c.l.b16 %v182
      %v270 = vunpack.c.l.b16 %v183
      %v271 = vunpack.c.l.b16 %v184
      %v272 = vunpack.c.l.b16 %v185
      %v273 = vunpack.c.l.b16 %v186
      %v274 = vunpack.c.l.b16 %v187
      %v275 = vunpack.c.l.b16 %v188
      %v276 = vunpack.c.l.b16 %v189
      %v277 = vunpack.c.l.b16 %v190
      %v278 = vunpack.c.l.b16 %v191
      %v279 = vunpack.c.l.b16 %v192
      %v280 = vunpack.c.l.b16 %v193
      %v281 = vunpack.c.l.b16 %v194
      %v282 = vunpack.c.l.b16 %v195
      %v283 = vunpack.c.l.b16 %v196
      %v284 = vunpack.c.l.b16 %v197
      %v285 = vunpack.c.l.b16 %v198
      %v286 = vunpack.c.l.b16 %v199
      %v287 = vunpack.c.l.b16 %v200
      %v288 = vunpack.c.l.b16 %v201
      %v289 = vunpack.c.l.b16 %v202
      %v290 = vunpack.c.l.b16 %v203
      %v291 = vunpack.c.l.b16 %v204
      %v292 = vunpack.c.l.b16 %v205
      %v293 = vunpack.c.l.b16 %v206
      %v294 = vpack.c.b16 %v263, %v262
      %v295 = vpack.c.b16 %v265, %v264
      %v296 = vpack.c.b16 %v267, %v266
      %v297 = vpack.c.b16 %v269, %v268
      %v298 = vpack.c.b16 %v271, %v270
      %v299 = vpack.c.b16 %v273, %v272
      %v300 = vpack.c.b16 %v275, %v274
      %v301 = vpack.c.b16 %v277, %v276
      %v302 = vpack.c.b16 %v279, %v278
      %v303 = vpack.c.b16 %v281, %v280
      %v304 = vpack.c.b16 %v283, %v282
      %v305 = vpack.c.b16 %v285, %v284
      %v306 = vpack.c.b16 %v287, %v286
      %v307 = vpack.c.b16 %v289, %v288
      %v308 = vpack.c.b16 %v291, %v290
      %v309 = vpack.c.b16 %v293, %v292
      %v342 = vunpack.c.l.b16 %v207
      %v343 = vunpack.c.l.b16 %v208
      %v344 = vunpack.c.l.b16 %v209
      %v345 = vunpack.c.l.b16 %v210
      %v346 = vunpack.c.l.b16 %v211
      %v347 = vunpack.c.l.b16 %v212
      %v348 = vunpack.c.l.b16 %v213
      %v349 = vunpack.c.l.b16 %v214
      %v350 = vunpack.c.l.b16 %v215
      %v351 = vunpack.c.l.b16 %v216
      %v352 = vunpack.c.l.b16 %v217
      %v353 = vunpack.c.l.b16 %v218
      %v354 = vunpack.c.l.b16 %v219
      %v355 = vunpack.c.l.b16 %v220
      %v356 = vunpack.c.l.b16 %v221
      %v357 = vunpack.c.l.b16 %v222
      %v358 = vpack.c.b16 %v343, %v342
      %v359 = vpack.c.b16 %v345, %v344
      %v360 = vpack.c.b16 %v347, %v346
      %v361 = vpack.c.b16 %v349, %v348
      %v362 = vpack.c.b16 %v351, %v350
      %v363 = vpack.c.b16 %v353, %v352
      %v364 = vpack.c.b16 %v355, %v354
      %v365 = vpack.c.b16 %v357, %v356
      %374 = vmatprep.subr.bf16.mxu0 0
      %375 = vmatpush1.bf16.msra.mxu0 %v358
      %376 = vmatprep.subr.bf16.mxu0 0
      %377 = vmatpush1.bf16.msra.mxu0 %v359
      %378 = vmatprep.subr.bf16.mxu0 0
      %379 = vmatpush1.bf16.msra.mxu0 %v360
      %380 = vmatprep.subr.bf16.mxu0 0
      %381 = vmatpush1.bf16.msra.mxu0 %v361
      %382 = vmatprep.subr.bf16.mxu0 0
      %383 = vmatpush1.bf16.msra.mxu0 %v362
      %384 = vmatprep.subr.bf16.mxu0 0
      %385 = vmatpush1.bf16.msra.mxu0 %v363
      %386 = vmatprep.subr.bf16.mxu0 0
      %387 = vmatpush1.bf16.msra.mxu0 %v364
      %388 = vmatprep.subr.bf16.mxu0 0
      %389 = vmatpush1.bf16.msra.mxu0 %v365
      %390 = vmatprep.subr.bf16.mxu0 0
      %391 = vmatpush1.bf16.msra.mxu0 0
      %392 = vmatprep.subr.bf16.mxu0 0
      %393 = vmatpush1.bf16.msra.mxu0 0
      %394 = vmatprep.subr.bf16.mxu0 0
      %395 = vmatpush1.bf16.msra.mxu0 0
      %396 = vmatprep.subr.bf16.mxu0 0
      %397 = vmatpush1.bf16.msra.mxu0 0
      %398 = vmatprep.subr.bf16.mxu0 0
      %399 = vmatpush1.bf16.msra.mxu0 0
      %400 = vmatprep.subr.bf16.mxu0 0
      %401 = vmatpush1.bf16.msra.mxu0 0
      %402 = vmatprep.subr.bf16.mxu0 0
      %403 = vmatpush1.bf16.msra.mxu0 0
      %404 = vmatprep.subr.bf16.mxu0 0
      %405 = vmatpush1.bf16.msra.mxu0 0
      %406 = vmatprep.mubr.bf16.mxu0 0
      %407 = vmatmul.mubr.bf16.gmra.mrb[0].mxu0 %v294
      %v408 = vpop.f32.mrb[0].mxu0
      %v409 = vadd.f32 %v228, %v408
      %v410 = vpop.f32.mrb[0].mxu0
      %v411 = vpop.f32.mrb[0].mxu0
      %v412 = vadd.f32 %v228, %v411
      %v413 = vpop.f32.mrb[0].mxu0
      %414 = vmatprep.mubr.bf16.mxu0 0
      %415 = vmatmul.mubr.bf16.gmra.mrb[0].mxu0 %v295
      %v416 = vpop.f32.mrb[0].mxu0
      %v417 = vadd.f32 %v228, %v416
      %v418 = vpop.f32.mrb[0].mxu0
      %v419 = vpop.f32.mrb[0].mxu0
      %v420 = vadd.f32 %v228, %v419
      %v421 = vpop.f32.mrb[0].mxu0
      %422 = vmatprep.mubr.bf16.mxu0 0
      %423 = vmatmul.mubr.bf16.gmra.mrb[0].mxu0 %v296
      %v424 = vpop.f32.mrb[0].mxu0
      %v425 = vadd.f32 %v228, %v424
      %v426 = vpop.f32.mrb[0].mxu0
      %v427 = vpop.f32.mrb[0].mxu0
      %v428 = vadd.f32 %v228, %v427
      %v429 = vpop.f32.mrb[0].mxu0
      %430 = vmatprep.mubr.bf16.mxu0 0
      %431 = vmatmul.mubr.bf16.gmra.mrb[0].mxu0 %v297
      %v432 = vpop.f32.mrb[0].mxu0
      %v433 = vadd.f32 %v228, %v432
      %v434 = vpop.f32.mrb[0].mxu0
      %v435 = vpop.f32.mrb[0].mxu0
      %v436 = vadd.f32 %v228, %v435
      %v437 = vpop.f32.mrb[0].mxu0
      %438 = vmatprep.mubr.bf16.mxu0 0
      %439 = vmatmul.mubr.bf16.gmra.mrb[0].mxu0 %v298
      %v440 = vpop.f32.mrb[0].mxu0
      %v441 = vadd.f32 %v228, %v440
      %v442 = vpop.f32.mrb[0].mxu0
      %v443 = vpop.f32.mrb[0].mxu0
      %v444 = vadd.f32 %v228, %v443
      %v445 = vpop.f32.mrb[0].mxu0
      %446 = vmatprep.mubr.bf16.mxu0 0
      %447 = vmatmul.mubr.bf16.gmra.mrb[0].mxu0 %v299
      %v448 = vpop.f32.mrb[0].mxu0
      %v449 = vadd.f32 %v228, %v448
      %v450 = vpop.f32.mrb[0].mxu0
      %v451 = vpop.f32.mrb[0].mxu0
      %v452 = vadd.f32 %v228, %v451
      %v453 = vpop.f32.mrb[0].mxu0
      %454 = vmatprep.mubr.bf16.mxu0 0
      %455 = vmatmul.mubr.bf16.gmra.mrb[0].mxu0 %v300
      %v456 = vpop.f32.mrb[0].mxu0
      %v457 = vadd.f32 %v228, %v456
      %v458 = vpop.f32.mrb[0].mxu0
      %v459 = vpop.f32.mrb[0].mxu0
      %v460 = vadd.f32 %v228, %v459
      %v461 = vpop.f32.mrb[0].mxu0
      %462 = vmatprep.mubr.bf16.mxu0 0
      %463 = vmatmul.mubr.bf16.gmra.mrb[0].mxu0 %v301
      %v464 = vpop.f32.mrb[0].mxu0
      %v465 = vadd.f32 %v228, %v464
      %v466 = vpop.f32.mrb[0].mxu0
      %v467 = vpop.f32.mrb[0].mxu0
      %v468 = vadd.f32 %v228, %v467
      %v469 = vpop.f32.mrb[0].mxu0
      %470 = vmatprep.mubr.bf16.mxu0 0
      %471 = vmatmul.mubr.bf16.gmra.mrb[0].mxu0 %v302
      %v472 = vpop.f32.mrb[0].mxu0
      %v473 = vadd.f32 %v228, %v472
      %v474 = vpop.f32.mrb[0].mxu0
      %v475 = vpop.f32.mrb[0].mxu0
      %v476 = vadd.f32 %v228, %v475
      %v477 = vpop.f32.mrb[0].mxu0
      %478 = vmatprep.mubr.bf16.mxu0 0
      %479 = vmatmul.mubr.bf16.gmra.mrb[0].mxu0 %v303
      %v480 = vpop.f32.mrb[0].mxu0
      %v481 = vadd.f32 %v228, %v480
      %v482 = vpop.f32.mrb[0].mxu0
      %v483 = vpop.f32.mrb[0].mxu0
      %v484 = vadd.f32 %v228, %v483
      %v485 = vpop.f32.mrb[0].mxu0
      %486 = vmatprep.mubr.bf16.mxu0 0
      %487 = vmatmul.mubr.bf16.gmra.mrb[0].mxu0 %v304
      %v488 = vpop.f32.mrb[0].mxu0
      %v489 = vadd.f32 %v228, %v488
      %v490 = vpop.f32.mrb[0].mxu0
      %v491 = vpop.f32.mrb[0].mxu0
      %v492 = vadd.f32 %v228, %v491
      %v493 = vpop.f32.mrb[0].mxu0
      %494 = vmatprep.mubr.bf16.mxu0 0
      %495 = vmatmul.mubr.bf16.gmra.mrb[0].mxu0 %v305
      %v496 = vpop.f32.mrb[0].mxu0
      %v497 = vadd.f32 %v228, %v496
      %v498 = vpop.f32.mrb[0].mxu0
      %v499 = vpop.f32.mrb[0].mxu0
      %v500 = vadd.f32 %v228, %v499
      %v501 = vpop.f32.mrb[0].mxu0
      %502 = vmatprep.mubr.bf16.mxu0 0
      %503 = vmatmul.mubr.bf16.gmra.mrb[0].mxu0 %v306
      %v504 = vpop.f32.mrb[0].mxu0
      %v505 = vadd.f32 %v228, %v504
      %v506 = vpop.f32.mrb[0].mxu0
      %v507 = vpop.f32.mrb[0].mxu0
      %v508 = vadd.f32 %v228, %v507
      %v509 = vpop.f32.mrb[0].mxu0
      %510 = vmatprep.mubr.bf16.mxu0 0
      %511 = vmatmul.mubr.bf16.gmra.mrb[0].mxu0 %v307
      %v512 = vpop.f32.mrb[0].mxu0
      %v513 = vadd.f32 %v228, %v512
      %v514 = vpop.f32.mrb[0].mxu0
      %v515 = vpop.f32.mrb[0].mxu0
      %v516 = vadd.f32 %v228, %v515
      %v517 = vpop.f32.mrb[0].mxu0
      %518 = vmatprep.mubr.bf16.mxu0 0
      %519 = vmatmul.mubr.bf16.gmra.mrb[0].mxu0 %v308
      %v520 = vpop.f32.mrb[0].mxu0
      %v521 = vadd.f32 %v228, %v520
      %v522 = vpop.f32.mrb[0].mxu0
      %v523 = vpop.f32.mrb[0].mxu0
      %v524 = vadd.f32 %v228, %v523
      %v525 = vpop.f32.mrb[0].mxu0
      %526 = vmatprep.mubr.bf16.mxu0 0
      %527 = vmatmul.mubr.bf16.gmra.mrb[0].mxu0 %v309
      %v528 = vpop.f32.mrb[0].mxu0
      %v529 = vadd.f32 %v228, %v528
      %v530 = vpop.f32.mrb[0].mxu0
      %v531 = vpop.f32.mrb[0].mxu0
      %v532 = vadd.f32 %v228, %v531
      %v533 = vpop.f32.mrb[0].mxu0
      %534 = vdwg.mxu0
      %535 = vst [vmem:[%s172] sm:$0xff] %v409
      %536 = vst [vmem:[%s172 + $0x8] sm:$0xff] %v412
      %537 = vst [vmem:[%s172 + $0x10] sm:$0xff] %v417
      %538 = vst [vmem:[%s172 + $0x18] sm:$0xff] %v420
      %539 = vst [vmem:[%s172 + $0x20] sm:$0xff] %v425
      %540 = vst [vmem:[%s172 + $0x28] sm:$0xff] %v428
      %541 = vst [vmem:[%s172 + $0x30] sm:$0xff] %v433
      %542 = vst [vmem:[%s172 + $0x38] sm:$0xff] %v436
      %543 = vst [vmem:[%s172 + $0x40] sm:$0xff] %v441
      %544 = vst [vmem:[%s172 + $0x48] sm:$0xff] %v444
      %545 = vst [vmem:[%s172 + $0x50] sm:$0xff] %v449
      %546 = vst [vmem:[%s172 + $0x58] sm:$0xff] %v452
      %547 = vst [vmem:[%s172 + $0x60] sm:$0xff] %v457
      %548 = vst [vmem:[%s172 + $0x68] sm:$0xff] %v460
      %549 = vst [vmem:[%s172 + $0x70] sm:$0xff] %v465
      %550 = vst [vmem:[%s172 + $0x78] sm:$0xff] %v468
      %551 = vst [vmem:[%s172 + $0x80] sm:$0xff] %v473
      %552 = vst [vmem:[%s172 + $0x88] sm:$0xff] %v476
      %553 = vst [vmem:[%s172 + $0x90] sm:$0xff] %v481
      %554 = vst [vmem:[%s172 + $0x98] sm:$0xff] %v484
      %555 = vst [vmem:[%s172 + $0xa0] sm:$0xff] %v489
      %556 = vst [vmem:[%s172 + $0xa8] sm:$0xff] %v492
      %557 = vst [vmem:[%s172 + $0xb0] sm:$0xff] %v497
      %558 = vst [vmem:[%s172 + $0xb8] sm:$0xff] %v500
      %559 = vst [vmem:[%s172 + $0xc0] sm:$0xff] %v505
      %560 = vst [vmem:[%s172 + $0xc8] sm:$0xff] %v508
      %561 = vst [vmem:[%s172 + $0xd0] sm:$0xff] %v513
      %562 = vst [vmem:[%s172 + $0xd8] sm:$0xff] %v516
      %563 = vst [vmem:[%s172 + $0xe0] sm:$0xff] %v521
      %564 = vst [vmem:[%s172 + $0xe8] sm:$0xff] %v524
      %565 = vst [vmem:[%s172 + $0xf0] sm:$0xff] %v529
      %566 = vst [vmem:[%s172 + $0xf8] sm:$0xff] %v532
      %s567 = smul.u32 32, %s14
      %p568 = scmp.lt.s32.totalorder %s567, 63
      %s569 = scalar_select %p568, %s567, 63
      %s570 = smul.addr %s569, 8
      %s571 = scalar_lea.vmem %s3, %s570
      // Predicated region
      $region33: #{spnet_forward.21} parent=31 // pred_check
        %p572 = pneg %p100
      $region34: #{spnet_forward.21} parent=31 // pred_check_branch
        %574 = sbr.rel (%p572) target = $region36
      $region35: #{spnet_forward.21} parent=31 // pred_region
        %s575 = smul.u32 32, %s14
      $region36: #{spnet_forward.21} parent=31 // pred_fallthru
        _
    $region32: #{spnet_forward.21} parent=5 // pred_fallthru
      _
    %p576 = scmp.le.s32.totalorder 2, %s9
    // Predicated region
    $region37: #{spnet_forward.21} parent=5 // pred_check
      %p577 = pneg %p576
    $region38: #{spnet_forward.21} parent=5 // pred_check_branch
      %579 = sbr.rel (%p577) target = $region40
    $region39: #{spnet_forward.21} parent=5 // pred_region
      %s580 = ssub.s32 %s9, 2
      // Predicated region
      $region41: #{spnet_forward.21} parent=39 // pred_check
        %p581 = pneg %p106
      $region42: #{spnet_forward.21} parent=39 // pred_check_branch
        %583 = sbr.rel (%p581) target = $region44
      $region43: #{spnet_forward.21} parent=39 // pred_region
        %s584 = smul.u32 32, %s15
        %p585 = scmp.lt.s32.totalorder %s584, 63
        %s586 = scalar_select %p585, %s584, 63
        %s587 = smul.addr %s586, 8
        %s588 = scalar_lea.vmem %s3, %s587
      $region44: #{spnet_forward.21} parent=39 // pred_fallthru
        _
    $region40: #{spnet_forward.21} parent=5 // pred_fallthru
      _
  $region6: #{spnet_forward.21} parent=0 // loop_footer
    %s13 = sadd.s32 1, %s9
  $region7: #{spnet_forward.21} parent=0 // loop_footer_branch
    %8 = sbr.rel target = $region3
  $region8: #{spnet_forward.21} parent=0 // loop_exit
    _

// kernel: spnet_forward.19
$region0: #{spnet_forward.19}
  #allocation0 [shape = 'u32[]', space=smem, size = 0x4, offset = 0x4, fixed_abs, tag = 'smem constant byte address 0x4 - core index']
  #allocation1 [shape = 'u32[144,128]{1,0:T(1,128)}', space=vmem, size = 0x12000, scoped, tag = 'internal scratch']
  %s0 = inlined_call_operand.vmem [shape: bf16[128,128], index: 0, kind: input, shape index: {}]
  %s1 = inlined_call_operand.vmem [shape: bf16[128,128], index: 1, kind: input, shape index: {}]
  %s2 = inlined_call_operand.vmem [shape: f32[1,128], index: 2, kind: input, shape index: {}]
  %s3 = inlined_call_operand.vmem [shape: bf16[128,128], index: 3, kind: input, shape index: {}]
  %s4 = inlined_call_operand.vmem [shape: bf16[128,128], index: 4, kind: output, shape index: {}]
  %s5 = sld [smem:[#allocation0]]
  $region26: #{spnet_forward.19} parent=0
    _
  %s7 = ssub.s32 1, %s5
  %s8 = scalar_select 0, %s7, %s5
  // Predicated region
  $region2: #{spnet_forward.19} parent=0 // pred_check
    _
  $region3: #{spnet_forward.19} parent=0 // pred_check_branch
    %10 = sbr.rel (0) target = $region5
  $region4: #{spnet_forward.19} parent=0 // pred_region
    _
  $region5: #{spnet_forward.19} parent=0 // pred_fallthru
    _
  // Predicated region
  $region6: #{spnet_forward.19} parent=0 // pred_check
    _
  $region7: #{spnet_forward.19} parent=0 // pred_check_branch
    %12 = sbr.rel (0) target = $region9
  $region8: #{spnet_forward.19} parent=0 // pred_region
    _
  $region9: #{spnet_forward.19} parent=0 // pred_fallthru
    _
  // Predicated region
  $region10: #{spnet_forward.19} parent=0 // pred_check
    _
  $region11: #{spnet_forward.19} parent=0 // pred_check_branch
    %14 = sbr.rel (0) target = $region13
  $region12: #{spnet_forward.19} parent=0 // pred_region
    _
  $region13: #{spnet_forward.19} parent=0 // pred_fallthru
    _
  // Predicated region
  $region14: #{spnet_forward.19} parent=0 // pred_check
    _
  $region15: #{spnet_forward.19} parent=0 // pred_check_branch
    %16 = sbr.rel (0) target = $region17
  $region16: #{spnet_forward.19} parent=0 // pred_region
    _
  $region17: #{spnet_forward.19} parent=0 // pred_fallthru
    _
  %v18 = vld [vmem:[%s0] sm:$0xf]
  %v19 = vld [vmem:[%s0 + $0x4] sm:$0xf]
  %v20 = vld [vmem:[%s0 + $0x8] sm:$0xf]
  %v21 = vld [vmem:[%s0 + $0xc] sm:$0xf]
  %v22 = vld [vmem:[%s0 + $0x10] sm:$0xf]
  %v23 = vld [vmem:[%s0 + $0x14] sm:$0xf]
  %v24 = vld [vmem:[%s0 + $0x18] sm:$0xf]
  %v25 = vld [vmem:[%s0 + $0x1c] sm:$0xf]
  %v26 = vld [vmem:[%s0 + $0x20] sm:$0xf]
  %v27 = vld [vmem:[%s0 + $0x24] sm:$0xf]
  %v28 = vld [vmem:[%s0 + $0x28] sm:$0xf]
  %v29 = vld [vmem:[%s0 + $0x2c] sm:$0xf]
  %v30 = vld [vmem:[%s0 + $0x30] sm:$0xf]
  %v31 = vld [vmem:[%s0 + $0x34] sm:$0xf]
  %v32 = vld [vmem:[%s0 + $0x38] sm:$0xf]
  %v33 = vld [vmem:[%s0 + $0x3c] sm:$0xf]
  %v34 = vld [vmem:[%s1] sm:$0xf]
  %v35 = vld [vmem:[%s1 + $0x4] sm:$0xf]
  %v36 = vld [vmem:[%s1 + $0x8] sm:$0xf]
  %v37 = vld [vmem:[%s1 + $0xc] sm:$0xf]
  %v38 = vld [vmem:[%s1 + $0x10] sm:$0xf]
  %v39 = vld [vmem:[%s1 + $0x14] sm:$0xf]
  %v40 = vld [vmem:[%s1 + $0x18] sm:$0xf]
  %v41 = vld [vmem:[%s1 + $0x1c] sm:$0xf]
  %v42 = vld [vmem:[%s1 + $0x20] sm:$0xf]
  %v43 = vld [vmem:[%s1 + $0x24] sm:$0xf]
  %v44 = vld [vmem:[%s1 + $0x28] sm:$0xf]
  %v45 = vld [vmem:[%s1 + $0x2c] sm:$0xf]
  %v46 = vld [vmem:[%s1 + $0x30] sm:$0xf]
  %v47 = vld [vmem:[%s1 + $0x34] sm:$0xf]
  %v48 = vld [vmem:[%s1 + $0x38] sm:$0xf]
  %v49 = vld [vmem:[%s1 + $0x3c] sm:$0xf]
  %v50 = vld [vmem:[%s2] sm:$0x1]
  %v52 = vlaneseq
  %v53 = vshrl.u32 %v52, 7
  %v54 = vsub.s32 0, %v53
  %v55 = vrot.slane %v50, %v54
  %v73 = vunpack.c.l.b16 %v18
  %v74 = vunpack.c.l.b16 %v19
  %v75 = vunpack.c.l.b16 %v20
  %v76 = vunpack.c.l.b16 %v21
  %v77 = vunpack.c.l.b16 %v22
  %v78 = vunpack.c.l.b16 %v23
  %v79 = vunpack.c.l.b16 %v24
  %v80 = vunpack.c.l.b16 %v25
  %v81 = vunpack.c.l.b16 %v26
  %v82 = vunpack.c.l.b16 %v27
  %v83 = vunpack.c.l.b16 %v28
  %v84 = vunpack.c.l.b16 %v29
  %v85 = vunpack.c.l.b16 %v30
  %v86 = vunpack.c.l.b16 %v31
  %v87 = vunpack.c.l.b16 %v32
  %v88 = vunpack.c.l.b16 %v33
  %v89 = vpack.c.b16 %v74, %v73
  %v90 = vpack.c.b16 %v76, %v75
  %v91 = vpack.c.b16 %v78, %v77
  %v92 = vpack.c.b16 %v80, %v79
  %v93 = vpack.c.b16 %v82, %v81
  %v94 = vpack.c.b16 %v84, %v83
  %v95 = vpack.c.b16 %v86, %v85
  %v96 = vpack.c.b16 %v88, %v87
  %v121 = vunpack.c.l.b16 %v34
  %v122 = vunpack.c.l.b16 %v35
  %v123 = vunpack.c.l.b16 %v36
  %v124 = vunpack.c.l.b16 %v37
  %v125 = vunpack.c.l.b16 %v38
  %v126 = vunpack.c.l.b16 %v39
  %v127 = vunpack.c.l.b16 %v40
  %v128 = vunpack.c.l.b16 %v41
  %v129 = vunpack.c.l.b16 %v42
  %v130 = vunpack.c.l.b16 %v43
  %v131 = vunpack.c.l.b16 %v44
  %v132 = vunpack.c.l.b16 %v45
  %v133 = vunpack.c.l.b16 %v46
  %v134 = vunpack.c.l.b16 %v47
  %v135 = vunpack.c.l.b16 %v48
  %v136 = vunpack.c.l.b16 %v49
  %v137 = vpack.c.b16 %v122, %v121
  %v138 = vpack.c.b16 %v124, %v123
  %v139 = vpack.c.b16 %v126, %v125
  %v140 = vpack.c.b16 %v128, %v127
  %v141 = vpack.c.b16 %v130, %v129
  %v142 = vpack.c.b16 %v132, %v131
  %v143 = vpack.c.b16 %v134, %v133
  %v144 = vpack.c.b16 %v136, %v135
  %153 = vmatprep.subr.bf16.mxu0 0
  %154 = vmatpush1.bf16.msra.mxu0 %v137
  %155 = vmatprep.subr.bf16.mxu0 0
  %156 = vmatpush1.bf16.msra.mxu0 %v138
  %157 = vmatprep.subr.bf16.mxu0 0
  %158 = vmatpush1.bf16.msra.mxu0 %v139
  %159 = vmatprep.subr.bf16.mxu0 0
  %160 = vmatpush1.bf16.msra.mxu0 %v140
  %161 = vmatprep.subr.bf16.mxu0 0
  %162 = vmatpush1.bf16.msra.mxu0 %v141
  %163 = vmatprep.subr.bf16.mxu0 0
  %164 = vmatpush1.bf16.msra.mxu0 %v142
  %165 = vmatprep.subr.bf16.mxu0 0
  %166 = vmatpush1.bf16.msra.mxu0 %v143
  %167 = vmatprep.subr.bf16.mxu0 0
  %168 = vmatpush1.bf16.msra.mxu0 %v144
  %169 = vmatprep.subr.bf16.mxu0 0
  %170 = vmatpush1.bf16.msra.mxu0 0
  %171 = vmatprep.subr.bf16.mxu0 0
  %172 = vmatpush1.bf16.msra.mxu0 0
  %173 = vmatprep.subr.bf16.mxu0 0
  %174 = vmatpush1.bf16.msra.mxu0 0
  %175 = vmatprep.subr.bf16.mxu0 0
  %176 = vmatpush1.bf16.msra.mxu0 0
  %177 = vmatprep.subr.bf16.mxu0 0
  %178 = vmatpush1.bf16.msra.mxu0 0
  %179 = vmatprep.subr.bf16.mxu0 0
  %180 = vmatpush1.bf16.msra.mxu0 0
  %181 = vmatprep.subr.bf16.mxu0 0
  %182 = vmatpush1.bf16.msra.mxu0 0
  %183 = vmatprep.subr.bf16.mxu0 0
  %184 = vmatpush1.bf16.msra.mxu0 0
  %185 = vmatprep.mubr.bf16.mxu0 0
  %186 = vmatmul.mubr.bf16.gmra.mrb[0].mxu0 %v89
  %v187 = vpop.f32.mrb[0].mxu0
  %v188 = vadd.f32 %v55, %v187
  %v189 = vpop.f32.mrb[0].mxu0
  %v190 = vpop.f32.mrb[0].mxu0
  %v191 = vadd.f32 %v55, %v190
  %v192 = vpop.f32.mrb[0].mxu0
  %193 = vmatprep.mubr.bf16.mxu0 0
  %194 = vmatmul.mubr.bf16.gmra.mrb[0].mxu0 %v90
  %v195 = vpop.f32.mrb[0].mxu0
  %v196 = vadd.f32 %v55, %v195
  %v197 = vpop.f32.mrb[0].mxu0
  %v198 = vpop.f32.mrb[0].mxu0
  %v199 = vadd.f32 %v55, %v198
  %v200 = vpop.f32.mrb[0].mxu0
  %201 = vmatprep.mubr.bf16.mxu0 0
  %202 = vmatmul.mubr.bf16.gmra.mrb[0].mxu0 %v91
  %v203 = vpop.f32.mrb[0].mxu0
  %v204 = vadd.f32 %v55, %v203
  %v205 = vpop.f32.mrb[0].mxu0
  %v206 = vpop.f32.mrb[0].mxu0
  %v207 = vadd.f32 %v55, %v206
  %v208 = vpop.f32.mrb[0].mxu0
  %209 = vmatprep.mubr.bf16.mxu0 0
  %210 = vmatmul.mubr.bf16.gmra.mrb[0].mxu0 %v92
  %v211 = vpop.f32.mrb[0].mxu0
  %v212 = vadd.f32 %v55, %v211
  %v213 = vpop.f32.mrb[0].mxu0
  %v214 = vpop.f32.mrb[0].mxu0
  %v215 = vadd.f32 %v55, %v214
  %v216 = vpop.f32.mrb[0].mxu0
  %217 = vmatprep.mubr.bf16.mxu0 0
  %218 = vmatmul.mubr.bf16.gmra.mrb[0].mxu0 %v93
  %v219 = vpop.f32.mrb[0].mxu0
  %v220 = vadd.f32 %v55, %v219
  %v221 = vpop.f32.mrb[0].mxu0
  %v222 = vpop.f32.mrb[0].mxu0
  %v223 = vadd.f32 %v55, %v222
  %v224 = vpop.f32.mrb[0].mxu0
  %225 = vmatprep.mubr.bf16.mxu0 0
  %226 = vmatmul.mubr.bf16.gmra.mrb[0].mxu0 %v94
  %v227 = vpop.f32.mrb[0].mxu0
  %v228 = vadd.f32 %v55, %v227
  %v229 = vpop.f32.mrb[0].mxu0
  %v230 = vpop.f32.mrb[0].mxu0
  %v231 = vadd.f32 %v55, %v230
  %v232 = vpop.f32.mrb[0].mxu0
  %233 = vmatprep.mubr.bf16.mxu0 0
  %234 = vmatmul.mubr.bf16.gmra.mrb[0].mxu0 %v95
  %v235 = vpop.f32.mrb[0].mxu0
  %v236 = vadd.f32 %v55, %v235
  %v237 = vpop.f32.mrb[0].mxu0
  %v238 = vpop.f32.mrb[0].mxu0
  %v239 = vadd.f32 %v55, %v238
  %v240 = vpop.f32.mrb[0].mxu0
  %241 = vmatprep.mubr.bf16.mxu0 0
  %242 = vmatmul.mubr.bf16.gmra.mrb[0].mxu0 %v96
  %v243 = vpop.f32.mrb[0].mxu0
  %v244 = vadd.f32 %v55, %v243
  %v245 = vpop.f32.mrb[0].mxu0
  %v246 = vpop.f32.mrb[0].mxu0
  %v247 = vadd.f32 %v55, %v246
  %v248 = vpop.f32.mrb[0].mxu0
  %249 = vdwg.mxu0
  %v250 = vld [vmem:[%s3] sm:$0xf]
  %v251 = vld [vmem:[%s3 + $0x4] sm:$0xf]
  %v252 = vld [vmem:[%s3 + $0x8] sm:$0xf]
  %v253 = vld [vmem:[%s3 + $0xc] sm:$0xf]
  %v254 = vld [vmem:[%s3 + $0x10] sm:$0xf]
  %v255 = vld [vmem:[%s3 + $0x14] sm:$0xf]
  %v256 = vld [vmem:[%s3 + $0x18] sm:$0xf]
  %v257 = vld [vmem:[%s3 + $0x1c] sm:$0xf]
  %v258 = vld [vmem:[%s3 + $0x20] sm:$0xf]
  %v259 = vld [vmem:[%s3 + $0x24] sm:$0xf]
  %v260 = vld [vmem:[%s3 + $0x28] sm:$0xf]
  %v261 = vld [vmem:[%s3 + $0x2c] sm:$0xf]
  %v262 = vld [vmem:[%s3 + $0x30] sm:$0xf]
  %v263 = vld [vmem:[%s3 + $0x34] sm:$0xf]
  %v264 = vld [vmem:[%s3 + $0x38] sm:$0xf]
  %v265 = vld [vmem:[%s3 + $0x3c] sm:$0xf]
  %v266 = vunpack.c.l.bf16 %v250
  %v267 = vunpack.c.l.bf16 %v251
  %v268 = vunpack.c.l.bf16 %v252
  %v269 = vunpack.c.l.bf16 %v253
  %v270 = vunpack.c.l.bf16 %v254
  %v271 = vunpack.c.l.bf16 %v255
  %v272 = vunpack.c.l.bf16 %v256
  %v273 = vunpack.c.l.bf16 %v257
  %v274 = vunpack.c.l.bf16 %v258
  %v275 = vunpack.c.l.bf16 %v259
  %v276 = vunpack.c.l.bf16 %v260
  %v277 = vunpack.c.l.bf16 %v261
  %v278 = vunpack.c.l.bf16 %v262
  %v279 = vunpack.c.l.bf16 %v263
  %v280 = vunpack.c.l.bf16 %v264
  %v281 = vunpack.c.l.bf16 %v265
  %v282 = vadd.f32 %v188, %v266
  %v283 = vadd.f32 %v191, %v267
  %v284 = vadd.f32 %v196, %v268
  %v285 = vadd.f32 %v199, %v269
  %v286 = vadd.f32 %v204, %v270
  %v287 = vadd.f32 %v207, %v271
  %v288 = vadd.f32 %v212, %v272
  %v289 = vadd.f32 %v215, %v273
  %v290 = vadd.f32 %v220, %v274
  %v291 = vadd.f32 %v223, %v275
  %v292 = vadd.f32 %v228, %v276
  %v293 = vadd.f32 %v231, %v277
  %v294 = vadd.f32 %v236, %v278
  %v295 = vadd.f32 %v239, %v279
  %v296 = vadd.f32 %v244, %v280
  %v297 = vadd.f32 %v247, %v281
  %v298 = vmax.f32 %v282, 0.0
  %v299 = vmax.f32 %v283, 0.0
  %v300 = vmax.f32 %v284, 0.0
  %v301 = vmax.f32 %v285, 0.0
  %v302 = vmax.f32 %v286, 0.0
  %v303 = vmax.f32 %v287, 0.0
  %v304 = vmax.f32 %v288, 0.0
  %v305 = vmax.f32 %v289, 0.0
  %v306 = vmax.f32 %v290, 0.0
  %v307 = vmax.f32 %v291, 0.0
  %v308 = vmax.f32 %v292, 0.0
  %v309 = vmax.f32 %v293, 0.0
  %v310 = vmax.f32 %v294, 0.0
  %v311 = vmax.f32 %v295, 0.0
  %v312 = vmax.f32 %v296, 0.0
  %v313 = vmax.f32 %v297, 0.0
  %v314 = vpack.c.bf16 %v299, %v298
  %v315 = vpack.c.bf16 %v301, %v300
  %v316 = vpack.c.bf16 %v303, %v302
  %v317 = vpack.c.bf16 %v305, %v304
  %v318 = vpack.c.bf16 %v307, %v306
  %v319 = vpack.c.bf16 %v309, %v308
  %v320 = vpack.c.bf16 %v311, %v310
  %v321 = vpack.c.bf16 %v313, %v312
  %v330 = vunpack.c.l.b16 %v314
  %v331 = vunpack.c.h.b16 %v314
  %v332 = vunpack.c.l.b16 %v315
  %v333 = vunpack.c.h.b16 %v315
  %v334 = vunpack.c.l.b16 %v316
  %v335 = vunpack.c.h.b16 %v316
  %v336 = vunpack.c.l.b16 %v317
  %v337 = vunpack.c.h.b16 %v317
  %v338 = vunpack.c.l.b16 %v318
  %v339 = vunpack.c.h.b16 %v318
  %v340 = vunpack.c.l.b16 %v319
  %v341 = vunpack.c.h.b16 %v319
  %v342 = vunpack.c.l.b16 %v320
  %v343 = vunpack.c.h.b16 %v320
  %v344 = vunpack.c.l.b16 %v321
  %v345 = vunpack.c.h.b16 %v321
  %v346 = vpack.c.b16 %v330, %v330
  %v347 = vpack.c.b16 %v331, %v331
  %v348 = vpack.c.b16 %v332, %v332
  %v349 = vpack.c.b16 %v333, %v333
  %v350 = vpack.c.b16 %v334, %v334
  %v351 = vpack.c.b16 %v335, %v335
  %v352 = vpack.c.b16 %v336, %v336
  %v353 = vpack.c.b16 %v337, %v337
  %v354 = vpack.c.b16 %v338, %v338
  %v355 = vpack.c.b16 %v339, %v339
  %v356 = vpack.c.b16 %v340, %v340
  %v357 = vpack.c.b16 %v341, %v341
  %v358 = vpack.c.b16 %v342, %v342
  %v359 = vpack.c.b16 %v343, %v343
  %v360 = vpack.c.b16 %v344, %v344
  %v361 = vpack.c.b16 %v345, %v345
  %378 = vst [vmem:[%s4] sm:$0xf] %v346
  %379 = vst [vmem:[%s4 + $0x4] sm:$0xf] %v347
  %380 = vst [vmem:[%s4 + $0x8] sm:$0xf] %v348
  %381 = vst [vmem:[%s4 + $0xc] sm:$0xf] %v349
  %382 = vst [vmem:[%s4 + $0x10] sm:$0xf] %v350
  %383 = vst [vmem:[%s4 + $0x14] sm:$0xf] %v351
  %384 = vst [vmem:[%s4 + $0x18] sm:$0xf] %v352
  %385 = vst [vmem:[%s4 + $0x1c] sm:$0xf] %v353
  %386 = vst [vmem:[%s4 + $0x20] sm:$0xf] %v354
  %387 = vst [vmem:[%s4 + $0x24] sm:$0xf] %v355
  %388 = vst [vmem:[%s4 + $0x28] sm:$0xf] %v356
  %389 = vst [vmem:[%s4 + $0x2c] sm:$0xf] %v357
  %390 = vst [vmem:[%s4 + $0x30] sm:$0xf] %v358
  %391 = vst [vmem:[%s4 + $0x34] sm:$0xf] %v359
  %392 = vst [vmem:[%s4 + $0x38] sm:$0xf] %v360
  %393 = vst [vmem:[%s4 + $0x3c] sm:$0xf] %v361
  // Predicated region
  $region18: #{spnet_forward.19} parent=0 // pred_check
    _
  $region19: #{spnet_forward.19} parent=0 // pred_check_branch
    %395 = sbr.rel (0) target = $region21
  $region20: #{spnet_forward.19} parent=0 // pred_region
    _
  $region21: #{spnet_forward.19} parent=0 // pred_fallthru
    _
  // Predicated region
  $region22: #{spnet_forward.19} parent=0 // pred_check
    _
  $region23: #{spnet_forward.19} parent=0 // pred_check_branch
    %397 = sbr.rel (0) target = $region25
  $region24: #{spnet_forward.19} parent=0 // pred_region
    _
  $region25: #{spnet_forward.19} parent=0 // pred_fallthru
    _

// kernel: spnet_forward.20
$region0: #{spnet_forward.20}
  #allocation0 [shape = 'u32[]', space=smem, size = 0x4, offset = 0x4, fixed_abs, tag = 'smem constant byte address 0x4 - core index']
  #allocation1 [shape = 'u32[144,128]{1,0:T(1,128)}', space=vmem, size = 0x12000, scoped, tag = 'internal scratch']
  %s0 = inlined_call_operand.vmem [shape: bf16[512,32], index: 0, kind: input, shape index: {}]
  %s1 = inlined_call_operand.vmem [shape: bf16[32,128], index: 1, kind: input, shape index: {}]
  %s2 = inlined_call_operand.vmem [shape: f32[1,128], index: 2, kind: input, shape index: {}]
  %s3 = inlined_call_operand.vmem [shape: bf16[512,128], index: 3, kind: input, shape index: {}]
  %s4 = inlined_call_operand.vmem [shape: bf16[512,128], index: 4, kind: output, shape index: {}]
  %s5 = sld [smem:[#allocation0]]
  $region49: #{spnet_forward.20} parent=0
    _
  %s7 = ssub.s32 1, %s5
  %s8 = scalar_select 0, %s7, %s5
  loop: start=0, step=1, limit=4
  $region2: #{spnet_forward.20} parent=0 // loop_pre_header
    _
  $region3: #{spnet_forward.20} parent=0 // loop_header
    %s10 = sphi 0, %s14
    %p11 = scmp.ge.s32.totalorder %s10, 4
    %s20 = sphi 0, %s22
    %s23 = sphi 0, %s20
    %s24 = sphi 0, %s23
    %s40 = sphi 0, %s24
    %s44 = sphi 0, %s44
    %s46 = sphi 0, %s44
    %s47 = sphi 0, %s46
    %s61 = sphi 0, %s47
    %s65 = sphi 0, %s65
    %s67 = sphi 0, %s65
    %s68 = sphi 0, %s67
    %s82 = sphi 0, %s68
    %s88 = sphi 0, %s90
    %s91 = sphi 0, %s88
    %s92 = sphi 0, %s91
    %s108 = sphi 0, %s92
    %s114 = sphi 0, %s116
    %s117 = sphi 0, %s114
    %s118 = sphi 0, %s117
    %s134 = sphi 0, %s118
  $region4: #{spnet_forward.20} parent=0 // loop_header_branch
    %13 = sbr.rel (%p11) target = $region8
  $region5: #{spnet_forward.20} parent=0 // loop_body
    %s15 = ssub.s32 %s10, 1
    %s16 = ssub.s32 %s10, 2
    %s17 = sadd.s32 %s10, 1
    %s18 = ssub.s32 %s10, %s17
    %p19 = scmp.eq.s32.totalorder %s18, 0
    %s21 = sadd.s32 %s20, 1
    %s22 = scalar_select %p19, %s20, %s21
    %p25 = pneg %p19
    %p26 = scmp.eq.s32.totalorder %s10, 1
    %p27 = por %p25, %p26
    %p28 = scmp.ne.s32.totalorder %s20, %s23
    %p29 = scmp.eq.s32.totalorder %s10, 0
    %p30 = por %p28, %p29
    %p31 = scmp.ne.s32.totalorder %s20, %s23
    %p32 = scmp.eq.s32.totalorder %s15, 1
    %p33 = por %p31, %p32
    %p34 = scmp.ne.s32.totalorder %s23, %s24
    %p35 = scmp.eq.s32.totalorder %s15, 0
    %p36 = por %p34, %p35
    %p37 = scmp.ne.s32.totalorder %s23, %s24
    %p38 = scmp.eq.s32.totalorder %s16, 1
    %p39 = por %p37, %p38
    %p41 = scmp.ne.s32.totalorder %s24, %s40
    %p42 = scmp.eq.s32.totalorder %s16, 0
    %p43 = por %p41, %p42
    %s45 = sadd.s32 %s44, 1
    %p48 = scmp.eq.s32.totalorder %s10, 1
    %p49 = scmp.ne.s32.totalorder %s44, %s46
    %p50 = scmp.eq.s32.totalorder %s10, 0
    %p51 = por %p49, %p50
    %p52 = scmp.ne.s32.totalorder %s44, %s46
    %p53 = scmp.eq.s32.totalorder %s15, 1
    %p54 = por %p52, %p53
    %p55 = scmp.ne.s32.totalorder %s46, %s47
    %p56 = scmp.eq.s32.totalorder %s15, 0
    %p57 = por %p55, %p56
    %p58 = scmp.ne.s32.totalorder %s46, %s47
    %p59 = scmp.eq.s32.totalorder %s16, 1
    %p60 = por %p58, %p59
    %p62 = scmp.ne.s32.totalorder %s47, %s61
    %p63 = scmp.eq.s32.totalorder %s16, 0
    %p64 = por %p62, %p63
    %s66 = sadd.s32 %s65, 1
    %p69 = scmp.eq.s32.totalorder %s10, 1
    %p70 = scmp.ne.s32.totalorder %s65, %s67
    %p71 = scmp.eq.s32.totalorder %s10, 0
    %p72 = por %p70, %p71
    %p73 = scmp.ne.s32.totalorder %s65, %s67
    %p74 = scmp.eq.s32.totalorder %s15, 1
    %p75 = por %p73, %p74
    %p76 = scmp.ne.s32.totalorder %s67, %s68
    %p77 = scmp.eq.s32.totalorder %s15, 0
    %p78 = por %p76, %p77
    %p79 = scmp.ne.s32.totalorder %s67, %s68
    %p80 = scmp.eq.s32.totalorder %s16, 1
    %p81 = por %p79, %p80
    %p83 = scmp.ne.s32.totalorder %s68, %s82
    %p84 = scmp.eq.s32.totalorder %s16, 0
    %p85 = por %p83, %p84
    %s86 = ssub.s32 %s10, %s17
    %p87 = scmp.eq.s32.totalorder %s86, 0
    %s89 = sadd.s32 %s88, 1
    %s90 = scalar_select %p87, %s88, %s89
    %p93 = pneg %p87
    %p94 = scmp.eq.s32.totalorder %s10, 1
    %p95 = por %p93, %p94
    %p96 = scmp.ne.s32.totalorder %s88, %s91
    %p97 = scmp.eq.s32.totalorder %s10, 0
    %p98 = por %p96, %p97
    %p99 = scmp.ne.s32.totalorder %s88, %s91
    %p100 = scmp.eq.s32.totalorder %s15, 1
    %p101 = por %p99, %p100
    %p102 = scmp.ne.s32.totalorder %s91, %s92
    %p103 = scmp.eq.s32.totalorder %s15, 0
    %p104 = por %p102, %p103
    %p105 = scmp.ne.s32.totalorder %s91, %s92
    %p106 = scmp.eq.s32.totalorder %s16, 1
    %p107 = por %p105, %p106
    %p109 = scmp.ne.s32.totalorder %s92, %s108
    %p110 = scmp.eq.s32.totalorder %s16, 0
    %p111 = por %p109, %p110
    %s112 = ssub.s32 %s10, %s17
    %p113 = scmp.eq.s32.totalorder %s112, 0
    %s115 = sadd.s32 %s114, 1
    %s116 = scalar_select %p113, %s114, %s115
    %p119 = pneg %p113
    %p120 = scmp.eq.s32.totalorder %s10, 1
    %p121 = por %p119, %p120
    %p122 = scmp.ne.s32.totalorder %s114, %s117
    %p123 = scmp.eq.s32.totalorder %s10, 0
    %p124 = por %p122, %p123
    %p125 = scmp.ne.s32.totalorder %s114, %s117
    %p126 = scmp.eq.s32.totalorder %s15, 1
    %p127 = por %p125, %p126
    %p128 = scmp.ne.s32.totalorder %s117, %s118
    %p129 = scmp.eq.s32.totalorder %s15, 0
    %p130 = por %p128, %p129
    %p131 = scmp.ne.s32.totalorder %s117, %s118
    %p132 = scmp.eq.s32.totalorder %s16, 1
    %p133 = por %p131, %p132
    %p135 = scmp.ne.s32.totalorder %s118, %s134
    %p136 = scmp.eq.s32.totalorder %s16, 0
    %p137 = por %p135, %p136
    %p138 = scmp.le.s32.totalorder 1, %s10
    %p139 = scmp.lt.s32.totalorder %s10, 3
    %p140 = pnand %p138, %p139
    %p141 = pneg %p140
    // Predicated region
    $region9: #{spnet_forward.20} parent=5 // pred_check
      _
    $region10: #{spnet_forward.20} parent=5 // pred_check_branch
      %143 = sbr.rel (%p140) target = $region12
    $region11: #{spnet_forward.20} parent=5 // pred_region
      %s144 = ssub.s32 %s10, 1
      // Predicated region
      $region13: #{spnet_forward.20} parent=11 // pred_check
        %p145 = pneg %p57
      $region14: #{spnet_forward.20} parent=11 // pred_check_branch
        %147 = sbr.rel (%p145) target = $region16
      $region15: #{spnet_forward.20} parent=11 // pred_region
        _
      $region16: #{spnet_forward.20} parent=11 // pred_fallthru
        _
      // Predicated region
      $region17: #{spnet_forward.20} parent=11 // pred_check
        %p148 = pneg %p78
      $region18: #{spnet_forward.20} parent=11 // pred_check_branch
        %150 = sbr.rel (%p148) target = $region20
      $region19: #{spnet_forward.20} parent=11 // pred_region
        _
      $region20: #{spnet_forward.20} parent=11 // pred_fallthru
        _
    $region12: #{spnet_forward.20} parent=5 // pred_fallthru
      _
    %p151 = scmp.lt.s32.totalorder %s10, 2
    // Predicated region
    $region21: #{spnet_forward.20} parent=5 // pred_check
      %p152 = pneg %p151
    $region22: #{spnet_forward.20} parent=5 // pred_check_branch
      %154 = sbr.rel (%p152) target = $region24
    $region23: #{spnet_forward.20} parent=5 // pred_region
      // Predicated region
      $region25: #{spnet_forward.20} parent=23 // pred_check
        %p155 = pneg %p30
      $region26: #{spnet_forward.20} parent=23 // pred_check_branch
        %157 = sbr.rel (%p155) target = $region28
      $region27: #{spnet_forward.20} parent=23 // pred_region
        %s158 = smul.u32 32, %s10
        %p159 = scmp.lt.s32.totalorder %s158, 63
        %s160 = scalar_select %p159, %s158, 63
        %s161 = smul.addr %s160, 4
        %s162 = scalar_lea.vmem %s0, %s161
        %s163 = smul.u32 32, %s10
      $region28: #{spnet_forward.20} parent=23 // pred_fallthru
        _
      // Predicated region
      $region29: #{spnet_forward.20} parent=23 // pred_check
        %p164 = pneg %p98
      $region30: #{spnet_forward.20} parent=23 // pred_check_branch
        %166 = sbr.rel (%p164) target = $region32
      $region31: #{spnet_forward.20} parent=23 // pred_region
        %s167 = smul.u32 32, %s10
        %p168 = scmp.lt.s32.totalorder %s167, 63
        %s169 = scalar_select %p168, %s167, 63
        %s170 = smul.addr %s169, 4
        %s171 = scalar_lea.vmem %s3, %s170
        %s172 = smul.u32 32, %s10
      $region32: #{spnet_forward.20} parent=23 // pred_fallthru
        _
    $region24: #{spnet_forward.20} parent=5 // pred_fallthru
      _
    %p173 = scmp.le.s32.totalorder 1, %s10
    %p174 = scmp.lt.s32.totalorder %s10, 3
    %p175 = pnand %p173, %p174
    %p176 = pneg %p175
    // Predicated region
    $region33: #{spnet_forward.20} parent=5 // pred_check
      _
    $region34: #{spnet_forward.20} parent=5 // pred_check_branch
      %178 = sbr.rel (%p175) target = $region36
    $region35: #{spnet_forward.20} parent=5 // pred_region
      %s179 = ssub.s32 %s10, 1
      %s180 = smul.u32 32, %s15
      %p181 = scmp.lt.s32.totalorder %s180, 63
      %s182 = scalar_select %p181, %s180, 63
      %s183 = smul.addr %s182, 4
      %s184 = scalar_lea.vmem %s0, %s183
      %p185 = pneg %p36
      %p186 = pneg %p33
      %p187 = pneg %p57
      %p188 = pneg %p54
      %p189 = pneg %p78
      %p190 = pneg %p75
      %s191 = smul.u32 32, %s15
      %p192 = scmp.lt.s32.totalorder %s191, 63
      %s193 = scalar_select %p192, %s191, 63
      %s194 = smul.addr %s193, 4
      %s195 = scalar_lea.vmem %s3, %s194
      %p196 = pneg %p104
      %p197 = pneg %p101
      %p198 = pneg %p130
      %p199 = pneg %p127
      %s200 = smul.u32 32, %s15
      %p201 = scmp.lt.s32.totalorder %s200, 63
      %s202 = scalar_select %p201, %s200, 63
      %s203 = smul.addr %s202, 4
      %s204 = scalar_lea.vmem %s4, %s203
      %s205 = smul.u32 32, %s15
      %p206 = scmp.lt.s32.totalorder %s205, 63
      %s207 = scalar_select %p206, %s205, 63
      %s208 = smul.addr %s207, 4
      %s209 = scalar_lea.vmem %s0, %s208
      %s210 = smul.u32 32, %s15
      %s211 = smul.u32 32, %s15
      %p212 = scmp.lt.s32.totalorder %s211, 63
      %s213 = scalar_select %p212, %s211, 63
      %s214 = smul.addr %s213, 4
      %s215 = scalar_lea.vmem %s3, %s214
      %s216 = smul.u32 32, %s15
      %s217 = smul.u32 32, %s15
      %p218 = scmp.lt.s32.totalorder %s217, 63
      %s219 = scalar_select %p218, %s217, 63
      %s220 = smul.addr %s219, 4
      %s221 = scalar_lea.vmem %s4, %s220
      %s222 = smul.u32 32, %s15
      %v224 = vld [vmem:[%s209] sm:$0xf]
      %v225 = vld [vmem:[%s209 + $0x4] sm:$0xf]
      %v226 = vld [vmem:[%s209 + $0x8] sm:$0xf]
      %v227 = vld [vmem:[%s209 + $0xc] sm:$0xf]
      %v228 = vld [vmem:[%s209 + $0x10] sm:$0xf]
      %v229 = vld [vmem:[%s209 + $0x14] sm:$0xf]
      %v230 = vld [vmem:[%s209 + $0x18] sm:$0xf]
      %v231 = vld [vmem:[%s209 + $0x1c] sm:$0xf]
      %v232 = vld [vmem:[%s209 + $0x20] sm:$0xf]
      %v233 = vld [vmem:[%s209 + $0x24] sm:$0xf]
      %v234 = vld [vmem:[%s209 + $0x28] sm:$0xf]
      %v235 = vld [vmem:[%s209 + $0x2c] sm:$0xf]
      %v236 = vld [vmem:[%s209 + $0x30] sm:$0xf]
      %v237 = vld [vmem:[%s209 + $0x34] sm:$0xf]
      %v238 = vld [vmem:[%s209 + $0x38] sm:$0xf]
      %v239 = vld [vmem:[%s209 + $0x3c] sm:$0xf]
      %v240 = vld [vmem:[%s209 + $0x40] sm:$0xf]
      %v241 = vld [vmem:[%s209 + $0x44] sm:$0xf]
      %v242 = vld [vmem:[%s209 + $0x48] sm:$0xf]
      %v243 = vld [vmem:[%s209 + $0x4c] sm:$0xf]
      %v244 = vld [vmem:[%s209 + $0x50] sm:$0xf]
      %v245 = vld [vmem:[%s209 + $0x54] sm:$0xf]
      %v246 = vld [vmem:[%s209 + $0x58] sm:$0xf]
      %v247 = vld [vmem:[%s209 + $0x5c] sm:$0xf]
      %v248 = vld [vmem:[%s209 + $0x60] sm:$0xf]
      %v249 = vld [vmem:[%s209 + $0x64] sm:$0xf]
      %v250 = vld [vmem:[%s209 + $0x68] sm:$0xf]
      %v251 = vld [vmem:[%s209 + $0x6c] sm:$0xf]
      %v252 = vld [vmem:[%s209 + $0x70] sm:$0xf]
      %v253 = vld [vmem:[%s209 + $0x74] sm:$0xf]
      %v254 = vld [vmem:[%s209 + $0x78] sm:$0xf]
      %v255 = vld [vmem:[%s209 + $0x7c] sm:$0xf]
      %v256 = vld [vmem:[%s1] sm:$0xf]
      %v257 = vld [vmem:[%s1 + $0x4] sm:$0xf]
      %v258 = vld [vmem:[%s1 + $0x8] sm:$0xf]
      %v259 = vld [vmem:[%s1 + $0xc] sm:$0xf]
      %v260 = vld [vmem:[%s2] sm:$0x1]
      %v262 = vlaneseq
      %v263 = vshrl.u32 %v262, 7
      %v264 = vsub.s32 0, %v263
      %v265 = vrot.slane %v260, %v264
      %v299 = vunpack.c.l.b16 %v224
      %v300 = vunpack.c.l.b16 %v225
      %v301 = vunpack.c.l.b16 %v226
      %v302 = vunpack.c.l.b16 %v227
      %v303 = vunpack.c.l.b16 %v228
      %v304 = vunpack.c.l.b16 %v229
      %v305 = vunpack.c.l.b16 %v230
      %v306 = vunpack.c.l.b16 %v231
      %v307 = vunpack.c.l.b16 %v232
      %v308 = vunpack.c.l.b16 %v233
      %v309 = vunpack.c.l.b16 %v234
      %v310 = vunpack.c.l.b16 %v235
      %v311 = vunpack.c.l.b16 %v236
      %v312 = vunpack.c.l.b16 %v237
      %v313 = vunpack.c.l.b16 %v238
      %v314 = vunpack.c.l.b16 %v239
      %v315 = vunpack.c.l.b16 %v240
      %v316 = vunpack.c.l.b16 %v241
      %v317 = vunpack.c.l.b16 %v242
      %v318 = vunpack.c.l.b16 %v243
      %v319 = vunpack.c.l.b16 %v244
      %v320 = vunpack.c.l.b16 %v245
      %v321 = vunpack.c.l.b16 %v246
      %v322 = vunpack.c.l.b16 %v247
      %v323 = vunpack.c.l.b16 %v248
      %v324 = vunpack.c.l.b16 %v249
      %v325 = vunpack.c.l.b16 %v250
      %v326 = vunpack.c.l.b16 %v251
      %v327 = vunpack.c.l.b16 %v252
      %v328 = vunpack.c.l.b16 %v253
      %v329 = vunpack.c.l.b16 %v254
      %v330 = vunpack.c.l.b16 %v255
      %v331 = vpack.c.b16 %v300, %v299
      %v332 = vpack.c.b16 %v302, %v301
      %v333 = vpack.c.b16 %v304, %v303
      %v334 = vpack.c.b16 %v306, %v305
      %v335 = vpack.c.b16 %v308, %v307
      %v336 = vpack.c.b16 %v310, %v309
      %v337 = vpack.c.b16 %v312, %v311
      %v338 = vpack.c.b16 %v314, %v313
      %v339 = vpack.c.b16 %v316, %v315
      %v340 = vpack.c.b16 %v318, %v317
      %v341 = vpack.c.b16 %v320, %v319
      %v342 = vpack.c.b16 %v322, %v321
      %v343 = vpack.c.b16 %v324, %v323
      %v344 = vpack.c.b16 %v326, %v325
      %v345 = vpack.c.b16 %v328, %v327
      %v346 = vpack.c.b16 %v330, %v329
      %v351 = vunpack.c.l.b16 %v256
      %v352 = vunpack.c.l.b16 %v257
      %v353 = vunpack.c.l.b16 %v258
      %v354 = vunpack.c.l.b16 %v259
      %v355 = vpack.c.b16 %v352, %v351
      %v356 = vpack.c.b16 %v354, %v353
      %vm359 = vcmask 261120
      %v361 = vsel %vm359, %v331, 0
      %v364 = vsel %vm359, %v332, 0
      %v367 = vsel %vm359, %v333, 0
      %v370 = vsel %vm359, %v334, 0
      %v373 = vsel %vm359, %v335, 0
      %v376 = vsel %vm359, %v336, 0
      %v379 = vsel %vm359, %v337, 0
      %v382 = vsel %vm359, %v338, 0
      %v385 = vsel %vm359, %v339, 0
      %v388 = vsel %vm359, %v340, 0
      %v391 = vsel %vm359, %v341, 0
      %v394 = vsel %vm359, %v342, 0
      %v397 = vsel %vm359, %v343, 0
      %v400 = vsel %vm359, %v344, 0
      %v403 = vsel %vm359, %v345, 0
      %v406 = vsel %vm359, %v346, 0
      %408 = vmatprep.subr.bf16.mxu0 0
      %409 = vmatpush1.bf16.msra.mxu0 %v355
      %410 = vmatprep.subr.bf16.mxu0 0
      %411 = vmatpush1.bf16.msra.mxu0 %v356
      %412 = vmatprep.subr.bf16.mxu0 0
      %413 = vmatpush1.bf16.msra.mxu0 0
      %414 = vmatprep.subr.bf16.mxu0 0
      %415 = vmatpush1.bf16.msra.mxu0 0
      %416 = vmatprep.subr.bf16.mxu0 0
      %417 = vmatpush1.bf16.msra.mxu0 0
      %418 = vmatprep.subr.bf16.mxu0 0
      %419 = vmatpush1.bf16.msra.mxu0 0
      %420 = vmatprep.subr.bf16.mxu0 0
      %421 = vmatpush1.bf16.msra.mxu0 0
      %422 = vmatprep.subr.bf16.mxu0 0
      %423 = vmatpush1.bf16.msra.mxu0 0
      %424 = vmatprep.subr.bf16.mxu0 0
      %425 = vmatpush1.bf16.msra.mxu0 0
      %426 = vmatprep.subr.bf16.mxu0 0
      %427 = vmatpush1.bf16.msra.mxu0 0
      %428 = vmatprep.subr.bf16.mxu0 0
      %429 = vmatpush1.bf16.msra.mxu0 0
      %430 = vmatprep.subr.bf16.mxu0 0
      %431 = vmatpush1.bf16.msra.mxu0 0
      %432 = vmatprep.subr.bf16.mxu0 0
      %433 = vmatpush1.bf16.msra.mxu0 0
      %434 = vmatprep.subr.bf16.mxu0 0
      %435 = vmatpush1.bf16.msra.mxu0 0
      %436 = vmatprep.subr.bf16.mxu0 0
      %437 = vmatpush1.bf16.msra.mxu0 0
      %438 = vmatprep.subr.bf16.mxu0 0
      %439 = vmatpush1.bf16.msra.mxu0 0
      %440 = vmatprep.mubr.bf16.mxu0 0
      %441 = vmatmul.mubr.bf16.gmra.mrb[0].mxu0 %v361
      %v442 = vpop.f32.mrb[0].mxu0
      %v443 = vadd.f32 %v265, %v442
      %v444 = vpop.f32.mrb[0].mxu0
      %v445 = vpop.f32.mrb[0].mxu0
      %v446 = vadd.f32 %v265, %v445
      %v447 = vpop.f32.mrb[0].mxu0
      %448 = vmatprep.mubr.bf16.mxu0 0
      %449 = vmatmul.mubr.bf16.gmra.mrb[0].mxu0 %v364
      %v450 = vpop.f32.mrb[0].mxu0
      %v451 = vadd.f32 %v265, %v450
      %v452 = vpop.f32.mrb[0].mxu0
      %v453 = vpop.f32.mrb[0].mxu0
      %v454 = vadd.f32 %v265, %v453
      %v455 = vpop.f32.mrb[0].mxu0
      %456 = vmatprep.mubr.bf16.mxu0 0
      %457 = vmatmul.mubr.bf16.gmra.mrb[0].mxu0 %v367
      %v458 = vpop.f32.mrb[0].mxu0
      %v459 = vadd.f32 %v265, %v458
      %v460 = vpop.f32.mrb[0].mxu0
      %v461 = vpop.f32.mrb[0].mxu0
      %v462 = vadd.f32 %v265, %v461
      %v463 = vpop.f32.mrb[0].mxu0
      %464 = vmatprep.mubr.bf16.mxu0 0
      %465 = vmatmul.mubr.bf16.gmra.mrb[0].mxu0 %v370
      %v466 = vpop.f32.mrb[0].mxu0
      %v467 = vadd.f32 %v265, %v466
      %v468 = vpop.f32.mrb[0].mxu0
      %v469 = vpop.f32.mrb[0].mxu0
      %v470 = vadd.f32 %v265, %v469
      %v471 = vpop.f32.mrb[0].mxu0
      %472 = vmatprep.mubr.bf16.mxu0 0
      %473 = vmatmul.mubr.bf16.gmra.mrb[0].mxu0 %v373
      %v474 = vpop.f32.mrb[0].mxu0
      %v475 = vadd.f32 %v265, %v474
      %v476 = vpop.f32.mrb[0].mxu0
      %v477 = vpop.f32.mrb[0].mxu0
      %v478 = vadd.f32 %v265, %v477
      %v479 = vpop.f32.mrb[0].mxu0
      %480 = vmatprep.mubr.bf16.mxu0 0
      %481 = vmatmul.mubr.bf16.gmra.mrb[0].mxu0 %v376
      %v482 = vpop.f32.mrb[0].mxu0
      %v483 = vadd.f32 %v265, %v482
      %v484 = vpop.f32.mrb[0].mxu0
      %v485 = vpop.f32.mrb[0].mxu0
      %v486 = vadd.f32 %v265, %v485
      %v487 = vpop.f32.mrb[0].mxu0
      %488 = vmatprep.mubr.bf16.mxu0 0
      %489 = vmatmul.mubr.bf16.gmra.mrb[0].mxu0 %v379
      %v490 = vpop.f32.mrb[0].mxu0
      %v491 = vadd.f32 %v265, %v490
      %v492 = vpop.f32.mrb[0].mxu0
      %v493 = vpop.f32.mrb[0].mxu0
      %v494 = vadd.f32 %v265, %v493
      %v495 = vpop.f32.mrb[0].mxu0
      %496 = vmatprep.mubr.bf16.mxu0 0
      %497 = vmatmul.mubr.bf16.gmra.mrb[0].mxu0 %v382
      %v498 = vpop.f32.mrb[0].mxu0
      %v499 = vadd.f32 %v265, %v498
      %v500 = vpop.f32.mrb[0].mxu0
      %v501 = vpop.f32.mrb[0].mxu0
      %v502 = vadd.f32 %v265, %v501
      %v503 = vpop.f32.mrb[0].mxu0
      %504 = vmatprep.mubr.bf16.mxu0 0
      %505 = vmatmul.mubr.bf16.gmra.mrb[0].mxu0 %v385
      %v506 = vpop.f32.mrb[0].mxu0
      %v507 = vadd.f32 %v265, %v506
      %v508 = vpop.f32.mrb[0].mxu0
      %v509 = vpop.f32.mrb[0].mxu0
      %v510 = vadd.f32 %v265, %v509
      %v511 = vpop.f32.mrb[0].mxu0
      %512 = vmatprep.mubr.bf16.mxu0 0
      %513 = vmatmul.mubr.bf16.gmra.mrb[0].mxu0 %v388
      %v514 = vpop.f32.mrb[0].mxu0
      %v515 = vadd.f32 %v265, %v514
      %v516 = vpop.f32.mrb[0].mxu0
      %v517 = vpop.f32.mrb[0].mxu0
      %v518 = vadd.f32 %v265, %v517
      %v519 = vpop.f32.mrb[0].mxu0
      %520 = vmatprep.mubr.bf16.mxu0 0
      %521 = vmatmul.mubr.bf16.gmra.mrb[0].mxu0 %v391
      %v522 = vpop.f32.mrb[0].mxu0
      %v523 = vadd.f32 %v265, %v522
      %v524 = vpop.f32.mrb[0].mxu0
      %v525 = vpop.f32.mrb[0].mxu0
      %v526 = vadd.f32 %v265, %v525
      %v527 = vpop.f32.mrb[0].mxu0
      %528 = vmatprep.mubr.bf16.mxu0 0
      %529 = vmatmul.mubr.bf16.gmra.mrb[0].mxu0 %v394
      %v530 = vpop.f32.mrb[0].mxu0
      %v531 = vadd.f32 %v265, %v530
      %v532 = vpop.f32.mrb[0].mxu0
      %v533 = vpop.f32.mrb[0].mxu0
      %v534 = vadd.f32 %v265, %v533
      %v535 = vpop.f32.mrb[0].mxu0
      %536 = vmatprep.mubr.bf16.mxu0 0
      %537 = vmatmul.mubr.bf16.gmra.mrb[0].mxu0 %v397
      %v538 = vpop.f32.mrb[0].mxu0
      %v539 = vadd.f32 %v265, %v538
      %v540 = vpop.f32.mrb[0].mxu0
      %v541 = vpop.f32.mrb[0].mxu0
      %v542 = vadd.f32 %v265, %v541
      %v543 = vpop.f32.mrb[0].mxu0
      %544 = vmatprep.mubr.bf16.mxu0 0
      %545 = vmatmul.mubr.bf16.gmra.mrb[0].mxu0 %v400
      %v546 = vpop.f32.mrb[0].mxu0
      %v547 = vadd.f32 %v265, %v546
      %v548 = vpop.f32.mrb[0].mxu0
      %v549 = vpop.f32.mrb[0].mxu0
      %v550 = vadd.f32 %v265, %v549
      %v551 = vpop.f32.mrb[0].mxu0
      %552 = vmatprep.mubr.bf16.mxu0 0
      %553 = vmatmul.mubr.bf16.gmra.mrb[0].mxu0 %v403
      %v554 = vpop.f32.mrb[0].mxu0
      %v555 = vadd.f32 %v265, %v554
      %v556 = vpop.f32.mrb[0].mxu0
      %v557 = vpop.f32.mrb[0].mxu0
      %v558 = vadd.f32 %v265, %v557
      %v559 = vpop.f32.mrb[0].mxu0
      %560 = vmatprep.mubr.bf16.mxu0 0
      %561 = vmatmul.mubr.bf16.gmra.mrb[0].mxu0 %v406
      %v562 = vpop.f32.mrb[0].mxu0
      %v563 = vadd.f32 %v265, %v562
      %v564 = vpop.f32.mrb[0].mxu0
      %v565 = vpop.f32.mrb[0].mxu0
      %v566 = vadd.f32 %v265, %v565
      %v567 = vpop.f32.mrb[0].mxu0
      %568 = vdwg.mxu0
      %v569 = vld [vmem:[%s215] sm:$0xf]
      %v570 = vld [vmem:[%s215 + $0x4] sm:$0xf]
      %v571 = vld [vmem:[%s215 + $0x8] sm:$0xf]
      %v572 = vld [vmem:[%s215 + $0xc] sm:$0xf]
      %v573 = vld [vmem:[%s215 + $0x10] sm:$0xf]
      %v574 = vld [vmem:[%s215 + $0x14] sm:$0xf]
      %v575 = vld [vmem:[%s215 + $0x18] sm:$0xf]
      %v576 = vld [vmem:[%s215 + $0x1c] sm:$0xf]
      %v577 = vld [vmem:[%s215 + $0x20] sm:$0xf]
      %v578 = vld [vmem:[%s215 + $0x24] sm:$0xf]
      %v579 = vld [vmem:[%s215 + $0x28] sm:$0xf]
      %v580 = vld [vmem:[%s215 + $0x2c] sm:$0xf]
      %v581 = vld [vmem:[%s215 + $0x30] sm:$0xf]
      %v582 = vld [vmem:[%s215 + $0x34] sm:$0xf]
      %v583 = vld [vmem:[%s215 + $0x38] sm:$0xf]
      %v584 = vld [vmem:[%s215 + $0x3c] sm:$0xf]
      %v585 = vld [vmem:[%s215 + $0x40] sm:$0xf]
      %v586 = vld [vmem:[%s215 + $0x44] sm:$0xf]
      %v587 = vld [vmem:[%s215 + $0x48] sm:$0xf]
      %v588 = vld [vmem:[%s215 + $0x4c] sm:$0xf]
      %v589 = vld [vmem:[%s215 + $0x50] sm:$0xf]
      %v590 = vld [vmem:[%s215 + $0x54] sm:$0xf]
      %v591 = vld [vmem:[%s215 + $0x58] sm:$0xf]
      %v592 = vld [vmem:[%s215 + $0x5c] sm:$0xf]
      %v593 = vld [vmem:[%s215 + $0x60] sm:$0xf]
      %v594 = vld [vmem:[%s215 + $0x64] sm:$0xf]
      %v595 = vld [vmem:[%s215 + $0x68] sm:$0xf]
      %v596 = vld [vmem:[%s215 + $0x6c] sm:$0xf]
      %v597 = vld [vmem:[%s215 + $0x70] sm:$0xf]
      %v598 = vld [vmem:[%s215 + $0x74] sm:$0xf]
      %v599 = vld [vmem:[%s215 + $0x78] sm:$0xf]
      %v600 = vld [vmem:[%s215 + $0x7c] sm:$0xf]
      %v601 = vunpack.c.l.bf16 %v569
      %v602 = vunpack.c.l.bf16 %v570
      %v603 = vunpack.c.l.bf16 %v571
      %v604 = vunpack.c.l.bf16 %v572
      %v605 = vunpack.c.l.bf16 %v573
      %v606 = vunpack.c.l.bf16 %v574
      %v607 = vunpack.c.l.bf16 %v575
      %v608 = vunpack.c.l.bf16 %v576
      %v609 = vunpack.c.l.bf16 %v577
      %v610 = vunpack.c.l.bf16 %v578
      %v611 = vunpack.c.l.bf16 %v579
      %v612 = vunpack.c.l.bf16 %v580
      %v613 = vunpack.c.l.bf16 %v581
      %v614 = vunpack.c.l.bf16 %v582
      %v615 = vunpack.c.l.bf16 %v583
      %v616 = vunpack.c.l.bf16 %v584
      %v617 = vunpack.c.l.bf16 %v585
      %v618 = vunpack.c.l.bf16 %v586
      %v619 = vunpack.c.l.bf16 %v587
      %v620 = vunpack.c.l.bf16 %v588
      %v621 = vunpack.c.l.bf16 %v589
      %v622 = vunpack.c.l.bf16 %v590
      %v623 = vunpack.c.l.bf16 %v591
      %v624 = vunpack.c.l.bf16 %v592
      %v625 = vunpack.c.l.bf16 %v593
      %v626 = vunpack.c.l.bf16 %v594
      %v627 = vunpack.c.l.bf16 %v595
      %v628 = vunpack.c.l.bf16 %v596
      %v629 = vunpack.c.l.bf16 %v597
      %v630 = vunpack.c.l.bf16 %v598
      %v631 = vunpack.c.l.bf16 %v599
      %v632 = vunpack.c.l.bf16 %v600
      %v633 = vadd.f32 %v443, %v601
      %v634 = vadd.f32 %v446, %v602
      %v635 = vadd.f32 %v451, %v603
      %v636 = vadd.f32 %v454, %v604
      %v637 = vadd.f32 %v459, %v605
      %v638 = vadd.f32 %v462, %v606
      %v639 = vadd.f32 %v467, %v607
      %v640 = vadd.f32 %v470, %v608
      %v641 = vadd.f32 %v475, %v609
      %v642 = vadd.f32 %v478, %v610
      %v643 = vadd.f32 %v483, %v611
      %v644 = vadd.f32 %v486, %v612
      %v645 = vadd.f32 %v491, %v613
      %v646 = vadd.f32 %v494, %v614
      %v647 = vadd.f32 %v499, %v615
      %v648 = vadd.f32 %v502, %v616
      %v649 = vadd.f32 %v507, %v617
      %v650 = vadd.f32 %v510, %v618
      %v651 = vadd.f32 %v515, %v619
      %v652 = vadd.f32 %v518, %v620
      %v653 = vadd.f32 %v523, %v621
      %v654 = vadd.f32 %v526, %v622
      %v655 = vadd.f32 %v531, %v623
      %v656 = vadd.f32 %v534, %v624
      %v657 = vadd.f32 %v539, %v625
      %v658 = vadd.f32 %v542, %v626
      %v659 = vadd.f32 %v547, %v627
      %v660 = vadd.f32 %v550, %v628
      %v661 = vadd.f32 %v555, %v629
      %v662 = vadd.f32 %v558, %v630
      %v663 = vadd.f32 %v563, %v631
      %v664 = vadd.f32 %v566, %v632
      %v665 = vmax.f32 %v633, 0.0
      %v666 = vmax.f32 %v634, 0.0
      %v667 = vmax.f32 %v635, 0.0
      %v668 = vmax.f32 %v636, 0.0
      %v669 = vmax.f32 %v637, 0.0
      %v670 = vmax.f32 %v638, 0.0
      %v671 = vmax.f32 %v639, 0.0
      %v672 = vmax.f32 %v640, 0.0
      %v673 = vmax.f32 %v641, 0.0
      %v674 = vmax.f32 %v642, 0.0
      %v675 = vmax.f32 %v643, 0.0
      %v676 = vmax.f32 %v644, 0.0
      %v677 = vmax.f32 %v645, 0.0
      %v678 = vmax.f32 %v646, 0.0
      %v679 = vmax.f32 %v647, 0.0
      %v680 = vmax.f32 %v648, 0.0
      %v681 = vmax.f32 %v649, 0.0
      %v682 = vmax.f32 %v650, 0.0
      %v683 = vmax.f32 %v651, 0.0
      %v684 = vmax.f32 %v652, 0.0
      %v685 = vmax.f32 %v653, 0.0
      %v686 = vmax.f32 %v654, 0.0
      %v687 = vmax.f32 %v655, 0.0
      %v688 = vmax.f32 %v656, 0.0
      %v689 = vmax.f32 %v657, 0.0
      %v690 = vmax.f32 %v658, 0.0
      %v691 = vmax.f32 %v659, 0.0
      %v692 = vmax.f32 %v660, 0.0
      %v693 = vmax.f32 %v661, 0.0
      %v694 = vmax.f32 %v662, 0.0
      %v695 = vmax.f32 %v663, 0.0
      %v696 = vmax.f32 %v664, 0.0
      %v697 = vpack.c.bf16 %v666, %v665
      %v698 = vpack.c.bf16 %v668, %v667
      %v699 = vpack.c.bf16 %v670, %v669
      %v700 = vpack.c.bf16 %v672, %v671
      %v701 = vpack.c.bf16 %v674, %v673
      %v702 = vpack.c.bf16 %v676, %v675
      %v703 = vpack.c.bf16 %v678, %v677
      %v704 = vpack.c.bf16 %v680, %v679
      %v705 = vpack.c.bf16 %v682, %v681
      %v706 = vpack.c.bf16 %v684, %v683
      %v707 = vpack.c.bf16 %v686, %v685
      %v708 = vpack.c.bf16 %v688, %v687
      %v709 = vpack.c.bf16 %v690, %v689
      %v710 = vpack.c.bf16 %v692, %v691
      %v711 = vpack.c.bf16 %v694, %v693
      %v712 = vpack.c.bf16 %v696, %v695
      %v729 = vunpack.c.l.b16 %v697
      %v730 = vunpack.c.h.b16 %v697
      %v731 = vunpack.c.l.b16 %v698
      %v732 = vunpack.c.h.b16 %v698
      %v733 = vunpack.c.l.b16 %v699
      %v734 = vunpack.c.h.b16 %v699
      %v735 = vunpack.c.l.b16 %v700
      %v736 = vunpack.c.h.b16 %v700
      %v737 = vunpack.c.l.b16 %v701
      %v738 = vunpack.c.h.b16 %v701
      %v739 = vunpack.c.l.b16 %v702
      %v740 = vunpack.c.h.b16 %v702
      %v741 = vunpack.c.l.b16 %v703
      %v742 = vunpack.c.h.b16 %v703
      %v743 = vunpack.c.l.b16 %v704
      %v744 = vunpack.c.h.b16 %v704
      %v745 = vunpack.c.l.b16 %v705
      %v746 = vunpack.c.h.b16 %v705
      %v747 = vunpack.c.l.b16 %v706
      %v748 = vunpack.c.h.b16 %v706
      %v749 = vunpack.c.l.b16 %v707
      %v750 = vunpack.c.h.b16 %v707
      %v751 = vunpack.c.l.b16 %v708
      %v752 = vunpack.c.h.b16 %v708
      %v753 = vunpack.c.l.b16 %v709
      %v754 = vunpack.c.h.b16 %v709
      %v755 = vunpack.c.l.b16 %v710
      %v756 = vunpack.c.h.b16 %v710
      %v757 = vunpack.c.l.b16 %v711
      %v758 = vunpack.c.h.b16 %v711
      %v759 = vunpack.c.l.b16 %v712
      %v760 = vunpack.c.h.b16 %v712
      %v761 = vpack.c.b16 %v729, %v729
      %v762 = vpack.c.b16 %v730, %v730
      %v763 = vpack.c.b16 %v731, %v731
      %v764 = vpack.c.b16 %v732, %v732
      %v765 = vpack.c.b16 %v733, %v733
      %v766 = vpack.c.b16 %v734, %v734
      %v767 = vpack.c.b16 %v735, %v735
      %v768 = vpack.c.b16 %v736, %v736
      %v769 = vpack.c.b16 %v737, %v737
      %v770 = vpack.c.b16 %v738, %v738
      %v771 = vpack.c.b16 %v739, %v739
      %v772 = vpack.c.b16 %v740, %v740
      %v773 = vpack.c.b16 %v741, %v741
      %v774 = vpack.c.b16 %v742, %v742
      %v775 = vpack.c.b16 %v743, %v743
      %v776 = vpack.c.b16 %v744, %v744
      %v777 = vpack.c.b16 %v745, %v745
      %v778 = vpack.c.b16 %v746, %v746
      %v779 = vpack.c.b16 %v747, %v747
      %v780 = vpack.c.b16 %v748, %v748
      %v781 = vpack.c.b16 %v749, %v749
      %v782 = vpack.c.b16 %v750, %v750
      %v783 = vpack.c.b16 %v751, %v751
      %v784 = vpack.c.b16 %v752, %v752
      %v785 = vpack.c.b16 %v753, %v753
      %v786 = vpack.c.b16 %v754, %v754
      %v787 = vpack.c.b16 %v755, %v755
      %v788 = vpack.c.b16 %v756, %v756
      %v789 = vpack.c.b16 %v757, %v757
      %v790 = vpack.c.b16 %v758, %v758
      %v791 = vpack.c.b16 %v759, %v759
      %v792 = vpack.c.b16 %v760, %v760
      %825 = vst [vmem:[%s221] sm:$0xf] %v761
      %826 = vst [vmem:[%s221 + $0x4] sm:$0xf] %v762
      %827 = vst [vmem:[%s221 + $0x8] sm:$0xf] %v763
      %828 = vst [vmem:[%s221 + $0xc] sm:$0xf] %v764
      %829 = vst [vmem:[%s221 + $0x10] sm:$0xf] %v765
      %830 = vst [vmem:[%s221 + $0x14] sm:$0xf] %v766
      %831 = vst [vmem:[%s221 + $0x18] sm:$0xf] %v767
      %832 = vst [vmem:[%s221 + $0x1c] sm:$0xf] %v768
      %833 = vst [vmem:[%s221 + $0x20] sm:$0xf] %v769
      %834 = vst [vmem:[%s221 + $0x24] sm:$0xf] %v770
      %835 = vst [vmem:[%s221 + $0x28] sm:$0xf] %v771
      %836 = vst [vmem:[%s221 + $0x2c] sm:$0xf] %v772
      %837 = vst [vmem:[%s221 + $0x30] sm:$0xf] %v773
      %838 = vst [vmem:[%s221 + $0x34] sm:$0xf] %v774
      %839 = vst [vmem:[%s221 + $0x38] sm:$0xf] %v775
      %840 = vst [vmem:[%s221 + $0x3c] sm:$0xf] %v776
      %841 = vst [vmem:[%s221 + $0x40] sm:$0xf] %v777
      %842 = vst [vmem:[%s221 + $0x44] sm:$0xf] %v778
      %843 = vst [vmem:[%s221 + $0x48] sm:$0xf] %v779
      %844 = vst [vmem:[%s221 + $0x4c] sm:$0xf] %v780
      %845 = vst [vmem:[%s221 + $0x50] sm:$0xf] %v781
      %846 = vst [vmem:[%s221 + $0x54] sm:$0xf] %v782
      %847 = vst [vmem:[%s221 + $0x58] sm:$0xf] %v783
      %848 = vst [vmem:[%s221 + $0x5c] sm:$0xf] %v784
      %849 = vst [vmem:[%s221 + $0x60] sm:$0xf] %v785
      %850 = vst [vmem:[%s221 + $0x64] sm:$0xf] %v786
      %851 = vst [vmem:[%s221 + $0x68] sm:$0xf] %v787
      %852 = vst [vmem:[%s221 + $0x6c] sm:$0xf] %v788
      %853 = vst [vmem:[%s221 + $0x70] sm:$0xf] %v789
      %854 = vst [vmem:[%s221 + $0x74] sm:$0xf] %v790
      %855 = vst [vmem:[%s221 + $0x78] sm:$0xf] %v791
      %856 = vst [vmem:[%s221 + $0x7c] sm:$0xf] %v792
      %s857 = smul.u32 32, %s15
      %p858 = scmp.lt.s32.totalorder %s857, 63
      %s859 = scalar_select %p858, %s857, 63
      %s860 = smul.addr %s859, 4
      %s861 = scalar_lea.vmem %s4, %s860
      // Predicated region
      $region37: #{spnet_forward.20} parent=35 // pred_check
        %p862 = pneg %p127
      $region38: #{spnet_forward.20} parent=35 // pred_check_branch
        %864 = sbr.rel (%p862) target = $region40
      $region39: #{spnet_forward.20} parent=35 // pred_region
        %s865 = smul.u32 32, %s15
      $region40: #{spnet_forward.20} parent=35 // pred_fallthru
        _
    $region36: #{spnet_forward.20} parent=5 // pred_fallthru
      _
    %p866 = scmp.le.s32.totalorder 2, %s10
    // Predicated region
    $region41: #{spnet_forward.20} parent=5 // pred_check
      %p867 = pneg %p866
    $region42: #{spnet_forward.20} parent=5 // pred_check_branch
      %869 = sbr.rel (%p867) target = $region44
    $region43: #{spnet_forward.20} parent=5 // pred_region
      %s870 = ssub.s32 %s10, 2
      // Predicated region
      $region45: #{spnet_forward.20} parent=43 // pred_check
        %p871 = pneg %p133
      $region46: #{spnet_forward.20} parent=43 // pred_check_branch
        %873 = sbr.rel (%p871) target = $region48
      $region47: #{spnet_forward.20} parent=43 // pred_region
        %s874 = smul.u32 32, %s16
        %p875 = scmp.lt.s32.totalorder %s874, 63
        %s876 = scalar_select %p875, %s874, 63
        %s877 = smul.addr %s876, 4
        %s878 = scalar_lea.vmem %s4, %s877
      $region48: #{spnet_forward.20} parent=43 // pred_fallthru
        _
    $region44: #{spnet_forward.20} parent=5 // pred_fallthru
      _
  $region6: #{spnet_forward.20} parent=0 // loop_footer
    %s14 = sadd.s32 1, %s10
  $region7: #{spnet_forward.20} parent=0 // loop_footer_branch
    %9 = sbr.rel target = $region3
  $region8: #{spnet_forward.20} parent=0 // loop_exit
    _

</llo_original>
